<compile_context>
chip_gen: v6e
topology: v6e:2x2x1
jax: 0.10.0
libtpu: 0.0.40
codegen_flags: <defaults>
</compile_context>

<pallas_src>
import jax
import jax.numpy as jnp
from jax.experimental import pallas as pl
from jax.experimental.pallas import tpu as pltpu

# Problem sizes (small, consistent with the module).
N = 2          # batch
CIN = 4        # in_ch
COUT = 4       # out_ch (must equal in_ch for the elementwise x*attn product)
CMID = 32      # hidden channels of conv1
GROUPS = 4     # GroupNorm groups
CPG = CMID // GROUPS
H = 16
W = 16
HW = H * W
EPS = 1e-5

PATCH_ROWS = 9 * CIN + 1          # 36 conv taps + ones-row (folds conv1 bias)
PAD_L = 128                       # lane offset of attn inside the scratch
SCR_LANES = PAD_L + HW + PAD_L    # 512 lanes; shifted reads stay in-bounds

_HI = jax.lax.Precision.HIGHEST


def _sum_all(v):
    """Full sum of a 2-D value, kept as a (1, 1) array (broadcast-friendly)."""
    return jnp.sum(jnp.sum(v, axis=1, keepdims=True), axis=0, keepdims=True)


def cofusion_kernel(p_ref, x_ref, mask_ref, w1_ref, gb_ref, w3_ref, b3_ref,
                    o_ref, scr_ref):
    """One image per grid step (channels on sublanes, pixels on lanes).

    p_ref    : (37, 256)   conv1 im2col patches (+ ones row)
    x_ref    : (4, 256)    original input, channels x pixels
    mask_ref : (9, 256)    3x3-tap validity masks (zero-padding borders)
    w1_ref   : (32, 37)    conv1 weights (+ bias column)
    gb_ref   : (32, 2)     [gamma, beta] columns of the GroupNorm affine
    w3_ref   : (9, 4, 32)  conv3 weights per tap
    b3_ref   : (4, 1)      conv3 bias
    o_ref    : (1, 256)    fused output row (lane-dense)
    scr_ref  : (32, 512)   lane-padded scratch holding tanh(GN(conv1(x)))
                           at lanes [PAD_L, PAD_L + 256)
    """
    # ---- conv1 + bias: a single (32,37)@(37,256) MXU matmul ----
    hidden = jnp.dot(w1_ref[...], p_ref[...],
                     preferred_element_type=jnp.float32,
                     precision=_HI)                            # (32, 256)

    # Zero the scratch: pad lanes are read by the shifted conv3 windows and
    # must be finite (they are masked after the dot; NaN*0 would poison it).
    scr_ref[...] = jnp.zeros_like(scr_ref)

    # ---- GroupNorm(4, 32) + tanh: per 8-channel (sublane-aligned) group,
    #      plain f32 reductions + scalar broadcasts (no selector matmuls) ----
    gamma = gb_ref[:, 0:1]                                     # (32, 1)
    beta = gb_ref[:, 1:2]                                      # (32, 1)
    cnt = float(CPG * HW)
    for g in range(GROUPS):
        lo, hi = g * CPG, (g + 1) * CPG
        hg = hidden[lo:hi, :]                                  # (8, 256)
        mu = _sum_all(hg) / cnt                                # (1, 1)
        var = _sum_all(hg * hg) / cnt - mu * mu                # biased (torch)
        inv = jax.lax.rsqrt(var + EPS)                         # (1, 1)
        scale = inv * gamma[lo:hi, :]                          # (8, 1)
        shift = beta[lo:hi, :] - mu * scale                    # (8, 1)
        scr_ref[lo:hi, PAD_L:PAD_L + HW] = jnp.tanh(hg * scale + shift)

    # ---- conv3: nine static shifted-window reads of the padded scratch,
    #      nine accumulating (4,32)@(32,256) dots, mask applied post-dot ----
    logits = jnp.zeros((COUT, HW), jnp.float32)
    for k in range(9):
        kh, kw = k // 3, k % 3
        off = (kh - 1) * W + (kw - 1)
        start = PAD_L + off
        view = scr_ref[:, start:start + HW]                    # (32, 256)
        contrib = jnp.dot(w3_ref[k], view,
                          preferred_element_type=jnp.float32,
                          precision=_HI)                       # (4, 256)
        logits = logits + contrib * mask_ref[k:k + 1, :]
    logits = logits + b3_ref[...]                              # (4,256)+(4,1)

    # ---- softmax over the 4-channel sublane axis ----
    m = jnp.max(logits, axis=0, keepdims=True)                 # (1, 256)
    e = jnp.exp(logits - m)
    s = jnp.sum(e, axis=0, keepdims=True)                      # (1, 256)
    attn = e / s                                               # (4, 256)

    # ---- fuse: (x * attn).sum(channels) -> lane-dense (1, 256) store ----
    o_ref[...] = jnp.sum(x_ref[...] * attn, axis=0, keepdims=True)


@jax.jit
def cofusion_forward(x_nchw, w1, b1, gamma, beta, w3, b3):
    """x_nchw: (N, CIN, H, W). Returns (N, 1, H, W), matching PyTorch."""
    n = x_nchw.shape[0]
    x = x_nchw.astype(jnp.float32)
    xt = x.reshape(n, CIN, HW)                                 # (N, 4, 256)

    # conv1 im2col in the flipped layout: rows are (tap, ci), pixels on lanes;
    # a trailing ones-row folds the conv1 bias into the matmul.
    xpad = jnp.pad(x, ((0, 0), (0, 0), (1, 1), (1, 1)))
    taps = [xpad[:, :, kh:kh + H, kw:kw + W].reshape(n, CIN, HW)
            for kh in range(3) for kw in range(3)]
    taps.append(jnp.ones((n, 1, HW), jnp.float32))
    patches = jnp.concatenate(taps, axis=1)                    # (N, 37, 256)

    # conv3 tap validity masks: mask[k, p] = 1 iff the k-th 3x3 neighbour of
    # pixel p lies inside the image (zero-padding border handling).
    hh = jnp.arange(H)
    ww = jnp.arange(W)
    rows = []
    for kh in range(3):
        for kw in range(3):
            mh = ((hh + kh - 1 >= 0) & (hh + kh - 1 < H)).astype(jnp.float32)
            mw = ((ww + kw - 1 >= 0) & (ww + kw - 1 < W)).astype(jnp.float32)
            rows.append(jnp.outer(mh, mw).reshape(HW))
    mask = jnp.stack(rows, axis=0)                             # (9, 256)

    # Repack PyTorch-layout weights (O, I, kh, kw) into flipped matmul layouts.
    w1k = jnp.concatenate(
        [jnp.transpose(w1, (0, 2, 3, 1)).reshape(CMID, 9 * CIN),
         b1.reshape(CMID, 1)], axis=1)                         # (32, 37)
    gb = jnp.stack([gamma, beta], axis=1)                      # (32, 2)
    w3k = jnp.transpose(w3, (2, 3, 0, 1)).reshape(9, COUT, CMID)
    b3c = b3.reshape(COUT, 1)

    out = pl.pallas_call(
        cofusion_kernel,
        out_shape=jax.ShapeDtypeStruct((n, 1, HW), jnp.float32),
        grid_spec=pltpu.PrefetchScalarGridSpec(
            num_scalar_prefetch=0,
            grid=(n,),
            in_specs=[
                pl.BlockSpec((None, PATCH_ROWS, HW), lambda i: (i, 0, 0)),
                pl.BlockSpec((None, CIN, HW), lambda i: (i, 0, 0)),
                pl.BlockSpec((9, HW), lambda i: (0, 0)),
                pl.BlockSpec((CMID, PATCH_ROWS), lambda i: (0, 0)),
                pl.BlockSpec((CMID, 2), lambda i: (0, 0)),
                pl.BlockSpec((9, COUT, CMID), lambda i: (0, 0, 0)),
                pl.BlockSpec((COUT, 1), lambda i: (0, 0)),
            ],
            out_specs=pl.BlockSpec((None, 1, HW), lambda i: (i, 0, 0)),
            scratch_shapes=[pltpu.VMEM((CMID, SCR_LANES), jnp.float32)],
        ),
        compiler_params=pltpu.CompilerParams(
            dimension_semantics=("parallel",)),
    )(patches, xt, mask, w1k, gb, w3k, b3c)

    return out.reshape(n, 1, H, W)


def reference_forward(x, w1, b1, gamma, beta, w3, b3):
    """Pure-JAX NCHW reference mirroring the PyTorch module."""
    dn = ("NCHW", "OIHW", "NCHW")
    y = jax.lax.conv_general_dilated(x, w1, (1, 1), "SAME",
                                     dimension_numbers=dn, precision=_HI)
    y = y + b1[None, :, None, None]
    n, c, h, w = y.shape
    gg = y.reshape(n, GROUPS, c // GROUPS, h, w)
    mu = jnp.mean(gg, axis=(2, 3, 4), keepdims=True)
    var = jnp.mean((gg - mu) ** 2, axis=(2, 3, 4), keepdims=True)
    y = ((gg - mu) / jnp.sqrt(var + EPS)).reshape(n, c, h, w)
    y = jnp.tanh(y * gamma[None, :, None, None] + beta[None, :, None, None])
    z = jax.lax.conv_general_dilated(y, w3, (1, 1), "SAME",
                                     dimension_numbers=dn, precision=_HI)
    z = z + b3[None, :, None, None]
    a = jax.nn.softmax(z, axis=1)
    return jnp.sum(x * a, axis=1, keepdims=True)


if __name__ == "__main__":
    key = jax.random.PRNGKey(0)
    kx, k1, kb1, kg, kb, k3, kb3 = jax.random.split(key, 7)

    x = jax.random.normal(kx, (N, CIN, H, W), jnp.float32)
    # Deterministic synthetic parameters (PyTorch layouts).
    w1 = 0.1 * jax.random.normal(k1, (CMID, CIN, 3, 3), jnp.float32)
    b1 = 0.05 * jax.random.normal(kb1, (CMID,), jnp.float32)
    gamma = 1.0 + 0.1 * jax.random.normal(kg, (CMID,), jnp.float32)
    beta = 0.05 * jax.random.normal(kb, (CMID,), jnp.float32)
    w3 = 0.1 * jax.random.normal(k3, (COUT, CMID, 3, 3), jnp.float32)
    b3 = 0.05 * jax.random.normal(kb3, (COUT,), jnp.float32)

    out = cofusion_forward(x, w1, b1, gamma, beta, w3, b3)
    out = jax.block_until_ready(out)

    ref = reference_forward(x, w1, b1, gamma, beta, w3, b3)
    assert out.shape == (N, 1, H, W), out.shape
    max_err = float(jnp.max(jnp.abs(out - ref)))
    assert max_err < 5e-3, f"mismatch vs reference: {max_err}"

    print("KERNEL_OK")
</pallas_src>

<mosaic_0001>
module attributes {stable_mosaic.version = 11 : i64} {
  func.func @cofusion_kernel(%arg0: i32, %arg1: memref<1x37x256xf32, #tpu.memory_space<vmem>>, %arg2: memref<1x4x256xf32, #tpu.memory_space<vmem>>, %arg3: memref<9x256xf32, #tpu.memory_space<vmem>>, %arg4: memref<32x37xf32, #tpu.memory_space<vmem>>, %arg5: memref<32x2xf32, #tpu.memory_space<vmem>>, %arg6: memref<9x4x32xf32, #tpu.memory_space<vmem>>, %arg7: memref<4x1xf32, #tpu.memory_space<vmem>>, %arg8: memref<1x1x256xf32, #tpu.memory_space<vmem>>, %arg9: memref<32x512xf32, #tpu.memory_space<vmem>>) attributes {dimension_semantics = [#tpu.dimension_semantics<parallel>], iteration_bounds = array<i64: 2>, scalar_prefetch = 0 : i64, scratch_operands = 1 : i64, tpu.core_type = #tpu.core_type<tc>, window_params = [{transform_indices = @transform_0, window_bounds = array<i64: 1, 37, 256>}, {transform_indices = @transform_1, window_bounds = array<i64: 1, 4, 256>}, {pipeline_mode = #tpu.pipeline_mode<synchronous>, transform_indices = @transform_2, window_bounds = array<i64: 9, 256>}, {pipeline_mode = #tpu.pipeline_mode<synchronous>, transform_indices = @transform_3, window_bounds = array<i64: 32, 37>}, {pipeline_mode = #tpu.pipeline_mode<synchronous>, transform_indices = @transform_4, window_bounds = array<i64: 32, 2>}, {pipeline_mode = #tpu.pipeline_mode<synchronous>, transform_indices = @transform_5, window_bounds = array<i64: 9, 4, 32>}, {pipeline_mode = #tpu.pipeline_mode<synchronous>, transform_indices = @transform_6, window_bounds = array<i64: 4, 1>}, {transform_indices = @transform_7, window_bounds = array<i64: 1, 1, 256>}]} {
    %c0 = arith.constant 0 : index
    %c0_0 = arith.constant 0 : index
    %0 = vector.load %arg4[%c0, %c0_0] : memref<32x37xf32, #tpu.memory_space<vmem>>, vector<32x37xf32>
    %c0_1 = arith.constant 0 : index
    %c0_2 = arith.constant 0 : index
    %c0_3 = arith.constant 0 : index
    %1 = vector.load %arg1[%c0_1, %c0_2, %c0_3] : memref<1x37x256xf32, #tpu.memory_space<vmem>>, vector<1x37x256xf32>
    %2 = vector.shape_cast %1 : vector<1x37x256xf32> to vector<37x256xf32>
    %cst = arith.constant dense<0.000000e+00> : vector<32x256xf32>
    %3 = tpu.matmul %0, %2, %cst {dimension_numbers = #tpu.dot_dimension_numbers<[1], [0], [0], [1], [0, 0, 1, 1], [], []>, precision = #tpu.contract_precision<fp32>} : vector<32x37xf32>, vector<37x256xf32>, vector<32x256xf32> -> vector<32x256xf32>
    %cst_4 = arith.constant 0.000000e+00 : f32
    %4 = vector.broadcast %cst_4 : f32 to vector<32x512xf32>
    %c0_5 = arith.constant 0 : index
    %c0_6 = arith.constant 0 : index
    %5 = vector.load %arg9[%c0_5, %c0_6] : memref<32x512xf32, #tpu.memory_space<vmem>>, vector<32x512xf32>
    tpu.vector_store %arg9[%c0_5, %c0_6], %4 {strides = array<i32>} : memref<32x512xf32, #tpu.memory_space<vmem>>, vector<32x512xf32>,
    %c0_7 = arith.constant 0 : index
    %c0_8 = arith.constant 0 : index
    %6 = vector.load %arg5[%c0_7, %c0_8] : memref<32x2xf32, #tpu.memory_space<vmem>>, vector<32x1xf32>
    %c0_9 = arith.constant 0 : index
    %c1 = arith.constant 1 : index
    %7 = vector.load %arg5[%c0_9, %c1] : memref<32x2xf32, #tpu.memory_space<vmem>>, vector<32x1xf32>
    %8 = vector.extract_strided_slice %3 {offsets = [0, 0], sizes = [8, 256], strides = [1, 1]} : vector<32x256xf32> to vector<8x256xf32>
    %cst_10 = arith.constant dense<0.000000e+00> : vector<8xf32>
    %9 = vector.multi_reduction <add>, %8, %cst_10 [1] : vector<8x256xf32> to vector<8xf32>
    %10 = vector.shape_cast %9 : vector<8xf32> to vector<8x1xf32>
    %cst_11 = arith.constant dense<0.000000e+00> : vector<1xf32>
    %11 = vector.multi_reduction <add>, %10, %cst_11 [0] : vector<8x1xf32> to vector<1xf32>
    %12 = vector.shape_cast %11 : vector<1xf32> to vector<1x1xf32>
    %cst_12 = arith.constant 2.048000e+03 : f32
    %13 = vector.broadcast %cst_12 : f32 to vector<1x1xf32>
    %14 = arith.divf %12, %13 : vector<1x1xf32>
    %15 = arith.mulf %8, %8 : vector<8x256xf32>
    %cst_13 = arith.constant dense<0.000000e+00> : vector<8xf32>
    %16 = vector.multi_reduction <add>, %15, %cst_13 [1] : vector<8x256xf32> to vector<8xf32>
    %17 = vector.shape_cast %16 : vector<8xf32> to vector<8x1xf32>
    %cst_14 = arith.constant dense<0.000000e+00> : vector<1xf32>
    %18 = vector.multi_reduction <add>, %17, %cst_14 [0] : vector<8x1xf32> to vector<1xf32>
    %19 = vector.shape_cast %18 : vector<1xf32> to vector<1x1xf32>
    %cst_15 = arith.constant 2.048000e+03 : f32
    %20 = vector.broadcast %cst_15 : f32 to vector<1x1xf32>
    %21 = arith.divf %19, %20 : vector<1x1xf32>
    %22 = arith.mulf %14, %14 : vector<1x1xf32>
    %23 = arith.subf %21, %22 : vector<1x1xf32>
    %cst_16 = arith.constant 9.99999974E-6 : f32
    %24 = vector.broadcast %cst_16 : f32 to vector<1x1xf32>
    %25 = arith.addf %23, %24 : vector<1x1xf32>
    %26 = math.rsqrt %25 : vector<1x1xf32>
    %27 = vector.extract_strided_slice %6 {offsets = [0, 0], sizes = [8, 1], strides = [1, 1]} : vector<32x1xf32> to vector<8x1xf32>
    %28 = vector.broadcast %26 : vector<1x1xf32> to vector<8x1xf32>
    %29 = arith.mulf %28, %27 : vector<8x1xf32>
    %30 = vector.extract_strided_slice %7 {offsets = [0, 0], sizes = [8, 1], strides = [1, 1]} : vector<32x1xf32> to vector<8x1xf32>
    %31 = vector.broadcast %14 : vector<1x1xf32> to vector<8x1xf32>
    %32 = arith.mulf %31, %29 : vector<8x1xf32>
    %33 = arith.subf %30, %32 : vector<8x1xf32>
    %34 = vector.broadcast %29 : vector<8x1xf32> to vector<8x256xf32>
    %35 = arith.mulf %8, %34 : vector<8x256xf32>
    %36 = vector.broadcast %33 : vector<8x1xf32> to vector<8x256xf32>
    %37 = arith.addf %35, %36 : vector<8x256xf32>
    %38 = math.tanh %37 : vector<8x256xf32>
    %c0_17 = arith.constant 0 : index
    %c128 = arith.constant 128 : index
    %39 = vector.load %arg9[%c0_17, %c128] : memref<32x512xf32, #tpu.memory_space<vmem>>, vector<8x256xf32>
    tpu.vector_store %arg9[%c0_17, %c128], %38 {strides = array<i32>} : memref<32x512xf32, #tpu.memory_space<vmem>>, vector<8x256xf32>,
    %40 = vector.extract_strided_slice %3 {offsets = [8, 0], sizes = [8, 256], strides = [1, 1]} : vector<32x256xf32> to vector<8x256xf32>
    %cst_18 = arith.constant dense<0.000000e+00> : vector<8xf32>
    %41 = vector.multi_reduction <add>, %40, %cst_18 [1] : vector<8x256xf32> to vector<8xf32>
    %42 = vector.shape_cast %41 : vector<8xf32> to vector<8x1xf32>
    %cst_19 = arith.constant dense<0.000000e+00> : vector<1xf32>
    %43 = vector.multi_reduction <add>, %42, %cst_19 [0] : vector<8x1xf32> to vector<1xf32>
    %44 = vector.shape_cast %43 : vector<1xf32> to vector<1x1xf32>
    %cst_20 = arith.constant 2.048000e+03 : f32
    %45 = vector.broadcast %cst_20 : f32 to vector<1x1xf32>
    %46 = arith.divf %44, %45 : vector<1x1xf32>
    %47 = arith.mulf %40, %40 : vector<8x256xf32>
    %cst_21 = arith.constant dense<0.000000e+00> : vector<8xf32>
    %48 = vector.multi_reduction <add>, %47, %cst_21 [1] : vector<8x256xf32> to vector<8xf32>
    %49 = vector.shape_cast %48 : vector<8xf32> to vector<8x1xf32>
    %cst_22 = arith.constant dense<0.000000e+00> : vector<1xf32>
    %50 = vector.multi_reduction <add>, %49, %cst_22 [0] : vector<8x1xf32> to vector<1xf32>
    %51 = vector.shape_cast %50 : vector<1xf32> to vector<1x1xf32>
    %cst_23 = arith.constant 2.048000e+03 : f32
    %52 = vector.broadcast %cst_23 : f32 to vector<1x1xf32>
    %53 = arith.divf %51, %52 : vector<1x1xf32>
    %54 = arith.mulf %46, %46 : vector<1x1xf32>
    %55 = arith.subf %53, %54 : vector<1x1xf32>
    %cst_24 = arith.constant 9.99999974E-6 : f32
    %56 = vector.broadcast %cst_24 : f32 to vector<1x1xf32>
    %57 = arith.addf %55, %56 : vector<1x1xf32>
    %58 = math.rsqrt %57 : vector<1x1xf32>
    %59 = vector.extract_strided_slice %6 {offsets = [8, 0], sizes = [8, 1], strides = [1, 1]} : vector<32x1xf32> to vector<8x1xf32>
    %60 = vector.broadcast %58 : vector<1x1xf32> to vector<8x1xf32>
    %61 = arith.mulf %60, %59 : vector<8x1xf32>
    %62 = vector.extract_strided_slice %7 {offsets = [8, 0], sizes = [8, 1], strides = [1, 1]} : vector<32x1xf32> to vector<8x1xf32>
    %63 = vector.broadcast %46 : vector<1x1xf32> to vector<8x1xf32>
    %64 = arith.mulf %63, %61 : vector<8x1xf32>
    %65 = arith.subf %62, %64 : vector<8x1xf32>
    %66 = vector.broadcast %61 : vector<8x1xf32> to vector<8x256xf32>
    %67 = arith.mulf %40, %66 : vector<8x256xf32>
    %68 = vector.broadcast %65 : vector<8x1xf32> to vector<8x256xf32>
    %69 = arith.addf %67, %68 : vector<8x256xf32>
    %70 = math.tanh %69 : vector<8x256xf32>
    %c8 = arith.constant 8 : index
    %c128_25 = arith.constant 128 : index
    %71 = vector.load %arg9[%c8, %c128_25] : memref<32x512xf32, #tpu.memory_space<vmem>>, vector<8x256xf32>
    tpu.vector_store %arg9[%c8, %c128_25], %70 {strides = array<i32>} : memref<32x512xf32, #tpu.memory_space<vmem>>, vector<8x256xf32>,
    %72 = vector.extract_strided_slice %3 {offsets = [16, 0], sizes = [8, 256], strides = [1, 1]} : vector<32x256xf32> to vector<8x256xf32>
    %cst_26 = arith.constant dense<0.000000e+00> : vector<8xf32>
    %73 = vector.multi_reduction <add>, %72, %cst_26 [1] : vector<8x256xf32> to vector<8xf32>
    %74 = vector.shape_cast %73 : vector<8xf32> to vector<8x1xf32>
    %cst_27 = arith.constant dense<0.000000e+00> : vector<1xf32>
    %75 = vector.multi_reduction <add>, %74, %cst_27 [0] : vector<8x1xf32> to vector<1xf32>
    %76 = vector.shape_cast %75 : vector<1xf32> to vector<1x1xf32>
    %cst_28 = arith.constant 2.048000e+03 : f32
    %77 = vector.broadcast %cst_28 : f32 to vector<1x1xf32>
    %78 = arith.divf %76, %77 : vector<1x1xf32>
    %79 = arith.mulf %72, %72 : vector<8x256xf32>
    %cst_29 = arith.constant dense<0.000000e+00> : vector<8xf32>
    %80 = vector.multi_reduction <add>, %79, %cst_29 [1] : vector<8x256xf32> to vector<8xf32>
    %81 = vector.shape_cast %80 : vector<8xf32> to vector<8x1xf32>
    %cst_30 = arith.constant dense<0.000000e+00> : vector<1xf32>
    %82 = vector.multi_reduction <add>, %81, %cst_30 [0] : vector<8x1xf32> to vector<1xf32>
    %83 = vector.shape_cast %82 : vector<1xf32> to vector<1x1xf32>
    %cst_31 = arith.constant 2.048000e+03 : f32
    %84 = vector.broadcast %cst_31 : f32 to vector<1x1xf32>
    %85 = arith.divf %83, %84 : vector<1x1xf32>
    %86 = arith.mulf %78, %78 : vector<1x1xf32>
    %87 = arith.subf %85, %86 : vector<1x1xf32>
    %cst_32 = arith.constant 9.99999974E-6 : f32
    %88 = vector.broadcast %cst_32 : f32 to vector<1x1xf32>
    %89 = arith.addf %87, %88 : vector<1x1xf32>
    %90 = math.rsqrt %89 : vector<1x1xf32>
    %91 = vector.extract_strided_slice %6 {offsets = [16, 0], sizes = [8, 1], strides = [1, 1]} : vector<32x1xf32> to vector<8x1xf32>
    %92 = vector.broadcast %90 : vector<1x1xf32> to vector<8x1xf32>
    %93 = arith.mulf %92, %91 : vector<8x1xf32>
    %94 = vector.extract_strided_slice %7 {offsets = [16, 0], sizes = [8, 1], strides = [1, 1]} : vector<32x1xf32> to vector<8x1xf32>
    %95 = vector.broadcast %78 : vector<1x1xf32> to vector<8x1xf32>
    %96 = arith.mulf %95, %93 : vector<8x1xf32>
    %97 = arith.subf %94, %96 : vector<8x1xf32>
    %98 = vector.broadcast %93 : vector<8x1xf32> to vector<8x256xf32>
    %99 = arith.mulf %72, %98 : vector<8x256xf32>
    %100 = vector.broadcast %97 : vector<8x1xf32> to vector<8x256xf32>
    %101 = arith.addf %99, %100 : vector<8x256xf32>
    %102 = math.tanh %101 : vector<8x256xf32>
    %c16 = arith.constant 16 : index
    %c128_33 = arith.constant 128 : index
    %103 = vector.load %arg9[%c16, %c128_33] : memref<32x512xf32, #tpu.memory_space<vmem>>, vector<8x256xf32>
    tpu.vector_store %arg9[%c16, %c128_33], %102 {strides = array<i32>} : memref<32x512xf32, #tpu.memory_space<vmem>>, vector<8x256xf32>,
    %104 = vector.extract_strided_slice %3 {offsets = [24, 0], sizes = [8, 256], strides = [1, 1]} : vector<32x256xf32> to vector<8x256xf32>
    %cst_34 = arith.constant dense<0.000000e+00> : vector<8xf32>
    %105 = vector.multi_reduction <add>, %104, %cst_34 [1] : vector<8x256xf32> to vector<8xf32>
    %106 = vector.shape_cast %105 : vector<8xf32> to vector<8x1xf32>
    %cst_35 = arith.constant dense<0.000000e+00> : vector<1xf32>
    %107 = vector.multi_reduction <add>, %106, %cst_35 [0] : vector<8x1xf32> to vector<1xf32>
    %108 = vector.shape_cast %107 : vector<1xf32> to vector<1x1xf32>
    %cst_36 = arith.constant 2.048000e+03 : f32
    %109 = vector.broadcast %cst_36 : f32 to vector<1x1xf32>
    %110 = arith.divf %108, %109 : vector<1x1xf32>
    %111 = arith.mulf %104, %104 : vector<8x256xf32>
    %cst_37 = arith.constant dense<0.000000e+00> : vector<8xf32>
    %112 = vector.multi_reduction <add>, %111, %cst_37 [1] : vector<8x256xf32> to vector<8xf32>
    %113 = vector.shape_cast %112 : vector<8xf32> to vector<8x1xf32>
    %cst_38 = arith.constant dense<0.000000e+00> : vector<1xf32>
    %114 = vector.multi_reduction <add>, %113, %cst_38 [0] : vector<8x1xf32> to vector<1xf32>
    %115 = vector.shape_cast %114 : vector<1xf32> to vector<1x1xf32>
    %cst_39 = arith.constant 2.048000e+03 : f32
    %116 = vector.broadcast %cst_39 : f32 to vector<1x1xf32>
    %117 = arith.divf %115, %116 : vector<1x1xf32>
    %118 = arith.mulf %110, %110 : vector<1x1xf32>
    %119 = arith.subf %117, %118 : vector<1x1xf32>
    %cst_40 = arith.constant 9.99999974E-6 : f32
    %120 = vector.broadcast %cst_40 : f32 to vector<1x1xf32>
    %121 = arith.addf %119, %120 : vector<1x1xf32>
    %122 = math.rsqrt %121 : vector<1x1xf32>
    %123 = vector.extract_strided_slice %6 {offsets = [24, 0], sizes = [8, 1], strides = [1, 1]} : vector<32x1xf32> to vector<8x1xf32>
    %124 = vector.broadcast %122 : vector<1x1xf32> to vector<8x1xf32>
    %125 = arith.mulf %124, %123 : vector<8x1xf32>
    %126 = vector.extract_strided_slice %7 {offsets = [24, 0], sizes = [8, 1], strides = [1, 1]} : vector<32x1xf32> to vector<8x1xf32>
    %127 = vector.broadcast %110 : vector<1x1xf32> to vector<8x1xf32>
    %128 = arith.mulf %127, %125 : vector<8x1xf32>
    %129 = arith.subf %126, %128 : vector<8x1xf32>
    %130 = vector.broadcast %125 : vector<8x1xf32> to vector<8x256xf32>
    %131 = arith.mulf %104, %130 : vector<8x256xf32>
    %132 = vector.broadcast %129 : vector<8x1xf32> to vector<8x256xf32>
    %133 = arith.addf %131, %132 : vector<8x256xf32>
    %134 = math.tanh %133 : vector<8x256xf32>
    %c24 = arith.constant 24 : index
    %c128_41 = arith.constant 128 : index
    %135 = vector.load %arg9[%c24, %c128_41] : memref<32x512xf32, #tpu.memory_space<vmem>>, vector<8x256xf32>
    tpu.vector_store %arg9[%c24, %c128_41], %134 {strides = array<i32>} : memref<32x512xf32, #tpu.memory_space<vmem>>, vector<8x256xf32>,
    %cst_42 = arith.constant 0.000000e+00 : f32
    %136 = vector.broadcast %cst_42 : f32 to vector<4x256xf32>
    %c0_43 = arith.constant 0 : index
    %c111 = arith.constant 111 : index
    %137 = vector.load %arg9[%c0_43, %c111] : memref<32x512xf32, #tpu.memory_space<vmem>>, vector<32x256xf32>
    %c0_44 = arith.constant 0 : index
    %c0_45 = arith.constant 0 : index
    %c0_46 = arith.constant 0 : index
    %138 = vector.load %arg6[%c0_44, %c0_45, %c0_46] : memref<9x4x32xf32, #tpu.memory_space<vmem>>, vector<1x4x32xf32>
    %139 = vector.shape_cast %138 : vector<1x4x32xf32> to vector<4x32xf32>
    %cst_47 = arith.constant dense<0.000000e+00> : vector<4x256xf32>
    %140 = tpu.matmul %139, %137, %cst_47 {dimension_numbers = #tpu.dot_dimension_numbers<[1], [0], [0], [1], [0, 0, 1, 1], [], []>, precision = #tpu.contract_precision<fp32>} : vector<4x32xf32>, vector<32x256xf32>, vector<4x256xf32> -> vector<4x256xf32>
    %c0_48 = arith.constant 0 : index
    %c0_49 = arith.constant 0 : index
    %141 = vector.load %arg3[%c0_48, %c0_49] : memref<9x256xf32, #tpu.memory_space<vmem>>, vector<1x256xf32>
    %142 = vector.broadcast %141 : vector<1x256xf32> to vector<4x256xf32>
    %143 = arith.mulf %140, %142 : vector<4x256xf32>
    %144 = arith.addf %136, %143 : vector<4x256xf32>
    %c0_50 = arith.constant 0 : index
    %c112 = arith.constant 112 : index
    %145 = vector.load %arg9[%c0_50, %c112] : memref<32x512xf32, #tpu.memory_space<vmem>>, vector<32x256xf32>
    %c1_51 = arith.constant 1 : index
    %c0_52 = arith.constant 0 : index
    %c0_53 = arith.constant 0 : index
    %146 = vector.load %arg6[%c1_51, %c0_52, %c0_53] : memref<9x4x32xf32, #tpu.memory_space<vmem>>, vector<1x4x32xf32>
    %147 = vector.shape_cast %146 : vector<1x4x32xf32> to vector<4x32xf32>
    %cst_54 = arith.constant dense<0.000000e+00> : vector<4x256xf32>
    %148 = tpu.matmul %147, %145, %cst_54 {dimension_numbers = #tpu.dot_dimension_numbers<[1], [0], [0], [1], [0, 0, 1, 1], [], []>, precision = #tpu.contract_precision<fp32>} : vector<4x32xf32>, vector<32x256xf32>, vector<4x256xf32> -> vector<4x256xf32>
    %c1_55 = arith.constant 1 : index
    %c0_56 = arith.constant 0 : index
    %149 = vector.load %arg3[%c1_55, %c0_56] : memref<9x256xf32, #tpu.memory_space<vmem>>, vector<1x256xf32>
    %150 = vector.broadcast %149 : vector<1x256xf32> to vector<4x256xf32>
    %151 = arith.mulf %148, %150 : vector<4x256xf32>
    %152 = arith.addf %144, %151 : vector<4x256xf32>
    %c0_57 = arith.constant 0 : index
    %c113 = arith.constant 113 : index
    %153 = vector.load %arg9[%c0_57, %c113] : memref<32x512xf32, #tpu.memory_space<vmem>>, vector<32x256xf32>
    %c2 = arith.constant 2 : index
    %c0_58 = arith.constant 0 : index
    %c0_59 = arith.constant 0 : index
    %154 = vector.load %arg6[%c2, %c0_58, %c0_59] : memref<9x4x32xf32, #tpu.memory_space<vmem>>, vector<1x4x32xf32>
    %155 = vector.shape_cast %154 : vector<1x4x32xf32> to vector<4x32xf32>
    %cst_60 = arith.constant dense<0.000000e+00> : vector<4x256xf32>
    %156 = tpu.matmul %155, %153, %cst_60 {dimension_numbers = #tpu.dot_dimension_numbers<[1], [0], [0], [1], [0, 0, 1, 1], [], []>, precision = #tpu.contract_precision<fp32>} : vector<4x32xf32>, vector<32x256xf32>, vector<4x256xf32> -> vector<4x256xf32>
    %c2_61 = arith.constant 2 : index
    %c0_62 = arith.constant 0 : index
    %157 = vector.load %arg3[%c2_61, %c0_62] : memref<9x256xf32, #tpu.memory_space<vmem>>, vector<1x256xf32>
    %158 = vector.broadcast %157 : vector<1x256xf32> to vector<4x256xf32>
    %159 = arith.mulf %156, %158 : vector<4x256xf32>
    %160 = arith.addf %152, %159 : vector<4x256xf32>
    %c0_63 = arith.constant 0 : index
    %c127 = arith.constant 127 : index
    %161 = vector.load %arg9[%c0_63, %c127] : memref<32x512xf32, #tpu.memory_space<vmem>>, vector<32x256xf32>
    %c3 = arith.constant 3 : index
    %c0_64 = arith.constant 0 : index
    %c0_65 = arith.constant 0 : index
    %162 = vector.load %arg6[%c3, %c0_64, %c0_65] : memref<9x4x32xf32, #tpu.memory_space<vmem>>, vector<1x4x32xf32>
    %163 = vector.shape_cast %162 : vector<1x4x32xf32> to vector<4x32xf32>
    %cst_66 = arith.constant dense<0.000000e+00> : vector<4x256xf32>
    %164 = tpu.matmul %163, %161, %cst_66 {dimension_numbers = #tpu.dot_dimension_numbers<[1], [0], [0], [1], [0, 0, 1, 1], [], []>, precision = #tpu.contract_precision<fp32>} : vector<4x32xf32>, vector<32x256xf32>, vector<4x256xf32> -> vector<4x256xf32>
    %c3_67 = arith.constant 3 : index
    %c0_68 = arith.constant 0 : index
    %165 = vector.load %arg3[%c3_67, %c0_68] : memref<9x256xf32, #tpu.memory_space<vmem>>, vector<1x256xf32>
    %166 = vector.broadcast %165 : vector<1x256xf32> to vector<4x256xf32>
    %167 = arith.mulf %164, %166 : vector<4x256xf32>
    %168 = arith.addf %160, %167 : vector<4x256xf32>
    %c0_69 = arith.constant 0 : index
    %c128_70 = arith.constant 128 : index
    %169 = vector.load %arg9[%c0_69, %c128_70] : memref<32x512xf32, #tpu.memory_space<vmem>>, vector<32x256xf32>
    %c4 = arith.constant 4 : index
    %c0_71 = arith.constant 0 : index
    %c0_72 = arith.constant 0 : index
    %170 = vector.load %arg6[%c4, %c0_71, %c0_72] : memref<9x4x32xf32, #tpu.memory_space<vmem>>, vector<1x4x32xf32>
    %171 = vector.shape_cast %170 : vector<1x4x32xf32> to vector<4x32xf32>
    %cst_73 = arith.constant dense<0.000000e+00> : vector<4x256xf32>
    %172 = tpu.matmul %171, %169, %cst_73 {dimension_numbers = #tpu.dot_dimension_numbers<[1], [0], [0], [1], [0, 0, 1, 1], [], []>, precision = #tpu.contract_precision<fp32>} : vector<4x32xf32>, vector<32x256xf32>, vector<4x256xf32> -> vector<4x256xf32>
    %c4_74 = arith.constant 4 : index
    %c0_75 = arith.constant 0 : index
    %173 = vector.load %arg3[%c4_74, %c0_75] : memref<9x256xf32, #tpu.memory_space<vmem>>, vector<1x256xf32>
    %174 = vector.broadcast %173 : vector<1x256xf32> to vector<4x256xf32>
    %175 = arith.mulf %172, %174 : vector<4x256xf32>
    %176 = arith.addf %168, %175 : vector<4x256xf32>
    %c0_76 = arith.constant 0 : index
    %c129 = arith.constant 129 : index
    %177 = vector.load %arg9[%c0_76, %c129] : memref<32x512xf32, #tpu.memory_space<vmem>>, vector<32x256xf32>
    %c5 = arith.constant 5 : index
    %c0_77 = arith.constant 0 : index
    %c0_78 = arith.constant 0 : index
    %178 = vector.load %arg6[%c5, %c0_77, %c0_78] : memref<9x4x32xf32, #tpu.memory_space<vmem>>, vector<1x4x32xf32>
    %179 = vector.shape_cast %178 : vector<1x4x32xf32> to vector<4x32xf32>
    %cst_79 = arith.constant dense<0.000000e+00> : vector<4x256xf32>
    %180 = tpu.matmul %179, %177, %cst_79 {dimension_numbers = #tpu.dot_dimension_numbers<[1], [0], [0], [1], [0, 0, 1, 1], [], []>, precision = #tpu.contract_precision<fp32>} : vector<4x32xf32>, vector<32x256xf32>, vector<4x256xf32> -> vector<4x256xf32>
    %c5_80 = arith.constant 5 : index
    %c0_81 = arith.constant 0 : index
    %181 = vector.load %arg3[%c5_80, %c0_81] : memref<9x256xf32, #tpu.memory_space<vmem>>, vector<1x256xf32>
    %182 = vector.broadcast %181 : vector<1x256xf32> to vector<4x256xf32>
    %183 = arith.mulf %180, %182 : vector<4x256xf32>
    %184 = arith.addf %176, %183 : vector<4x256xf32>
    %c0_82 = arith.constant 0 : index
    %c143 = arith.constant 143 : index
    %185 = vector.load %arg9[%c0_82, %c143] : memref<32x512xf32, #tpu.memory_space<vmem>>, vector<32x256xf32>
    %c6 = arith.constant 6 : index
    %c0_83 = arith.constant 0 : index
    %c0_84 = arith.constant 0 : index
    %186 = vector.load %arg6[%c6, %c0_83, %c0_84] : memref<9x4x32xf32, #tpu.memory_space<vmem>>, vector<1x4x32xf32>
    %187 = vector.shape_cast %186 : vector<1x4x32xf32> to vector<4x32xf32>
    %cst_85 = arith.constant dense<0.000000e+00> : vector<4x256xf32>
    %188 = tpu.matmul %187, %185, %cst_85 {dimension_numbers = #tpu.dot_dimension_numbers<[1], [0], [0], [1], [0, 0, 1, 1], [], []>, precision = #tpu.contract_precision<fp32>} : vector<4x32xf32>, vector<32x256xf32>, vector<4x256xf32> -> vector<4x256xf32>
    %c6_86 = arith.constant 6 : index
    %c0_87 = arith.constant 0 : index
    %189 = vector.load %arg3[%c6_86, %c0_87] : memref<9x256xf32, #tpu.memory_space<vmem>>, vector<1x256xf32>
    %190 = vector.broadcast %189 : vector<1x256xf32> to vector<4x256xf32>
    %191 = arith.mulf %188, %190 : vector<4x256xf32>
    %192 = arith.addf %184, %191 : vector<4x256xf32>
    %c0_88 = arith.constant 0 : index
    %c144 = arith.constant 144 : index
    %193 = vector.load %arg9[%c0_88, %c144] : memref<32x512xf32, #tpu.memory_space<vmem>>, vector<32x256xf32>
    %c7 = arith.constant 7 : index
    %c0_89 = arith.constant 0 : index
    %c0_90 = arith.constant 0 : index
    %194 = vector.load %arg6[%c7, %c0_89, %c0_90] : memref<9x4x32xf32, #tpu.memory_space<vmem>>, vector<1x4x32xf32>
    %195 = vector.shape_cast %194 : vector<1x4x32xf32> to vector<4x32xf32>
    %cst_91 = arith.constant dense<0.000000e+00> : vector<4x256xf32>
    %196 = tpu.matmul %195, %193, %cst_91 {dimension_numbers = #tpu.dot_dimension_numbers<[1], [0], [0], [1], [0, 0, 1, 1], [], []>, precision = #tpu.contract_precision<fp32>} : vector<4x32xf32>, vector<32x256xf32>, vector<4x256xf32> -> vector<4x256xf32>
    %c7_92 = arith.constant 7 : index
    %c0_93 = arith.constant 0 : index
    %197 = vector.load %arg3[%c7_92, %c0_93] : memref<9x256xf32, #tpu.memory_space<vmem>>, vector<1x256xf32>
    %198 = vector.broadcast %197 : vector<1x256xf32> to vector<4x256xf32>
    %199 = arith.mulf %196, %198 : vector<4x256xf32>
    %200 = arith.addf %192, %199 : vector<4x256xf32>
    %c0_94 = arith.constant 0 : index
    %c145 = arith.constant 145 : index
    %201 = vector.load %arg9[%c0_94, %c145] : memref<32x512xf32, #tpu.memory_space<vmem>>, vector<32x256xf32>
    %c8_95 = arith.constant 8 : index
    %c0_96 = arith.constant 0 : index
    %c0_97 = arith.constant 0 : index
    %202 = vector.load %arg6[%c8_95, %c0_96, %c0_97] : memref<9x4x32xf32, #tpu.memory_space<vmem>>, vector<1x4x32xf32>
    %203 = vector.shape_cast %202 : vector<1x4x32xf32> to vector<4x32xf32>
    %cst_98 = arith.constant dense<0.000000e+00> : vector<4x256xf32>
    %204 = tpu.matmul %203, %201, %cst_98 {dimension_numbers = #tpu.dot_dimension_numbers<[1], [0], [0], [1], [0, 0, 1, 1], [], []>, precision = #tpu.contract_precision<fp32>} : vector<4x32xf32>, vector<32x256xf32>, vector<4x256xf32> -> vector<4x256xf32>
    %c8_99 = arith.constant 8 : index
    %c0_100 = arith.constant 0 : index
    %205 = vector.load %arg3[%c8_99, %c0_100] : memref<9x256xf32, #tpu.memory_space<vmem>>, vector<1x256xf32>
    %206 = vector.broadcast %205 : vector<1x256xf32> to vector<4x256xf32>
    %207 = arith.mulf %204, %206 : vector<4x256xf32>
    %208 = arith.addf %200, %207 : vector<4x256xf32>
    %c0_101 = arith.constant 0 : index
    %c0_102 = arith.constant 0 : index
    %209 = vector.load %arg7[%c0_101, %c0_102] : memref<4x1xf32, #tpu.memory_space<vmem>>, vector<4x1xf32>
    %210 = vector.broadcast %209 : vector<4x1xf32> to vector<4x256xf32>
    %211 = arith.addf %208, %210 : vector<4x256xf32>
    %cst_103 = arith.constant dense<0xFF800000> : vector<256xf32>
    %212 = vector.multi_reduction <maximumf>, %211, %cst_103 [0] : vector<4x256xf32> to vector<256xf32>
    %213 = vector.shape_cast %212 : vector<256xf32> to vector<1x256xf32>
    %214 = vector.broadcast %213 : vector<1x256xf32> to vector<4x256xf32>
    %215 = arith.subf %211, %214 : vector<4x256xf32>
    %216 = math.exp %215 : vector<4x256xf32>
    %cst_104 = arith.constant dense<0.000000e+00> : vector<256xf32>
    %217 = vector.multi_reduction <add>, %216, %cst_104 [0] : vector<4x256xf32> to vector<256xf32>
    %218 = vector.shape_cast %217 : vector<256xf32> to vector<1x256xf32>
    %219 = vector.broadcast %218 : vector<1x256xf32> to vector<4x256xf32>
    %220 = arith.divf %216, %219 : vector<4x256xf32>
    %c0_105 = arith.constant 0 : index
    %c0_106 = arith.constant 0 : index
    %c0_107 = arith.constant 0 : index
    %221 = vector.load %arg2[%c0_105, %c0_106, %c0_107] : memref<1x4x256xf32, #tpu.memory_space<vmem>>, vector<1x4x256xf32>
    %222 = vector.shape_cast %221 : vector<1x4x256xf32> to vector<4x256xf32>
    %223 = arith.mulf %222, %220 : vector<4x256xf32>
    %cst_108 = arith.constant dense<0.000000e+00> : vector<256xf32>
    %224 = vector.multi_reduction <add>, %223, %cst_108 [0] : vector<4x256xf32> to vector<256xf32>
    %225 = vector.shape_cast %224 : vector<256xf32> to vector<1x256xf32>
    %c0_109 = arith.constant 0 : index
    %c0_110 = arith.constant 0 : index
    %c0_111 = arith.constant 0 : index
    %226 = vector.load %arg8[%c0_109, %c0_110, %c0_111] : memref<1x1x256xf32, #tpu.memory_space<vmem>>, vector<1x1x256xf32>
    %227 = vector.shape_cast %226 : vector<1x1x256xf32> to vector<1x256xf32>
    %228 = vector.shape_cast %225 : vector<1x256xf32> to vector<1x1x256xf32>
    tpu.vector_store %arg8[%c0_109, %c0_110, %c0_111], %228 {strides = array<i32>} : memref<1x1x256xf32, #tpu.memory_space<vmem>>, vector<1x1x256xf32>,
    return
  }
  func.func @transform_0(%arg0: i32) -> (i32, i32, i32) {
    %c0_i32 = arith.constant 0 : i32
    %c0_i32_0 = arith.constant 0 : i32
    %c0_i32_1 = arith.constant 0 : i32
    return %arg0, %c0_i32, %c0_i32_0 : i32, i32, i32
  }
  func.func @transform_1(%arg0: i32) -> (i32, i32, i32) {
    %c0_i32 = arith.constant 0 : i32
    %c0_i32_0 = arith.constant 0 : i32
    %c0_i32_1 = arith.constant 0 : i32
    return %arg0, %c0_i32, %c0_i32_0 : i32, i32, i32
  }
  func.func @transform_2(%arg0: i32) -> (i32, i32) {
    %c0_i32 = arith.constant 0 : i32
    %c0_i32_0 = arith.constant 0 : i32
    %c0_i32_1 = arith.constant 0 : i32
    return %c0_i32, %c0_i32_0 : i32, i32
  }
  func.func @transform_3(%arg0: i32) -> (i32, i32) {
    %c0_i32 = arith.constant 0 : i32
    %c0_i32_0 = arith.constant 0 : i32
    %c0_i32_1 = arith.constant 0 : i32
    return %c0_i32, %c0_i32_0 : i32, i32
  }
  func.func @transform_4(%arg0: i32) -> (i32, i32) {
    %c0_i32 = arith.constant 0 : i32
    %c0_i32_0 = arith.constant 0 : i32
    %c0_i32_1 = arith.constant 0 : i32
    return %c0_i32, %c0_i32_0 : i32, i32
  }
  func.func @transform_5(%arg0: i32) -> (i32, i32, i32) {
    %c0_i32 = arith.constant 0 : i32
    %c0_i32_0 = arith.constant 0 : i32
    %c0_i32_1 = arith.constant 0 : i32
    %c0_i32_2 = arith.constant 0 : i32
    return %c0_i32, %c0_i32_0, %c0_i32_1 : i32, i32, i32
  }
  func.func @transform_6(%arg0: i32) -> (i32, i32) {
    %c0_i32 = arith.constant 0 : i32
    %c0_i32_0 = arith.constant 0 : i32
    %c0_i32_1 = arith.constant 0 : i32
    return %c0_i32, %c0_i32_0 : i32, i32
  }
  func.func @transform_7(%arg0: i32) -> (i32, i32, i32) {
    %c0_i32 = arith.constant 0 : i32
    %c0_i32_0 = arith.constant 0 : i32
    %c0_i32_1 = arith.constant 0 : i32
    return %arg0, %c0_i32, %c0_i32_0 : i32, i32, i32
  }
}

</mosaic_0001>

<llo_original>
// kernel: cofusion_forward.1
$region0: #{cofusion_forward.1}
  #allocation0 [shape = 'u32[]', space=smem, size = 0x4, offset = 0x4, fixed_abs, tag = 'smem constant byte address 0x4 - core index']
  #allocation1 [shape = 'u32[144,128]{1,0:T(1,128)}', space=vmem, size = 0x12000, scoped, tag = 'internal scratch']
  #allocation2 [shape = 'f32[32,512]{1,0:T(8,128)}', space=vmem, size = 0x10000, scoped, tag = 'scratch operand']
  %s0 = inlined_call_operand.vmem [shape: f32[2,37,256], index: 0, kind: input, shape index: {}]
  %s1 = inlined_call_operand.vmem [shape: f32[2,4,256], index: 1, kind: input, shape index: {}]
  %s2 = inlined_call_operand.vmem [shape: f32[9,256], index: 2, kind: input, shape index: {}]
  %s3 = inlined_call_operand.vmem [shape: f32[32,37], index: 3, kind: input, shape index: {}]
  %s4 = inlined_call_operand.vmem [shape: f32[32,2], index: 4, kind: input, shape index: {}]
  %s5 = inlined_call_operand.vmem [shape: f32[9,4,32], index: 5, kind: input, shape index: {}]
  %s6 = inlined_call_operand.vmem [shape: f32[4,1], index: 6, kind: input, shape index: {}]
  %s7 = inlined_call_operand.vmem [shape: f32[2,1,256], index: 7, kind: output, shape index: {}]
  %s8 = sld [smem:[#allocation0]]
  $region61: #{cofusion_forward.1} parent=0
    _
  %s10 = ssub.s32 1, %s8
  %s11 = scalar_select 0, %s10, %s8
  loop: start=0, step=1, limit=4
  $region2: #{cofusion_forward.1} parent=0 // loop_pre_header
    _
  $region3: #{cofusion_forward.1} parent=0 // loop_header
    %s13 = sphi 0, %s17
    %p14 = scmp.ge.s32.totalorder %s13, 4
    %s23 = sphi 0, %s25
    %s26 = sphi 0, %s23
    %s27 = sphi 0, %s26
    %s43 = sphi 0, %s27
    %s49 = sphi 0, %s51
    %s52 = sphi 0, %s49
    %s53 = sphi 0, %s52
    %s69 = sphi 0, %s53
    %s73 = sphi 0, %s73
    %s75 = sphi 0, %s73
    %s76 = sphi 0, %s75
    %s90 = sphi 0, %s76
    %s94 = sphi 0, %s94
    %s96 = sphi 0, %s94
    %s97 = sphi 0, %s96
    %s111 = sphi 0, %s97
    %s115 = sphi 0, %s115
    %s117 = sphi 0, %s115
    %s118 = sphi 0, %s117
    %s132 = sphi 0, %s118
    %s136 = sphi 0, %s136
    %s138 = sphi 0, %s136
    %s139 = sphi 0, %s138
    %s153 = sphi 0, %s139
    %s157 = sphi 0, %s157
    %s159 = sphi 0, %s157
    %s160 = sphi 0, %s159
    %s174 = sphi 0, %s160
    %s180 = sphi 0, %s182
    %s183 = sphi 0, %s180
    %s184 = sphi 0, %s183
    %s200 = sphi 0, %s184
  $region4: #{cofusion_forward.1} parent=0 // loop_header_branch
    %16 = sbr.rel (%p14) target = $region8
  $region5: #{cofusion_forward.1} parent=0 // loop_body
    %s18 = ssub.s32 %s13, 1
    %s19 = ssub.s32 %s13, 2
    %s20 = sadd.s32 %s13, 1
    %s21 = ssub.s32 %s13, %s20
    %p22 = scmp.eq.s32.totalorder %s21, 0
    %s24 = sadd.s32 %s23, 1
    %s25 = scalar_select %p22, %s23, %s24
    %p28 = pneg %p22
    %p29 = scmp.eq.s32.totalorder %s13, 1
    %p30 = por %p28, %p29
    %p31 = scmp.ne.s32.totalorder %s23, %s26
    %p32 = scmp.eq.s32.totalorder %s13, 0
    %p33 = por %p31, %p32
    %p34 = scmp.ne.s32.totalorder %s23, %s26
    %p35 = scmp.eq.s32.totalorder %s18, 1
    %p36 = por %p34, %p35
    %p37 = scmp.ne.s32.totalorder %s26, %s27
    %p38 = scmp.eq.s32.totalorder %s18, 0
    %p39 = por %p37, %p38
    %p40 = scmp.ne.s32.totalorder %s26, %s27
    %p41 = scmp.eq.s32.totalorder %s19, 1
    %p42 = por %p40, %p41
    %p44 = scmp.ne.s32.totalorder %s27, %s43
    %p45 = scmp.eq.s32.totalorder %s19, 0
    %p46 = por %p44, %p45
    %s47 = ssub.s32 %s13, %s20
    %p48 = scmp.eq.s32.totalorder %s47, 0
    %s50 = sadd.s32 %s49, 1
    %s51 = scalar_select %p48, %s49, %s50
    %p54 = pneg %p48
    %p55 = scmp.eq.s32.totalorder %s13, 1
    %p56 = por %p54, %p55
    %p57 = scmp.ne.s32.totalorder %s49, %s52
    %p58 = scmp.eq.s32.totalorder %s13, 0
    %p59 = por %p57, %p58
    %p60 = scmp.ne.s32.totalorder %s49, %s52
    %p61 = scmp.eq.s32.totalorder %s18, 1
    %p62 = por %p60, %p61
    %p63 = scmp.ne.s32.totalorder %s52, %s53
    %p64 = scmp.eq.s32.totalorder %s18, 0
    %p65 = por %p63, %p64
    %p66 = scmp.ne.s32.totalorder %s52, %s53
    %p67 = scmp.eq.s32.totalorder %s19, 1
    %p68 = por %p66, %p67
    %p70 = scmp.ne.s32.totalorder %s53, %s69
    %p71 = scmp.eq.s32.totalorder %s19, 0
    %p72 = por %p70, %p71
    %s74 = sadd.s32 %s73, 1
    %p77 = scmp.eq.s32.totalorder %s13, 1
    %p78 = scmp.ne.s32.totalorder %s73, %s75
    %p79 = scmp.eq.s32.totalorder %s13, 0
    %p80 = por %p78, %p79
    %p81 = scmp.ne.s32.totalorder %s73, %s75
    %p82 = scmp.eq.s32.totalorder %s18, 1
    %p83 = por %p81, %p82
    %p84 = scmp.ne.s32.totalorder %s75, %s76
    %p85 = scmp.eq.s32.totalorder %s18, 0
    %p86 = por %p84, %p85
    %p87 = scmp.ne.s32.totalorder %s75, %s76
    %p88 = scmp.eq.s32.totalorder %s19, 1
    %p89 = por %p87, %p88
    %p91 = scmp.ne.s32.totalorder %s76, %s90
    %p92 = scmp.eq.s32.totalorder %s19, 0
    %p93 = por %p91, %p92
    %s95 = sadd.s32 %s94, 1
    %p98 = scmp.eq.s32.totalorder %s13, 1
    %p99 = scmp.ne.s32.totalorder %s94, %s96
    %p100 = scmp.eq.s32.totalorder %s13, 0
    %p101 = por %p99, %p100
    %p102 = scmp.ne.s32.totalorder %s94, %s96
    %p103 = scmp.eq.s32.totalorder %s18, 1
    %p104 = por %p102, %p103
    %p105 = scmp.ne.s32.totalorder %s96, %s97
    %p106 = scmp.eq.s32.totalorder %s18, 0
    %p107 = por %p105, %p106
    %p108 = scmp.ne.s32.totalorder %s96, %s97
    %p109 = scmp.eq.s32.totalorder %s19, 1
    %p110 = por %p108, %p109
    %p112 = scmp.ne.s32.totalorder %s97, %s111
    %p113 = scmp.eq.s32.totalorder %s19, 0
    %p114 = por %p112, %p113
    %s116 = sadd.s32 %s115, 1
    %p119 = scmp.eq.s32.totalorder %s13, 1
    %p120 = scmp.ne.s32.totalorder %s115, %s117
    %p121 = scmp.eq.s32.totalorder %s13, 0
    %p122 = por %p120, %p121
    %p123 = scmp.ne.s32.totalorder %s115, %s117
    %p124 = scmp.eq.s32.totalorder %s18, 1
    %p125 = por %p123, %p124
    %p126 = scmp.ne.s32.totalorder %s117, %s118
    %p127 = scmp.eq.s32.totalorder %s18, 0
    %p128 = por %p126, %p127
    %p129 = scmp.ne.s32.totalorder %s117, %s118
    %p130 = scmp.eq.s32.totalorder %s19, 1
    %p131 = por %p129, %p130
    %p133 = scmp.ne.s32.totalorder %s118, %s132
    %p134 = scmp.eq.s32.totalorder %s19, 0
    %p135 = por %p133, %p134
    %s137 = sadd.s32 %s136, 1
    %p140 = scmp.eq.s32.totalorder %s13, 1
    %p141 = scmp.ne.s32.totalorder %s136, %s138
    %p142 = scmp.eq.s32.totalorder %s13, 0
    %p143 = por %p141, %p142
    %p144 = scmp.ne.s32.totalorder %s136, %s138
    %p145 = scmp.eq.s32.totalorder %s18, 1
    %p146 = por %p144, %p145
    %p147 = scmp.ne.s32.totalorder %s138, %s139
    %p148 = scmp.eq.s32.totalorder %s18, 0
    %p149 = por %p147, %p148
    %p150 = scmp.ne.s32.totalorder %s138, %s139
    %p151 = scmp.eq.s32.totalorder %s19, 1
    %p152 = por %p150, %p151
    %p154 = scmp.ne.s32.totalorder %s139, %s153
    %p155 = scmp.eq.s32.totalorder %s19, 0
    %p156 = por %p154, %p155
    %s158 = sadd.s32 %s157, 1
    %p161 = scmp.eq.s32.totalorder %s13, 1
    %p162 = scmp.ne.s32.totalorder %s157, %s159
    %p163 = scmp.eq.s32.totalorder %s13, 0
    %p164 = por %p162, %p163
    %p165 = scmp.ne.s32.totalorder %s157, %s159
    %p166 = scmp.eq.s32.totalorder %s18, 1
    %p167 = por %p165, %p166
    %p168 = scmp.ne.s32.totalorder %s159, %s160
    %p169 = scmp.eq.s32.totalorder %s18, 0
    %p170 = por %p168, %p169
    %p171 = scmp.ne.s32.totalorder %s159, %s160
    %p172 = scmp.eq.s32.totalorder %s19, 1
    %p173 = por %p171, %p172
    %p175 = scmp.ne.s32.totalorder %s160, %s174
    %p176 = scmp.eq.s32.totalorder %s19, 0
    %p177 = por %p175, %p176
    %s178 = ssub.s32 %s13, %s20
    %p179 = scmp.eq.s32.totalorder %s178, 0
    %s181 = sadd.s32 %s180, 1
    %s182 = scalar_select %p179, %s180, %s181
    %p185 = pneg %p179
    %p186 = scmp.eq.s32.totalorder %s13, 1
    %p187 = por %p185, %p186
    %p188 = scmp.ne.s32.totalorder %s180, %s183
    %p189 = scmp.eq.s32.totalorder %s13, 0
    %p190 = por %p188, %p189
    %p191 = scmp.ne.s32.totalorder %s180, %s183
    %p192 = scmp.eq.s32.totalorder %s18, 1
    %p193 = por %p191, %p192
    %p194 = scmp.ne.s32.totalorder %s183, %s184
    %p195 = scmp.eq.s32.totalorder %s18, 0
    %p196 = por %p194, %p195
    %p197 = scmp.ne.s32.totalorder %s183, %s184
    %p198 = scmp.eq.s32.totalorder %s19, 1
    %p199 = por %p197, %p198
    %p201 = scmp.ne.s32.totalorder %s184, %s200
    %p202 = scmp.eq.s32.totalorder %s19, 0
    %p203 = por %p201, %p202
    %p204 = scmp.le.s32.totalorder 1, %s13
    %p205 = scmp.lt.s32.totalorder %s13, 3
    %p206 = pnand %p204, %p205
    %p207 = pneg %p206
    // Predicated region
    $region9: #{cofusion_forward.1} parent=5 // pred_check
      _
    $region10: #{cofusion_forward.1} parent=5 // pred_check_branch
      %209 = sbr.rel (%p206) target = $region12
    $region11: #{cofusion_forward.1} parent=5 // pred_region
      %s210 = ssub.s32 %s13, 1
      // Predicated region
      $region13: #{cofusion_forward.1} parent=11 // pred_check
        %p211 = pneg %p86
      $region14: #{cofusion_forward.1} parent=11 // pred_check_branch
        %213 = sbr.rel (%p211) target = $region16
      $region15: #{cofusion_forward.1} parent=11 // pred_region
        _
      $region16: #{cofusion_forward.1} parent=11 // pred_fallthru
        _
      // Predicated region
      $region17: #{cofusion_forward.1} parent=11 // pred_check
        %p214 = pneg %p107
      $region18: #{cofusion_forward.1} parent=11 // pred_check_branch
        %216 = sbr.rel (%p214) target = $region20
      $region19: #{cofusion_forward.1} parent=11 // pred_region
        _
      $region20: #{cofusion_forward.1} parent=11 // pred_fallthru
        _
      // Predicated region
      $region21: #{cofusion_forward.1} parent=11 // pred_check
        %p217 = pneg %p128
      $region22: #{cofusion_forward.1} parent=11 // pred_check_branch
        %219 = sbr.rel (%p217) target = $region24
      $region23: #{cofusion_forward.1} parent=11 // pred_region
        _
      $region24: #{cofusion_forward.1} parent=11 // pred_fallthru
        _
      // Predicated region
      $region25: #{cofusion_forward.1} parent=11 // pred_check
        %p220 = pneg %p149
      $region26: #{cofusion_forward.1} parent=11 // pred_check_branch
        %222 = sbr.rel (%p220) target = $region28
      $region27: #{cofusion_forward.1} parent=11 // pred_region
        _
      $region28: #{cofusion_forward.1} parent=11 // pred_fallthru
        _
      // Predicated region
      $region29: #{cofusion_forward.1} parent=11 // pred_check
        %p223 = pneg %p170
      $region30: #{cofusion_forward.1} parent=11 // pred_check_branch
        %225 = sbr.rel (%p223) target = $region32
      $region31: #{cofusion_forward.1} parent=11 // pred_region
        _
      $region32: #{cofusion_forward.1} parent=11 // pred_fallthru
        _
    $region12: #{cofusion_forward.1} parent=5 // pred_fallthru
      _
    %p226 = scmp.lt.s32.totalorder %s13, 2
    // Predicated region
    $region33: #{cofusion_forward.1} parent=5 // pred_check
      %p227 = pneg %p226
    $region34: #{cofusion_forward.1} parent=5 // pred_check_branch
      %229 = sbr.rel (%p227) target = $region36
    $region35: #{cofusion_forward.1} parent=5 // pred_region
      // Predicated region
      $region37: #{cofusion_forward.1} parent=35 // pred_check
        %p230 = pneg %p33
      $region38: #{cofusion_forward.1} parent=35 // pred_check_branch
        %232 = sbr.rel (%p230) target = $region40
      $region39: #{cofusion_forward.1} parent=35 // pred_region
        %p233 = scmp.lt.s32.totalorder %s13, 1
        %s234 = scalar_select %p233, %s13, 1
        %s235 = smul.addr %s234, 10
        %s236 = smul.addr %s235, 8
        %s237 = scalar_lea.vmem %s0, %s236
      $region40: #{cofusion_forward.1} parent=35 // pred_fallthru
        _
      // Predicated region
      $region41: #{cofusion_forward.1} parent=35 // pred_check
        %p238 = pneg %p59
      $region42: #{cofusion_forward.1} parent=35 // pred_check_branch
        %240 = sbr.rel (%p238) target = $region44
      $region43: #{cofusion_forward.1} parent=35 // pred_region
        %p241 = scmp.lt.s32.totalorder %s13, 1
        %s242 = scalar_select %p241, %s13, 1
        %s243 = smul.addr %s242, 2
        %s244 = smul.addr %s243, 4
        %s245 = scalar_lea.vmem %s1, %s244
      $region44: #{cofusion_forward.1} parent=35 // pred_fallthru
        _
    $region36: #{cofusion_forward.1} parent=5 // pred_fallthru
      _
    %p246 = scmp.le.s32.totalorder 1, %s13
    %p247 = scmp.lt.s32.totalorder %s13, 3
    %p248 = pnand %p246, %p247
    %p249 = pneg %p248
    // Predicated region
    $region45: #{cofusion_forward.1} parent=5 // pred_check
      _
    $region46: #{cofusion_forward.1} parent=5 // pred_check_branch
      %251 = sbr.rel (%p248) target = $region48
    $region47: #{cofusion_forward.1} parent=5 // pred_region
      %s252 = ssub.s32 %s13, 1
      %p253 = scmp.lt.s32.totalorder %s18, 1
      %s254 = scalar_select %p253, %s18, 1
      %s255 = smul.addr %s254, 10
      %s256 = smul.addr %s255, 8
      %s257 = scalar_lea.vmem %s0, %s256
      %p258 = pneg %p39
      %p259 = pneg %p36
      %p260 = scmp.lt.s32.totalorder %s18, 1
      %s261 = scalar_select %p260, %s18, 1
      %s262 = smul.addr %s261, 2
      %s263 = smul.addr %s262, 4
      %s264 = scalar_lea.vmem %s1, %s263
      %p265 = pneg %p65
      %p266 = pneg %p62
      %p267 = pneg %p86
      %p268 = pneg %p83
      %p269 = pneg %p107
      %p270 = pneg %p104
      %p271 = pneg %p128
      %p272 = pneg %p125
      %p273 = pneg %p149
      %p274 = pneg %p146
      %p275 = pneg %p170
      %p276 = pneg %p167
      %p277 = pneg %p196
      %p278 = pneg %p193
      %p279 = scmp.lt.s32.totalorder %s18, 1
      %s280 = scalar_select %p279, %s18, 1
      %s281 = smul.addr %s280, 2
      %s282 = scalar_lea.vmem %s7, %s281
      %p283 = scmp.lt.s32.totalorder %s18, 1
      %s284 = scalar_select %p283, %s18, 1
      %s285 = smul.addr %s284, 10
      %s286 = smul.addr %s285, 8
      %s287 = scalar_lea.vmem %s0, %s286
      %p288 = scmp.lt.s32.totalorder %s18, 1
      %s289 = scalar_select %p288, %s18, 1
      %s290 = smul.addr %s289, 2
      %s291 = smul.addr %s290, 4
      %s292 = scalar_lea.vmem %s1, %s291
      %p293 = scmp.lt.s32.totalorder %s18, 1
      %s294 = scalar_select %p293, %s18, 1
      %s295 = smul.addr %s294, 2
      %s296 = scalar_lea.vmem %s7, %s295
      %v297 = vld [vmem:[%s3] sm:$0xff]
      %v298 = vld [vmem:[%s3 + $0x8] sm:$0xff]
      %v299 = vld [vmem:[%s3 + $0x10] sm:$0xff]
      %v300 = vld [vmem:[%s3 + $0x18] sm:$0xff]
      %v301 = vld [vmem:[%s287] sm:$0xff]
      %v302 = vld [vmem:[%s287 + $0x8] sm:$0xff]
      %v303 = vld [vmem:[%s287 + $0x10] sm:$0xff]
      %v304 = vld [vmem:[%s287 + $0x18] sm:$0xff]
      %v305 = vld [vmem:[%s287 + $0x20] sm:$0xff]
      %v306 = vld [vmem:[%s287 + $0x28] sm:$0xff]
      %v307 = vld [vmem:[%s287 + $0x30] sm:$0xff]
      %v308 = vld [vmem:[%s287 + $0x38] sm:$0xff]
      %v309 = vld [vmem:[%s287 + $0x40] sm:$0x1f]
      %v310 = vld [vmem:[%s287 + $0x48] sm:$0x1f]
      %vm311 = vcmask 302080
      %v313 = vsel %vm311, %v297, 0
      %v316 = vsel %vm311, %v298, 0
      %v319 = vsel %vm311, %v299, 0
      %v322 = vsel %vm311, %v300, 0
      %vm324 = vcmask 1044480
      %v326 = vsel %vm324, %v309, 0
      %v329 = vsel %vm324, %v310, 0
      %331 = vmatprep.subr.mxu0 0.0
      %332 = vmatpush1.msra.mxu0 0.0
      %333 = vmatprep.subr.mxu0 0.0
      %334 = vmatpush1.msra.mxu0 0.0
      %335 = vmatprep.subr.mxu0 0.0
      %336 = vmatpush1.msra.mxu0 0.0
      %337 = vmatprep.subr.mxu0 0.0
      %338 = vmatpush1.msra.mxu0 0.0
      %339 = vmatprep.subr.mxu0 0.0
      %340 = vmatpush1.msra.mxu0 0.0
      %341 = vmatprep.subr.mxu0 0.0
      %342 = vmatpush1.msra.mxu0 0.0
      %343 = vmatprep.subr.mxu0 0.0
      %344 = vmatpush1.msra.mxu0 0.0
      %345 = vmatprep.subr.mxu0 0.0
      %346 = vmatpush1.msra.mxu0 0.0
      %347 = vmatprep.subr.mxu0 0.0
      %348 = vmatpush1.msra.mxu0 0.0
      %349 = vmatprep.subr.mxu0 0.0
      %350 = vmatpush1.msra.mxu0 0.0
      %351 = vmatprep.subr.mxu0 0.0
      %352 = vmatpush1.msra.mxu0 0.0
      %v353 = vand.u32 %v329, 4294901760
      %354 = vmatprep.subr.mxu0 %v353
      %v355 = vand.u32 %v326, 4294901760
      %356 = vmatpush1.msra.mxu0 %v355
      %v357 = vand.u32 %v308, 4294901760
      %358 = vmatprep.subr.mxu0 %v357
      %v359 = vand.u32 %v307, 4294901760
      %360 = vmatpush1.msra.mxu0 %v359
      %v361 = vand.u32 %v306, 4294901760
      %362 = vmatprep.subr.mxu0 %v361
      %v363 = vand.u32 %v305, 4294901760
      %364 = vmatpush1.msra.mxu0 %v363
      %v365 = vand.u32 %v304, 4294901760
      %366 = vmatprep.subr.mxu0 %v365
      %v367 = vand.u32 %v303, 4294901760
      %368 = vmatpush1.msra.mxu0 %v367
      %v369 = vand.u32 %v302, 4294901760
      %370 = vmatprep.subr.mxu0 %v369
      %v371 = vand.u32 %v301, 4294901760
      %372 = vmatpush1.msra.mxu0 %v371
      %373 = vmatprep.subr.mxu0 0.0
      %374 = vmatpush2.msra.mxu0 0.0
      %375 = vmatprep.subr.mxu0 0.0
      %376 = vmatpush2.msra.mxu0 0.0
      %377 = vmatprep.subr.mxu0 0.0
      %378 = vmatpush2.msra.mxu0 0.0
      %379 = vmatprep.subr.mxu0 0.0
      %380 = vmatpush2.msra.mxu0 0.0
      %381 = vmatprep.subr.mxu0 0.0
      %382 = vmatpush2.msra.mxu0 0.0
      %383 = vmatprep.subr.mxu0 0.0
      %384 = vmatpush2.msra.mxu0 0.0
      %385 = vmatprep.subr.mxu0 0.0
      %386 = vmatpush2.msra.mxu0 0.0
      %387 = vmatprep.subr.mxu0 0.0
      %388 = vmatpush2.msra.mxu0 0.0
      %389 = vmatprep.subr.mxu0 0.0
      %390 = vmatpush2.msra.mxu0 0.0
      %391 = vmatprep.subr.mxu0 0.0
      %392 = vmatpush2.msra.mxu0 0.0
      %393 = vmatprep.subr.mxu0 0.0
      %394 = vmatpush2.msra.mxu0 0.0
      %395 = vmatprep.subr.mxu0 0.0
      %396 = vmatpush2.msra.mxu0 0.0
      %397 = vmatprep.subr.mxu0 0.0
      %398 = vmatpush2.msra.mxu0 0.0
      %399 = vmatprep.subr.mxu0 0.0
      %400 = vmatpush2.msra.mxu0 0.0
      %401 = vmatprep.subr.mxu0 0.0
      %402 = vmatpush2.msra.mxu0 0.0
      %403 = vmatprep.subr.mxu0 0.0
      %404 = vmatpush2.msra.mxu0 0.0
      %405 = vmatprep.mubr.f32.mxu0 0.0
      %v406 = vand.u32 %v313, 4294901760
      %v407 = vsub.f32 %v313, %v406
      %v408 = vand.u32 %v407, 4294901760
      %v409 = vsub.f32 %v407, %v408
      %v410 = vand.u32 %v409, 4294901760
      %411 = vmatmul.mubr.f32.gmra.mxu0 %v410
      %v412 = vpop.f32.mrf.mxu0
      %v413 = vadd.f32 0.0, %v412
      %v414 = vpop.f32.mrf.mxu0
      %v415 = vadd.f32 0.0, %v414
      %416 = vmatprep.mubr.f32.mxu0 0.0
      %v417 = vand.u32 %v316, 4294901760
      %v418 = vsub.f32 %v316, %v417
      %v419 = vand.u32 %v418, 4294901760
      %v420 = vsub.f32 %v418, %v419
      %v421 = vand.u32 %v420, 4294901760
      %422 = vmatmul.mubr.f32.gmra.mxu0 %v421
      %v423 = vpop.f32.mrf.mxu0
      %v424 = vadd.f32 0.0, %v423
      %v425 = vpop.f32.mrf.mxu0
      %v426 = vadd.f32 0.0, %v425
      %427 = vmatprep.mubr.f32.mxu0 0.0
      %v428 = vand.u32 %v319, 4294901760
      %v429 = vsub.f32 %v319, %v428
      %v430 = vand.u32 %v429, 4294901760
      %v431 = vsub.f32 %v429, %v430
      %v432 = vand.u32 %v431, 4294901760
      %433 = vmatmul.mubr.f32.gmra.mxu0 %v432
      %v434 = vpop.f32.mrf.mxu0
      %v435 = vadd.f32 0.0, %v434
      %v436 = vpop.f32.mrf.mxu0
      %v437 = vadd.f32 0.0, %v436
      %438 = vmatprep.mubr.f32.mxu0 0.0
      %v439 = vand.u32 %v322, 4294901760
      %v440 = vsub.f32 %v322, %v439
      %v441 = vand.u32 %v440, 4294901760
      %v442 = vsub.f32 %v440, %v441
      %v443 = vand.u32 %v442, 4294901760
      %444 = vmatmul.mubr.f32.gmra.mxu0 %v443
      %v445 = vpop.f32.mrf.mxu0
      %v446 = vadd.f32 0.0, %v445
      %v447 = vpop.f32.mrf.mxu0
      %v448 = vadd.f32 0.0, %v447
      %449 = vdwg.mxu0
      %450 = vmatprep.subr.mxu0 0.0
      %451 = vmatpush1.msra.mxu0 0.0
      %452 = vmatprep.subr.mxu0 0.0
      %453 = vmatpush1.msra.mxu0 0.0
      %454 = vmatprep.subr.mxu0 0.0
      %455 = vmatpush1.msra.mxu0 0.0
      %456 = vmatprep.subr.mxu0 0.0
      %457 = vmatpush1.msra.mxu0 0.0
      %458 = vmatprep.subr.mxu0 0.0
      %459 = vmatpush1.msra.mxu0 0.0
      %460 = vmatprep.subr.mxu0 0.0
      %461 = vmatpush1.msra.mxu0 0.0
      %462 = vmatprep.subr.mxu0 0.0
      %463 = vmatpush1.msra.mxu0 0.0
      %464 = vmatprep.subr.mxu0 0.0
      %465 = vmatpush1.msra.mxu0 0.0
      %466 = vmatprep.subr.mxu0 0.0
      %467 = vmatpush1.msra.mxu0 0.0
      %468 = vmatprep.subr.mxu0 0.0
      %469 = vmatpush1.msra.mxu0 0.0
      %470 = vmatprep.subr.mxu0 0.0
      %471 = vmatpush1.msra.mxu0 0.0
      %v472 = vand.u32 %v329, 4294901760
      %v473 = vsub.f32 %v329, %v472
      %v474 = vand.u32 %v473, 4294901760
      %v475 = vsub.f32 %v473, %v474
      %v476 = vand.u32 %v475, 4294901760
      %477 = vmatprep.subr.mxu0 %v476
      %v478 = vand.u32 %v326, 4294901760
      %v479 = vsub.f32 %v326, %v478
      %v480 = vand.u32 %v479, 4294901760
      %v481 = vsub.f32 %v479, %v480
      %v482 = vand.u32 %v481, 4294901760
      %483 = vmatpush1.msra.mxu0 %v482
      %v484 = vand.u32 %v308, 4294901760
      %v485 = vsub.f32 %v308, %v484
      %v486 = vand.u32 %v485, 4294901760
      %v487 = vsub.f32 %v485, %v486
      %v488 = vand.u32 %v487, 4294901760
      %489 = vmatprep.subr.mxu0 %v488
      %v490 = vand.u32 %v307, 4294901760
      %v491 = vsub.f32 %v307, %v490
      %v492 = vand.u32 %v491, 4294901760
      %v493 = vsub.f32 %v491, %v492
      %v494 = vand.u32 %v493, 4294901760
      %495 = vmatpush1.msra.mxu0 %v494
      %v496 = vand.u32 %v306, 4294901760
      %v497 = vsub.f32 %v306, %v496
      %v498 = vand.u32 %v497, 4294901760
      %v499 = vsub.f32 %v497, %v498
      %v500 = vand.u32 %v499, 4294901760
      %501 = vmatprep.subr.mxu0 %v500
      %v502 = vand.u32 %v305, 4294901760
      %v503 = vsub.f32 %v305, %v502
      %v504 = vand.u32 %v503, 4294901760
      %v505 = vsub.f32 %v503, %v504
      %v506 = vand.u32 %v505, 4294901760
      %507 = vmatpush1.msra.mxu0 %v506
      %v508 = vand.u32 %v304, 4294901760
      %v509 = vsub.f32 %v304, %v508
      %v510 = vand.u32 %v509, 4294901760
      %v511 = vsub.f32 %v509, %v510
      %v512 = vand.u32 %v511, 4294901760
      %513 = vmatprep.subr.mxu0 %v512
      %v514 = vand.u32 %v303, 4294901760
      %v515 = vsub.f32 %v303, %v514
      %v516 = vand.u32 %v515, 4294901760
      %v517 = vsub.f32 %v515, %v516
      %v518 = vand.u32 %v517, 4294901760
      %519 = vmatpush1.msra.mxu0 %v518
      %v520 = vand.u32 %v302, 4294901760
      %v521 = vsub.f32 %v302, %v520
      %v522 = vand.u32 %v521, 4294901760
      %v523 = vsub.f32 %v521, %v522
      %v524 = vand.u32 %v523, 4294901760
      %525 = vmatprep.subr.mxu0 %v524
      %v526 = vand.u32 %v301, 4294901760
      %v527 = vsub.f32 %v301, %v526
      %v528 = vand.u32 %v527, 4294901760
      %v529 = vsub.f32 %v527, %v528
      %v530 = vand.u32 %v529, 4294901760
      %531 = vmatpush1.msra.mxu0 %v530
      %532 = vmatprep.subr.mxu0 0.0
      %533 = vmatpush2.msra.mxu0 0.0
      %534 = vmatprep.subr.mxu0 0.0
      %535 = vmatpush2.msra.mxu0 0.0
      %536 = vmatprep.subr.mxu0 0.0
      %537 = vmatpush2.msra.mxu0 0.0
      %538 = vmatprep.subr.mxu0 0.0
      %539 = vmatpush2.msra.mxu0 0.0
      %540 = vmatprep.subr.mxu0 0.0
      %541 = vmatpush2.msra.mxu0 0.0
      %542 = vmatprep.subr.mxu0 0.0
      %543 = vmatpush2.msra.mxu0 0.0
      %544 = vmatprep.subr.mxu0 0.0
      %545 = vmatpush2.msra.mxu0 0.0
      %546 = vmatprep.subr.mxu0 0.0
      %547 = vmatpush2.msra.mxu0 0.0
      %548 = vmatprep.subr.mxu0 0.0
      %549 = vmatpush2.msra.mxu0 0.0
      %550 = vmatprep.subr.mxu0 0.0
      %551 = vmatpush2.msra.mxu0 0.0
      %552 = vmatprep.subr.mxu0 0.0
      %553 = vmatpush2.msra.mxu0 0.0
      %554 = vmatprep.subr.mxu0 0.0
      %555 = vmatpush2.msra.mxu0 0.0
      %556 = vmatprep.subr.mxu0 0.0
      %557 = vmatpush2.msra.mxu0 0.0
      %558 = vmatprep.subr.mxu0 0.0
      %559 = vmatpush2.msra.mxu0 0.0
      %560 = vmatprep.subr.mxu0 0.0
      %561 = vmatpush2.msra.mxu0 0.0
      %562 = vmatprep.subr.mxu0 0.0
      %563 = vmatpush2.msra.mxu0 0.0
      %564 = vmatprep.mubr.f32.mxu0 0.0
      %v565 = vand.u32 %v313, 4294901760
      %566 = vmatmul.mubr.f32.gmra.mxu0 %v565
      %v567 = vpop.f32.mrf.mxu0
      %v568 = vadd.f32 %v413, %v567
      %v569 = vpop.f32.mrf.mxu0
      %v570 = vadd.f32 %v415, %v569
      %571 = vmatprep.mubr.f32.mxu0 0.0
      %v572 = vand.u32 %v316, 4294901760
      %573 = vmatmul.mubr.f32.gmra.mxu0 %v572
      %v574 = vpop.f32.mrf.mxu0
      %v575 = vadd.f32 %v424, %v574
      %v576 = vpop.f32.mrf.mxu0
      %v577 = vadd.f32 %v426, %v576
      %578 = vmatprep.mubr.f32.mxu0 0.0
      %v579 = vand.u32 %v319, 4294901760
      %580 = vmatmul.mubr.f32.gmra.mxu0 %v579
      %v581 = vpop.f32.mrf.mxu0
      %v582 = vadd.f32 %v435, %v581
      %v583 = vpop.f32.mrf.mxu0
      %v584 = vadd.f32 %v437, %v583
      %585 = vmatprep.mubr.f32.mxu0 0.0
      %v586 = vand.u32 %v322, 4294901760
      %587 = vmatmul.mubr.f32.gmra.mxu0 %v586
      %v588 = vpop.f32.mrf.mxu0
      %v589 = vadd.f32 %v446, %v588
      %v590 = vpop.f32.mrf.mxu0
      %v591 = vadd.f32 %v448, %v590
      %592 = vdwg.mxu0
      %593 = vmatprep.subr.mxu0 0.0
      %594 = vmatpush1.msra.mxu0 0.0
      %595 = vmatprep.subr.mxu0 0.0
      %596 = vmatpush1.msra.mxu0 0.0
      %597 = vmatprep.subr.mxu0 0.0
      %598 = vmatpush1.msra.mxu0 0.0
      %599 = vmatprep.subr.mxu0 0.0
      %600 = vmatpush1.msra.mxu0 0.0
      %601 = vmatprep.subr.mxu0 0.0
      %602 = vmatpush1.msra.mxu0 0.0
      %603 = vmatprep.subr.mxu0 0.0
      %604 = vmatpush1.msra.mxu0 0.0
      %605 = vmatprep.subr.mxu0 0.0
      %606 = vmatpush1.msra.mxu0 0.0
      %607 = vmatprep.subr.mxu0 0.0
      %608 = vmatpush1.msra.mxu0 0.0
      %609 = vmatprep.subr.mxu0 0.0
      %610 = vmatpush1.msra.mxu0 0.0
      %611 = vmatprep.subr.mxu0 0.0
      %612 = vmatpush1.msra.mxu0 0.0
      %613 = vmatprep.subr.mxu0 0.0
      %614 = vmatpush1.msra.mxu0 0.0
      %v615 = vand.u32 %v329, 4294901760
      %v616 = vsub.f32 %v329, %v615
      %617 = vmatprep.subr.mxu0 %v616
      %v618 = vand.u32 %v326, 4294901760
      %v619 = vsub.f32 %v326, %v618
      %620 = vmatpush1.msra.mxu0 %v619
      %v621 = vand.u32 %v308, 4294901760
      %v622 = vsub.f32 %v308, %v621
      %623 = vmatprep.subr.mxu0 %v622
      %v624 = vand.u32 %v307, 4294901760
      %v625 = vsub.f32 %v307, %v624
      %626 = vmatpush1.msra.mxu0 %v625
      %v627 = vand.u32 %v306, 4294901760
      %v628 = vsub.f32 %v306, %v627
      %629 = vmatprep.subr.mxu0 %v628
      %v630 = vand.u32 %v305, 4294901760
      %v631 = vsub.f32 %v305, %v630
      %632 = vmatpush1.msra.mxu0 %v631
      %v633 = vand.u32 %v304, 4294901760
      %v634 = vsub.f32 %v304, %v633
      %635 = vmatprep.subr.mxu0 %v634
      %v636 = vand.u32 %v303, 4294901760
      %v637 = vsub.f32 %v303, %v636
      %638 = vmatpush1.msra.mxu0 %v637
      %v639 = vand.u32 %v302, 4294901760
      %v640 = vsub.f32 %v302, %v639
      %641 = vmatprep.subr.mxu0 %v640
      %v642 = vand.u32 %v301, 4294901760
      %v643 = vsub.f32 %v301, %v642
      %644 = vmatpush1.msra.mxu0 %v643
      %645 = vmatprep.subr.mxu0 0.0
      %646 = vmatpush2.msra.mxu0 0.0
      %647 = vmatprep.subr.mxu0 0.0
      %648 = vmatpush2.msra.mxu0 0.0
      %649 = vmatprep.subr.mxu0 0.0
      %650 = vmatpush2.msra.mxu0 0.0
      %651 = vmatprep.subr.mxu0 0.0
      %652 = vmatpush2.msra.mxu0 0.0
      %653 = vmatprep.subr.mxu0 0.0
      %654 = vmatpush2.msra.mxu0 0.0
      %655 = vmatprep.subr.mxu0 0.0
      %656 = vmatpush2.msra.mxu0 0.0
      %657 = vmatprep.subr.mxu0 0.0
      %658 = vmatpush2.msra.mxu0 0.0
      %659 = vmatprep.subr.mxu0 0.0
      %660 = vmatpush2.msra.mxu0 0.0
      %661 = vmatprep.subr.mxu0 0.0
      %662 = vmatpush2.msra.mxu0 0.0
      %663 = vmatprep.subr.mxu0 0.0
      %664 = vmatpush2.msra.mxu0 0.0
      %665 = vmatprep.subr.mxu0 0.0
      %666 = vmatpush2.msra.mxu0 0.0
      %667 = vmatprep.subr.mxu0 0.0
      %668 = vmatpush2.msra.mxu0 0.0
      %669 = vmatprep.subr.mxu0 0.0
      %670 = vmatpush2.msra.mxu0 0.0
      %671 = vmatprep.subr.mxu0 0.0
      %672 = vmatpush2.msra.mxu0 0.0
      %673 = vmatprep.subr.mxu0 0.0
      %674 = vmatpush2.msra.mxu0 0.0
      %675 = vmatprep.subr.mxu0 0.0
      %676 = vmatpush2.msra.mxu0 0.0
      %677 = vmatprep.mubr.f32.mxu0 0.0
      %v678 = vand.u32 %v313, 4294901760
      %v679 = vsub.f32 %v313, %v678
      %680 = vmatmul.mubr.f32.gmra.mxu0 %v679
      %v681 = vpop.f32.mrf.mxu0
      %v682 = vadd.f32 %v568, %v681
      %v683 = vpop.f32.mrf.mxu0
      %v684 = vadd.f32 %v570, %v683
      %685 = vmatprep.mubr.f32.mxu0 0.0
      %v686 = vand.u32 %v316, 4294901760
      %v687 = vsub.f32 %v316, %v686
      %688 = vmatmul.mubr.f32.gmra.mxu0 %v687
      %v689 = vpop.f32.mrf.mxu0
      %v690 = vadd.f32 %v575, %v689
      %v691 = vpop.f32.mrf.mxu0
      %v692 = vadd.f32 %v577, %v691
      %693 = vmatprep.mubr.f32.mxu0 0.0
      %v694 = vand.u32 %v319, 4294901760
      %v695 = vsub.f32 %v319, %v694
      %696 = vmatmul.mubr.f32.gmra.mxu0 %v695
      %v697 = vpop.f32.mrf.mxu0
      %v698 = vadd.f32 %v582, %v697
      %v699 = vpop.f32.mrf.mxu0
      %v700 = vadd.f32 %v584, %v699
      %701 = vmatprep.mubr.f32.mxu0 0.0
      %v702 = vand.u32 %v322, 4294901760
      %v703 = vsub.f32 %v322, %v702
      %704 = vmatmul.mubr.f32.gmra.mxu0 %v703
      %v705 = vpop.f32.mrf.mxu0
      %v706 = vadd.f32 %v589, %v705
      %v707 = vpop.f32.mrf.mxu0
      %v708 = vadd.f32 %v591, %v707
      %709 = vdwg.mxu0
      %710 = vmatprep.subr.mxu0 0.0
      %711 = vmatpush1.msra.mxu0 0.0
      %712 = vmatprep.subr.mxu0 0.0
      %713 = vmatpush1.msra.mxu0 0.0
      %714 = vmatprep.subr.mxu0 0.0
      %715 = vmatpush1.msra.mxu0 0.0
      %716 = vmatprep.subr.mxu0 0.0
      %717 = vmatpush1.msra.mxu0 0.0
      %718 = vmatprep.subr.mxu0 0.0
      %719 = vmatpush1.msra.mxu0 0.0
      %720 = vmatprep.subr.mxu0 0.0
      %721 = vmatpush1.msra.mxu0 0.0
      %722 = vmatprep.subr.mxu0 0.0
      %723 = vmatpush1.msra.mxu0 0.0
      %724 = vmatprep.subr.mxu0 0.0
      %725 = vmatpush1.msra.mxu0 0.0
      %726 = vmatprep.subr.mxu0 0.0
      %727 = vmatpush1.msra.mxu0 0.0
      %728 = vmatprep.subr.mxu0 0.0
      %729 = vmatpush1.msra.mxu0 0.0
      %730 = vmatprep.subr.mxu0 0.0
      %731 = vmatpush1.msra.mxu0 0.0
      %v732 = vand.u32 %v329, 4294901760
      %733 = vmatprep.subr.mxu0 %v732
      %v734 = vand.u32 %v326, 4294901760
      %735 = vmatpush1.msra.mxu0 %v734
      %v736 = vand.u32 %v308, 4294901760
      %737 = vmatprep.subr.mxu0 %v736
      %v738 = vand.u32 %v307, 4294901760
      %739 = vmatpush1.msra.mxu0 %v738
      %v740 = vand.u32 %v306, 4294901760
      %741 = vmatprep.subr.mxu0 %v740
      %v742 = vand.u32 %v305, 4294901760
      %743 = vmatpush1.msra.mxu0 %v742
      %v744 = vand.u32 %v304, 4294901760
      %745 = vmatprep.subr.mxu0 %v744
      %v746 = vand.u32 %v303, 4294901760
      %747 = vmatpush1.msra.mxu0 %v746
      %v748 = vand.u32 %v302, 4294901760
      %749 = vmatprep.subr.mxu0 %v748
      %v750 = vand.u32 %v301, 4294901760
      %751 = vmatpush1.msra.mxu0 %v750
      %752 = vmatprep.subr.mxu0 0.0
      %753 = vmatpush2.msra.mxu0 0.0
      %754 = vmatprep.subr.mxu0 0.0
      %755 = vmatpush2.msra.mxu0 0.0
      %756 = vmatprep.subr.mxu0 0.0
      %757 = vmatpush2.msra.mxu0 0.0
      %758 = vmatprep.subr.mxu0 0.0
      %759 = vmatpush2.msra.mxu0 0.0
      %760 = vmatprep.subr.mxu0 0.0
      %761 = vmatpush2.msra.mxu0 0.0
      %762 = vmatprep.subr.mxu0 0.0
      %763 = vmatpush2.msra.mxu0 0.0
      %764 = vmatprep.subr.mxu0 0.0
      %765 = vmatpush2.msra.mxu0 0.0
      %766 = vmatprep.subr.mxu0 0.0
      %767 = vmatpush2.msra.mxu0 0.0
      %768 = vmatprep.subr.mxu0 0.0
      %769 = vmatpush2.msra.mxu0 0.0
      %770 = vmatprep.subr.mxu0 0.0
      %771 = vmatpush2.msra.mxu0 0.0
      %772 = vmatprep.subr.mxu0 0.0
      %773 = vmatpush2.msra.mxu0 0.0
      %774 = vmatprep.subr.mxu0 0.0
      %775 = vmatpush2.msra.mxu0 0.0
      %776 = vmatprep.subr.mxu0 0.0
      %777 = vmatpush2.msra.mxu0 0.0
      %778 = vmatprep.subr.mxu0 0.0
      %779 = vmatpush2.msra.mxu0 0.0
      %780 = vmatprep.subr.mxu0 0.0
      %781 = vmatpush2.msra.mxu0 0.0
      %782 = vmatprep.subr.mxu0 0.0
      %783 = vmatpush2.msra.mxu0 0.0
      %784 = vmatprep.mubr.f32.mxu0 0.0
      %v785 = vand.u32 %v313, 4294901760
      %v786 = vsub.f32 %v313, %v785
      %v787 = vand.u32 %v786, 4294901760
      %788 = vmatmul.mubr.f32.gmra.mxu0 %v787
      %v789 = vpop.f32.mrf.mxu0
      %v790 = vadd.f32 %v682, %v789
      %v791 = vpop.f32.mrf.mxu0
      %v792 = vadd.f32 %v684, %v791
      %793 = vmatprep.mubr.f32.mxu0 0.0
      %v794 = vand.u32 %v316, 4294901760
      %v795 = vsub.f32 %v316, %v794
      %v796 = vand.u32 %v795, 4294901760
      %797 = vmatmul.mubr.f32.gmra.mxu0 %v796
      %v798 = vpop.f32.mrf.mxu0
      %v799 = vadd.f32 %v690, %v798
      %v800 = vpop.f32.mrf.mxu0
      %v801 = vadd.f32 %v692, %v800
      %802 = vmatprep.mubr.f32.mxu0 0.0
      %v803 = vand.u32 %v319, 4294901760
      %v804 = vsub.f32 %v319, %v803
      %v805 = vand.u32 %v804, 4294901760
      %806 = vmatmul.mubr.f32.gmra.mxu0 %v805
      %v807 = vpop.f32.mrf.mxu0
      %v808 = vadd.f32 %v698, %v807
      %v809 = vpop.f32.mrf.mxu0
      %v810 = vadd.f32 %v700, %v809
      %811 = vmatprep.mubr.f32.mxu0 0.0
      %v812 = vand.u32 %v322, 4294901760
      %v813 = vsub.f32 %v322, %v812
      %v814 = vand.u32 %v813, 4294901760
      %815 = vmatmul.mubr.f32.gmra.mxu0 %v814
      %v816 = vpop.f32.mrf.mxu0
      %v817 = vadd.f32 %v706, %v816
      %v818 = vpop.f32.mrf.mxu0
      %v819 = vadd.f32 %v708, %v818
      %820 = vdwg.mxu0
      %821 = vmatprep.subr.mxu0 0.0
      %822 = vmatpush1.msra.mxu0 0.0
      %823 = vmatprep.subr.mxu0 0.0
      %824 = vmatpush1.msra.mxu0 0.0
      %825 = vmatprep.subr.mxu0 0.0
      %826 = vmatpush1.msra.mxu0 0.0
      %827 = vmatprep.subr.mxu0 0.0
      %828 = vmatpush1.msra.mxu0 0.0
      %829 = vmatprep.subr.mxu0 0.0
      %830 = vmatpush1.msra.mxu0 0.0
      %831 = vmatprep.subr.mxu0 0.0
      %832 = vmatpush1.msra.mxu0 0.0
      %833 = vmatprep.subr.mxu0 0.0
      %834 = vmatpush1.msra.mxu0 0.0
      %835 = vmatprep.subr.mxu0 0.0
      %836 = vmatpush1.msra.mxu0 0.0
      %837 = vmatprep.subr.mxu0 0.0
      %838 = vmatpush1.msra.mxu0 0.0
      %839 = vmatprep.subr.mxu0 0.0
      %840 = vmatpush1.msra.mxu0 0.0
      %841 = vmatprep.subr.mxu0 0.0
      %842 = vmatpush1.msra.mxu0 0.0
      %v843 = vand.u32 %v329, 4294901760
      %v844 = vsub.f32 %v329, %v843
      %v845 = vand.u32 %v844, 4294901760
      %846 = vmatprep.subr.mxu0 %v845
      %v847 = vand.u32 %v326, 4294901760
      %v848 = vsub.f32 %v326, %v847
      %v849 = vand.u32 %v848, 4294901760
      %850 = vmatpush1.msra.mxu0 %v849
      %v851 = vand.u32 %v308, 4294901760
      %v852 = vsub.f32 %v308, %v851
      %v853 = vand.u32 %v852, 4294901760
      %854 = vmatprep.subr.mxu0 %v853
      %v855 = vand.u32 %v307, 4294901760
      %v856 = vsub.f32 %v307, %v855
      %v857 = vand.u32 %v856, 4294901760
      %858 = vmatpush1.msra.mxu0 %v857
      %v859 = vand.u32 %v306, 4294901760
      %v860 = vsub.f32 %v306, %v859
      %v861 = vand.u32 %v860, 4294901760
      %862 = vmatprep.subr.mxu0 %v861
      %v863 = vand.u32 %v305, 4294901760
      %v864 = vsub.f32 %v305, %v863
      %v865 = vand.u32 %v864, 4294901760
      %866 = vmatpush1.msra.mxu0 %v865
      %v867 = vand.u32 %v304, 4294901760
      %v868 = vsub.f32 %v304, %v867
      %v869 = vand.u32 %v868, 4294901760
      %870 = vmatprep.subr.mxu0 %v869
      %v871 = vand.u32 %v303, 4294901760
      %v872 = vsub.f32 %v303, %v871
      %v873 = vand.u32 %v872, 4294901760
      %874 = vmatpush1.msra.mxu0 %v873
      %v875 = vand.u32 %v302, 4294901760
      %v876 = vsub.f32 %v302, %v875
      %v877 = vand.u32 %v876, 4294901760
      %878 = vmatprep.subr.mxu0 %v877
      %v879 = vand.u32 %v301, 4294901760
      %v880 = vsub.f32 %v301, %v879
      %v881 = vand.u32 %v880, 4294901760
      %882 = vmatpush1.msra.mxu0 %v881
      %883 = vmatprep.subr.mxu0 0.0
      %884 = vmatpush2.msra.mxu0 0.0
      %885 = vmatprep.subr.mxu0 0.0
      %886 = vmatpush2.msra.mxu0 0.0
      %887 = vmatprep.subr.mxu0 0.0
      %888 = vmatpush2.msra.mxu0 0.0
      %889 = vmatprep.subr.mxu0 0.0
      %890 = vmatpush2.msra.mxu0 0.0
      %891 = vmatprep.subr.mxu0 0.0
      %892 = vmatpush2.msra.mxu0 0.0
      %893 = vmatprep.subr.mxu0 0.0
      %894 = vmatpush2.msra.mxu0 0.0
      %895 = vmatprep.subr.mxu0 0.0
      %896 = vmatpush2.msra.mxu0 0.0
      %897 = vmatprep.subr.mxu0 0.0
      %898 = vmatpush2.msra.mxu0 0.0
      %899 = vmatprep.subr.mxu0 0.0
      %900 = vmatpush2.msra.mxu0 0.0
      %901 = vmatprep.subr.mxu0 0.0
      %902 = vmatpush2.msra.mxu0 0.0
      %903 = vmatprep.subr.mxu0 0.0
      %904 = vmatpush2.msra.mxu0 0.0
      %905 = vmatprep.subr.mxu0 0.0
      %906 = vmatpush2.msra.mxu0 0.0
      %907 = vmatprep.subr.mxu0 0.0
      %908 = vmatpush2.msra.mxu0 0.0
      %909 = vmatprep.subr.mxu0 0.0
      %910 = vmatpush2.msra.mxu0 0.0
      %911 = vmatprep.subr.mxu0 0.0
      %912 = vmatpush2.msra.mxu0 0.0
      %913 = vmatprep.subr.mxu0 0.0
      %914 = vmatpush2.msra.mxu0 0.0
      %915 = vmatprep.mubr.f32.mxu0 0.0
      %v916 = vand.u32 %v313, 4294901760
      %917 = vmatmul.mubr.f32.gmra.mxu0 %v916
      %v918 = vpop.f32.mrf.mxu0
      %v919 = vadd.f32 %v790, %v918
      %v920 = vpop.f32.mrf.mxu0
      %v921 = vadd.f32 %v792, %v920
      %922 = vmatprep.mubr.f32.mxu0 0.0
      %v923 = vand.u32 %v316, 4294901760
      %924 = vmatmul.mubr.f32.gmra.mxu0 %v923
      %v925 = vpop.f32.mrf.mxu0
      %v926 = vadd.f32 %v799, %v925
      %v927 = vpop.f32.mrf.mxu0
      %v928 = vadd.f32 %v801, %v927
      %929 = vmatprep.mubr.f32.mxu0 0.0
      %v930 = vand.u32 %v319, 4294901760
      %931 = vmatmul.mubr.f32.gmra.mxu0 %v930
      %v932 = vpop.f32.mrf.mxu0
      %v933 = vadd.f32 %v808, %v932
      %v934 = vpop.f32.mrf.mxu0
      %v935 = vadd.f32 %v810, %v934
      %936 = vmatprep.mubr.f32.mxu0 0.0
      %v937 = vand.u32 %v322, 4294901760
      %938 = vmatmul.mubr.f32.gmra.mxu0 %v937
      %v939 = vpop.f32.mrf.mxu0
      %v940 = vadd.f32 %v817, %v939
      %v941 = vpop.f32.mrf.mxu0
      %v942 = vadd.f32 %v819, %v941
      %943 = vdwg.mxu0
      %944 = vmatprep.subr.mxu0 0.0
      %945 = vmatpush1.msra.mxu0 0.0
      %946 = vmatprep.subr.mxu0 0.0
      %947 = vmatpush1.msra.mxu0 0.0
      %948 = vmatprep.subr.mxu0 0.0
      %949 = vmatpush1.msra.mxu0 0.0
      %950 = vmatprep.subr.mxu0 0.0
      %951 = vmatpush1.msra.mxu0 0.0
      %952 = vmatprep.subr.mxu0 0.0
      %953 = vmatpush1.msra.mxu0 0.0
      %954 = vmatprep.subr.mxu0 0.0
      %955 = vmatpush1.msra.mxu0 0.0
      %956 = vmatprep.subr.mxu0 0.0
      %957 = vmatpush1.msra.mxu0 0.0
      %958 = vmatprep.subr.mxu0 0.0
      %959 = vmatpush1.msra.mxu0 0.0
      %960 = vmatprep.subr.mxu0 0.0
      %961 = vmatpush1.msra.mxu0 0.0
      %962 = vmatprep.subr.mxu0 0.0
      %963 = vmatpush1.msra.mxu0 0.0
      %964 = vmatprep.subr.mxu0 0.0
      %965 = vmatpush1.msra.mxu0 0.0
      %v966 = vand.u32 %v329, 4294901760
      %967 = vmatprep.subr.mxu0 %v966
      %v968 = vand.u32 %v326, 4294901760
      %969 = vmatpush1.msra.mxu0 %v968
      %v970 = vand.u32 %v308, 4294901760
      %971 = vmatprep.subr.mxu0 %v970
      %v972 = vand.u32 %v307, 4294901760
      %973 = vmatpush1.msra.mxu0 %v972
      %v974 = vand.u32 %v306, 4294901760
      %975 = vmatprep.subr.mxu0 %v974
      %v976 = vand.u32 %v305, 4294901760
      %977 = vmatpush1.msra.mxu0 %v976
      %v978 = vand.u32 %v304, 4294901760
      %979 = vmatprep.subr.mxu0 %v978
      %v980 = vand.u32 %v303, 4294901760
      %981 = vmatpush1.msra.mxu0 %v980
      %v982 = vand.u32 %v302, 4294901760
      %983 = vmatprep.subr.mxu0 %v982
      %v984 = vand.u32 %v301, 4294901760
      %985 = vmatpush1.msra.mxu0 %v984
      %986 = vmatprep.subr.mxu0 0.0
      %987 = vmatpush2.msra.mxu0 0.0
      %988 = vmatprep.subr.mxu0 0.0
      %989 = vmatpush2.msra.mxu0 0.0
      %990 = vmatprep.subr.mxu0 0.0
      %991 = vmatpush2.msra.mxu0 0.0
      %992 = vmatprep.subr.mxu0 0.0
      %993 = vmatpush2.msra.mxu0 0.0
      %994 = vmatprep.subr.mxu0 0.0
      %995 = vmatpush2.msra.mxu0 0.0
      %996 = vmatprep.subr.mxu0 0.0
      %997 = vmatpush2.msra.mxu0 0.0
      %998 = vmatprep.subr.mxu0 0.0
      %999 = vmatpush2.msra.mxu0 0.0
      %1000 = vmatprep.subr.mxu0 0.0
      %1001 = vmatpush2.msra.mxu0 0.0
      %1002 = vmatprep.subr.mxu0 0.0
      %1003 = vmatpush2.msra.mxu0 0.0
      %1004 = vmatprep.subr.mxu0 0.0
      %1005 = vmatpush2.msra.mxu0 0.0
      %1006 = vmatprep.subr.mxu0 0.0
      %1007 = vmatpush2.msra.mxu0 0.0
      %1008 = vmatprep.subr.mxu0 0.0
      %1009 = vmatpush2.msra.mxu0 0.0
      %1010 = vmatprep.subr.mxu0 0.0
      %1011 = vmatpush2.msra.mxu0 0.0
      %1012 = vmatprep.subr.mxu0 0.0
      %1013 = vmatpush2.msra.mxu0 0.0
      %1014 = vmatprep.subr.mxu0 0.0
      %1015 = vmatpush2.msra.mxu0 0.0
      %1016 = vmatprep.subr.mxu0 0.0
      %1017 = vmatpush2.msra.mxu0 0.0
      %1018 = vmatprep.mubr.f32.mxu0 0.0
      %v1019 = vand.u32 %v313, 4294901760
      %1020 = vmatmul.mubr.f32.gmra.mxu0 %v1019
      %v1021 = vpop.f32.mrf.mxu0
      %v1022 = vadd.f32 %v919, %v1021
      %v1023 = vpop.f32.mrf.mxu0
      %v1024 = vadd.f32 %v921, %v1023
      %1025 = vmatprep.mubr.f32.mxu0 0.0
      %v1026 = vand.u32 %v316, 4294901760
      %1027 = vmatmul.mubr.f32.gmra.mxu0 %v1026
      %v1028 = vpop.f32.mrf.mxu0
      %v1029 = vadd.f32 %v926, %v1028
      %v1030 = vpop.f32.mrf.mxu0
      %v1031 = vadd.f32 %v928, %v1030
      %1032 = vmatprep.mubr.f32.mxu0 0.0
      %v1033 = vand.u32 %v319, 4294901760
      %1034 = vmatmul.mubr.f32.gmra.mxu0 %v1033
      %v1035 = vpop.f32.mrf.mxu0
      %v1036 = vadd.f32 %v933, %v1035
      %v1037 = vpop.f32.mrf.mxu0
      %v1038 = vadd.f32 %v935, %v1037
      %1039 = vmatprep.mubr.f32.mxu0 0.0
      %v1040 = vand.u32 %v322, 4294901760
      %1041 = vmatmul.mubr.f32.gmra.mxu0 %v1040
      %v1042 = vpop.f32.mrf.mxu0
      %v1043 = vadd.f32 %v940, %v1042
      %v1044 = vpop.f32.mrf.mxu0
      %v1045 = vadd.f32 %v942, %v1044
      %1046 = vdwg.mxu0
      %1047 = vst [vmem:[#allocation2] sm:$0xff] 0.0
      %1048 = vst [vmem:[#allocation2 + $0x8] sm:$0xff] 0.0
      %1049 = vst [vmem:[#allocation2 + $0x10] sm:$0xff] 0.0
      %1050 = vst [vmem:[#allocation2 + $0x18] sm:$0xff] 0.0
      %1051 = vst [vmem:[#allocation2 + $0x20] sm:$0xff] 0.0
      %1052 = vst [vmem:[#allocation2 + $0x28] sm:$0xff] 0.0
      %1053 = vst [vmem:[#allocation2 + $0x30] sm:$0xff] 0.0
      %1054 = vst [vmem:[#allocation2 + $0x38] sm:$0xff] 0.0
      %1055 = vst [vmem:[#allocation2 + $0x40] sm:$0xff] 0.0
      %1056 = vst [vmem:[#allocation2 + $0x48] sm:$0xff] 0.0
      %1057 = vst [vmem:[#allocation2 + $0x50] sm:$0xff] 0.0
      %1058 = vst [vmem:[#allocation2 + $0x58] sm:$0xff] 0.0
      %1059 = vst [vmem:[#allocation2 + $0x60] sm:$0xff] 0.0
      %1060 = vst [vmem:[#allocation2 + $0x68] sm:$0xff] 0.0
      %1061 = vst [vmem:[#allocation2 + $0x70] sm:$0xff] 0.0
      %1062 = vst [vmem:[#allocation2 + $0x78] sm:$0xff] 0.0
      %v1063 = vld [vmem:[%s4] sm:$0xff]
      %v1064 = vld [vmem:[%s4 + $0x8] sm:$0xff]
      %v1065 = vld [vmem:[%s4 + $0x10] sm:$0xff]
      %v1066 = vld [vmem:[%s4 + $0x18] sm:$0xff]
      %v1067 = vadd.f32 %v1022, %v1024
      %1068 = vadd.xlane.f32.xlu0 %v1067
      %v1069 = vpop.xlane.xlu0 %1068
      %v1070 = vrot.slane %v1069, 4
      %v1071 = vadd.f32 %v1069, %v1070
      %v1072 = vrot.slane %v1071, 2
      %v1073 = vadd.f32 %v1071, %v1072
      %v1074 = vrot.slane %v1073, 1
      %v1075 = vadd.f32 %v1073, %v1074
      %v1076 = vrcp.pop 2048.0
      %v1077 = vmul.f32 %v1075, %v1076
      %v1078 = vmul.f32 %v1022, %v1022
      %v1079 = vmul.f32 %v1024, %v1024
      %v1080 = vadd.f32 %v1078, %v1079
      %1081 = vadd.xlane.f32.xlu0 %v1080
      %v1082 = vpop.xlane.xlu0 %1081
      %v1083 = vrot.slane %v1082, 4
      %v1084 = vadd.f32 %v1082, %v1083
      %v1085 = vrot.slane %v1084, 2
      %v1086 = vadd.f32 %v1084, %v1085
      %v1087 = vrot.slane %v1086, 1
      %v1088 = vadd.f32 %v1086, %v1087
      %v1089 = vmul.f32 %v1088, %v1076
      %v1090 = vmul.f32 %v1077, %v1077
      %v1091 = vsub.f32 %v1089, %v1090
      %v1092 = vadd.f32 %v1091, 1e-05
      %v1093 = vrsqrt.pop %v1092
      %v1094 = vmul.f32 %v1093, %v1063
      %v1095 = vmul.f32 %v1077, %v1094
      %1097 = vrot.lane.b32.xlu0 %v1095, 1
      %v1098 = vpop.permute.xlu0 %1097
      %v1100 = vsub.f32 %v1063, %v1098
      %1102 = vset.pattern.permute.xlu0 0
      %1103 = vperm.xlu0 %1102, %v1094
      %v1104 = vpop.permute.xlu0 %1103
      %v1106 = vmul.f32 %v1022, %v1104
      %v1107 = vmul.f32 %v1024, %v1104
      %1109 = vset.pattern.permute.xlu0 1
      %1110 = vperm.xlu0 %1109, %v1100
      %v1111 = vpop.permute.xlu0 %1110
      %v1113 = vadd.f32 %v1106, %v1111
      %v1114 = vadd.f32 %v1107, %v1111
      %v1115 = vtanh.pop %v1113
      %v1116 = vtanh.pop %v1114
      %1117 = vst [vmem:[#allocation2 + $0x8] sm:$0xff] %v1115
      %1118 = vst [vmem:[#allocation2 + $0x10] sm:$0xff] %v1116
      %v1119 = vadd.f32 %v1029, %v1031
      %1120 = vadd.xlane.f32.xlu0 %v1119
      %v1121 = vpop.xlane.xlu0 %1120
      %v1122 = vrot.slane %v1121, 4
      %v1123 = vadd.f32 %v1121, %v1122
      %v1124 = vrot.slane %v1123, 2
      %v1125 = vadd.f32 %v1123, %v1124
      %v1126 = vrot.slane %v1125, 1
      %v1127 = vadd.f32 %v1125, %v1126
      %v1128 = vmul.f32 %v1127, %v1076
      %v1129 = vmul.f32 %v1029, %v1029
      %v1130 = vmul.f32 %v1031, %v1031
      %v1131 = vadd.f32 %v1129, %v1130
      %1132 = vadd.xlane.f32.xlu0 %v1131
      %v1133 = vpop.xlane.xlu0 %1132
      %v1134 = vrot.slane %v1133, 4
      %v1135 = vadd.f32 %v1133, %v1134
      %v1136 = vrot.slane %v1135, 2
      %v1137 = vadd.f32 %v1135, %v1136
      %v1138 = vrot.slane %v1137, 1
      %v1139 = vadd.f32 %v1137, %v1138
      %v1140 = vmul.f32 %v1139, %v1076
      %v1141 = vmul.f32 %v1128, %v1128
      %v1142 = vsub.f32 %v1140, %v1141
      %v1143 = vadd.f32 %v1142, 1e-05
      %v1144 = vrsqrt.pop %v1143
      %v1145 = vmul.f32 %v1144, %v1064
      %v1146 = vmul.f32 %v1128, %v1145
      %1148 = vrot.lane.b32.xlu0 %v1146, 1
      %v1149 = vpop.permute.xlu0 %1148
      %v1151 = vsub.f32 %v1064, %v1149
      %1153 = vset.pattern.permute.xlu0 0
      %1154 = vperm.xlu0 %1153, %v1145
      %v1155 = vpop.permute.xlu0 %1154
      %v1157 = vmul.f32 %v1029, %v1155
      %v1158 = vmul.f32 %v1031, %v1155
      %1160 = vset.pattern.permute.xlu0 1
      %1161 = vperm.xlu0 %1160, %v1151
      %v1162 = vpop.permute.xlu0 %1161
      %v1164 = vadd.f32 %v1157, %v1162
      %v1165 = vadd.f32 %v1158, %v1162
      %v1166 = vtanh.pop %v1164
      %v1167 = vtanh.pop %v1165
      %1168 = vst [vmem:[#allocation2 + $0x28] sm:$0xff] %v1166
      %1169 = vst [vmem:[#allocation2 + $0x30] sm:$0xff] %v1167
      %v1170 = vadd.f32 %v1036, %v1038
      %1171 = vadd.xlane.f32.xlu0 %v1170
      %v1172 = vpop.xlane.xlu0 %1171
      %v1173 = vrot.slane %v1172, 4
      %v1174 = vadd.f32 %v1172, %v1173
      %v1175 = vrot.slane %v1174, 2
      %v1176 = vadd.f32 %v1174, %v1175
      %v1177 = vrot.slane %v1176, 1
      %v1178 = vadd.f32 %v1176, %v1177
      %v1179 = vmul.f32 %v1178, %v1076
      %v1180 = vmul.f32 %v1036, %v1036
      %v1181 = vmul.f32 %v1038, %v1038
      %v1182 = vadd.f32 %v1180, %v1181
      %1183 = vadd.xlane.f32.xlu0 %v1182
      %v1184 = vpop.xlane.xlu0 %1183
      %v1185 = vrot.slane %v1184, 4
      %v1186 = vadd.f32 %v1184, %v1185
      %v1187 = vrot.slane %v1186, 2
      %v1188 = vadd.f32 %v1186, %v1187
      %v1189 = vrot.slane %v1188, 1
      %v1190 = vadd.f32 %v1188, %v1189
      %v1191 = vmul.f32 %v1190, %v1076
      %v1192 = vmul.f32 %v1179, %v1179
      %v1193 = vsub.f32 %v1191, %v1192
      %v1194 = vadd.f32 %v1193, 1e-05
      %v1195 = vrsqrt.pop %v1194
      %v1196 = vmul.f32 %v1195, %v1065
      %v1197 = vmul.f32 %v1179, %v1196
      %1199 = vrot.lane.b32.xlu0 %v1197, 1
      %v1200 = vpop.permute.xlu0 %1199
      %v1202 = vsub.f32 %v1065, %v1200
      %1204 = vset.pattern.permute.xlu0 0
      %1205 = vperm.xlu0 %1204, %v1196
      %v1206 = vpop.permute.xlu0 %1205
      %v1208 = vmul.f32 %v1036, %v1206
      %v1209 = vmul.f32 %v1038, %v1206
      %1211 = vset.pattern.permute.xlu0 1
      %1212 = vperm.xlu0 %1211, %v1202
      %v1213 = vpop.permute.xlu0 %1212
      %v1215 = vadd.f32 %v1208, %v1213
      %v1216 = vadd.f32 %v1209, %v1213
      %v1217 = vtanh.pop %v1215
      %v1218 = vtanh.pop %v1216
      %1219 = vst [vmem:[#allocation2 + $0x48] sm:$0xff] %v1217
      %1220 = vst [vmem:[#allocation2 + $0x50] sm:$0xff] %v1218
      %v1221 = vadd.f32 %v1043, %v1045
      %1222 = vadd.xlane.f32.xlu0 %v1221
      %v1223 = vpop.xlane.xlu0 %1222
      %v1224 = vrot.slane %v1223, 4
      %v1225 = vadd.f32 %v1223, %v1224
      %v1226 = vrot.slane %v1225, 2
      %v1227 = vadd.f32 %v1225, %v1226
      %v1228 = vrot.slane %v1227, 1
      %v1229 = vadd.f32 %v1227, %v1228
      %v1230 = vmul.f32 %v1229, %v1076
      %v1231 = vmul.f32 %v1043, %v1043
      %v1232 = vmul.f32 %v1045, %v1045
      %v1233 = vadd.f32 %v1231, %v1232
      %1234 = vadd.xlane.f32.xlu0 %v1233
      %v1235 = vpop.xlane.xlu0 %1234
      %v1236 = vrot.slane %v1235, 4
      %v1237 = vadd.f32 %v1235, %v1236
      %v1238 = vrot.slane %v1237, 2
      %v1239 = vadd.f32 %v1237, %v1238
      %v1240 = vrot.slane %v1239, 1
      %v1241 = vadd.f32 %v1239, %v1240
      %v1242 = vmul.f32 %v1241, %v1076
      %v1243 = vmul.f32 %v1230, %v1230
      %v1244 = vsub.f32 %v1242, %v1243
      %v1245 = vadd.f32 %v1244, 1e-05
      %v1246 = vrsqrt.pop %v1245
      %v1247 = vmul.f32 %v1246, %v1066
      %v1248 = vmul.f32 %v1230, %v1247
      %1250 = vrot.lane.b32.xlu0 %v1248, 1
      %v1251 = vpop.permute.xlu0 %1250
      %v1253 = vsub.f32 %v1066, %v1251
      %1255 = vset.pattern.permute.xlu0 0
      %1256 = vperm.xlu0 %1255, %v1247
      %v1257 = vpop.permute.xlu0 %1256
      %v1259 = vmul.f32 %v1043, %v1257
      %v1260 = vmul.f32 %v1045, %v1257
      %1262 = vset.pattern.permute.xlu0 1
      %1263 = vperm.xlu0 %1262, %v1253
      %v1264 = vpop.permute.xlu0 %1263
      %v1266 = vadd.f32 %v1259, %v1264
      %v1267 = vadd.f32 %v1260, %v1264
      %v1268 = vtanh.pop %v1266
      %v1269 = vtanh.pop %v1267
      %1270 = vst [vmem:[#allocation2 + $0x68] sm:$0xff] %v1268
      %1271 = vst [vmem:[#allocation2 + $0x70] sm:$0xff] %v1269
      %v1272 = vld [vmem:[#allocation2] sm:$0xff]
      %v1273 = vld [vmem:[#allocation2 + $0x8] sm:$0xff]
      %v1274 = vld [vmem:[#allocation2 + $0x10] sm:$0xff]
      %v1275 = vld [vmem:[#allocation2 + $0x20] sm:$0xff]
      %v1276 = vld [vmem:[#allocation2 + $0x28] sm:$0xff]
      %v1277 = vld [vmem:[#allocation2 + $0x30] sm:$0xff]
      %v1278 = vld [vmem:[#allocation2 + $0x40] sm:$0xff]
      %v1279 = vld [vmem:[#allocation2 + $0x48] sm:$0xff]
      %v1280 = vld [vmem:[#allocation2 + $0x50] sm:$0xff]
      %v1281 = vld [vmem:[#allocation2 + $0x60] sm:$0xff]
      %v1282 = vld [vmem:[#allocation2 + $0x68] sm:$0xff]
      %v1283 = vld [vmem:[#allocation2 + $0x70] sm:$0xff]
      %v1284 = vld [vmem:[%s5] sm:$0xf]
      %1297 = vrot.lane.b32.xlu0 %v1272, 17
      %v1298 = vpop.permute.xlu0 %1297
      %1299 = vrot.lane.b32.xlu0 %v1273, 17
      %v1300 = vpop.permute.xlu0 %1299
      %1301 = vrot.lane.b32.xlu0 %v1274, 17
      %v1302 = vpop.permute.xlu0 %1301
      %1303 = vrot.lane.b32.xlu0 %v1275, 17
      %v1304 = vpop.permute.xlu0 %1303
      %1305 = vrot.lane.b32.xlu0 %v1276, 17
      %v1306 = vpop.permute.xlu0 %1305
      %1307 = vrot.lane.b32.xlu0 %v1277, 17
      %v1308 = vpop.permute.xlu0 %1307
      %1309 = vrot.lane.b32.xlu0 %v1278, 17
      %v1310 = vpop.permute.xlu0 %1309
      %1311 = vrot.lane.b32.xlu0 %v1279, 17
      %v1312 = vpop.permute.xlu0 %1311
      %1313 = vrot.lane.b32.xlu0 %v1280, 17
      %v1314 = vpop.permute.xlu0 %1313
      %1315 = vrot.lane.b32.xlu0 %v1281, 17
      %v1316 = vpop.permute.xlu0 %1315
      %1317 = vrot.lane.b32.xlu0 %v1282, 17
      %v1318 = vpop.permute.xlu0 %1317
      %1319 = vrot.lane.b32.xlu0 %v1283, 17
      %v1320 = vpop.permute.xlu0 %1319
      %vm1321 = vcmask 138240
      %v1322 = vsel %vm1321, %v1298, %v1300
      %v1323 = vsel %vm1321, %v1300, %v1302
      %v1324 = vsel %vm1321, %v1304, %v1306
      %v1325 = vsel %vm1321, %v1306, %v1308
      %v1326 = vsel %vm1321, %v1310, %v1312
      %v1327 = vsel %vm1321, %v1312, %v1314
      %v1328 = vsel %vm1321, %v1316, %v1318
      %v1329 = vsel %vm1321, %v1318, %v1320
      %vm1338 = vcmask 261120
      %v1340 = vsel %vm1338, %v1284, 0
      %1342 = vmatprep.subr.mxu0 0.0
      %1343 = vmatpush1.msra.mxu0 0.0
      %1344 = vmatprep.subr.mxu0 0.0
      %1345 = vmatpush1.msra.mxu0 0.0
      %1346 = vmatprep.subr.mxu0 0.0
      %1347 = vmatpush1.msra.mxu0 0.0
      %1348 = vmatprep.subr.mxu0 0.0
      %1349 = vmatpush1.msra.mxu0 0.0
      %1350 = vmatprep.subr.mxu0 0.0
      %1351 = vmatpush1.msra.mxu0 0.0
      %1352 = vmatprep.subr.mxu0 0.0
      %1353 = vmatpush1.msra.mxu0 0.0
      %1354 = vmatprep.subr.mxu0 0.0
      %1355 = vmatpush1.msra.mxu0 0.0
      %1356 = vmatprep.subr.mxu0 0.0
      %1357 = vmatpush1.msra.mxu0 0.0
      %1358 = vmatprep.subr.mxu0 0.0
      %1359 = vmatpush1.msra.mxu0 0.0
      %1360 = vmatprep.subr.mxu0 0.0
      %1361 = vmatpush1.msra.mxu0 0.0
      %1362 = vmatprep.subr.mxu0 0.0
      %1363 = vmatpush1.msra.mxu0 0.0
      %1364 = vmatprep.subr.mxu0 0.0
      %1365 = vmatpush1.msra.mxu0 0.0
      %v1366 = vand.u32 %v1329, 4294901760
      %1367 = vmatprep.subr.mxu0 %v1366
      %v1368 = vand.u32 %v1328, 4294901760
      %1369 = vmatpush1.msra.mxu0 %v1368
      %v1370 = vand.u32 %v1327, 4294901760
      %1371 = vmatprep.subr.mxu0 %v1370
      %v1372 = vand.u32 %v1326, 4294901760
      %1373 = vmatpush1.msra.mxu0 %v1372
      %v1374 = vand.u32 %v1325, 4294901760
      %1375 = vmatprep.subr.mxu0 %v1374
      %v1376 = vand.u32 %v1324, 4294901760
      %1377 = vmatpush1.msra.mxu0 %v1376
      %v1378 = vand.u32 %v1323, 4294901760
      %1379 = vmatprep.subr.mxu0 %v1378
      %v1380 = vand.u32 %v1322, 4294901760
      %1381 = vmatpush1.msra.mxu0 %v1380
      %1382 = vmatprep.subr.mxu0 0.0
      %1383 = vmatpush2.msra.mxu0 0.0
      %1384 = vmatprep.subr.mxu0 0.0
      %1385 = vmatpush2.msra.mxu0 0.0
      %1386 = vmatprep.subr.mxu0 0.0
      %1387 = vmatpush2.msra.mxu0 0.0
      %1388 = vmatprep.subr.mxu0 0.0
      %1389 = vmatpush2.msra.mxu0 0.0
      %1390 = vmatprep.subr.mxu0 0.0
      %1391 = vmatpush2.msra.mxu0 0.0
      %1392 = vmatprep.subr.mxu0 0.0
      %1393 = vmatpush2.msra.mxu0 0.0
      %1394 = vmatprep.subr.mxu0 0.0
      %1395 = vmatpush2.msra.mxu0 0.0
      %1396 = vmatprep.subr.mxu0 0.0
      %1397 = vmatpush2.msra.mxu0 0.0
      %1398 = vmatprep.subr.mxu0 0.0
      %1399 = vmatpush2.msra.mxu0 0.0
      %1400 = vmatprep.subr.mxu0 0.0
      %1401 = vmatpush2.msra.mxu0 0.0
      %1402 = vmatprep.subr.mxu0 0.0
      %1403 = vmatpush2.msra.mxu0 0.0
      %1404 = vmatprep.subr.mxu0 0.0
      %1405 = vmatpush2.msra.mxu0 0.0
      %1406 = vmatprep.subr.mxu0 0.0
      %1407 = vmatpush2.msra.mxu0 0.0
      %1408 = vmatprep.subr.mxu0 0.0
      %1409 = vmatpush2.msra.mxu0 0.0
      %1410 = vmatprep.subr.mxu0 0.0
      %1411 = vmatpush2.msra.mxu0 0.0
      %1412 = vmatprep.subr.mxu0 0.0
      %1413 = vmatpush2.msra.mxu0 0.0
      %1414 = vmatprep.mubr.f32.mxu0 0.0
      %v1415 = vand.u32 %v1340, 4294901760
      %v1416 = vsub.f32 %v1340, %v1415
      %v1417 = vand.u32 %v1416, 4294901760
      %v1418 = vsub.f32 %v1416, %v1417
      %v1419 = vand.u32 %v1418, 4294901760
      %1420 = vmatmul.mubr.f32.gmra.mxu0 %v1419
      %v1421 = vpop.f32.mrf.mxu0
      %v1422 = vadd.f32 0.0, %v1421
      %v1423 = vpop.f32.mrf.mxu0
      %v1424 = vadd.f32 0.0, %v1423
      %1425 = vdwg.mxu0
      %1426 = vmatprep.subr.mxu0 0.0
      %1427 = vmatpush1.msra.mxu0 0.0
      %1428 = vmatprep.subr.mxu0 0.0
      %1429 = vmatpush1.msra.mxu0 0.0
      %1430 = vmatprep.subr.mxu0 0.0
      %1431 = vmatpush1.msra.mxu0 0.0
      %1432 = vmatprep.subr.mxu0 0.0
      %1433 = vmatpush1.msra.mxu0 0.0
      %1434 = vmatprep.subr.mxu0 0.0
      %1435 = vmatpush1.msra.mxu0 0.0
      %1436 = vmatprep.subr.mxu0 0.0
      %1437 = vmatpush1.msra.mxu0 0.0
      %1438 = vmatprep.subr.mxu0 0.0
      %1439 = vmatpush1.msra.mxu0 0.0
      %1440 = vmatprep.subr.mxu0 0.0
      %1441 = vmatpush1.msra.mxu0 0.0
      %1442 = vmatprep.subr.mxu0 0.0
      %1443 = vmatpush1.msra.mxu0 0.0
      %1444 = vmatprep.subr.mxu0 0.0
      %1445 = vmatpush1.msra.mxu0 0.0
      %1446 = vmatprep.subr.mxu0 0.0
      %1447 = vmatpush1.msra.mxu0 0.0
      %1448 = vmatprep.subr.mxu0 0.0
      %1449 = vmatpush1.msra.mxu0 0.0
      %v1450 = vand.u32 %v1329, 4294901760
      %v1451 = vsub.f32 %v1329, %v1450
      %v1452 = vand.u32 %v1451, 4294901760
      %v1453 = vsub.f32 %v1451, %v1452
      %v1454 = vand.u32 %v1453, 4294901760
      %1455 = vmatprep.subr.mxu0 %v1454
      %v1456 = vand.u32 %v1328, 4294901760
      %v1457 = vsub.f32 %v1328, %v1456
      %v1458 = vand.u32 %v1457, 4294901760
      %v1459 = vsub.f32 %v1457, %v1458
      %v1460 = vand.u32 %v1459, 4294901760
      %1461 = vmatpush1.msra.mxu0 %v1460
      %v1462 = vand.u32 %v1327, 4294901760
      %v1463 = vsub.f32 %v1327, %v1462
      %v1464 = vand.u32 %v1463, 4294901760
      %v1465 = vsub.f32 %v1463, %v1464
      %v1466 = vand.u32 %v1465, 4294901760
      %1467 = vmatprep.subr.mxu0 %v1466
      %v1468 = vand.u32 %v1326, 4294901760
      %v1469 = vsub.f32 %v1326, %v1468
      %v1470 = vand.u32 %v1469, 4294901760
      %v1471 = vsub.f32 %v1469, %v1470
      %v1472 = vand.u32 %v1471, 4294901760
      %1473 = vmatpush1.msra.mxu0 %v1472
      %v1474 = vand.u32 %v1325, 4294901760
      %v1475 = vsub.f32 %v1325, %v1474
      %v1476 = vand.u32 %v1475, 4294901760
      %v1477 = vsub.f32 %v1475, %v1476
      %v1478 = vand.u32 %v1477, 4294901760
      %1479 = vmatprep.subr.mxu0 %v1478
      %v1480 = vand.u32 %v1324, 4294901760
      %v1481 = vsub.f32 %v1324, %v1480
      %v1482 = vand.u32 %v1481, 4294901760
      %v1483 = vsub.f32 %v1481, %v1482
      %v1484 = vand.u32 %v1483, 4294901760
      %1485 = vmatpush1.msra.mxu0 %v1484
      %v1486 = vand.u32 %v1323, 4294901760
      %v1487 = vsub.f32 %v1323, %v1486
      %v1488 = vand.u32 %v1487, 4294901760
      %v1489 = vsub.f32 %v1487, %v1488
      %v1490 = vand.u32 %v1489, 4294901760
      %1491 = vmatprep.subr.mxu0 %v1490
      %v1492 = vand.u32 %v1322, 4294901760
      %v1493 = vsub.f32 %v1322, %v1492
      %v1494 = vand.u32 %v1493, 4294901760
      %v1495 = vsub.f32 %v1493, %v1494
      %v1496 = vand.u32 %v1495, 4294901760
      %1497 = vmatpush1.msra.mxu0 %v1496
      %1498 = vmatprep.subr.mxu0 0.0
      %1499 = vmatpush2.msra.mxu0 0.0
      %1500 = vmatprep.subr.mxu0 0.0
      %1501 = vmatpush2.msra.mxu0 0.0
      %1502 = vmatprep.subr.mxu0 0.0
      %1503 = vmatpush2.msra.mxu0 0.0
      %1504 = vmatprep.subr.mxu0 0.0
      %1505 = vmatpush2.msra.mxu0 0.0
      %1506 = vmatprep.subr.mxu0 0.0
      %1507 = vmatpush2.msra.mxu0 0.0
      %1508 = vmatprep.subr.mxu0 0.0
      %1509 = vmatpush2.msra.mxu0 0.0
      %1510 = vmatprep.subr.mxu0 0.0
      %1511 = vmatpush2.msra.mxu0 0.0
      %1512 = vmatprep.subr.mxu0 0.0
      %1513 = vmatpush2.msra.mxu0 0.0
      %1514 = vmatprep.subr.mxu0 0.0
      %1515 = vmatpush2.msra.mxu0 0.0
      %1516 = vmatprep.subr.mxu0 0.0
      %1517 = vmatpush2.msra.mxu0 0.0
      %1518 = vmatprep.subr.mxu0 0.0
      %1519 = vmatpush2.msra.mxu0 0.0
      %1520 = vmatprep.subr.mxu0 0.0
      %1521 = vmatpush2.msra.mxu0 0.0
      %1522 = vmatprep.subr.mxu0 0.0
      %1523 = vmatpush2.msra.mxu0 0.0
      %1524 = vmatprep.subr.mxu0 0.0
      %1525 = vmatpush2.msra.mxu0 0.0
      %1526 = vmatprep.subr.mxu0 0.0
      %1527 = vmatpush2.msra.mxu0 0.0
      %1528 = vmatprep.subr.mxu0 0.0
      %1529 = vmatpush2.msra.mxu0 0.0
      %1530 = vmatprep.mubr.f32.mxu0 0.0
      %v1531 = vand.u32 %v1340, 4294901760
      %1532 = vmatmul.mubr.f32.gmra.mxu0 %v1531
      %v1533 = vpop.f32.mrf.mxu0
      %v1534 = vadd.f32 %v1422, %v1533
      %v1535 = vpop.f32.mrf.mxu0
      %v1536 = vadd.f32 %v1424, %v1535
      %1537 = vdwg.mxu0
      %1538 = vmatprep.subr.mxu0 0.0
      %1539 = vmatpush1.msra.mxu0 0.0
      %1540 = vmatprep.subr.mxu0 0.0
      %1541 = vmatpush1.msra.mxu0 0.0
      %1542 = vmatprep.subr.mxu0 0.0
      %1543 = vmatpush1.msra.mxu0 0.0
      %1544 = vmatprep.subr.mxu0 0.0
      %1545 = vmatpush1.msra.mxu0 0.0
      %1546 = vmatprep.subr.mxu0 0.0
      %1547 = vmatpush1.msra.mxu0 0.0
      %1548 = vmatprep.subr.mxu0 0.0
      %1549 = vmatpush1.msra.mxu0 0.0
      %1550 = vmatprep.subr.mxu0 0.0
      %1551 = vmatpush1.msra.mxu0 0.0
      %1552 = vmatprep.subr.mxu0 0.0
      %1553 = vmatpush1.msra.mxu0 0.0
      %1554 = vmatprep.subr.mxu0 0.0
      %1555 = vmatpush1.msra.mxu0 0.0
      %1556 = vmatprep.subr.mxu0 0.0
      %1557 = vmatpush1.msra.mxu0 0.0
      %1558 = vmatprep.subr.mxu0 0.0
      %1559 = vmatpush1.msra.mxu0 0.0
      %1560 = vmatprep.subr.mxu0 0.0
      %1561 = vmatpush1.msra.mxu0 0.0
      %v1562 = vand.u32 %v1329, 4294901760
      %v1563 = vsub.f32 %v1329, %v1562
      %1564 = vmatprep.subr.mxu0 %v1563
      %v1565 = vand.u32 %v1328, 4294901760
      %v1566 = vsub.f32 %v1328, %v1565
      %1567 = vmatpush1.msra.mxu0 %v1566
      %v1568 = vand.u32 %v1327, 4294901760
      %v1569 = vsub.f32 %v1327, %v1568
      %1570 = vmatprep.subr.mxu0 %v1569
      %v1571 = vand.u32 %v1326, 4294901760
      %v1572 = vsub.f32 %v1326, %v1571
      %1573 = vmatpush1.msra.mxu0 %v1572
      %v1574 = vand.u32 %v1325, 4294901760
      %v1575 = vsub.f32 %v1325, %v1574
      %1576 = vmatprep.subr.mxu0 %v1575
      %v1577 = vand.u32 %v1324, 4294901760
      %v1578 = vsub.f32 %v1324, %v1577
      %1579 = vmatpush1.msra.mxu0 %v1578
      %v1580 = vand.u32 %v1323, 4294901760
      %v1581 = vsub.f32 %v1323, %v1580
      %1582 = vmatprep.subr.mxu0 %v1581
      %v1583 = vand.u32 %v1322, 4294901760
      %v1584 = vsub.f32 %v1322, %v1583
      %1585 = vmatpush1.msra.mxu0 %v1584
      %1586 = vmatprep.subr.mxu0 0.0
      %1587 = vmatpush2.msra.mxu0 0.0
      %1588 = vmatprep.subr.mxu0 0.0
      %1589 = vmatpush2.msra.mxu0 0.0
      %1590 = vmatprep.subr.mxu0 0.0
      %1591 = vmatpush2.msra.mxu0 0.0
      %1592 = vmatprep.subr.mxu0 0.0
      %1593 = vmatpush2.msra.mxu0 0.0
      %1594 = vmatprep.subr.mxu0 0.0
      %1595 = vmatpush2.msra.mxu0 0.0
      %1596 = vmatprep.subr.mxu0 0.0
      %1597 = vmatpush2.msra.mxu0 0.0
      %1598 = vmatprep.subr.mxu0 0.0
      %1599 = vmatpush2.msra.mxu0 0.0
      %1600 = vmatprep.subr.mxu0 0.0
      %1601 = vmatpush2.msra.mxu0 0.0
      %1602 = vmatprep.subr.mxu0 0.0
      %1603 = vmatpush2.msra.mxu0 0.0
      %1604 = vmatprep.subr.mxu0 0.0
      %1605 = vmatpush2.msra.mxu0 0.0
      %1606 = vmatprep.subr.mxu0 0.0
      %1607 = vmatpush2.msra.mxu0 0.0
      %1608 = vmatprep.subr.mxu0 0.0
      %1609 = vmatpush2.msra.mxu0 0.0
      %1610 = vmatprep.subr.mxu0 0.0
      %1611 = vmatpush2.msra.mxu0 0.0
      %1612 = vmatprep.subr.mxu0 0.0
      %1613 = vmatpush2.msra.mxu0 0.0
      %1614 = vmatprep.subr.mxu0 0.0
      %1615 = vmatpush2.msra.mxu0 0.0
      %1616 = vmatprep.subr.mxu0 0.0
      %1617 = vmatpush2.msra.mxu0 0.0
      %1618 = vmatprep.mubr.f32.mxu0 0.0
      %v1619 = vand.u32 %v1340, 4294901760
      %v1620 = vsub.f32 %v1340, %v1619
      %1621 = vmatmul.mubr.f32.gmra.mxu0 %v1620
      %v1622 = vpop.f32.mrf.mxu0
      %v1623 = vadd.f32 %v1534, %v1622
      %v1624 = vpop.f32.mrf.mxu0
      %v1625 = vadd.f32 %v1536, %v1624
      %1626 = vdwg.mxu0
      %1627 = vmatprep.subr.mxu0 0.0
      %1628 = vmatpush1.msra.mxu0 0.0
      %1629 = vmatprep.subr.mxu0 0.0
      %1630 = vmatpush1.msra.mxu0 0.0
      %1631 = vmatprep.subr.mxu0 0.0
      %1632 = vmatpush1.msra.mxu0 0.0
      %1633 = vmatprep.subr.mxu0 0.0
      %1634 = vmatpush1.msra.mxu0 0.0
      %1635 = vmatprep.subr.mxu0 0.0
      %1636 = vmatpush1.msra.mxu0 0.0
      %1637 = vmatprep.subr.mxu0 0.0
      %1638 = vmatpush1.msra.mxu0 0.0
      %1639 = vmatprep.subr.mxu0 0.0
      %1640 = vmatpush1.msra.mxu0 0.0
      %1641 = vmatprep.subr.mxu0 0.0
      %1642 = vmatpush1.msra.mxu0 0.0
      %1643 = vmatprep.subr.mxu0 0.0
      %1644 = vmatpush1.msra.mxu0 0.0
      %1645 = vmatprep.subr.mxu0 0.0
      %1646 = vmatpush1.msra.mxu0 0.0
      %1647 = vmatprep.subr.mxu0 0.0
      %1648 = vmatpush1.msra.mxu0 0.0
      %1649 = vmatprep.subr.mxu0 0.0
      %1650 = vmatpush1.msra.mxu0 0.0
      %v1651 = vand.u32 %v1329, 4294901760
      %1652 = vmatprep.subr.mxu0 %v1651
      %v1653 = vand.u32 %v1328, 4294901760
      %1654 = vmatpush1.msra.mxu0 %v1653
      %v1655 = vand.u32 %v1327, 4294901760
      %1656 = vmatprep.subr.mxu0 %v1655
      %v1657 = vand.u32 %v1326, 4294901760
      %1658 = vmatpush1.msra.mxu0 %v1657
      %v1659 = vand.u32 %v1325, 4294901760
      %1660 = vmatprep.subr.mxu0 %v1659
      %v1661 = vand.u32 %v1324, 4294901760
      %1662 = vmatpush1.msra.mxu0 %v1661
      %v1663 = vand.u32 %v1323, 4294901760
      %1664 = vmatprep.subr.mxu0 %v1663
      %v1665 = vand.u32 %v1322, 4294901760
      %1666 = vmatpush1.msra.mxu0 %v1665
      %1667 = vmatprep.subr.mxu0 0.0
      %1668 = vmatpush2.msra.mxu0 0.0
      %1669 = vmatprep.subr.mxu0 0.0
      %1670 = vmatpush2.msra.mxu0 0.0
      %1671 = vmatprep.subr.mxu0 0.0
      %1672 = vmatpush2.msra.mxu0 0.0
      %1673 = vmatprep.subr.mxu0 0.0
      %1674 = vmatpush2.msra.mxu0 0.0
      %1675 = vmatprep.subr.mxu0 0.0
      %1676 = vmatpush2.msra.mxu0 0.0
      %1677 = vmatprep.subr.mxu0 0.0
      %1678 = vmatpush2.msra.mxu0 0.0
      %1679 = vmatprep.subr.mxu0 0.0
      %1680 = vmatpush2.msra.mxu0 0.0
      %1681 = vmatprep.subr.mxu0 0.0
      %1682 = vmatpush2.msra.mxu0 0.0
      %1683 = vmatprep.subr.mxu0 0.0
      %1684 = vmatpush2.msra.mxu0 0.0
      %1685 = vmatprep.subr.mxu0 0.0
      %1686 = vmatpush2.msra.mxu0 0.0
      %1687 = vmatprep.subr.mxu0 0.0
      %1688 = vmatpush2.msra.mxu0 0.0
      %1689 = vmatprep.subr.mxu0 0.0
      %1690 = vmatpush2.msra.mxu0 0.0
      %1691 = vmatprep.subr.mxu0 0.0
      %1692 = vmatpush2.msra.mxu0 0.0
      %1693 = vmatprep.subr.mxu0 0.0
      %1694 = vmatpush2.msra.mxu0 0.0
      %1695 = vmatprep.subr.mxu0 0.0
      %1696 = vmatpush2.msra.mxu0 0.0
      %1697 = vmatprep.subr.mxu0 0.0
      %1698 = vmatpush2.msra.mxu0 0.0
      %1699 = vmatprep.mubr.f32.mxu0 0.0
      %v1700 = vand.u32 %v1340, 4294901760
      %v1701 = vsub.f32 %v1340, %v1700
      %v1702 = vand.u32 %v1701, 4294901760
      %1703 = vmatmul.mubr.f32.gmra.mxu0 %v1702
      %v1704 = vpop.f32.mrf.mxu0
      %v1705 = vadd.f32 %v1623, %v1704
      %v1706 = vpop.f32.mrf.mxu0
      %v1707 = vadd.f32 %v1625, %v1706
      %1708 = vdwg.mxu0
      %1709 = vmatprep.subr.mxu0 0.0
      %1710 = vmatpush1.msra.mxu0 0.0
      %1711 = vmatprep.subr.mxu0 0.0
      %1712 = vmatpush1.msra.mxu0 0.0
      %1713 = vmatprep.subr.mxu0 0.0
      %1714 = vmatpush1.msra.mxu0 0.0
      %1715 = vmatprep.subr.mxu0 0.0
      %1716 = vmatpush1.msra.mxu0 0.0
      %1717 = vmatprep.subr.mxu0 0.0
      %1718 = vmatpush1.msra.mxu0 0.0
      %1719 = vmatprep.subr.mxu0 0.0
      %1720 = vmatpush1.msra.mxu0 0.0
      %1721 = vmatprep.subr.mxu0 0.0
      %1722 = vmatpush1.msra.mxu0 0.0
      %1723 = vmatprep.subr.mxu0 0.0
      %1724 = vmatpush1.msra.mxu0 0.0
      %1725 = vmatprep.subr.mxu0 0.0
      %1726 = vmatpush1.msra.mxu0 0.0
      %1727 = vmatprep.subr.mxu0 0.0
      %1728 = vmatpush1.msra.mxu0 0.0
      %1729 = vmatprep.subr.mxu0 0.0
      %1730 = vmatpush1.msra.mxu0 0.0
      %1731 = vmatprep.subr.mxu0 0.0
      %1732 = vmatpush1.msra.mxu0 0.0
      %v1733 = vand.u32 %v1329, 4294901760
      %v1734 = vsub.f32 %v1329, %v1733
      %v1735 = vand.u32 %v1734, 4294901760
      %1736 = vmatprep.subr.mxu0 %v1735
      %v1737 = vand.u32 %v1328, 4294901760
      %v1738 = vsub.f32 %v1328, %v1737
      %v1739 = vand.u32 %v1738, 4294901760
      %1740 = vmatpush1.msra.mxu0 %v1739
      %v1741 = vand.u32 %v1327, 4294901760
      %v1742 = vsub.f32 %v1327, %v1741
      %v1743 = vand.u32 %v1742, 4294901760
      %1744 = vmatprep.subr.mxu0 %v1743
      %v1745 = vand.u32 %v1326, 4294901760
      %v1746 = vsub.f32 %v1326, %v1745
      %v1747 = vand.u32 %v1746, 4294901760
      %1748 = vmatpush1.msra.mxu0 %v1747
      %v1749 = vand.u32 %v1325, 4294901760
      %v1750 = vsub.f32 %v1325, %v1749
      %v1751 = vand.u32 %v1750, 4294901760
      %1752 = vmatprep.subr.mxu0 %v1751
      %v1753 = vand.u32 %v1324, 4294901760
      %v1754 = vsub.f32 %v1324, %v1753
      %v1755 = vand.u32 %v1754, 4294901760
      %1756 = vmatpush1.msra.mxu0 %v1755
      %v1757 = vand.u32 %v1323, 4294901760
      %v1758 = vsub.f32 %v1323, %v1757
      %v1759 = vand.u32 %v1758, 4294901760
      %1760 = vmatprep.subr.mxu0 %v1759
      %v1761 = vand.u32 %v1322, 4294901760
      %v1762 = vsub.f32 %v1322, %v1761
      %v1763 = vand.u32 %v1762, 4294901760
      %1764 = vmatpush1.msra.mxu0 %v1763
      %1765 = vmatprep.subr.mxu0 0.0
      %1766 = vmatpush2.msra.mxu0 0.0
      %1767 = vmatprep.subr.mxu0 0.0
      %1768 = vmatpush2.msra.mxu0 0.0
      %1769 = vmatprep.subr.mxu0 0.0
      %1770 = vmatpush2.msra.mxu0 0.0
      %1771 = vmatprep.subr.mxu0 0.0
      %1772 = vmatpush2.msra.mxu0 0.0
      %1773 = vmatprep.subr.mxu0 0.0
      %1774 = vmatpush2.msra.mxu0 0.0
      %1775 = vmatprep.subr.mxu0 0.0
      %1776 = vmatpush2.msra.mxu0 0.0
      %1777 = vmatprep.subr.mxu0 0.0
      %1778 = vmatpush2.msra.mxu0 0.0
      %1779 = vmatprep.subr.mxu0 0.0
      %1780 = vmatpush2.msra.mxu0 0.0
      %1781 = vmatprep.subr.mxu0 0.0
      %1782 = vmatpush2.msra.mxu0 0.0
      %1783 = vmatprep.subr.mxu0 0.0
      %1784 = vmatpush2.msra.mxu0 0.0
      %1785 = vmatprep.subr.mxu0 0.0
      %1786 = vmatpush2.msra.mxu0 0.0
      %1787 = vmatprep.subr.mxu0 0.0
      %1788 = vmatpush2.msra.mxu0 0.0
      %1789 = vmatprep.subr.mxu0 0.0
      %1790 = vmatpush2.msra.mxu0 0.0
      %1791 = vmatprep.subr.mxu0 0.0
      %1792 = vmatpush2.msra.mxu0 0.0
      %1793 = vmatprep.subr.mxu0 0.0
      %1794 = vmatpush2.msra.mxu0 0.0
      %1795 = vmatprep.subr.mxu0 0.0
      %1796 = vmatpush2.msra.mxu0 0.0
      %1797 = vmatprep.mubr.f32.mxu0 0.0
      %v1798 = vand.u32 %v1340, 4294901760
      %1799 = vmatmul.mubr.f32.gmra.mxu0 %v1798
      %v1800 = vpop.f32.mrf.mxu0
      %v1801 = vadd.f32 %v1705, %v1800
      %v1802 = vpop.f32.mrf.mxu0
      %v1803 = vadd.f32 %v1707, %v1802
      %1804 = vdwg.mxu0
      %1805 = vmatprep.subr.mxu0 0.0
      %1806 = vmatpush1.msra.mxu0 0.0
      %1807 = vmatprep.subr.mxu0 0.0
      %1808 = vmatpush1.msra.mxu0 0.0
      %1809 = vmatprep.subr.mxu0 0.0
      %1810 = vmatpush1.msra.mxu0 0.0
      %1811 = vmatprep.subr.mxu0 0.0
      %1812 = vmatpush1.msra.mxu0 0.0
      %1813 = vmatprep.subr.mxu0 0.0
      %1814 = vmatpush1.msra.mxu0 0.0
      %1815 = vmatprep.subr.mxu0 0.0
      %1816 = vmatpush1.msra.mxu0 0.0
      %1817 = vmatprep.subr.mxu0 0.0
      %1818 = vmatpush1.msra.mxu0 0.0
      %1819 = vmatprep.subr.mxu0 0.0
      %1820 = vmatpush1.msra.mxu0 0.0
      %1821 = vmatprep.subr.mxu0 0.0
      %1822 = vmatpush1.msra.mxu0 0.0
      %1823 = vmatprep.subr.mxu0 0.0
      %1824 = vmatpush1.msra.mxu0 0.0
      %1825 = vmatprep.subr.mxu0 0.0
      %1826 = vmatpush1.msra.mxu0 0.0
      %1827 = vmatprep.subr.mxu0 0.0
      %1828 = vmatpush1.msra.mxu0 0.0
      %v1829 = vand.u32 %v1329, 4294901760
      %1830 = vmatprep.subr.mxu0 %v1829
      %v1831 = vand.u32 %v1328, 4294901760
      %1832 = vmatpush1.msra.mxu0 %v1831
      %v1833 = vand.u32 %v1327, 4294901760
      %1834 = vmatprep.subr.mxu0 %v1833
      %v1835 = vand.u32 %v1326, 4294901760
      %1836 = vmatpush1.msra.mxu0 %v1835
      %v1837 = vand.u32 %v1325, 4294901760
      %1838 = vmatprep.subr.mxu0 %v1837
      %v1839 = vand.u32 %v1324, 4294901760
      %1840 = vmatpush1.msra.mxu0 %v1839
      %v1841 = vand.u32 %v1323, 4294901760
      %1842 = vmatprep.subr.mxu0 %v1841
      %v1843 = vand.u32 %v1322, 4294901760
      %1844 = vmatpush1.msra.mxu0 %v1843
      %1845 = vmatprep.subr.mxu0 0.0
      %1846 = vmatpush2.msra.mxu0 0.0
      %1847 = vmatprep.subr.mxu0 0.0
      %1848 = vmatpush2.msra.mxu0 0.0
      %1849 = vmatprep.subr.mxu0 0.0
      %1850 = vmatpush2.msra.mxu0 0.0
      %1851 = vmatprep.subr.mxu0 0.0
      %1852 = vmatpush2.msra.mxu0 0.0
      %1853 = vmatprep.subr.mxu0 0.0
      %1854 = vmatpush2.msra.mxu0 0.0
      %1855 = vmatprep.subr.mxu0 0.0
      %1856 = vmatpush2.msra.mxu0 0.0
      %1857 = vmatprep.subr.mxu0 0.0
      %1858 = vmatpush2.msra.mxu0 0.0
      %1859 = vmatprep.subr.mxu0 0.0
      %1860 = vmatpush2.msra.mxu0 0.0
      %1861 = vmatprep.subr.mxu0 0.0
      %1862 = vmatpush2.msra.mxu0 0.0
      %1863 = vmatprep.subr.mxu0 0.0
      %1864 = vmatpush2.msra.mxu0 0.0
      %1865 = vmatprep.subr.mxu0 0.0
      %1866 = vmatpush2.msra.mxu0 0.0
      %1867 = vmatprep.subr.mxu0 0.0
      %1868 = vmatpush2.msra.mxu0 0.0
      %1869 = vmatprep.subr.mxu0 0.0
      %1870 = vmatpush2.msra.mxu0 0.0
      %1871 = vmatprep.subr.mxu0 0.0
      %1872 = vmatpush2.msra.mxu0 0.0
      %1873 = vmatprep.subr.mxu0 0.0
      %1874 = vmatpush2.msra.mxu0 0.0
      %1875 = vmatprep.subr.mxu0 0.0
      %1876 = vmatpush2.msra.mxu0 0.0
      %1877 = vmatprep.mubr.f32.mxu0 0.0
      %v1878 = vand.u32 %v1340, 4294901760
      %1879 = vmatmul.mubr.f32.gmra.mxu0 %v1878
      %v1880 = vpop.f32.mrf.mxu0
      %v1881 = vadd.f32 %v1801, %v1880
      %v1882 = vpop.f32.mrf.mxu0
      %v1883 = vadd.f32 %v1803, %v1882
      %1884 = vdwg.mxu0
      %v1885 = vld [vmem:[%s2] ss:$8 sm:$0x3]
      %v1887 = vlaneseq
      %v1888 = vshrl.u32 %v1887, 7
      %v1889 = vsub.s32 0, %v1888
      %v1890 = vrot.slane %v1885, %v1889
      %v1891 = vlaneseq
      %v1892 = vshrl.u32 %v1891, 7
      %v1893 = vsub.s32 1, %v1892
      %v1894 = vrot.slane %v1885, %v1893
      %v1897 = vmul.f32 %v1881, %v1890
      %v1898 = vmul.f32 %v1883, %v1894
      %v1899 = vadd.f32 %v1897, 0.0
      %v1900 = vadd.f32 %v1898, 0.0
      %s1901 = scalar_lea.vmem %s5, 4
      %v1902 = vld [vmem:[%s1901] sm:$0xf]
      %1903 = vrot.lane.b32.xlu0 %v1272, 16
      %v1904 = vpop.permute.xlu0 %1903
      %1905 = vrot.lane.b32.xlu0 %v1273, 16
      %v1906 = vpop.permute.xlu0 %1905
      %1907 = vrot.lane.b32.xlu0 %v1274, 16
      %v1908 = vpop.permute.xlu0 %1907
      %1909 = vrot.lane.b32.xlu0 %v1275, 16
      %v1910 = vpop.permute.xlu0 %1909
      %1911 = vrot.lane.b32.xlu0 %v1276, 16
      %v1912 = vpop.permute.xlu0 %1911
      %1913 = vrot.lane.b32.xlu0 %v1277, 16
      %v1914 = vpop.permute.xlu0 %1913
      %1915 = vrot.lane.b32.xlu0 %v1278, 16
      %v1916 = vpop.permute.xlu0 %1915
      %1917 = vrot.lane.b32.xlu0 %v1279, 16
      %v1918 = vpop.permute.xlu0 %1917
      %1919 = vrot.lane.b32.xlu0 %v1280, 16
      %v1920 = vpop.permute.xlu0 %1919
      %1921 = vrot.lane.b32.xlu0 %v1281, 16
      %v1922 = vpop.permute.xlu0 %1921
      %1923 = vrot.lane.b32.xlu0 %v1282, 16
      %v1924 = vpop.permute.xlu0 %1923
      %1925 = vrot.lane.b32.xlu0 %v1283, 16
      %v1926 = vpop.permute.xlu0 %1925
      %vm1927 = vcmask 130048
      %v1928 = vsel %vm1927, %v1904, %v1906
      %v1929 = vsel %vm1927, %v1906, %v1908
      %v1930 = vsel %vm1927, %v1910, %v1912
      %v1931 = vsel %vm1927, %v1912, %v1914
      %v1932 = vsel %vm1927, %v1916, %v1918
      %v1933 = vsel %vm1927, %v1918, %v1920
      %v1934 = vsel %vm1927, %v1922, %v1924
      %v1935 = vsel %vm1927, %v1924, %v1926
      %v1945 = vsel %vm1338, %v1902, 0
      %1947 = vmatprep.subr.mxu0 0.0
      %1948 = vmatpush1.msra.mxu0 0.0
      %1949 = vmatprep.subr.mxu0 0.0
      %1950 = vmatpush1.msra.mxu0 0.0
      %1951 = vmatprep.subr.mxu0 0.0
      %1952 = vmatpush1.msra.mxu0 0.0
      %1953 = vmatprep.subr.mxu0 0.0
      %1954 = vmatpush1.msra.mxu0 0.0
      %1955 = vmatprep.subr.mxu0 0.0
      %1956 = vmatpush1.msra.mxu0 0.0
      %1957 = vmatprep.subr.mxu0 0.0
      %1958 = vmatpush1.msra.mxu0 0.0
      %1959 = vmatprep.subr.mxu0 0.0
      %1960 = vmatpush1.msra.mxu0 0.0
      %1961 = vmatprep.subr.mxu0 0.0
      %1962 = vmatpush1.msra.mxu0 0.0
      %1963 = vmatprep.subr.mxu0 0.0
      %1964 = vmatpush1.msra.mxu0 0.0
      %1965 = vmatprep.subr.mxu0 0.0
      %1966 = vmatpush1.msra.mxu0 0.0
      %1967 = vmatprep.subr.mxu0 0.0
      %1968 = vmatpush1.msra.mxu0 0.0
      %1969 = vmatprep.subr.mxu0 0.0
      %1970 = vmatpush1.msra.mxu0 0.0
      %v1971 = vand.u32 %v1935, 4294901760
      %1972 = vmatprep.subr.mxu0 %v1971
      %v1973 = vand.u32 %v1934, 4294901760
      %1974 = vmatpush1.msra.mxu0 %v1973
      %v1975 = vand.u32 %v1933, 4294901760
      %1976 = vmatprep.subr.mxu0 %v1975
      %v1977 = vand.u32 %v1932, 4294901760
      %1978 = vmatpush1.msra.mxu0 %v1977
      %v1979 = vand.u32 %v1931, 4294901760
      %1980 = vmatprep.subr.mxu0 %v1979
      %v1981 = vand.u32 %v1930, 4294901760
      %1982 = vmatpush1.msra.mxu0 %v1981
      %v1983 = vand.u32 %v1929, 4294901760
      %1984 = vmatprep.subr.mxu0 %v1983
      %v1985 = vand.u32 %v1928, 4294901760
      %1986 = vmatpush1.msra.mxu0 %v1985
      %1987 = vmatprep.subr.mxu0 0.0
      %1988 = vmatpush2.msra.mxu0 0.0
      %1989 = vmatprep.subr.mxu0 0.0
      %1990 = vmatpush2.msra.mxu0 0.0
      %1991 = vmatprep.subr.mxu0 0.0
      %1992 = vmatpush2.msra.mxu0 0.0
      %1993 = vmatprep.subr.mxu0 0.0
      %1994 = vmatpush2.msra.mxu0 0.0
      %1995 = vmatprep.subr.mxu0 0.0
      %1996 = vmatpush2.msra.mxu0 0.0
      %1997 = vmatprep.subr.mxu0 0.0
      %1998 = vmatpush2.msra.mxu0 0.0
      %1999 = vmatprep.subr.mxu0 0.0
      %2000 = vmatpush2.msra.mxu0 0.0
      %2001 = vmatprep.subr.mxu0 0.0
      %2002 = vmatpush2.msra.mxu0 0.0
      %2003 = vmatprep.subr.mxu0 0.0
      %2004 = vmatpush2.msra.mxu0 0.0
      %2005 = vmatprep.subr.mxu0 0.0
      %2006 = vmatpush2.msra.mxu0 0.0
      %2007 = vmatprep.subr.mxu0 0.0
      %2008 = vmatpush2.msra.mxu0 0.0
      %2009 = vmatprep.subr.mxu0 0.0
      %2010 = vmatpush2.msra.mxu0 0.0
      %2011 = vmatprep.subr.mxu0 0.0
      %2012 = vmatpush2.msra.mxu0 0.0
      %2013 = vmatprep.subr.mxu0 0.0
      %2014 = vmatpush2.msra.mxu0 0.0
      %2015 = vmatprep.subr.mxu0 0.0
      %2016 = vmatpush2.msra.mxu0 0.0
      %2017 = vmatprep.subr.mxu0 0.0
      %2018 = vmatpush2.msra.mxu0 0.0
      %2019 = vmatprep.mubr.f32.mxu0 0.0
      %v2020 = vand.u32 %v1945, 4294901760
      %v2021 = vsub.f32 %v1945, %v2020
      %v2022 = vand.u32 %v2021, 4294901760
      %v2023 = vsub.f32 %v2021, %v2022
      %v2024 = vand.u32 %v2023, 4294901760
      %2025 = vmatmul.mubr.f32.gmra.mxu0 %v2024
      %v2026 = vpop.f32.mrf.mxu0
      %v2027 = vadd.f32 0.0, %v2026
      %v2028 = vpop.f32.mrf.mxu0
      %v2029 = vadd.f32 0.0, %v2028
      %2030 = vdwg.mxu0
      %2031 = vmatprep.subr.mxu0 0.0
      %2032 = vmatpush1.msra.mxu0 0.0
      %2033 = vmatprep.subr.mxu0 0.0
      %2034 = vmatpush1.msra.mxu0 0.0
      %2035 = vmatprep.subr.mxu0 0.0
      %2036 = vmatpush1.msra.mxu0 0.0
      %2037 = vmatprep.subr.mxu0 0.0
      %2038 = vmatpush1.msra.mxu0 0.0
      %2039 = vmatprep.subr.mxu0 0.0
      %2040 = vmatpush1.msra.mxu0 0.0
      %2041 = vmatprep.subr.mxu0 0.0
      %2042 = vmatpush1.msra.mxu0 0.0
      %2043 = vmatprep.subr.mxu0 0.0
      %2044 = vmatpush1.msra.mxu0 0.0
      %2045 = vmatprep.subr.mxu0 0.0
      %2046 = vmatpush1.msra.mxu0 0.0
      %2047 = vmatprep.subr.mxu0 0.0
      %2048 = vmatpush1.msra.mxu0 0.0
      %2049 = vmatprep.subr.mxu0 0.0
      %2050 = vmatpush1.msra.mxu0 0.0
      %2051 = vmatprep.subr.mxu0 0.0
      %2052 = vmatpush1.msra.mxu0 0.0
      %2053 = vmatprep.subr.mxu0 0.0
      %2054 = vmatpush1.msra.mxu0 0.0
      %v2055 = vand.u32 %v1935, 4294901760
      %v2056 = vsub.f32 %v1935, %v2055
      %v2057 = vand.u32 %v2056, 4294901760
      %v2058 = vsub.f32 %v2056, %v2057
      %v2059 = vand.u32 %v2058, 4294901760
      %2060 = vmatprep.subr.mxu0 %v2059
      %v2061 = vand.u32 %v1934, 4294901760
      %v2062 = vsub.f32 %v1934, %v2061
      %v2063 = vand.u32 %v2062, 4294901760
      %v2064 = vsub.f32 %v2062, %v2063
      %v2065 = vand.u32 %v2064, 4294901760
      %2066 = vmatpush1.msra.mxu0 %v2065
      %v2067 = vand.u32 %v1933, 4294901760
      %v2068 = vsub.f32 %v1933, %v2067
      %v2069 = vand.u32 %v2068, 4294901760
      %v2070 = vsub.f32 %v2068, %v2069
      %v2071 = vand.u32 %v2070, 4294901760
      %2072 = vmatprep.subr.mxu0 %v2071
      %v2073 = vand.u32 %v1932, 4294901760
      %v2074 = vsub.f32 %v1932, %v2073
      %v2075 = vand.u32 %v2074, 4294901760
      %v2076 = vsub.f32 %v2074, %v2075
      %v2077 = vand.u32 %v2076, 4294901760
      %2078 = vmatpush1.msra.mxu0 %v2077
      %v2079 = vand.u32 %v1931, 4294901760
      %v2080 = vsub.f32 %v1931, %v2079
      %v2081 = vand.u32 %v2080, 4294901760
      %v2082 = vsub.f32 %v2080, %v2081
      %v2083 = vand.u32 %v2082, 4294901760
      %2084 = vmatprep.subr.mxu0 %v2083
      %v2085 = vand.u32 %v1930, 4294901760
      %v2086 = vsub.f32 %v1930, %v2085
      %v2087 = vand.u32 %v2086, 4294901760
      %v2088 = vsub.f32 %v2086, %v2087
      %v2089 = vand.u32 %v2088, 4294901760
      %2090 = vmatpush1.msra.mxu0 %v2089
      %v2091 = vand.u32 %v1929, 4294901760
      %v2092 = vsub.f32 %v1929, %v2091
      %v2093 = vand.u32 %v2092, 4294901760
      %v2094 = vsub.f32 %v2092, %v2093
      %v2095 = vand.u32 %v2094, 4294901760
      %2096 = vmatprep.subr.mxu0 %v2095
      %v2097 = vand.u32 %v1928, 4294901760
      %v2098 = vsub.f32 %v1928, %v2097
      %v2099 = vand.u32 %v2098, 4294901760
      %v2100 = vsub.f32 %v2098, %v2099
      %v2101 = vand.u32 %v2100, 4294901760
      %2102 = vmatpush1.msra.mxu0 %v2101
      %2103 = vmatprep.subr.mxu0 0.0
      %2104 = vmatpush2.msra.mxu0 0.0
      %2105 = vmatprep.subr.mxu0 0.0
      %2106 = vmatpush2.msra.mxu0 0.0
      %2107 = vmatprep.subr.mxu0 0.0
      %2108 = vmatpush2.msra.mxu0 0.0
      %2109 = vmatprep.subr.mxu0 0.0
      %2110 = vmatpush2.msra.mxu0 0.0
      %2111 = vmatprep.subr.mxu0 0.0
      %2112 = vmatpush2.msra.mxu0 0.0
      %2113 = vmatprep.subr.mxu0 0.0
      %2114 = vmatpush2.msra.mxu0 0.0
      %2115 = vmatprep.subr.mxu0 0.0
      %2116 = vmatpush2.msra.mxu0 0.0
      %2117 = vmatprep.subr.mxu0 0.0
      %2118 = vmatpush2.msra.mxu0 0.0
      %2119 = vmatprep.subr.mxu0 0.0
      %2120 = vmatpush2.msra.mxu0 0.0
      %2121 = vmatprep.subr.mxu0 0.0
      %2122 = vmatpush2.msra.mxu0 0.0
      %2123 = vmatprep.subr.mxu0 0.0
      %2124 = vmatpush2.msra.mxu0 0.0
      %2125 = vmatprep.subr.mxu0 0.0
      %2126 = vmatpush2.msra.mxu0 0.0
      %2127 = vmatprep.subr.mxu0 0.0
      %2128 = vmatpush2.msra.mxu0 0.0
      %2129 = vmatprep.subr.mxu0 0.0
      %2130 = vmatpush2.msra.mxu0 0.0
      %2131 = vmatprep.subr.mxu0 0.0
      %2132 = vmatpush2.msra.mxu0 0.0
      %2133 = vmatprep.subr.mxu0 0.0
      %2134 = vmatpush2.msra.mxu0 0.0
      %2135 = vmatprep.mubr.f32.mxu0 0.0
      %v2136 = vand.u32 %v1945, 4294901760
      %2137 = vmatmul.mubr.f32.gmra.mxu0 %v2136
      %v2138 = vpop.f32.mrf.mxu0
      %v2139 = vadd.f32 %v2027, %v2138
      %v2140 = vpop.f32.mrf.mxu0
      %v2141 = vadd.f32 %v2029, %v2140
      %2142 = vdwg.mxu0
      %2143 = vmatprep.subr.mxu0 0.0
      %2144 = vmatpush1.msra.mxu0 0.0
      %2145 = vmatprep.subr.mxu0 0.0
      %2146 = vmatpush1.msra.mxu0 0.0
      %2147 = vmatprep.subr.mxu0 0.0
      %2148 = vmatpush1.msra.mxu0 0.0
      %2149 = vmatprep.subr.mxu0 0.0
      %2150 = vmatpush1.msra.mxu0 0.0
      %2151 = vmatprep.subr.mxu0 0.0
      %2152 = vmatpush1.msra.mxu0 0.0
      %2153 = vmatprep.subr.mxu0 0.0
      %2154 = vmatpush1.msra.mxu0 0.0
      %2155 = vmatprep.subr.mxu0 0.0
      %2156 = vmatpush1.msra.mxu0 0.0
      %2157 = vmatprep.subr.mxu0 0.0
      %2158 = vmatpush1.msra.mxu0 0.0
      %2159 = vmatprep.subr.mxu0 0.0
      %2160 = vmatpush1.msra.mxu0 0.0
      %2161 = vmatprep.subr.mxu0 0.0
      %2162 = vmatpush1.msra.mxu0 0.0
      %2163 = vmatprep.subr.mxu0 0.0
      %2164 = vmatpush1.msra.mxu0 0.0
      %2165 = vmatprep.subr.mxu0 0.0
      %2166 = vmatpush1.msra.mxu0 0.0
      %v2167 = vand.u32 %v1935, 4294901760
      %v2168 = vsub.f32 %v1935, %v2167
      %2169 = vmatprep.subr.mxu0 %v2168
      %v2170 = vand.u32 %v1934, 4294901760
      %v2171 = vsub.f32 %v1934, %v2170
      %2172 = vmatpush1.msra.mxu0 %v2171
      %v2173 = vand.u32 %v1933, 4294901760
      %v2174 = vsub.f32 %v1933, %v2173
      %2175 = vmatprep.subr.mxu0 %v2174
      %v2176 = vand.u32 %v1932, 4294901760
      %v2177 = vsub.f32 %v1932, %v2176
      %2178 = vmatpush1.msra.mxu0 %v2177
      %v2179 = vand.u32 %v1931, 4294901760
      %v2180 = vsub.f32 %v1931, %v2179
      %2181 = vmatprep.subr.mxu0 %v2180
      %v2182 = vand.u32 %v1930, 4294901760
      %v2183 = vsub.f32 %v1930, %v2182
      %2184 = vmatpush1.msra.mxu0 %v2183
      %v2185 = vand.u32 %v1929, 4294901760
      %v2186 = vsub.f32 %v1929, %v2185
      %2187 = vmatprep.subr.mxu0 %v2186
      %v2188 = vand.u32 %v1928, 4294901760
      %v2189 = vsub.f32 %v1928, %v2188
      %2190 = vmatpush1.msra.mxu0 %v2189
      %2191 = vmatprep.subr.mxu0 0.0
      %2192 = vmatpush2.msra.mxu0 0.0
      %2193 = vmatprep.subr.mxu0 0.0
      %2194 = vmatpush2.msra.mxu0 0.0
      %2195 = vmatprep.subr.mxu0 0.0
      %2196 = vmatpush2.msra.mxu0 0.0
      %2197 = vmatprep.subr.mxu0 0.0
      %2198 = vmatpush2.msra.mxu0 0.0
      %2199 = vmatprep.subr.mxu0 0.0
      %2200 = vmatpush2.msra.mxu0 0.0
      %2201 = vmatprep.subr.mxu0 0.0
      %2202 = vmatpush2.msra.mxu0 0.0
      %2203 = vmatprep.subr.mxu0 0.0
      %2204 = vmatpush2.msra.mxu0 0.0
      %2205 = vmatprep.subr.mxu0 0.0
      %2206 = vmatpush2.msra.mxu0 0.0
      %2207 = vmatprep.subr.mxu0 0.0
      %2208 = vmatpush2.msra.mxu0 0.0
      %2209 = vmatprep.subr.mxu0 0.0
      %2210 = vmatpush2.msra.mxu0 0.0
      %2211 = vmatprep.subr.mxu0 0.0
      %2212 = vmatpush2.msra.mxu0 0.0
      %2213 = vmatprep.subr.mxu0 0.0
      %2214 = vmatpush2.msra.mxu0 0.0
      %2215 = vmatprep.subr.mxu0 0.0
      %2216 = vmatpush2.msra.mxu0 0.0
      %2217 = vmatprep.subr.mxu0 0.0
      %2218 = vmatpush2.msra.mxu0 0.0
      %2219 = vmatprep.subr.mxu0 0.0
      %2220 = vmatpush2.msra.mxu0 0.0
      %2221 = vmatprep.subr.mxu0 0.0
      %2222 = vmatpush2.msra.mxu0 0.0
      %2223 = vmatprep.mubr.f32.mxu0 0.0
      %v2224 = vand.u32 %v1945, 4294901760
      %v2225 = vsub.f32 %v1945, %v2224
      %2226 = vmatmul.mubr.f32.gmra.mxu0 %v2225
      %v2227 = vpop.f32.mrf.mxu0
      %v2228 = vadd.f32 %v2139, %v2227
      %v2229 = vpop.f32.mrf.mxu0
      %v2230 = vadd.f32 %v2141, %v2229
      %2231 = vdwg.mxu0
      %2232 = vmatprep.subr.mxu0 0.0
      %2233 = vmatpush1.msra.mxu0 0.0
      %2234 = vmatprep.subr.mxu0 0.0
      %2235 = vmatpush1.msra.mxu0 0.0
      %2236 = vmatprep.subr.mxu0 0.0
      %2237 = vmatpush1.msra.mxu0 0.0
      %2238 = vmatprep.subr.mxu0 0.0
      %2239 = vmatpush1.msra.mxu0 0.0
      %2240 = vmatprep.subr.mxu0 0.0
      %2241 = vmatpush1.msra.mxu0 0.0
      %2242 = vmatprep.subr.mxu0 0.0
      %2243 = vmatpush1.msra.mxu0 0.0
      %2244 = vmatprep.subr.mxu0 0.0
      %2245 = vmatpush1.msra.mxu0 0.0
      %2246 = vmatprep.subr.mxu0 0.0
      %2247 = vmatpush1.msra.mxu0 0.0
      %2248 = vmatprep.subr.mxu0 0.0
      %2249 = vmatpush1.msra.mxu0 0.0
      %2250 = vmatprep.subr.mxu0 0.0
      %2251 = vmatpush1.msra.mxu0 0.0
      %2252 = vmatprep.subr.mxu0 0.0
      %2253 = vmatpush1.msra.mxu0 0.0
      %2254 = vmatprep.subr.mxu0 0.0
      %2255 = vmatpush1.msra.mxu0 0.0
      %v2256 = vand.u32 %v1935, 4294901760
      %2257 = vmatprep.subr.mxu0 %v2256
      %v2258 = vand.u32 %v1934, 4294901760
      %2259 = vmatpush1.msra.mxu0 %v2258
      %v2260 = vand.u32 %v1933, 4294901760
      %2261 = vmatprep.subr.mxu0 %v2260
      %v2262 = vand.u32 %v1932, 4294901760
      %2263 = vmatpush1.msra.mxu0 %v2262
      %v2264 = vand.u32 %v1931, 4294901760
      %2265 = vmatprep.subr.mxu0 %v2264
      %v2266 = vand.u32 %v1930, 4294901760
      %2267 = vmatpush1.msra.mxu0 %v2266
      %v2268 = vand.u32 %v1929, 4294901760
      %2269 = vmatprep.subr.mxu0 %v2268
      %v2270 = vand.u32 %v1928, 4294901760
      %2271 = vmatpush1.msra.mxu0 %v2270
      %2272 = vmatprep.subr.mxu0 0.0
      %2273 = vmatpush2.msra.mxu0 0.0
      %2274 = vmatprep.subr.mxu0 0.0
      %2275 = vmatpush2.msra.mxu0 0.0
      %2276 = vmatprep.subr.mxu0 0.0
      %2277 = vmatpush2.msra.mxu0 0.0
      %2278 = vmatprep.subr.mxu0 0.0
      %2279 = vmatpush2.msra.mxu0 0.0
      %2280 = vmatprep.subr.mxu0 0.0
      %2281 = vmatpush2.msra.mxu0 0.0
      %2282 = vmatprep.subr.mxu0 0.0
      %2283 = vmatpush2.msra.mxu0 0.0
      %2284 = vmatprep.subr.mxu0 0.0
      %2285 = vmatpush2.msra.mxu0 0.0
      %2286 = vmatprep.subr.mxu0 0.0
      %2287 = vmatpush2.msra.mxu0 0.0
      %2288 = vmatprep.subr.mxu0 0.0
      %2289 = vmatpush2.msra.mxu0 0.0
      %2290 = vmatprep.subr.mxu0 0.0
      %2291 = vmatpush2.msra.mxu0 0.0
      %2292 = vmatprep.subr.mxu0 0.0
      %2293 = vmatpush2.msra.mxu0 0.0
      %2294 = vmatprep.subr.mxu0 0.0
      %2295 = vmatpush2.msra.mxu0 0.0
      %2296 = vmatprep.subr.mxu0 0.0
      %2297 = vmatpush2.msra.mxu0 0.0
      %2298 = vmatprep.subr.mxu0 0.0
      %2299 = vmatpush2.msra.mxu0 0.0
      %2300 = vmatprep.subr.mxu0 0.0
      %2301 = vmatpush2.msra.mxu0 0.0
      %2302 = vmatprep.subr.mxu0 0.0
      %2303 = vmatpush2.msra.mxu0 0.0
      %2304 = vmatprep.mubr.f32.mxu0 0.0
      %v2305 = vand.u32 %v1945, 4294901760
      %v2306 = vsub.f32 %v1945, %v2305
      %v2307 = vand.u32 %v2306, 4294901760
      %2308 = vmatmul.mubr.f32.gmra.mxu0 %v2307
      %v2309 = vpop.f32.mrf.mxu0
      %v2310 = vadd.f32 %v2228, %v2309
      %v2311 = vpop.f32.mrf.mxu0
      %v2312 = vadd.f32 %v2230, %v2311
      %2313 = vdwg.mxu0
      %2314 = vmatprep.subr.mxu0 0.0
      %2315 = vmatpush1.msra.mxu0 0.0
      %2316 = vmatprep.subr.mxu0 0.0
      %2317 = vmatpush1.msra.mxu0 0.0
      %2318 = vmatprep.subr.mxu0 0.0
      %2319 = vmatpush1.msra.mxu0 0.0
      %2320 = vmatprep.subr.mxu0 0.0
      %2321 = vmatpush1.msra.mxu0 0.0
      %2322 = vmatprep.subr.mxu0 0.0
      %2323 = vmatpush1.msra.mxu0 0.0
      %2324 = vmatprep.subr.mxu0 0.0
      %2325 = vmatpush1.msra.mxu0 0.0
      %2326 = vmatprep.subr.mxu0 0.0
      %2327 = vmatpush1.msra.mxu0 0.0
      %2328 = vmatprep.subr.mxu0 0.0
      %2329 = vmatpush1.msra.mxu0 0.0
      %2330 = vmatprep.subr.mxu0 0.0
      %2331 = vmatpush1.msra.mxu0 0.0
      %2332 = vmatprep.subr.mxu0 0.0
      %2333 = vmatpush1.msra.mxu0 0.0
      %2334 = vmatprep.subr.mxu0 0.0
      %2335 = vmatpush1.msra.mxu0 0.0
      %2336 = vmatprep.subr.mxu0 0.0
      %2337 = vmatpush1.msra.mxu0 0.0
      %v2338 = vand.u32 %v1935, 4294901760
      %v2339 = vsub.f32 %v1935, %v2338
      %v2340 = vand.u32 %v2339, 4294901760
      %2341 = vmatprep.subr.mxu0 %v2340
      %v2342 = vand.u32 %v1934, 4294901760
      %v2343 = vsub.f32 %v1934, %v2342
      %v2344 = vand.u32 %v2343, 4294901760
      %2345 = vmatpush1.msra.mxu0 %v2344
      %v2346 = vand.u32 %v1933, 4294901760
      %v2347 = vsub.f32 %v1933, %v2346
      %v2348 = vand.u32 %v2347, 4294901760
      %2349 = vmatprep.subr.mxu0 %v2348
      %v2350 = vand.u32 %v1932, 4294901760
      %v2351 = vsub.f32 %v1932, %v2350
      %v2352 = vand.u32 %v2351, 4294901760
      %2353 = vmatpush1.msra.mxu0 %v2352
      %v2354 = vand.u32 %v1931, 4294901760
      %v2355 = vsub.f32 %v1931, %v2354
      %v2356 = vand.u32 %v2355, 4294901760
      %2357 = vmatprep.subr.mxu0 %v2356
      %v2358 = vand.u32 %v1930, 4294901760
      %v2359 = vsub.f32 %v1930, %v2358
      %v2360 = vand.u32 %v2359, 4294901760
      %2361 = vmatpush1.msra.mxu0 %v2360
      %v2362 = vand.u32 %v1929, 4294901760
      %v2363 = vsub.f32 %v1929, %v2362
      %v2364 = vand.u32 %v2363, 4294901760
      %2365 = vmatprep.subr.mxu0 %v2364
      %v2366 = vand.u32 %v1928, 4294901760
      %v2367 = vsub.f32 %v1928, %v2366
      %v2368 = vand.u32 %v2367, 4294901760
      %2369 = vmatpush1.msra.mxu0 %v2368
      %2370 = vmatprep.subr.mxu0 0.0
      %2371 = vmatpush2.msra.mxu0 0.0
      %2372 = vmatprep.subr.mxu0 0.0
      %2373 = vmatpush2.msra.mxu0 0.0
      %2374 = vmatprep.subr.mxu0 0.0
      %2375 = vmatpush2.msra.mxu0 0.0
      %2376 = vmatprep.subr.mxu0 0.0
      %2377 = vmatpush2.msra.mxu0 0.0
      %2378 = vmatprep.subr.mxu0 0.0
      %2379 = vmatpush2.msra.mxu0 0.0
      %2380 = vmatprep.subr.mxu0 0.0
      %2381 = vmatpush2.msra.mxu0 0.0
      %2382 = vmatprep.subr.mxu0 0.0
      %2383 = vmatpush2.msra.mxu0 0.0
      %2384 = vmatprep.subr.mxu0 0.0
      %2385 = vmatpush2.msra.mxu0 0.0
      %2386 = vmatprep.subr.mxu0 0.0
      %2387 = vmatpush2.msra.mxu0 0.0
      %2388 = vmatprep.subr.mxu0 0.0
      %2389 = vmatpush2.msra.mxu0 0.0
      %2390 = vmatprep.subr.mxu0 0.0
      %2391 = vmatpush2.msra.mxu0 0.0
      %2392 = vmatprep.subr.mxu0 0.0
      %2393 = vmatpush2.msra.mxu0 0.0
      %2394 = vmatprep.subr.mxu0 0.0
      %2395 = vmatpush2.msra.mxu0 0.0
      %2396 = vmatprep.subr.mxu0 0.0
      %2397 = vmatpush2.msra.mxu0 0.0
      %2398 = vmatprep.subr.mxu0 0.0
      %2399 = vmatpush2.msra.mxu0 0.0
      %2400 = vmatprep.subr.mxu0 0.0
      %2401 = vmatpush2.msra.mxu0 0.0
      %2402 = vmatprep.mubr.f32.mxu0 0.0
      %v2403 = vand.u32 %v1945, 4294901760
      %2404 = vmatmul.mubr.f32.gmra.mxu0 %v2403
      %v2405 = vpop.f32.mrf.mxu0
      %v2406 = vadd.f32 %v2310, %v2405
      %v2407 = vpop.f32.mrf.mxu0
      %v2408 = vadd.f32 %v2312, %v2407
      %2409 = vdwg.mxu0
      %2410 = vmatprep.subr.mxu0 0.0
      %2411 = vmatpush1.msra.mxu0 0.0
      %2412 = vmatprep.subr.mxu0 0.0
      %2413 = vmatpush1.msra.mxu0 0.0
      %2414 = vmatprep.subr.mxu0 0.0
      %2415 = vmatpush1.msra.mxu0 0.0
      %2416 = vmatprep.subr.mxu0 0.0
      %2417 = vmatpush1.msra.mxu0 0.0
      %2418 = vmatprep.subr.mxu0 0.0
      %2419 = vmatpush1.msra.mxu0 0.0
      %2420 = vmatprep.subr.mxu0 0.0
      %2421 = vmatpush1.msra.mxu0 0.0
      %2422 = vmatprep.subr.mxu0 0.0
      %2423 = vmatpush1.msra.mxu0 0.0
      %2424 = vmatprep.subr.mxu0 0.0
      %2425 = vmatpush1.msra.mxu0 0.0
      %2426 = vmatprep.subr.mxu0 0.0
      %2427 = vmatpush1.msra.mxu0 0.0
      %2428 = vmatprep.subr.mxu0 0.0
      %2429 = vmatpush1.msra.mxu0 0.0
      %2430 = vmatprep.subr.mxu0 0.0
      %2431 = vmatpush1.msra.mxu0 0.0
      %2432 = vmatprep.subr.mxu0 0.0
      %2433 = vmatpush1.msra.mxu0 0.0
      %v2434 = vand.u32 %v1935, 4294901760
      %2435 = vmatprep.subr.mxu0 %v2434
      %v2436 = vand.u32 %v1934, 4294901760
      %2437 = vmatpush1.msra.mxu0 %v2436
      %v2438 = vand.u32 %v1933, 4294901760
      %2439 = vmatprep.subr.mxu0 %v2438
      %v2440 = vand.u32 %v1932, 4294901760
      %2441 = vmatpush1.msra.mxu0 %v2440
      %v2442 = vand.u32 %v1931, 4294901760
      %2443 = vmatprep.subr.mxu0 %v2442
      %v2444 = vand.u32 %v1930, 4294901760
      %2445 = vmatpush1.msra.mxu0 %v2444
      %v2446 = vand.u32 %v1929, 4294901760
      %2447 = vmatprep.subr.mxu0 %v2446
      %v2448 = vand.u32 %v1928, 4294901760
      %2449 = vmatpush1.msra.mxu0 %v2448
      %2450 = vmatprep.subr.mxu0 0.0
      %2451 = vmatpush2.msra.mxu0 0.0
      %2452 = vmatprep.subr.mxu0 0.0
      %2453 = vmatpush2.msra.mxu0 0.0
      %2454 = vmatprep.subr.mxu0 0.0
      %2455 = vmatpush2.msra.mxu0 0.0
      %2456 = vmatprep.subr.mxu0 0.0
      %2457 = vmatpush2.msra.mxu0 0.0
      %2458 = vmatprep.subr.mxu0 0.0
      %2459 = vmatpush2.msra.mxu0 0.0
      %2460 = vmatprep.subr.mxu0 0.0
      %2461 = vmatpush2.msra.mxu0 0.0
      %2462 = vmatprep.subr.mxu0 0.0
      %2463 = vmatpush2.msra.mxu0 0.0
      %2464 = vmatprep.subr.mxu0 0.0
      %2465 = vmatpush2.msra.mxu0 0.0
      %2466 = vmatprep.subr.mxu0 0.0
      %2467 = vmatpush2.msra.mxu0 0.0
      %2468 = vmatprep.subr.mxu0 0.0
      %2469 = vmatpush2.msra.mxu0 0.0
      %2470 = vmatprep.subr.mxu0 0.0
      %2471 = vmatpush2.msra.mxu0 0.0
      %2472 = vmatprep.subr.mxu0 0.0
      %2473 = vmatpush2.msra.mxu0 0.0
      %2474 = vmatprep.subr.mxu0 0.0
      %2475 = vmatpush2.msra.mxu0 0.0
      %2476 = vmatprep.subr.mxu0 0.0
      %2477 = vmatpush2.msra.mxu0 0.0
      %2478 = vmatprep.subr.mxu0 0.0
      %2479 = vmatpush2.msra.mxu0 0.0
      %2480 = vmatprep.subr.mxu0 0.0
      %2481 = vmatpush2.msra.mxu0 0.0
      %2482 = vmatprep.mubr.f32.mxu0 0.0
      %v2483 = vand.u32 %v1945, 4294901760
      %2484 = vmatmul.mubr.f32.gmra.mxu0 %v2483
      %v2485 = vpop.f32.mrf.mxu0
      %v2486 = vadd.f32 %v2406, %v2485
      %v2487 = vpop.f32.mrf.mxu0
      %v2488 = vadd.f32 %v2408, %v2487
      %2489 = vdwg.mxu0
      %s2490 = scalar_lea.vmem %s2, 1
      %v2491 = vld [vmem:[%s2490] ss:$8 sm:$0x3]
      %v2493 = vlaneseq
      %v2494 = vshrl.u32 %v2493, 7
      %v2495 = vsub.s32 0, %v2494
      %v2496 = vrot.slane %v2491, %v2495
      %v2497 = vlaneseq
      %v2498 = vshrl.u32 %v2497, 7
      %v2499 = vsub.s32 1, %v2498
      %v2500 = vrot.slane %v2491, %v2499
      %v2503 = vmul.f32 %v2486, %v2496
      %v2504 = vmul.f32 %v2488, %v2500
      %v2505 = vadd.f32 %v1899, %v2503
      %v2506 = vadd.f32 %v1900, %v2504
      %s2507 = scalar_lea.vmem %s5, 8
      %v2508 = vld [vmem:[%s2507] sm:$0xf]
      %2509 = vrot.lane.b32.xlu0 %v1272, 15
      %v2510 = vpop.permute.xlu0 %2509
      %2511 = vrot.lane.b32.xlu0 %v1273, 15
      %v2512 = vpop.permute.xlu0 %2511
      %2513 = vrot.lane.b32.xlu0 %v1274, 15
      %v2514 = vpop.permute.xlu0 %2513
      %2515 = vrot.lane.b32.xlu0 %v1275, 15
      %v2516 = vpop.permute.xlu0 %2515
      %2517 = vrot.lane.b32.xlu0 %v1276, 15
      %v2518 = vpop.permute.xlu0 %2517
      %2519 = vrot.lane.b32.xlu0 %v1277, 15
      %v2520 = vpop.permute.xlu0 %2519
      %2521 = vrot.lane.b32.xlu0 %v1278, 15
      %v2522 = vpop.permute.xlu0 %2521
      %2523 = vrot.lane.b32.xlu0 %v1279, 15
      %v2524 = vpop.permute.xlu0 %2523
      %2525 = vrot.lane.b32.xlu0 %v1280, 15
      %v2526 = vpop.permute.xlu0 %2525
      %2527 = vrot.lane.b32.xlu0 %v1281, 15
      %v2528 = vpop.permute.xlu0 %2527
      %2529 = vrot.lane.b32.xlu0 %v1282, 15
      %v2530 = vpop.permute.xlu0 %2529
      %2531 = vrot.lane.b32.xlu0 %v1283, 15
      %v2532 = vpop.permute.xlu0 %2531
      %vm2533 = vcmask 121856
      %v2534 = vsel %vm2533, %v2510, %v2512
      %v2535 = vsel %vm2533, %v2512, %v2514
      %v2536 = vsel %vm2533, %v2516, %v2518
      %v2537 = vsel %vm2533, %v2518, %v2520
      %v2538 = vsel %vm2533, %v2522, %v2524
      %v2539 = vsel %vm2533, %v2524, %v2526
      %v2540 = vsel %vm2533, %v2528, %v2530
      %v2541 = vsel %vm2533, %v2530, %v2532
      %v2551 = vsel %vm1338, %v2508, 0
      %2553 = vmatprep.subr.mxu0 0.0
      %2554 = vmatpush1.msra.mxu0 0.0
      %2555 = vmatprep.subr.mxu0 0.0
      %2556 = vmatpush1.msra.mxu0 0.0
      %2557 = vmatprep.subr.mxu0 0.0
      %2558 = vmatpush1.msra.mxu0 0.0
      %2559 = vmatprep.subr.mxu0 0.0
      %2560 = vmatpush1.msra.mxu0 0.0
      %2561 = vmatprep.subr.mxu0 0.0
      %2562 = vmatpush1.msra.mxu0 0.0
      %2563 = vmatprep.subr.mxu0 0.0
      %2564 = vmatpush1.msra.mxu0 0.0
      %2565 = vmatprep.subr.mxu0 0.0
      %2566 = vmatpush1.msra.mxu0 0.0
      %2567 = vmatprep.subr.mxu0 0.0
      %2568 = vmatpush1.msra.mxu0 0.0
      %2569 = vmatprep.subr.mxu0 0.0
      %2570 = vmatpush1.msra.mxu0 0.0
      %2571 = vmatprep.subr.mxu0 0.0
      %2572 = vmatpush1.msra.mxu0 0.0
      %2573 = vmatprep.subr.mxu0 0.0
      %2574 = vmatpush1.msra.mxu0 0.0
      %2575 = vmatprep.subr.mxu0 0.0
      %2576 = vmatpush1.msra.mxu0 0.0
      %v2577 = vand.u32 %v2541, 4294901760
      %2578 = vmatprep.subr.mxu0 %v2577
      %v2579 = vand.u32 %v2540, 4294901760
      %2580 = vmatpush1.msra.mxu0 %v2579
      %v2581 = vand.u32 %v2539, 4294901760
      %2582 = vmatprep.subr.mxu0 %v2581
      %v2583 = vand.u32 %v2538, 4294901760
      %2584 = vmatpush1.msra.mxu0 %v2583
      %v2585 = vand.u32 %v2537, 4294901760
      %2586 = vmatprep.subr.mxu0 %v2585
      %v2587 = vand.u32 %v2536, 4294901760
      %2588 = vmatpush1.msra.mxu0 %v2587
      %v2589 = vand.u32 %v2535, 4294901760
      %2590 = vmatprep.subr.mxu0 %v2589
      %v2591 = vand.u32 %v2534, 4294901760
      %2592 = vmatpush1.msra.mxu0 %v2591
      %2593 = vmatprep.subr.mxu0 0.0
      %2594 = vmatpush2.msra.mxu0 0.0
      %2595 = vmatprep.subr.mxu0 0.0
      %2596 = vmatpush2.msra.mxu0 0.0
      %2597 = vmatprep.subr.mxu0 0.0
      %2598 = vmatpush2.msra.mxu0 0.0
      %2599 = vmatprep.subr.mxu0 0.0
      %2600 = vmatpush2.msra.mxu0 0.0
      %2601 = vmatprep.subr.mxu0 0.0
      %2602 = vmatpush2.msra.mxu0 0.0
      %2603 = vmatprep.subr.mxu0 0.0
      %2604 = vmatpush2.msra.mxu0 0.0
      %2605 = vmatprep.subr.mxu0 0.0
      %2606 = vmatpush2.msra.mxu0 0.0
      %2607 = vmatprep.subr.mxu0 0.0
      %2608 = vmatpush2.msra.mxu0 0.0
      %2609 = vmatprep.subr.mxu0 0.0
      %2610 = vmatpush2.msra.mxu0 0.0
      %2611 = vmatprep.subr.mxu0 0.0
      %2612 = vmatpush2.msra.mxu0 0.0
      %2613 = vmatprep.subr.mxu0 0.0
      %2614 = vmatpush2.msra.mxu0 0.0
      %2615 = vmatprep.subr.mxu0 0.0
      %2616 = vmatpush2.msra.mxu0 0.0
      %2617 = vmatprep.subr.mxu0 0.0
      %2618 = vmatpush2.msra.mxu0 0.0
      %2619 = vmatprep.subr.mxu0 0.0
      %2620 = vmatpush2.msra.mxu0 0.0
      %2621 = vmatprep.subr.mxu0 0.0
      %2622 = vmatpush2.msra.mxu0 0.0
      %2623 = vmatprep.subr.mxu0 0.0
      %2624 = vmatpush2.msra.mxu0 0.0
      %2625 = vmatprep.mubr.f32.mxu0 0.0
      %v2626 = vand.u32 %v2551, 4294901760
      %v2627 = vsub.f32 %v2551, %v2626
      %v2628 = vand.u32 %v2627, 4294901760
      %v2629 = vsub.f32 %v2627, %v2628
      %v2630 = vand.u32 %v2629, 4294901760
      %2631 = vmatmul.mubr.f32.gmra.mxu0 %v2630
      %v2632 = vpop.f32.mrf.mxu0
      %v2633 = vadd.f32 0.0, %v2632
      %v2634 = vpop.f32.mrf.mxu0
      %v2635 = vadd.f32 0.0, %v2634
      %2636 = vdwg.mxu0
      %2637 = vmatprep.subr.mxu0 0.0
      %2638 = vmatpush1.msra.mxu0 0.0
      %2639 = vmatprep.subr.mxu0 0.0
      %2640 = vmatpush1.msra.mxu0 0.0
      %2641 = vmatprep.subr.mxu0 0.0
      %2642 = vmatpush1.msra.mxu0 0.0
      %2643 = vmatprep.subr.mxu0 0.0
      %2644 = vmatpush1.msra.mxu0 0.0
      %2645 = vmatprep.subr.mxu0 0.0
      %2646 = vmatpush1.msra.mxu0 0.0
      %2647 = vmatprep.subr.mxu0 0.0
      %2648 = vmatpush1.msra.mxu0 0.0
      %2649 = vmatprep.subr.mxu0 0.0
      %2650 = vmatpush1.msra.mxu0 0.0
      %2651 = vmatprep.subr.mxu0 0.0
      %2652 = vmatpush1.msra.mxu0 0.0
      %2653 = vmatprep.subr.mxu0 0.0
      %2654 = vmatpush1.msra.mxu0 0.0
      %2655 = vmatprep.subr.mxu0 0.0
      %2656 = vmatpush1.msra.mxu0 0.0
      %2657 = vmatprep.subr.mxu0 0.0
      %2658 = vmatpush1.msra.mxu0 0.0
      %2659 = vmatprep.subr.mxu0 0.0
      %2660 = vmatpush1.msra.mxu0 0.0
      %v2661 = vand.u32 %v2541, 4294901760
      %v2662 = vsub.f32 %v2541, %v2661
      %v2663 = vand.u32 %v2662, 4294901760
      %v2664 = vsub.f32 %v2662, %v2663
      %v2665 = vand.u32 %v2664, 4294901760
      %2666 = vmatprep.subr.mxu0 %v2665
      %v2667 = vand.u32 %v2540, 4294901760
      %v2668 = vsub.f32 %v2540, %v2667
      %v2669 = vand.u32 %v2668, 4294901760
      %v2670 = vsub.f32 %v2668, %v2669
      %v2671 = vand.u32 %v2670, 4294901760
      %2672 = vmatpush1.msra.mxu0 %v2671
      %v2673 = vand.u32 %v2539, 4294901760
      %v2674 = vsub.f32 %v2539, %v2673
      %v2675 = vand.u32 %v2674, 4294901760
      %v2676 = vsub.f32 %v2674, %v2675
      %v2677 = vand.u32 %v2676, 4294901760
      %2678 = vmatprep.subr.mxu0 %v2677
      %v2679 = vand.u32 %v2538, 4294901760
      %v2680 = vsub.f32 %v2538, %v2679
      %v2681 = vand.u32 %v2680, 4294901760
      %v2682 = vsub.f32 %v2680, %v2681
      %v2683 = vand.u32 %v2682, 4294901760
      %2684 = vmatpush1.msra.mxu0 %v2683
      %v2685 = vand.u32 %v2537, 4294901760
      %v2686 = vsub.f32 %v2537, %v2685
      %v2687 = vand.u32 %v2686, 4294901760
      %v2688 = vsub.f32 %v2686, %v2687
      %v2689 = vand.u32 %v2688, 4294901760
      %2690 = vmatprep.subr.mxu0 %v2689
      %v2691 = vand.u32 %v2536, 4294901760
      %v2692 = vsub.f32 %v2536, %v2691
      %v2693 = vand.u32 %v2692, 4294901760
      %v2694 = vsub.f32 %v2692, %v2693
      %v2695 = vand.u32 %v2694, 4294901760
      %2696 = vmatpush1.msra.mxu0 %v2695
      %v2697 = vand.u32 %v2535, 4294901760
      %v2698 = vsub.f32 %v2535, %v2697
      %v2699 = vand.u32 %v2698, 4294901760
      %v2700 = vsub.f32 %v2698, %v2699
      %v2701 = vand.u32 %v2700, 4294901760
      %2702 = vmatprep.subr.mxu0 %v2701
      %v2703 = vand.u32 %v2534, 4294901760
      %v2704 = vsub.f32 %v2534, %v2703
      %v2705 = vand.u32 %v2704, 4294901760
      %v2706 = vsub.f32 %v2704, %v2705
      %v2707 = vand.u32 %v2706, 4294901760
      %2708 = vmatpush1.msra.mxu0 %v2707
      %2709 = vmatprep.subr.mxu0 0.0
      %2710 = vmatpush2.msra.mxu0 0.0
      %2711 = vmatprep.subr.mxu0 0.0
      %2712 = vmatpush2.msra.mxu0 0.0
      %2713 = vmatprep.subr.mxu0 0.0
      %2714 = vmatpush2.msra.mxu0 0.0
      %2715 = vmatprep.subr.mxu0 0.0
      %2716 = vmatpush2.msra.mxu0 0.0
      %2717 = vmatprep.subr.mxu0 0.0
      %2718 = vmatpush2.msra.mxu0 0.0
      %2719 = vmatprep.subr.mxu0 0.0
      %2720 = vmatpush2.msra.mxu0 0.0
      %2721 = vmatprep.subr.mxu0 0.0
      %2722 = vmatpush2.msra.mxu0 0.0
      %2723 = vmatprep.subr.mxu0 0.0
      %2724 = vmatpush2.msra.mxu0 0.0
      %2725 = vmatprep.subr.mxu0 0.0
      %2726 = vmatpush2.msra.mxu0 0.0
      %2727 = vmatprep.subr.mxu0 0.0
      %2728 = vmatpush2.msra.mxu0 0.0
      %2729 = vmatprep.subr.mxu0 0.0
      %2730 = vmatpush2.msra.mxu0 0.0
      %2731 = vmatprep.subr.mxu0 0.0
      %2732 = vmatpush2.msra.mxu0 0.0
      %2733 = vmatprep.subr.mxu0 0.0
      %2734 = vmatpush2.msra.mxu0 0.0
      %2735 = vmatprep.subr.mxu0 0.0
      %2736 = vmatpush2.msra.mxu0 0.0
      %2737 = vmatprep.subr.mxu0 0.0
      %2738 = vmatpush2.msra.mxu0 0.0
      %2739 = vmatprep.subr.mxu0 0.0
      %2740 = vmatpush2.msra.mxu0 0.0
      %2741 = vmatprep.mubr.f32.mxu0 0.0
      %v2742 = vand.u32 %v2551, 4294901760
      %2743 = vmatmul.mubr.f32.gmra.mxu0 %v2742
      %v2744 = vpop.f32.mrf.mxu0
      %v2745 = vadd.f32 %v2633, %v2744
      %v2746 = vpop.f32.mrf.mxu0
      %v2747 = vadd.f32 %v2635, %v2746
      %2748 = vdwg.mxu0
      %2749 = vmatprep.subr.mxu0 0.0
      %2750 = vmatpush1.msra.mxu0 0.0
      %2751 = vmatprep.subr.mxu0 0.0
      %2752 = vmatpush1.msra.mxu0 0.0
      %2753 = vmatprep.subr.mxu0 0.0
      %2754 = vmatpush1.msra.mxu0 0.0
      %2755 = vmatprep.subr.mxu0 0.0
      %2756 = vmatpush1.msra.mxu0 0.0
      %2757 = vmatprep.subr.mxu0 0.0
      %2758 = vmatpush1.msra.mxu0 0.0
      %2759 = vmatprep.subr.mxu0 0.0
      %2760 = vmatpush1.msra.mxu0 0.0
      %2761 = vmatprep.subr.mxu0 0.0
      %2762 = vmatpush1.msra.mxu0 0.0
      %2763 = vmatprep.subr.mxu0 0.0
      %2764 = vmatpush1.msra.mxu0 0.0
      %2765 = vmatprep.subr.mxu0 0.0
      %2766 = vmatpush1.msra.mxu0 0.0
      %2767 = vmatprep.subr.mxu0 0.0
      %2768 = vmatpush1.msra.mxu0 0.0
      %2769 = vmatprep.subr.mxu0 0.0
      %2770 = vmatpush1.msra.mxu0 0.0
      %2771 = vmatprep.subr.mxu0 0.0
      %2772 = vmatpush1.msra.mxu0 0.0
      %v2773 = vand.u32 %v2541, 4294901760
      %v2774 = vsub.f32 %v2541, %v2773
      %2775 = vmatprep.subr.mxu0 %v2774
      %v2776 = vand.u32 %v2540, 4294901760
      %v2777 = vsub.f32 %v2540, %v2776
      %2778 = vmatpush1.msra.mxu0 %v2777
      %v2779 = vand.u32 %v2539, 4294901760
      %v2780 = vsub.f32 %v2539, %v2779
      %2781 = vmatprep.subr.mxu0 %v2780
      %v2782 = vand.u32 %v2538, 4294901760
      %v2783 = vsub.f32 %v2538, %v2782
      %2784 = vmatpush1.msra.mxu0 %v2783
      %v2785 = vand.u32 %v2537, 4294901760
      %v2786 = vsub.f32 %v2537, %v2785
      %2787 = vmatprep.subr.mxu0 %v2786
      %v2788 = vand.u32 %v2536, 4294901760
      %v2789 = vsub.f32 %v2536, %v2788
      %2790 = vmatpush1.msra.mxu0 %v2789
      %v2791 = vand.u32 %v2535, 4294901760
      %v2792 = vsub.f32 %v2535, %v2791
      %2793 = vmatprep.subr.mxu0 %v2792
      %v2794 = vand.u32 %v2534, 4294901760
      %v2795 = vsub.f32 %v2534, %v2794
      %2796 = vmatpush1.msra.mxu0 %v2795
      %2797 = vmatprep.subr.mxu0 0.0
      %2798 = vmatpush2.msra.mxu0 0.0
      %2799 = vmatprep.subr.mxu0 0.0
      %2800 = vmatpush2.msra.mxu0 0.0
      %2801 = vmatprep.subr.mxu0 0.0
      %2802 = vmatpush2.msra.mxu0 0.0
      %2803 = vmatprep.subr.mxu0 0.0
      %2804 = vmatpush2.msra.mxu0 0.0
      %2805 = vmatprep.subr.mxu0 0.0
      %2806 = vmatpush2.msra.mxu0 0.0
      %2807 = vmatprep.subr.mxu0 0.0
      %2808 = vmatpush2.msra.mxu0 0.0
      %2809 = vmatprep.subr.mxu0 0.0
      %2810 = vmatpush2.msra.mxu0 0.0
      %2811 = vmatprep.subr.mxu0 0.0
      %2812 = vmatpush2.msra.mxu0 0.0
      %2813 = vmatprep.subr.mxu0 0.0
      %2814 = vmatpush2.msra.mxu0 0.0
      %2815 = vmatprep.subr.mxu0 0.0
      %2816 = vmatpush2.msra.mxu0 0.0
      %2817 = vmatprep.subr.mxu0 0.0
      %2818 = vmatpush2.msra.mxu0 0.0
      %2819 = vmatprep.subr.mxu0 0.0
      %2820 = vmatpush2.msra.mxu0 0.0
      %2821 = vmatprep.subr.mxu0 0.0
      %2822 = vmatpush2.msra.mxu0 0.0
      %2823 = vmatprep.subr.mxu0 0.0
      %2824 = vmatpush2.msra.mxu0 0.0
      %2825 = vmatprep.subr.mxu0 0.0
      %2826 = vmatpush2.msra.mxu0 0.0
      %2827 = vmatprep.subr.mxu0 0.0
      %2828 = vmatpush2.msra.mxu0 0.0
      %2829 = vmatprep.mubr.f32.mxu0 0.0
      %v2830 = vand.u32 %v2551, 4294901760
      %v2831 = vsub.f32 %v2551, %v2830
      %2832 = vmatmul.mubr.f32.gmra.mxu0 %v2831
      %v2833 = vpop.f32.mrf.mxu0
      %v2834 = vadd.f32 %v2745, %v2833
      %v2835 = vpop.f32.mrf.mxu0
      %v2836 = vadd.f32 %v2747, %v2835
      %2837 = vdwg.mxu0
      %2838 = vmatprep.subr.mxu0 0.0
      %2839 = vmatpush1.msra.mxu0 0.0
      %2840 = vmatprep.subr.mxu0 0.0
      %2841 = vmatpush1.msra.mxu0 0.0
      %2842 = vmatprep.subr.mxu0 0.0
      %2843 = vmatpush1.msra.mxu0 0.0
      %2844 = vmatprep.subr.mxu0 0.0
      %2845 = vmatpush1.msra.mxu0 0.0
      %2846 = vmatprep.subr.mxu0 0.0
      %2847 = vmatpush1.msra.mxu0 0.0
      %2848 = vmatprep.subr.mxu0 0.0
      %2849 = vmatpush1.msra.mxu0 0.0
      %2850 = vmatprep.subr.mxu0 0.0
      %2851 = vmatpush1.msra.mxu0 0.0
      %2852 = vmatprep.subr.mxu0 0.0
      %2853 = vmatpush1.msra.mxu0 0.0
      %2854 = vmatprep.subr.mxu0 0.0
      %2855 = vmatpush1.msra.mxu0 0.0
      %2856 = vmatprep.subr.mxu0 0.0
      %2857 = vmatpush1.msra.mxu0 0.0
      %2858 = vmatprep.subr.mxu0 0.0
      %2859 = vmatpush1.msra.mxu0 0.0
      %2860 = vmatprep.subr.mxu0 0.0
      %2861 = vmatpush1.msra.mxu0 0.0
      %v2862 = vand.u32 %v2541, 4294901760
      %2863 = vmatprep.subr.mxu0 %v2862
      %v2864 = vand.u32 %v2540, 4294901760
      %2865 = vmatpush1.msra.mxu0 %v2864
      %v2866 = vand.u32 %v2539, 4294901760
      %2867 = vmatprep.subr.mxu0 %v2866
      %v2868 = vand.u32 %v2538, 4294901760
      %2869 = vmatpush1.msra.mxu0 %v2868
      %v2870 = vand.u32 %v2537, 4294901760
      %2871 = vmatprep.subr.mxu0 %v2870
      %v2872 = vand.u32 %v2536, 4294901760
      %2873 = vmatpush1.msra.mxu0 %v2872
      %v2874 = vand.u32 %v2535, 4294901760
      %2875 = vmatprep.subr.mxu0 %v2874
      %v2876 = vand.u32 %v2534, 4294901760
      %2877 = vmatpush1.msra.mxu0 %v2876
      %2878 = vmatprep.subr.mxu0 0.0
      %2879 = vmatpush2.msra.mxu0 0.0
      %2880 = vmatprep.subr.mxu0 0.0
      %2881 = vmatpush2.msra.mxu0 0.0
      %2882 = vmatprep.subr.mxu0 0.0
      %2883 = vmatpush2.msra.mxu0 0.0
      %2884 = vmatprep.subr.mxu0 0.0
      %2885 = vmatpush2.msra.mxu0 0.0
      %2886 = vmatprep.subr.mxu0 0.0
      %2887 = vmatpush2.msra.mxu0 0.0
      %2888 = vmatprep.subr.mxu0 0.0
      %2889 = vmatpush2.msra.mxu0 0.0
      %2890 = vmatprep.subr.mxu0 0.0
      %2891 = vmatpush2.msra.mxu0 0.0
      %2892 = vmatprep.subr.mxu0 0.0
      %2893 = vmatpush2.msra.mxu0 0.0
      %2894 = vmatprep.subr.mxu0 0.0
      %2895 = vmatpush2.msra.mxu0 0.0
      %2896 = vmatprep.subr.mxu0 0.0
      %2897 = vmatpush2.msra.mxu0 0.0
      %2898 = vmatprep.subr.mxu0 0.0
      %2899 = vmatpush2.msra.mxu0 0.0
      %2900 = vmatprep.subr.mxu0 0.0
      %2901 = vmatpush2.msra.mxu0 0.0
      %2902 = vmatprep.subr.mxu0 0.0
      %2903 = vmatpush2.msra.mxu0 0.0
      %2904 = vmatprep.subr.mxu0 0.0
      %2905 = vmatpush2.msra.mxu0 0.0
      %2906 = vmatprep.subr.mxu0 0.0
      %2907 = vmatpush2.msra.mxu0 0.0
      %2908 = vmatprep.subr.mxu0 0.0
      %2909 = vmatpush2.msra.mxu0 0.0
      %2910 = vmatprep.mubr.f32.mxu0 0.0
      %v2911 = vand.u32 %v2551, 4294901760
      %v2912 = vsub.f32 %v2551, %v2911
      %v2913 = vand.u32 %v2912, 4294901760
      %2914 = vmatmul.mubr.f32.gmra.mxu0 %v2913
      %v2915 = vpop.f32.mrf.mxu0
      %v2916 = vadd.f32 %v2834, %v2915
      %v2917 = vpop.f32.mrf.mxu0
      %v2918 = vadd.f32 %v2836, %v2917
      %2919 = vdwg.mxu0
      %2920 = vmatprep.subr.mxu0 0.0
      %2921 = vmatpush1.msra.mxu0 0.0
      %2922 = vmatprep.subr.mxu0 0.0
      %2923 = vmatpush1.msra.mxu0 0.0
      %2924 = vmatprep.subr.mxu0 0.0
      %2925 = vmatpush1.msra.mxu0 0.0
      %2926 = vmatprep.subr.mxu0 0.0
      %2927 = vmatpush1.msra.mxu0 0.0
      %2928 = vmatprep.subr.mxu0 0.0
      %2929 = vmatpush1.msra.mxu0 0.0
      %2930 = vmatprep.subr.mxu0 0.0
      %2931 = vmatpush1.msra.mxu0 0.0
      %2932 = vmatprep.subr.mxu0 0.0
      %2933 = vmatpush1.msra.mxu0 0.0
      %2934 = vmatprep.subr.mxu0 0.0
      %2935 = vmatpush1.msra.mxu0 0.0
      %2936 = vmatprep.subr.mxu0 0.0
      %2937 = vmatpush1.msra.mxu0 0.0
      %2938 = vmatprep.subr.mxu0 0.0
      %2939 = vmatpush1.msra.mxu0 0.0
      %2940 = vmatprep.subr.mxu0 0.0
      %2941 = vmatpush1.msra.mxu0 0.0
      %2942 = vmatprep.subr.mxu0 0.0
      %2943 = vmatpush1.msra.mxu0 0.0
      %v2944 = vand.u32 %v2541, 4294901760
      %v2945 = vsub.f32 %v2541, %v2944
      %v2946 = vand.u32 %v2945, 4294901760
      %2947 = vmatprep.subr.mxu0 %v2946
      %v2948 = vand.u32 %v2540, 4294901760
      %v2949 = vsub.f32 %v2540, %v2948
      %v2950 = vand.u32 %v2949, 4294901760
      %2951 = vmatpush1.msra.mxu0 %v2950
      %v2952 = vand.u32 %v2539, 4294901760
      %v2953 = vsub.f32 %v2539, %v2952
      %v2954 = vand.u32 %v2953, 4294901760
      %2955 = vmatprep.subr.mxu0 %v2954
      %v2956 = vand.u32 %v2538, 4294901760
      %v2957 = vsub.f32 %v2538, %v2956
      %v2958 = vand.u32 %v2957, 4294901760
      %2959 = vmatpush1.msra.mxu0 %v2958
      %v2960 = vand.u32 %v2537, 4294901760
      %v2961 = vsub.f32 %v2537, %v2960
      %v2962 = vand.u32 %v2961, 4294901760
      %2963 = vmatprep.subr.mxu0 %v2962
      %v2964 = vand.u32 %v2536, 4294901760
      %v2965 = vsub.f32 %v2536, %v2964
      %v2966 = vand.u32 %v2965, 4294901760
      %2967 = vmatpush1.msra.mxu0 %v2966
      %v2968 = vand.u32 %v2535, 4294901760
      %v2969 = vsub.f32 %v2535, %v2968
      %v2970 = vand.u32 %v2969, 4294901760
      %2971 = vmatprep.subr.mxu0 %v2970
      %v2972 = vand.u32 %v2534, 4294901760
      %v2973 = vsub.f32 %v2534, %v2972
      %v2974 = vand.u32 %v2973, 4294901760
      %2975 = vmatpush1.msra.mxu0 %v2974
      %2976 = vmatprep.subr.mxu0 0.0
      %2977 = vmatpush2.msra.mxu0 0.0
      %2978 = vmatprep.subr.mxu0 0.0
      %2979 = vmatpush2.msra.mxu0 0.0
      %2980 = vmatprep.subr.mxu0 0.0
      %2981 = vmatpush2.msra.mxu0 0.0
      %2982 = vmatprep.subr.mxu0 0.0
      %2983 = vmatpush2.msra.mxu0 0.0
      %2984 = vmatprep.subr.mxu0 0.0
      %2985 = vmatpush2.msra.mxu0 0.0
      %2986 = vmatprep.subr.mxu0 0.0
      %2987 = vmatpush2.msra.mxu0 0.0
      %2988 = vmatprep.subr.mxu0 0.0
      %2989 = vmatpush2.msra.mxu0 0.0
      %2990 = vmatprep.subr.mxu0 0.0
      %2991 = vmatpush2.msra.mxu0 0.0
      %2992 = vmatprep.subr.mxu0 0.0
      %2993 = vmatpush2.msra.mxu0 0.0
      %2994 = vmatprep.subr.mxu0 0.0
      %2995 = vmatpush2.msra.mxu0 0.0
      %2996 = vmatprep.subr.mxu0 0.0
      %2997 = vmatpush2.msra.mxu0 0.0
      %2998 = vmatprep.subr.mxu0 0.0
      %2999 = vmatpush2.msra.mxu0 0.0
      %3000 = vmatprep.subr.mxu0 0.0
      %3001 = vmatpush2.msra.mxu0 0.0
      %3002 = vmatprep.subr.mxu0 0.0
      %3003 = vmatpush2.msra.mxu0 0.0
      %3004 = vmatprep.subr.mxu0 0.0
      %3005 = vmatpush2.msra.mxu0 0.0
      %3006 = vmatprep.subr.mxu0 0.0
      %3007 = vmatpush2.msra.mxu0 0.0
      %3008 = vmatprep.mubr.f32.mxu0 0.0
      %v3009 = vand.u32 %v2551, 4294901760
      %3010 = vmatmul.mubr.f32.gmra.mxu0 %v3009
      %v3011 = vpop.f32.mrf.mxu0
      %v3012 = vadd.f32 %v2916, %v3011
      %v3013 = vpop.f32.mrf.mxu0
      %v3014 = vadd.f32 %v2918, %v3013
      %3015 = vdwg.mxu0
      %3016 = vmatprep.subr.mxu0 0.0
      %3017 = vmatpush1.msra.mxu0 0.0
      %3018 = vmatprep.subr.mxu0 0.0
      %3019 = vmatpush1.msra.mxu0 0.0
      %3020 = vmatprep.subr.mxu0 0.0
      %3021 = vmatpush1.msra.mxu0 0.0
      %3022 = vmatprep.subr.mxu0 0.0
      %3023 = vmatpush1.msra.mxu0 0.0
      %3024 = vmatprep.subr.mxu0 0.0
      %3025 = vmatpush1.msra.mxu0 0.0
      %3026 = vmatprep.subr.mxu0 0.0
      %3027 = vmatpush1.msra.mxu0 0.0
      %3028 = vmatprep.subr.mxu0 0.0
      %3029 = vmatpush1.msra.mxu0 0.0
      %3030 = vmatprep.subr.mxu0 0.0
      %3031 = vmatpush1.msra.mxu0 0.0
      %3032 = vmatprep.subr.mxu0 0.0
      %3033 = vmatpush1.msra.mxu0 0.0
      %3034 = vmatprep.subr.mxu0 0.0
      %3035 = vmatpush1.msra.mxu0 0.0
      %3036 = vmatprep.subr.mxu0 0.0
      %3037 = vmatpush1.msra.mxu0 0.0
      %3038 = vmatprep.subr.mxu0 0.0
      %3039 = vmatpush1.msra.mxu0 0.0
      %v3040 = vand.u32 %v2541, 4294901760
      %3041 = vmatprep.subr.mxu0 %v3040
      %v3042 = vand.u32 %v2540, 4294901760
      %3043 = vmatpush1.msra.mxu0 %v3042
      %v3044 = vand.u32 %v2539, 4294901760
      %3045 = vmatprep.subr.mxu0 %v3044
      %v3046 = vand.u32 %v2538, 4294901760
      %3047 = vmatpush1.msra.mxu0 %v3046
      %v3048 = vand.u32 %v2537, 4294901760
      %3049 = vmatprep.subr.mxu0 %v3048
      %v3050 = vand.u32 %v2536, 4294901760
      %3051 = vmatpush1.msra.mxu0 %v3050
      %v3052 = vand.u32 %v2535, 4294901760
      %3053 = vmatprep.subr.mxu0 %v3052
      %v3054 = vand.u32 %v2534, 4294901760
      %3055 = vmatpush1.msra.mxu0 %v3054
      %3056 = vmatprep.subr.mxu0 0.0
      %3057 = vmatpush2.msra.mxu0 0.0
      %3058 = vmatprep.subr.mxu0 0.0
      %3059 = vmatpush2.msra.mxu0 0.0
      %3060 = vmatprep.subr.mxu0 0.0
      %3061 = vmatpush2.msra.mxu0 0.0
      %3062 = vmatprep.subr.mxu0 0.0
      %3063 = vmatpush2.msra.mxu0 0.0
      %3064 = vmatprep.subr.mxu0 0.0
      %3065 = vmatpush2.msra.mxu0 0.0
      %3066 = vmatprep.subr.mxu0 0.0
      %3067 = vmatpush2.msra.mxu0 0.0
      %3068 = vmatprep.subr.mxu0 0.0
      %3069 = vmatpush2.msra.mxu0 0.0
      %3070 = vmatprep.subr.mxu0 0.0
      %3071 = vmatpush2.msra.mxu0 0.0
      %3072 = vmatprep.subr.mxu0 0.0
      %3073 = vmatpush2.msra.mxu0 0.0
      %3074 = vmatprep.subr.mxu0 0.0
      %3075 = vmatpush2.msra.mxu0 0.0
      %3076 = vmatprep.subr.mxu0 0.0
      %3077 = vmatpush2.msra.mxu0 0.0
      %3078 = vmatprep.subr.mxu0 0.0
      %3079 = vmatpush2.msra.mxu0 0.0
      %3080 = vmatprep.subr.mxu0 0.0
      %3081 = vmatpush2.msra.mxu0 0.0
      %3082 = vmatprep.subr.mxu0 0.0
      %3083 = vmatpush2.msra.mxu0 0.0
      %3084 = vmatprep.subr.mxu0 0.0
      %3085 = vmatpush2.msra.mxu0 0.0
      %3086 = vmatprep.subr.mxu0 0.0
      %3087 = vmatpush2.msra.mxu0 0.0
      %3088 = vmatprep.mubr.f32.mxu0 0.0
      %v3089 = vand.u32 %v2551, 4294901760
      %3090 = vmatmul.mubr.f32.gmra.mxu0 %v3089
      %v3091 = vpop.f32.mrf.mxu0
      %v3092 = vadd.f32 %v3012, %v3091
      %v3093 = vpop.f32.mrf.mxu0
      %v3094 = vadd.f32 %v3014, %v3093
      %3095 = vdwg.mxu0
      %s3096 = scalar_lea.vmem %s2, 2
      %v3097 = vld [vmem:[%s3096] ss:$8 sm:$0x3]
      %v3099 = vlaneseq
      %v3100 = vshrl.u32 %v3099, 7
      %v3101 = vsub.s32 0, %v3100
      %v3102 = vrot.slane %v3097, %v3101
      %v3103 = vlaneseq
      %v3104 = vshrl.u32 %v3103, 7
      %v3105 = vsub.s32 1, %v3104
      %v3106 = vrot.slane %v3097, %v3105
      %v3109 = vmul.f32 %v3092, %v3102
      %v3110 = vmul.f32 %v3094, %v3106
      %v3111 = vadd.f32 %v2505, %v3109
      %v3112 = vadd.f32 %v2506, %v3110
      %s3113 = scalar_lea.vmem %s5, 12
      %v3114 = vld [vmem:[%s3113] sm:$0xf]
      %3115 = vrot.lane.b32.xlu0 %v1272, 1
      %v3116 = vpop.permute.xlu0 %3115
      %3117 = vrot.lane.b32.xlu0 %v1273, 1
      %v3118 = vpop.permute.xlu0 %3117
      %3119 = vrot.lane.b32.xlu0 %v1274, 1
      %v3120 = vpop.permute.xlu0 %3119
      %3121 = vrot.lane.b32.xlu0 %v1275, 1
      %v3122 = vpop.permute.xlu0 %3121
      %3123 = vrot.lane.b32.xlu0 %v1276, 1
      %v3124 = vpop.permute.xlu0 %3123
      %3125 = vrot.lane.b32.xlu0 %v1277, 1
      %v3126 = vpop.permute.xlu0 %3125
      %3127 = vrot.lane.b32.xlu0 %v1278, 1
      %v3128 = vpop.permute.xlu0 %3127
      %3129 = vrot.lane.b32.xlu0 %v1279, 1
      %v3130 = vpop.permute.xlu0 %3129
      %3131 = vrot.lane.b32.xlu0 %v1280, 1
      %v3132 = vpop.permute.xlu0 %3131
      %3133 = vrot.lane.b32.xlu0 %v1281, 1
      %v3134 = vpop.permute.xlu0 %3133
      %3135 = vrot.lane.b32.xlu0 %v1282, 1
      %v3136 = vpop.permute.xlu0 %3135
      %3137 = vrot.lane.b32.xlu0 %v1283, 1
      %v3138 = vpop.permute.xlu0 %3137
      %vm3139 = vcmask 7168
      %v3140 = vsel %vm3139, %v3116, %v3118
      %v3141 = vsel %vm3139, %v3118, %v3120
      %v3142 = vsel %vm3139, %v3122, %v3124
      %v3143 = vsel %vm3139, %v3124, %v3126
      %v3144 = vsel %vm3139, %v3128, %v3130
      %v3145 = vsel %vm3139, %v3130, %v3132
      %v3146 = vsel %vm3139, %v3134, %v3136
      %v3147 = vsel %vm3139, %v3136, %v3138
      %v3157 = vsel %vm1338, %v3114, 0
      %3159 = vmatprep.subr.mxu0 0.0
      %3160 = vmatpush1.msra.mxu0 0.0
      %3161 = vmatprep.subr.mxu0 0.0
      %3162 = vmatpush1.msra.mxu0 0.0
      %3163 = vmatprep.subr.mxu0 0.0
      %3164 = vmatpush1.msra.mxu0 0.0
      %3165 = vmatprep.subr.mxu0 0.0
      %3166 = vmatpush1.msra.mxu0 0.0
      %3167 = vmatprep.subr.mxu0 0.0
      %3168 = vmatpush1.msra.mxu0 0.0
      %3169 = vmatprep.subr.mxu0 0.0
      %3170 = vmatpush1.msra.mxu0 0.0
      %3171 = vmatprep.subr.mxu0 0.0
      %3172 = vmatpush1.msra.mxu0 0.0
      %3173 = vmatprep.subr.mxu0 0.0
      %3174 = vmatpush1.msra.mxu0 0.0
      %3175 = vmatprep.subr.mxu0 0.0
      %3176 = vmatpush1.msra.mxu0 0.0
      %3177 = vmatprep.subr.mxu0 0.0
      %3178 = vmatpush1.msra.mxu0 0.0
      %3179 = vmatprep.subr.mxu0 0.0
      %3180 = vmatpush1.msra.mxu0 0.0
      %3181 = vmatprep.subr.mxu0 0.0
      %3182 = vmatpush1.msra.mxu0 0.0
      %v3183 = vand.u32 %v3147, 4294901760
      %3184 = vmatprep.subr.mxu0 %v3183
      %v3185 = vand.u32 %v3146, 4294901760
      %3186 = vmatpush1.msra.mxu0 %v3185
      %v3187 = vand.u32 %v3145, 4294901760
      %3188 = vmatprep.subr.mxu0 %v3187
      %v3189 = vand.u32 %v3144, 4294901760
      %3190 = vmatpush1.msra.mxu0 %v3189
      %v3191 = vand.u32 %v3143, 4294901760
      %3192 = vmatprep.subr.mxu0 %v3191
      %v3193 = vand.u32 %v3142, 4294901760
      %3194 = vmatpush1.msra.mxu0 %v3193
      %v3195 = vand.u32 %v3141, 4294901760
      %3196 = vmatprep.subr.mxu0 %v3195
      %v3197 = vand.u32 %v3140, 4294901760
      %3198 = vmatpush1.msra.mxu0 %v3197
      %3199 = vmatprep.subr.mxu0 0.0
      %3200 = vmatpush2.msra.mxu0 0.0
      %3201 = vmatprep.subr.mxu0 0.0
      %3202 = vmatpush2.msra.mxu0 0.0
      %3203 = vmatprep.subr.mxu0 0.0
      %3204 = vmatpush2.msra.mxu0 0.0
      %3205 = vmatprep.subr.mxu0 0.0
      %3206 = vmatpush2.msra.mxu0 0.0
      %3207 = vmatprep.subr.mxu0 0.0
      %3208 = vmatpush2.msra.mxu0 0.0
      %3209 = vmatprep.subr.mxu0 0.0
      %3210 = vmatpush2.msra.mxu0 0.0
      %3211 = vmatprep.subr.mxu0 0.0
      %3212 = vmatpush2.msra.mxu0 0.0
      %3213 = vmatprep.subr.mxu0 0.0
      %3214 = vmatpush2.msra.mxu0 0.0
      %3215 = vmatprep.subr.mxu0 0.0
      %3216 = vmatpush2.msra.mxu0 0.0
      %3217 = vmatprep.subr.mxu0 0.0
      %3218 = vmatpush2.msra.mxu0 0.0
      %3219 = vmatprep.subr.mxu0 0.0
      %3220 = vmatpush2.msra.mxu0 0.0
      %3221 = vmatprep.subr.mxu0 0.0
      %3222 = vmatpush2.msra.mxu0 0.0
      %3223 = vmatprep.subr.mxu0 0.0
      %3224 = vmatpush2.msra.mxu0 0.0
      %3225 = vmatprep.subr.mxu0 0.0
      %3226 = vmatpush2.msra.mxu0 0.0
      %3227 = vmatprep.subr.mxu0 0.0
      %3228 = vmatpush2.msra.mxu0 0.0
      %3229 = vmatprep.subr.mxu0 0.0
      %3230 = vmatpush2.msra.mxu0 0.0
      %3231 = vmatprep.mubr.f32.mxu0 0.0
      %v3232 = vand.u32 %v3157, 4294901760
      %v3233 = vsub.f32 %v3157, %v3232
      %v3234 = vand.u32 %v3233, 4294901760
      %v3235 = vsub.f32 %v3233, %v3234
      %v3236 = vand.u32 %v3235, 4294901760
      %3237 = vmatmul.mubr.f32.gmra.mxu0 %v3236
      %v3238 = vpop.f32.mrf.mxu0
      %v3239 = vadd.f32 0.0, %v3238
      %v3240 = vpop.f32.mrf.mxu0
      %v3241 = vadd.f32 0.0, %v3240
      %3242 = vdwg.mxu0
      %3243 = vmatprep.subr.mxu0 0.0
      %3244 = vmatpush1.msra.mxu0 0.0
      %3245 = vmatprep.subr.mxu0 0.0
      %3246 = vmatpush1.msra.mxu0 0.0
      %3247 = vmatprep.subr.mxu0 0.0
      %3248 = vmatpush1.msra.mxu0 0.0
      %3249 = vmatprep.subr.mxu0 0.0
      %3250 = vmatpush1.msra.mxu0 0.0
      %3251 = vmatprep.subr.mxu0 0.0
      %3252 = vmatpush1.msra.mxu0 0.0
      %3253 = vmatprep.subr.mxu0 0.0
      %3254 = vmatpush1.msra.mxu0 0.0
      %3255 = vmatprep.subr.mxu0 0.0
      %3256 = vmatpush1.msra.mxu0 0.0
      %3257 = vmatprep.subr.mxu0 0.0
      %3258 = vmatpush1.msra.mxu0 0.0
      %3259 = vmatprep.subr.mxu0 0.0
      %3260 = vmatpush1.msra.mxu0 0.0
      %3261 = vmatprep.subr.mxu0 0.0
      %3262 = vmatpush1.msra.mxu0 0.0
      %3263 = vmatprep.subr.mxu0 0.0
      %3264 = vmatpush1.msra.mxu0 0.0
      %3265 = vmatprep.subr.mxu0 0.0
      %3266 = vmatpush1.msra.mxu0 0.0
      %v3267 = vand.u32 %v3147, 4294901760
      %v3268 = vsub.f32 %v3147, %v3267
      %v3269 = vand.u32 %v3268, 4294901760
      %v3270 = vsub.f32 %v3268, %v3269
      %v3271 = vand.u32 %v3270, 4294901760
      %3272 = vmatprep.subr.mxu0 %v3271
      %v3273 = vand.u32 %v3146, 4294901760
      %v3274 = vsub.f32 %v3146, %v3273
      %v3275 = vand.u32 %v3274, 4294901760
      %v3276 = vsub.f32 %v3274, %v3275
      %v3277 = vand.u32 %v3276, 4294901760
      %3278 = vmatpush1.msra.mxu0 %v3277
      %v3279 = vand.u32 %v3145, 4294901760
      %v3280 = vsub.f32 %v3145, %v3279
      %v3281 = vand.u32 %v3280, 4294901760
      %v3282 = vsub.f32 %v3280, %v3281
      %v3283 = vand.u32 %v3282, 4294901760
      %3284 = vmatprep.subr.mxu0 %v3283
      %v3285 = vand.u32 %v3144, 4294901760
      %v3286 = vsub.f32 %v3144, %v3285
      %v3287 = vand.u32 %v3286, 4294901760
      %v3288 = vsub.f32 %v3286, %v3287
      %v3289 = vand.u32 %v3288, 4294901760
      %3290 = vmatpush1.msra.mxu0 %v3289
      %v3291 = vand.u32 %v3143, 4294901760
      %v3292 = vsub.f32 %v3143, %v3291
      %v3293 = vand.u32 %v3292, 4294901760
      %v3294 = vsub.f32 %v3292, %v3293
      %v3295 = vand.u32 %v3294, 4294901760
      %3296 = vmatprep.subr.mxu0 %v3295
      %v3297 = vand.u32 %v3142, 4294901760
      %v3298 = vsub.f32 %v3142, %v3297
      %v3299 = vand.u32 %v3298, 4294901760
      %v3300 = vsub.f32 %v3298, %v3299
      %v3301 = vand.u32 %v3300, 4294901760
      %3302 = vmatpush1.msra.mxu0 %v3301
      %v3303 = vand.u32 %v3141, 4294901760
      %v3304 = vsub.f32 %v3141, %v3303
      %v3305 = vand.u32 %v3304, 4294901760
      %v3306 = vsub.f32 %v3304, %v3305
      %v3307 = vand.u32 %v3306, 4294901760
      %3308 = vmatprep.subr.mxu0 %v3307
      %v3309 = vand.u32 %v3140, 4294901760
      %v3310 = vsub.f32 %v3140, %v3309
      %v3311 = vand.u32 %v3310, 4294901760
      %v3312 = vsub.f32 %v3310, %v3311
      %v3313 = vand.u32 %v3312, 4294901760
      %3314 = vmatpush1.msra.mxu0 %v3313
      %3315 = vmatprep.subr.mxu0 0.0
      %3316 = vmatpush2.msra.mxu0 0.0
      %3317 = vmatprep.subr.mxu0 0.0
      %3318 = vmatpush2.msra.mxu0 0.0
      %3319 = vmatprep.subr.mxu0 0.0
      %3320 = vmatpush2.msra.mxu0 0.0
      %3321 = vmatprep.subr.mxu0 0.0
      %3322 = vmatpush2.msra.mxu0 0.0
      %3323 = vmatprep.subr.mxu0 0.0
      %3324 = vmatpush2.msra.mxu0 0.0
      %3325 = vmatprep.subr.mxu0 0.0
      %3326 = vmatpush2.msra.mxu0 0.0
      %3327 = vmatprep.subr.mxu0 0.0
      %3328 = vmatpush2.msra.mxu0 0.0
      %3329 = vmatprep.subr.mxu0 0.0
      %3330 = vmatpush2.msra.mxu0 0.0
      %3331 = vmatprep.subr.mxu0 0.0
      %3332 = vmatpush2.msra.mxu0 0.0
      %3333 = vmatprep.subr.mxu0 0.0
      %3334 = vmatpush2.msra.mxu0 0.0
      %3335 = vmatprep.subr.mxu0 0.0
      %3336 = vmatpush2.msra.mxu0 0.0
      %3337 = vmatprep.subr.mxu0 0.0
      %3338 = vmatpush2.msra.mxu0 0.0
      %3339 = vmatprep.subr.mxu0 0.0
      %3340 = vmatpush2.msra.mxu0 0.0
      %3341 = vmatprep.subr.mxu0 0.0
      %3342 = vmatpush2.msra.mxu0 0.0
      %3343 = vmatprep.subr.mxu0 0.0
      %3344 = vmatpush2.msra.mxu0 0.0
      %3345 = vmatprep.subr.mxu0 0.0
      %3346 = vmatpush2.msra.mxu0 0.0
      %3347 = vmatprep.mubr.f32.mxu0 0.0
      %v3348 = vand.u32 %v3157, 4294901760
      %3349 = vmatmul.mubr.f32.gmra.mxu0 %v3348
      %v3350 = vpop.f32.mrf.mxu0
      %v3351 = vadd.f32 %v3239, %v3350
      %v3352 = vpop.f32.mrf.mxu0
      %v3353 = vadd.f32 %v3241, %v3352
      %3354 = vdwg.mxu0
      %3355 = vmatprep.subr.mxu0 0.0
      %3356 = vmatpush1.msra.mxu0 0.0
      %3357 = vmatprep.subr.mxu0 0.0
      %3358 = vmatpush1.msra.mxu0 0.0
      %3359 = vmatprep.subr.mxu0 0.0
      %3360 = vmatpush1.msra.mxu0 0.0
      %3361 = vmatprep.subr.mxu0 0.0
      %3362 = vmatpush1.msra.mxu0 0.0
      %3363 = vmatprep.subr.mxu0 0.0
      %3364 = vmatpush1.msra.mxu0 0.0
      %3365 = vmatprep.subr.mxu0 0.0
      %3366 = vmatpush1.msra.mxu0 0.0
      %3367 = vmatprep.subr.mxu0 0.0
      %3368 = vmatpush1.msra.mxu0 0.0
      %3369 = vmatprep.subr.mxu0 0.0
      %3370 = vmatpush1.msra.mxu0 0.0
      %3371 = vmatprep.subr.mxu0 0.0
      %3372 = vmatpush1.msra.mxu0 0.0
      %3373 = vmatprep.subr.mxu0 0.0
      %3374 = vmatpush1.msra.mxu0 0.0
      %3375 = vmatprep.subr.mxu0 0.0
      %3376 = vmatpush1.msra.mxu0 0.0
      %3377 = vmatprep.subr.mxu0 0.0
      %3378 = vmatpush1.msra.mxu0 0.0
      %v3379 = vand.u32 %v3147, 4294901760
      %v3380 = vsub.f32 %v3147, %v3379
      %3381 = vmatprep.subr.mxu0 %v3380
      %v3382 = vand.u32 %v3146, 4294901760
      %v3383 = vsub.f32 %v3146, %v3382
      %3384 = vmatpush1.msra.mxu0 %v3383
      %v3385 = vand.u32 %v3145, 4294901760
      %v3386 = vsub.f32 %v3145, %v3385
      %3387 = vmatprep.subr.mxu0 %v3386
      %v3388 = vand.u32 %v3144, 4294901760
      %v3389 = vsub.f32 %v3144, %v3388
      %3390 = vmatpush1.msra.mxu0 %v3389
      %v3391 = vand.u32 %v3143, 4294901760
      %v3392 = vsub.f32 %v3143, %v3391
      %3393 = vmatprep.subr.mxu0 %v3392
      %v3394 = vand.u32 %v3142, 4294901760
      %v3395 = vsub.f32 %v3142, %v3394
      %3396 = vmatpush1.msra.mxu0 %v3395
      %v3397 = vand.u32 %v3141, 4294901760
      %v3398 = vsub.f32 %v3141, %v3397
      %3399 = vmatprep.subr.mxu0 %v3398
      %v3400 = vand.u32 %v3140, 4294901760
      %v3401 = vsub.f32 %v3140, %v3400
      %3402 = vmatpush1.msra.mxu0 %v3401
      %3403 = vmatprep.subr.mxu0 0.0
      %3404 = vmatpush2.msra.mxu0 0.0
      %3405 = vmatprep.subr.mxu0 0.0
      %3406 = vmatpush2.msra.mxu0 0.0
      %3407 = vmatprep.subr.mxu0 0.0
      %3408 = vmatpush2.msra.mxu0 0.0
      %3409 = vmatprep.subr.mxu0 0.0
      %3410 = vmatpush2.msra.mxu0 0.0
      %3411 = vmatprep.subr.mxu0 0.0
      %3412 = vmatpush2.msra.mxu0 0.0
      %3413 = vmatprep.subr.mxu0 0.0
      %3414 = vmatpush2.msra.mxu0 0.0
      %3415 = vmatprep.subr.mxu0 0.0
      %3416 = vmatpush2.msra.mxu0 0.0
      %3417 = vmatprep.subr.mxu0 0.0
      %3418 = vmatpush2.msra.mxu0 0.0
      %3419 = vmatprep.subr.mxu0 0.0
      %3420 = vmatpush2.msra.mxu0 0.0
      %3421 = vmatprep.subr.mxu0 0.0
      %3422 = vmatpush2.msra.mxu0 0.0
      %3423 = vmatprep.subr.mxu0 0.0
      %3424 = vmatpush2.msra.mxu0 0.0
      %3425 = vmatprep.subr.mxu0 0.0
      %3426 = vmatpush2.msra.mxu0 0.0
      %3427 = vmatprep.subr.mxu0 0.0
      %3428 = vmatpush2.msra.mxu0 0.0
      %3429 = vmatprep.subr.mxu0 0.0
      %3430 = vmatpush2.msra.mxu0 0.0
      %3431 = vmatprep.subr.mxu0 0.0
      %3432 = vmatpush2.msra.mxu0 0.0
      %3433 = vmatprep.subr.mxu0 0.0
      %3434 = vmatpush2.msra.mxu0 0.0
      %3435 = vmatprep.mubr.f32.mxu0 0.0
      %v3436 = vand.u32 %v3157, 4294901760
      %v3437 = vsub.f32 %v3157, %v3436
      %3438 = vmatmul.mubr.f32.gmra.mxu0 %v3437
      %v3439 = vpop.f32.mrf.mxu0
      %v3440 = vadd.f32 %v3351, %v3439
      %v3441 = vpop.f32.mrf.mxu0
      %v3442 = vadd.f32 %v3353, %v3441
      %3443 = vdwg.mxu0
      %3444 = vmatprep.subr.mxu0 0.0
      %3445 = vmatpush1.msra.mxu0 0.0
      %3446 = vmatprep.subr.mxu0 0.0
      %3447 = vmatpush1.msra.mxu0 0.0
      %3448 = vmatprep.subr.mxu0 0.0
      %3449 = vmatpush1.msra.mxu0 0.0
      %3450 = vmatprep.subr.mxu0 0.0
      %3451 = vmatpush1.msra.mxu0 0.0
      %3452 = vmatprep.subr.mxu0 0.0
      %3453 = vmatpush1.msra.mxu0 0.0
      %3454 = vmatprep.subr.mxu0 0.0
      %3455 = vmatpush1.msra.mxu0 0.0
      %3456 = vmatprep.subr.mxu0 0.0
      %3457 = vmatpush1.msra.mxu0 0.0
      %3458 = vmatprep.subr.mxu0 0.0
      %3459 = vmatpush1.msra.mxu0 0.0
      %3460 = vmatprep.subr.mxu0 0.0
      %3461 = vmatpush1.msra.mxu0 0.0
      %3462 = vmatprep.subr.mxu0 0.0
      %3463 = vmatpush1.msra.mxu0 0.0
      %3464 = vmatprep.subr.mxu0 0.0
      %3465 = vmatpush1.msra.mxu0 0.0
      %3466 = vmatprep.subr.mxu0 0.0
      %3467 = vmatpush1.msra.mxu0 0.0
      %v3468 = vand.u32 %v3147, 4294901760
      %3469 = vmatprep.subr.mxu0 %v3468
      %v3470 = vand.u32 %v3146, 4294901760
      %3471 = vmatpush1.msra.mxu0 %v3470
      %v3472 = vand.u32 %v3145, 4294901760
      %3473 = vmatprep.subr.mxu0 %v3472
      %v3474 = vand.u32 %v3144, 4294901760
      %3475 = vmatpush1.msra.mxu0 %v3474
      %v3476 = vand.u32 %v3143, 4294901760
      %3477 = vmatprep.subr.mxu0 %v3476
      %v3478 = vand.u32 %v3142, 4294901760
      %3479 = vmatpush1.msra.mxu0 %v3478
      %v3480 = vand.u32 %v3141, 4294901760
      %3481 = vmatprep.subr.mxu0 %v3480
      %v3482 = vand.u32 %v3140, 4294901760
      %3483 = vmatpush1.msra.mxu0 %v3482
      %3484 = vmatprep.subr.mxu0 0.0
      %3485 = vmatpush2.msra.mxu0 0.0
      %3486 = vmatprep.subr.mxu0 0.0
      %3487 = vmatpush2.msra.mxu0 0.0
      %3488 = vmatprep.subr.mxu0 0.0
      %3489 = vmatpush2.msra.mxu0 0.0
      %3490 = vmatprep.subr.mxu0 0.0
      %3491 = vmatpush2.msra.mxu0 0.0
      %3492 = vmatprep.subr.mxu0 0.0
      %3493 = vmatpush2.msra.mxu0 0.0
      %3494 = vmatprep.subr.mxu0 0.0
      %3495 = vmatpush2.msra.mxu0 0.0
      %3496 = vmatprep.subr.mxu0 0.0
      %3497 = vmatpush2.msra.mxu0 0.0
      %3498 = vmatprep.subr.mxu0 0.0
      %3499 = vmatpush2.msra.mxu0 0.0
      %3500 = vmatprep.subr.mxu0 0.0
      %3501 = vmatpush2.msra.mxu0 0.0
      %3502 = vmatprep.subr.mxu0 0.0
      %3503 = vmatpush2.msra.mxu0 0.0
      %3504 = vmatprep.subr.mxu0 0.0
      %3505 = vmatpush2.msra.mxu0 0.0
      %3506 = vmatprep.subr.mxu0 0.0
      %3507 = vmatpush2.msra.mxu0 0.0
      %3508 = vmatprep.subr.mxu0 0.0
      %3509 = vmatpush2.msra.mxu0 0.0
      %3510 = vmatprep.subr.mxu0 0.0
      %3511 = vmatpush2.msra.mxu0 0.0
      %3512 = vmatprep.subr.mxu0 0.0
      %3513 = vmatpush2.msra.mxu0 0.0
      %3514 = vmatprep.subr.mxu0 0.0
      %3515 = vmatpush2.msra.mxu0 0.0
      %3516 = vmatprep.mubr.f32.mxu0 0.0
      %v3517 = vand.u32 %v3157, 4294901760
      %v3518 = vsub.f32 %v3157, %v3517
      %v3519 = vand.u32 %v3518, 4294901760
      %3520 = vmatmul.mubr.f32.gmra.mxu0 %v3519
      %v3521 = vpop.f32.mrf.mxu0
      %v3522 = vadd.f32 %v3440, %v3521
      %v3523 = vpop.f32.mrf.mxu0
      %v3524 = vadd.f32 %v3442, %v3523
      %3525 = vdwg.mxu0
      %3526 = vmatprep.subr.mxu0 0.0
      %3527 = vmatpush1.msra.mxu0 0.0
      %3528 = vmatprep.subr.mxu0 0.0
      %3529 = vmatpush1.msra.mxu0 0.0
      %3530 = vmatprep.subr.mxu0 0.0
      %3531 = vmatpush1.msra.mxu0 0.0
      %3532 = vmatprep.subr.mxu0 0.0
      %3533 = vmatpush1.msra.mxu0 0.0
      %3534 = vmatprep.subr.mxu0 0.0
      %3535 = vmatpush1.msra.mxu0 0.0
      %3536 = vmatprep.subr.mxu0 0.0
      %3537 = vmatpush1.msra.mxu0 0.0
      %3538 = vmatprep.subr.mxu0 0.0
      %3539 = vmatpush1.msra.mxu0 0.0
      %3540 = vmatprep.subr.mxu0 0.0
      %3541 = vmatpush1.msra.mxu0 0.0
      %3542 = vmatprep.subr.mxu0 0.0
      %3543 = vmatpush1.msra.mxu0 0.0
      %3544 = vmatprep.subr.mxu0 0.0
      %3545 = vmatpush1.msra.mxu0 0.0
      %3546 = vmatprep.subr.mxu0 0.0
      %3547 = vmatpush1.msra.mxu0 0.0
      %3548 = vmatprep.subr.mxu0 0.0
      %3549 = vmatpush1.msra.mxu0 0.0
      %v3550 = vand.u32 %v3147, 4294901760
      %v3551 = vsub.f32 %v3147, %v3550
      %v3552 = vand.u32 %v3551, 4294901760
      %3553 = vmatprep.subr.mxu0 %v3552
      %v3554 = vand.u32 %v3146, 4294901760
      %v3555 = vsub.f32 %v3146, %v3554
      %v3556 = vand.u32 %v3555, 4294901760
      %3557 = vmatpush1.msra.mxu0 %v3556
      %v3558 = vand.u32 %v3145, 4294901760
      %v3559 = vsub.f32 %v3145, %v3558
      %v3560 = vand.u32 %v3559, 4294901760
      %3561 = vmatprep.subr.mxu0 %v3560
      %v3562 = vand.u32 %v3144, 4294901760
      %v3563 = vsub.f32 %v3144, %v3562
      %v3564 = vand.u32 %v3563, 4294901760
      %3565 = vmatpush1.msra.mxu0 %v3564
      %v3566 = vand.u32 %v3143, 4294901760
      %v3567 = vsub.f32 %v3143, %v3566
      %v3568 = vand.u32 %v3567, 4294901760
      %3569 = vmatprep.subr.mxu0 %v3568
      %v3570 = vand.u32 %v3142, 4294901760
      %v3571 = vsub.f32 %v3142, %v3570
      %v3572 = vand.u32 %v3571, 4294901760
      %3573 = vmatpush1.msra.mxu0 %v3572
      %v3574 = vand.u32 %v3141, 4294901760
      %v3575 = vsub.f32 %v3141, %v3574
      %v3576 = vand.u32 %v3575, 4294901760
      %3577 = vmatprep.subr.mxu0 %v3576
      %v3578 = vand.u32 %v3140, 4294901760
      %v3579 = vsub.f32 %v3140, %v3578
      %v3580 = vand.u32 %v3579, 4294901760
      %3581 = vmatpush1.msra.mxu0 %v3580
      %3582 = vmatprep.subr.mxu0 0.0
      %3583 = vmatpush2.msra.mxu0 0.0
      %3584 = vmatprep.subr.mxu0 0.0
      %3585 = vmatpush2.msra.mxu0 0.0
      %3586 = vmatprep.subr.mxu0 0.0
      %3587 = vmatpush2.msra.mxu0 0.0
      %3588 = vmatprep.subr.mxu0 0.0
      %3589 = vmatpush2.msra.mxu0 0.0
      %3590 = vmatprep.subr.mxu0 0.0
      %3591 = vmatpush2.msra.mxu0 0.0
      %3592 = vmatprep.subr.mxu0 0.0
      %3593 = vmatpush2.msra.mxu0 0.0
      %3594 = vmatprep.subr.mxu0 0.0
      %3595 = vmatpush2.msra.mxu0 0.0
      %3596 = vmatprep.subr.mxu0 0.0
      %3597 = vmatpush2.msra.mxu0 0.0
      %3598 = vmatprep.subr.mxu0 0.0
      %3599 = vmatpush2.msra.mxu0 0.0
      %3600 = vmatprep.subr.mxu0 0.0
      %3601 = vmatpush2.msra.mxu0 0.0
      %3602 = vmatprep.subr.mxu0 0.0
      %3603 = vmatpush2.msra.mxu0 0.0
      %3604 = vmatprep.subr.mxu0 0.0
      %3605 = vmatpush2.msra.mxu0 0.0
      %3606 = vmatprep.subr.mxu0 0.0
      %3607 = vmatpush2.msra.mxu0 0.0
      %3608 = vmatprep.subr.mxu0 0.0
      %3609 = vmatpush2.msra.mxu0 0.0
      %3610 = vmatprep.subr.mxu0 0.0
      %3611 = vmatpush2.msra.mxu0 0.0
      %3612 = vmatprep.subr.mxu0 0.0
      %3613 = vmatpush2.msra.mxu0 0.0
      %3614 = vmatprep.mubr.f32.mxu0 0.0
      %v3615 = vand.u32 %v3157, 4294901760
      %3616 = vmatmul.mubr.f32.gmra.mxu0 %v3615
      %v3617 = vpop.f32.mrf.mxu0
      %v3618 = vadd.f32 %v3522, %v3617
      %v3619 = vpop.f32.mrf.mxu0
      %v3620 = vadd.f32 %v3524, %v3619
      %3621 = vdwg.mxu0
      %3622 = vmatprep.subr.mxu0 0.0
      %3623 = vmatpush1.msra.mxu0 0.0
      %3624 = vmatprep.subr.mxu0 0.0
      %3625 = vmatpush1.msra.mxu0 0.0
      %3626 = vmatprep.subr.mxu0 0.0
      %3627 = vmatpush1.msra.mxu0 0.0
      %3628 = vmatprep.subr.mxu0 0.0
      %3629 = vmatpush1.msra.mxu0 0.0
      %3630 = vmatprep.subr.mxu0 0.0
      %3631 = vmatpush1.msra.mxu0 0.0
      %3632 = vmatprep.subr.mxu0 0.0
      %3633 = vmatpush1.msra.mxu0 0.0
      %3634 = vmatprep.subr.mxu0 0.0
      %3635 = vmatpush1.msra.mxu0 0.0
      %3636 = vmatprep.subr.mxu0 0.0
      %3637 = vmatpush1.msra.mxu0 0.0
      %3638 = vmatprep.subr.mxu0 0.0
      %3639 = vmatpush1.msra.mxu0 0.0
      %3640 = vmatprep.subr.mxu0 0.0
      %3641 = vmatpush1.msra.mxu0 0.0
      %3642 = vmatprep.subr.mxu0 0.0
      %3643 = vmatpush1.msra.mxu0 0.0
      %3644 = vmatprep.subr.mxu0 0.0
      %3645 = vmatpush1.msra.mxu0 0.0
      %v3646 = vand.u32 %v3147, 4294901760
      %3647 = vmatprep.subr.mxu0 %v3646
      %v3648 = vand.u32 %v3146, 4294901760
      %3649 = vmatpush1.msra.mxu0 %v3648
      %v3650 = vand.u32 %v3145, 4294901760
      %3651 = vmatprep.subr.mxu0 %v3650
      %v3652 = vand.u32 %v3144, 4294901760
      %3653 = vmatpush1.msra.mxu0 %v3652
      %v3654 = vand.u32 %v3143, 4294901760
      %3655 = vmatprep.subr.mxu0 %v3654
      %v3656 = vand.u32 %v3142, 4294901760
      %3657 = vmatpush1.msra.mxu0 %v3656
      %v3658 = vand.u32 %v3141, 4294901760
      %3659 = vmatprep.subr.mxu0 %v3658
      %v3660 = vand.u32 %v3140, 4294901760
      %3661 = vmatpush1.msra.mxu0 %v3660
      %3662 = vmatprep.subr.mxu0 0.0
      %3663 = vmatpush2.msra.mxu0 0.0
      %3664 = vmatprep.subr.mxu0 0.0
      %3665 = vmatpush2.msra.mxu0 0.0
      %3666 = vmatprep.subr.mxu0 0.0
      %3667 = vmatpush2.msra.mxu0 0.0
      %3668 = vmatprep.subr.mxu0 0.0
      %3669 = vmatpush2.msra.mxu0 0.0
      %3670 = vmatprep.subr.mxu0 0.0
      %3671 = vmatpush2.msra.mxu0 0.0
      %3672 = vmatprep.subr.mxu0 0.0
      %3673 = vmatpush2.msra.mxu0 0.0
      %3674 = vmatprep.subr.mxu0 0.0
      %3675 = vmatpush2.msra.mxu0 0.0
      %3676 = vmatprep.subr.mxu0 0.0
      %3677 = vmatpush2.msra.mxu0 0.0
      %3678 = vmatprep.subr.mxu0 0.0
      %3679 = vmatpush2.msra.mxu0 0.0
      %3680 = vmatprep.subr.mxu0 0.0
      %3681 = vmatpush2.msra.mxu0 0.0
      %3682 = vmatprep.subr.mxu0 0.0
      %3683 = vmatpush2.msra.mxu0 0.0
      %3684 = vmatprep.subr.mxu0 0.0
      %3685 = vmatpush2.msra.mxu0 0.0
      %3686 = vmatprep.subr.mxu0 0.0
      %3687 = vmatpush2.msra.mxu0 0.0
      %3688 = vmatprep.subr.mxu0 0.0
      %3689 = vmatpush2.msra.mxu0 0.0
      %3690 = vmatprep.subr.mxu0 0.0
      %3691 = vmatpush2.msra.mxu0 0.0
      %3692 = vmatprep.subr.mxu0 0.0
      %3693 = vmatpush2.msra.mxu0 0.0
      %3694 = vmatprep.mubr.f32.mxu0 0.0
      %v3695 = vand.u32 %v3157, 4294901760
      %3696 = vmatmul.mubr.f32.gmra.mxu0 %v3695
      %v3697 = vpop.f32.mrf.mxu0
      %v3698 = vadd.f32 %v3618, %v3697
      %v3699 = vpop.f32.mrf.mxu0
      %v3700 = vadd.f32 %v3620, %v3699
      %3701 = vdwg.mxu0
      %s3702 = scalar_lea.vmem %s2, 3
      %v3703 = vld [vmem:[%s3702] ss:$8 sm:$0x3]
      %v3705 = vlaneseq
      %v3706 = vshrl.u32 %v3705, 7
      %v3707 = vsub.s32 0, %v3706
      %v3708 = vrot.slane %v3703, %v3707
      %v3709 = vlaneseq
      %v3710 = vshrl.u32 %v3709, 7
      %v3711 = vsub.s32 1, %v3710
      %v3712 = vrot.slane %v3703, %v3711
      %v3715 = vmul.f32 %v3698, %v3708
      %v3716 = vmul.f32 %v3700, %v3712
      %v3717 = vadd.f32 %v3111, %v3715
      %v3718 = vadd.f32 %v3112, %v3716
      %s3719 = scalar_lea.vmem %s5, 16
      %v3720 = vld [vmem:[%s3719] sm:$0xf]
      %v3722 = vsel %vm1338, %v3720, 0
      %3724 = vmatprep.subr.mxu0 0.0
      %3725 = vmatpush1.msra.mxu0 0.0
      %3726 = vmatprep.subr.mxu0 0.0
      %3727 = vmatpush1.msra.mxu0 0.0
      %3728 = vmatprep.subr.mxu0 0.0
      %3729 = vmatpush1.msra.mxu0 0.0
      %3730 = vmatprep.subr.mxu0 0.0
      %3731 = vmatpush1.msra.mxu0 0.0
      %3732 = vmatprep.subr.mxu0 0.0
      %3733 = vmatpush1.msra.mxu0 0.0
      %3734 = vmatprep.subr.mxu0 0.0
      %3735 = vmatpush1.msra.mxu0 0.0
      %3736 = vmatprep.subr.mxu0 0.0
      %3737 = vmatpush1.msra.mxu0 0.0
      %3738 = vmatprep.subr.mxu0 0.0
      %3739 = vmatpush1.msra.mxu0 0.0
      %3740 = vmatprep.subr.mxu0 0.0
      %3741 = vmatpush1.msra.mxu0 0.0
      %3742 = vmatprep.subr.mxu0 0.0
      %3743 = vmatpush1.msra.mxu0 0.0
      %3744 = vmatprep.subr.mxu0 0.0
      %3745 = vmatpush1.msra.mxu0 0.0
      %3746 = vmatprep.subr.mxu0 0.0
      %3747 = vmatpush1.msra.mxu0 0.0
      %v3748 = vand.u32 %v1283, 4294901760
      %3749 = vmatprep.subr.mxu0 %v3748
      %v3750 = vand.u32 %v1282, 4294901760
      %3751 = vmatpush1.msra.mxu0 %v3750
      %v3752 = vand.u32 %v1280, 4294901760
      %3753 = vmatprep.subr.mxu0 %v3752
      %v3754 = vand.u32 %v1279, 4294901760
      %3755 = vmatpush1.msra.mxu0 %v3754
      %v3756 = vand.u32 %v1277, 4294901760
      %3757 = vmatprep.subr.mxu0 %v3756
      %v3758 = vand.u32 %v1276, 4294901760
      %3759 = vmatpush1.msra.mxu0 %v3758
      %v3760 = vand.u32 %v1274, 4294901760
      %3761 = vmatprep.subr.mxu0 %v3760
      %v3762 = vand.u32 %v1273, 4294901760
      %3763 = vmatpush1.msra.mxu0 %v3762
      %3764 = vmatprep.subr.mxu0 0.0
      %3765 = vmatpush2.msra.mxu0 0.0
      %3766 = vmatprep.subr.mxu0 0.0
      %3767 = vmatpush2.msra.mxu0 0.0
      %3768 = vmatprep.subr.mxu0 0.0
      %3769 = vmatpush2.msra.mxu0 0.0
      %3770 = vmatprep.subr.mxu0 0.0
      %3771 = vmatpush2.msra.mxu0 0.0
      %3772 = vmatprep.subr.mxu0 0.0
      %3773 = vmatpush2.msra.mxu0 0.0
      %3774 = vmatprep.subr.mxu0 0.0
      %3775 = vmatpush2.msra.mxu0 0.0
      %3776 = vmatprep.subr.mxu0 0.0
      %3777 = vmatpush2.msra.mxu0 0.0
      %3778 = vmatprep.subr.mxu0 0.0
      %3779 = vmatpush2.msra.mxu0 0.0
      %3780 = vmatprep.subr.mxu0 0.0
      %3781 = vmatpush2.msra.mxu0 0.0
      %3782 = vmatprep.subr.mxu0 0.0
      %3783 = vmatpush2.msra.mxu0 0.0
      %3784 = vmatprep.subr.mxu0 0.0
      %3785 = vmatpush2.msra.mxu0 0.0
      %3786 = vmatprep.subr.mxu0 0.0
      %3787 = vmatpush2.msra.mxu0 0.0
      %3788 = vmatprep.subr.mxu0 0.0
      %3789 = vmatpush2.msra.mxu0 0.0
      %3790 = vmatprep.subr.mxu0 0.0
      %3791 = vmatpush2.msra.mxu0 0.0
      %3792 = vmatprep.subr.mxu0 0.0
      %3793 = vmatpush2.msra.mxu0 0.0
      %3794 = vmatprep.subr.mxu0 0.0
      %3795 = vmatpush2.msra.mxu0 0.0
      %3796 = vmatprep.mubr.f32.mxu0 0.0
      %v3797 = vand.u32 %v3722, 4294901760
      %v3798 = vsub.f32 %v3722, %v3797
      %v3799 = vand.u32 %v3798, 4294901760
      %v3800 = vsub.f32 %v3798, %v3799
      %v3801 = vand.u32 %v3800, 4294901760
      %3802 = vmatmul.mubr.f32.gmra.mxu0 %v3801
      %v3803 = vpop.f32.mrf.mxu0
      %v3804 = vadd.f32 0.0, %v3803
      %v3805 = vpop.f32.mrf.mxu0
      %v3806 = vadd.f32 0.0, %v3805
      %3807 = vdwg.mxu0
      %3808 = vmatprep.subr.mxu0 0.0
      %3809 = vmatpush1.msra.mxu0 0.0
      %3810 = vmatprep.subr.mxu0 0.0
      %3811 = vmatpush1.msra.mxu0 0.0
      %3812 = vmatprep.subr.mxu0 0.0
      %3813 = vmatpush1.msra.mxu0 0.0
      %3814 = vmatprep.subr.mxu0 0.0
      %3815 = vmatpush1.msra.mxu0 0.0
      %3816 = vmatprep.subr.mxu0 0.0
      %3817 = vmatpush1.msra.mxu0 0.0
      %3818 = vmatprep.subr.mxu0 0.0
      %3819 = vmatpush1.msra.mxu0 0.0
      %3820 = vmatprep.subr.mxu0 0.0
      %3821 = vmatpush1.msra.mxu0 0.0
      %3822 = vmatprep.subr.mxu0 0.0
      %3823 = vmatpush1.msra.mxu0 0.0
      %3824 = vmatprep.subr.mxu0 0.0
      %3825 = vmatpush1.msra.mxu0 0.0
      %3826 = vmatprep.subr.mxu0 0.0
      %3827 = vmatpush1.msra.mxu0 0.0
      %3828 = vmatprep.subr.mxu0 0.0
      %3829 = vmatpush1.msra.mxu0 0.0
      %3830 = vmatprep.subr.mxu0 0.0
      %3831 = vmatpush1.msra.mxu0 0.0
      %v3832 = vand.u32 %v1283, 4294901760
      %v3833 = vsub.f32 %v1283, %v3832
      %v3834 = vand.u32 %v3833, 4294901760
      %v3835 = vsub.f32 %v3833, %v3834
      %v3836 = vand.u32 %v3835, 4294901760
      %3837 = vmatprep.subr.mxu0 %v3836
      %v3838 = vand.u32 %v1282, 4294901760
      %v3839 = vsub.f32 %v1282, %v3838
      %v3840 = vand.u32 %v3839, 4294901760
      %v3841 = vsub.f32 %v3839, %v3840
      %v3842 = vand.u32 %v3841, 4294901760
      %3843 = vmatpush1.msra.mxu0 %v3842
      %v3844 = vand.u32 %v1280, 4294901760
      %v3845 = vsub.f32 %v1280, %v3844
      %v3846 = vand.u32 %v3845, 4294901760
      %v3847 = vsub.f32 %v3845, %v3846
      %v3848 = vand.u32 %v3847, 4294901760
      %3849 = vmatprep.subr.mxu0 %v3848
      %v3850 = vand.u32 %v1279, 4294901760
      %v3851 = vsub.f32 %v1279, %v3850
      %v3852 = vand.u32 %v3851, 4294901760
      %v3853 = vsub.f32 %v3851, %v3852
      %v3854 = vand.u32 %v3853, 4294901760
      %3855 = vmatpush1.msra.mxu0 %v3854
      %v3856 = vand.u32 %v1277, 4294901760
      %v3857 = vsub.f32 %v1277, %v3856
      %v3858 = vand.u32 %v3857, 4294901760
      %v3859 = vsub.f32 %v3857, %v3858
      %v3860 = vand.u32 %v3859, 4294901760
      %3861 = vmatprep.subr.mxu0 %v3860
      %v3862 = vand.u32 %v1276, 4294901760
      %v3863 = vsub.f32 %v1276, %v3862
      %v3864 = vand.u32 %v3863, 4294901760
      %v3865 = vsub.f32 %v3863, %v3864
      %v3866 = vand.u32 %v3865, 4294901760
      %3867 = vmatpush1.msra.mxu0 %v3866
      %v3868 = vand.u32 %v1274, 4294901760
      %v3869 = vsub.f32 %v1274, %v3868
      %v3870 = vand.u32 %v3869, 4294901760
      %v3871 = vsub.f32 %v3869, %v3870
      %v3872 = vand.u32 %v3871, 4294901760
      %3873 = vmatprep.subr.mxu0 %v3872
      %v3874 = vand.u32 %v1273, 4294901760
      %v3875 = vsub.f32 %v1273, %v3874
      %v3876 = vand.u32 %v3875, 4294901760
      %v3877 = vsub.f32 %v3875, %v3876
      %v3878 = vand.u32 %v3877, 4294901760
      %3879 = vmatpush1.msra.mxu0 %v3878
      %3880 = vmatprep.subr.mxu0 0.0
      %3881 = vmatpush2.msra.mxu0 0.0
      %3882 = vmatprep.subr.mxu0 0.0
      %3883 = vmatpush2.msra.mxu0 0.0
      %3884 = vmatprep.subr.mxu0 0.0
      %3885 = vmatpush2.msra.mxu0 0.0
      %3886 = vmatprep.subr.mxu0 0.0
      %3887 = vmatpush2.msra.mxu0 0.0
      %3888 = vmatprep.subr.mxu0 0.0
      %3889 = vmatpush2.msra.mxu0 0.0
      %3890 = vmatprep.subr.mxu0 0.0
      %3891 = vmatpush2.msra.mxu0 0.0
      %3892 = vmatprep.subr.mxu0 0.0
      %3893 = vmatpush2.msra.mxu0 0.0
      %3894 = vmatprep.subr.mxu0 0.0
      %3895 = vmatpush2.msra.mxu0 0.0
      %3896 = vmatprep.subr.mxu0 0.0
      %3897 = vmatpush2.msra.mxu0 0.0
      %3898 = vmatprep.subr.mxu0 0.0
      %3899 = vmatpush2.msra.mxu0 0.0
      %3900 = vmatprep.subr.mxu0 0.0
      %3901 = vmatpush2.msra.mxu0 0.0
      %3902 = vmatprep.subr.mxu0 0.0
      %3903 = vmatpush2.msra.mxu0 0.0
      %3904 = vmatprep.subr.mxu0 0.0
      %3905 = vmatpush2.msra.mxu0 0.0
      %3906 = vmatprep.subr.mxu0 0.0
      %3907 = vmatpush2.msra.mxu0 0.0
      %3908 = vmatprep.subr.mxu0 0.0
      %3909 = vmatpush2.msra.mxu0 0.0
      %3910 = vmatprep.subr.mxu0 0.0
      %3911 = vmatpush2.msra.mxu0 0.0
      %3912 = vmatprep.mubr.f32.mxu0 0.0
      %v3913 = vand.u32 %v3722, 4294901760
      %3914 = vmatmul.mubr.f32.gmra.mxu0 %v3913
      %v3915 = vpop.f32.mrf.mxu0
      %v3916 = vadd.f32 %v3804, %v3915
      %v3917 = vpop.f32.mrf.mxu0
      %v3918 = vadd.f32 %v3806, %v3917
      %3919 = vdwg.mxu0
      %3920 = vmatprep.subr.mxu0 0.0
      %3921 = vmatpush1.msra.mxu0 0.0
      %3922 = vmatprep.subr.mxu0 0.0
      %3923 = vmatpush1.msra.mxu0 0.0
      %3924 = vmatprep.subr.mxu0 0.0
      %3925 = vmatpush1.msra.mxu0 0.0
      %3926 = vmatprep.subr.mxu0 0.0
      %3927 = vmatpush1.msra.mxu0 0.0
      %3928 = vmatprep.subr.mxu0 0.0
      %3929 = vmatpush1.msra.mxu0 0.0
      %3930 = vmatprep.subr.mxu0 0.0
      %3931 = vmatpush1.msra.mxu0 0.0
      %3932 = vmatprep.subr.mxu0 0.0
      %3933 = vmatpush1.msra.mxu0 0.0
      %3934 = vmatprep.subr.mxu0 0.0
      %3935 = vmatpush1.msra.mxu0 0.0
      %3936 = vmatprep.subr.mxu0 0.0
      %3937 = vmatpush1.msra.mxu0 0.0
      %3938 = vmatprep.subr.mxu0 0.0
      %3939 = vmatpush1.msra.mxu0 0.0
      %3940 = vmatprep.subr.mxu0 0.0
      %3941 = vmatpush1.msra.mxu0 0.0
      %3942 = vmatprep.subr.mxu0 0.0
      %3943 = vmatpush1.msra.mxu0 0.0
      %v3944 = vand.u32 %v1283, 4294901760
      %v3945 = vsub.f32 %v1283, %v3944
      %3946 = vmatprep.subr.mxu0 %v3945
      %v3947 = vand.u32 %v1282, 4294901760
      %v3948 = vsub.f32 %v1282, %v3947
      %3949 = vmatpush1.msra.mxu0 %v3948
      %v3950 = vand.u32 %v1280, 4294901760
      %v3951 = vsub.f32 %v1280, %v3950
      %3952 = vmatprep.subr.mxu0 %v3951
      %v3953 = vand.u32 %v1279, 4294901760
      %v3954 = vsub.f32 %v1279, %v3953
      %3955 = vmatpush1.msra.mxu0 %v3954
      %v3956 = vand.u32 %v1277, 4294901760
      %v3957 = vsub.f32 %v1277, %v3956
      %3958 = vmatprep.subr.mxu0 %v3957
      %v3959 = vand.u32 %v1276, 4294901760
      %v3960 = vsub.f32 %v1276, %v3959
      %3961 = vmatpush1.msra.mxu0 %v3960
      %v3962 = vand.u32 %v1274, 4294901760
      %v3963 = vsub.f32 %v1274, %v3962
      %3964 = vmatprep.subr.mxu0 %v3963
      %v3965 = vand.u32 %v1273, 4294901760
      %v3966 = vsub.f32 %v1273, %v3965
      %3967 = vmatpush1.msra.mxu0 %v3966
      %3968 = vmatprep.subr.mxu0 0.0
      %3969 = vmatpush2.msra.mxu0 0.0
      %3970 = vmatprep.subr.mxu0 0.0
      %3971 = vmatpush2.msra.mxu0 0.0
      %3972 = vmatprep.subr.mxu0 0.0
      %3973 = vmatpush2.msra.mxu0 0.0
      %3974 = vmatprep.subr.mxu0 0.0
      %3975 = vmatpush2.msra.mxu0 0.0
      %3976 = vmatprep.subr.mxu0 0.0
      %3977 = vmatpush2.msra.mxu0 0.0
      %3978 = vmatprep.subr.mxu0 0.0
      %3979 = vmatpush2.msra.mxu0 0.0
      %3980 = vmatprep.subr.mxu0 0.0
      %3981 = vmatpush2.msra.mxu0 0.0
      %3982 = vmatprep.subr.mxu0 0.0
      %3983 = vmatpush2.msra.mxu0 0.0
      %3984 = vmatprep.subr.mxu0 0.0
      %3985 = vmatpush2.msra.mxu0 0.0
      %3986 = vmatprep.subr.mxu0 0.0
      %3987 = vmatpush2.msra.mxu0 0.0
      %3988 = vmatprep.subr.mxu0 0.0
      %3989 = vmatpush2.msra.mxu0 0.0
      %3990 = vmatprep.subr.mxu0 0.0
      %3991 = vmatpush2.msra.mxu0 0.0
      %3992 = vmatprep.subr.mxu0 0.0
      %3993 = vmatpush2.msra.mxu0 0.0
      %3994 = vmatprep.subr.mxu0 0.0
      %3995 = vmatpush2.msra.mxu0 0.0
      %3996 = vmatprep.subr.mxu0 0.0
      %3997 = vmatpush2.msra.mxu0 0.0
      %3998 = vmatprep.subr.mxu0 0.0
      %3999 = vmatpush2.msra.mxu0 0.0
      %4000 = vmatprep.mubr.f32.mxu0 0.0
      %v4001 = vand.u32 %v3722, 4294901760
      %v4002 = vsub.f32 %v3722, %v4001
      %4003 = vmatmul.mubr.f32.gmra.mxu0 %v4002
      %v4004 = vpop.f32.mrf.mxu0
      %v4005 = vadd.f32 %v3916, %v4004
      %v4006 = vpop.f32.mrf.mxu0
      %v4007 = vadd.f32 %v3918, %v4006
      %4008 = vdwg.mxu0
      %4009 = vmatprep.subr.mxu0 0.0
      %4010 = vmatpush1.msra.mxu0 0.0
      %4011 = vmatprep.subr.mxu0 0.0
      %4012 = vmatpush1.msra.mxu0 0.0
      %4013 = vmatprep.subr.mxu0 0.0
      %4014 = vmatpush1.msra.mxu0 0.0
      %4015 = vmatprep.subr.mxu0 0.0
      %4016 = vmatpush1.msra.mxu0 0.0
      %4017 = vmatprep.subr.mxu0 0.0
      %4018 = vmatpush1.msra.mxu0 0.0
      %4019 = vmatprep.subr.mxu0 0.0
      %4020 = vmatpush1.msra.mxu0 0.0
      %4021 = vmatprep.subr.mxu0 0.0
      %4022 = vmatpush1.msra.mxu0 0.0
      %4023 = vmatprep.subr.mxu0 0.0
      %4024 = vmatpush1.msra.mxu0 0.0
      %4025 = vmatprep.subr.mxu0 0.0
      %4026 = vmatpush1.msra.mxu0 0.0
      %4027 = vmatprep.subr.mxu0 0.0
      %4028 = vmatpush1.msra.mxu0 0.0
      %4029 = vmatprep.subr.mxu0 0.0
      %4030 = vmatpush1.msra.mxu0 0.0
      %4031 = vmatprep.subr.mxu0 0.0
      %4032 = vmatpush1.msra.mxu0 0.0
      %v4033 = vand.u32 %v1283, 4294901760
      %4034 = vmatprep.subr.mxu0 %v4033
      %v4035 = vand.u32 %v1282, 4294901760
      %4036 = vmatpush1.msra.mxu0 %v4035
      %v4037 = vand.u32 %v1280, 4294901760
      %4038 = vmatprep.subr.mxu0 %v4037
      %v4039 = vand.u32 %v1279, 4294901760
      %4040 = vmatpush1.msra.mxu0 %v4039
      %v4041 = vand.u32 %v1277, 4294901760
      %4042 = vmatprep.subr.mxu0 %v4041
      %v4043 = vand.u32 %v1276, 4294901760
      %4044 = vmatpush1.msra.mxu0 %v4043
      %v4045 = vand.u32 %v1274, 4294901760
      %4046 = vmatprep.subr.mxu0 %v4045
      %v4047 = vand.u32 %v1273, 4294901760
      %4048 = vmatpush1.msra.mxu0 %v4047
      %4049 = vmatprep.subr.mxu0 0.0
      %4050 = vmatpush2.msra.mxu0 0.0
      %4051 = vmatprep.subr.mxu0 0.0
      %4052 = vmatpush2.msra.mxu0 0.0
      %4053 = vmatprep.subr.mxu0 0.0
      %4054 = vmatpush2.msra.mxu0 0.0
      %4055 = vmatprep.subr.mxu0 0.0
      %4056 = vmatpush2.msra.mxu0 0.0
      %4057 = vmatprep.subr.mxu0 0.0
      %4058 = vmatpush2.msra.mxu0 0.0
      %4059 = vmatprep.subr.mxu0 0.0
      %4060 = vmatpush2.msra.mxu0 0.0
      %4061 = vmatprep.subr.mxu0 0.0
      %4062 = vmatpush2.msra.mxu0 0.0
      %4063 = vmatprep.subr.mxu0 0.0
      %4064 = vmatpush2.msra.mxu0 0.0
      %4065 = vmatprep.subr.mxu0 0.0
      %4066 = vmatpush2.msra.mxu0 0.0
      %4067 = vmatprep.subr.mxu0 0.0
      %4068 = vmatpush2.msra.mxu0 0.0
      %4069 = vmatprep.subr.mxu0 0.0
      %4070 = vmatpush2.msra.mxu0 0.0
      %4071 = vmatprep.subr.mxu0 0.0
      %4072 = vmatpush2.msra.mxu0 0.0
      %4073 = vmatprep.subr.mxu0 0.0
      %4074 = vmatpush2.msra.mxu0 0.0
      %4075 = vmatprep.subr.mxu0 0.0
      %4076 = vmatpush2.msra.mxu0 0.0
      %4077 = vmatprep.subr.mxu0 0.0
      %4078 = vmatpush2.msra.mxu0 0.0
      %4079 = vmatprep.subr.mxu0 0.0
      %4080 = vmatpush2.msra.mxu0 0.0
      %4081 = vmatprep.mubr.f32.mxu0 0.0
      %v4082 = vand.u32 %v3722, 4294901760
      %v4083 = vsub.f32 %v3722, %v4082
      %v4084 = vand.u32 %v4083, 4294901760
      %4085 = vmatmul.mubr.f32.gmra.mxu0 %v4084
      %v4086 = vpop.f32.mrf.mxu0
      %v4087 = vadd.f32 %v4005, %v4086
      %v4088 = vpop.f32.mrf.mxu0
      %v4089 = vadd.f32 %v4007, %v4088
      %4090 = vdwg.mxu0
      %4091 = vmatprep.subr.mxu0 0.0
      %4092 = vmatpush1.msra.mxu0 0.0
      %4093 = vmatprep.subr.mxu0 0.0
      %4094 = vmatpush1.msra.mxu0 0.0
      %4095 = vmatprep.subr.mxu0 0.0
      %4096 = vmatpush1.msra.mxu0 0.0
      %4097 = vmatprep.subr.mxu0 0.0
      %4098 = vmatpush1.msra.mxu0 0.0
      %4099 = vmatprep.subr.mxu0 0.0
      %4100 = vmatpush1.msra.mxu0 0.0
      %4101 = vmatprep.subr.mxu0 0.0
      %4102 = vmatpush1.msra.mxu0 0.0
      %4103 = vmatprep.subr.mxu0 0.0
      %4104 = vmatpush1.msra.mxu0 0.0
      %4105 = vmatprep.subr.mxu0 0.0
      %4106 = vmatpush1.msra.mxu0 0.0
      %4107 = vmatprep.subr.mxu0 0.0
      %4108 = vmatpush1.msra.mxu0 0.0
      %4109 = vmatprep.subr.mxu0 0.0
      %4110 = vmatpush1.msra.mxu0 0.0
      %4111 = vmatprep.subr.mxu0 0.0
      %4112 = vmatpush1.msra.mxu0 0.0
      %4113 = vmatprep.subr.mxu0 0.0
      %4114 = vmatpush1.msra.mxu0 0.0
      %v4115 = vand.u32 %v1283, 4294901760
      %v4116 = vsub.f32 %v1283, %v4115
      %v4117 = vand.u32 %v4116, 4294901760
      %4118 = vmatprep.subr.mxu0 %v4117
      %v4119 = vand.u32 %v1282, 4294901760
      %v4120 = vsub.f32 %v1282, %v4119
      %v4121 = vand.u32 %v4120, 4294901760
      %4122 = vmatpush1.msra.mxu0 %v4121
      %v4123 = vand.u32 %v1280, 4294901760
      %v4124 = vsub.f32 %v1280, %v4123
      %v4125 = vand.u32 %v4124, 4294901760
      %4126 = vmatprep.subr.mxu0 %v4125
      %v4127 = vand.u32 %v1279, 4294901760
      %v4128 = vsub.f32 %v1279, %v4127
      %v4129 = vand.u32 %v4128, 4294901760
      %4130 = vmatpush1.msra.mxu0 %v4129
      %v4131 = vand.u32 %v1277, 4294901760
      %v4132 = vsub.f32 %v1277, %v4131
      %v4133 = vand.u32 %v4132, 4294901760
      %4134 = vmatprep.subr.mxu0 %v4133
      %v4135 = vand.u32 %v1276, 4294901760
      %v4136 = vsub.f32 %v1276, %v4135
      %v4137 = vand.u32 %v4136, 4294901760
      %4138 = vmatpush1.msra.mxu0 %v4137
      %v4139 = vand.u32 %v1274, 4294901760
      %v4140 = vsub.f32 %v1274, %v4139
      %v4141 = vand.u32 %v4140, 4294901760
      %4142 = vmatprep.subr.mxu0 %v4141
      %v4143 = vand.u32 %v1273, 4294901760
      %v4144 = vsub.f32 %v1273, %v4143
      %v4145 = vand.u32 %v4144, 4294901760
      %4146 = vmatpush1.msra.mxu0 %v4145
      %4147 = vmatprep.subr.mxu0 0.0
      %4148 = vmatpush2.msra.mxu0 0.0
      %4149 = vmatprep.subr.mxu0 0.0
      %4150 = vmatpush2.msra.mxu0 0.0
      %4151 = vmatprep.subr.mxu0 0.0
      %4152 = vmatpush2.msra.mxu0 0.0
      %4153 = vmatprep.subr.mxu0 0.0
      %4154 = vmatpush2.msra.mxu0 0.0
      %4155 = vmatprep.subr.mxu0 0.0
      %4156 = vmatpush2.msra.mxu0 0.0
      %4157 = vmatprep.subr.mxu0 0.0
      %4158 = vmatpush2.msra.mxu0 0.0
      %4159 = vmatprep.subr.mxu0 0.0
      %4160 = vmatpush2.msra.mxu0 0.0
      %4161 = vmatprep.subr.mxu0 0.0
      %4162 = vmatpush2.msra.mxu0 0.0
      %4163 = vmatprep.subr.mxu0 0.0
      %4164 = vmatpush2.msra.mxu0 0.0
      %4165 = vmatprep.subr.mxu0 0.0
      %4166 = vmatpush2.msra.mxu0 0.0
      %4167 = vmatprep.subr.mxu0 0.0
      %4168 = vmatpush2.msra.mxu0 0.0
      %4169 = vmatprep.subr.mxu0 0.0
      %4170 = vmatpush2.msra.mxu0 0.0
      %4171 = vmatprep.subr.mxu0 0.0
      %4172 = vmatpush2.msra.mxu0 0.0
      %4173 = vmatprep.subr.mxu0 0.0
      %4174 = vmatpush2.msra.mxu0 0.0
      %4175 = vmatprep.subr.mxu0 0.0
      %4176 = vmatpush2.msra.mxu0 0.0
      %4177 = vmatprep.subr.mxu0 0.0
      %4178 = vmatpush2.msra.mxu0 0.0
      %4179 = vmatprep.mubr.f32.mxu0 0.0
      %v4180 = vand.u32 %v3722, 4294901760
      %4181 = vmatmul.mubr.f32.gmra.mxu0 %v4180
      %v4182 = vpop.f32.mrf.mxu0
      %v4183 = vadd.f32 %v4087, %v4182
      %v4184 = vpop.f32.mrf.mxu0
      %v4185 = vadd.f32 %v4089, %v4184
      %4186 = vdwg.mxu0
      %4187 = vmatprep.subr.mxu0 0.0
      %4188 = vmatpush1.msra.mxu0 0.0
      %4189 = vmatprep.subr.mxu0 0.0
      %4190 = vmatpush1.msra.mxu0 0.0
      %4191 = vmatprep.subr.mxu0 0.0
      %4192 = vmatpush1.msra.mxu0 0.0
      %4193 = vmatprep.subr.mxu0 0.0
      %4194 = vmatpush1.msra.mxu0 0.0
      %4195 = vmatprep.subr.mxu0 0.0
      %4196 = vmatpush1.msra.mxu0 0.0
      %4197 = vmatprep.subr.mxu0 0.0
      %4198 = vmatpush1.msra.mxu0 0.0
      %4199 = vmatprep.subr.mxu0 0.0
      %4200 = vmatpush1.msra.mxu0 0.0
      %4201 = vmatprep.subr.mxu0 0.0
      %4202 = vmatpush1.msra.mxu0 0.0
      %4203 = vmatprep.subr.mxu0 0.0
      %4204 = vmatpush1.msra.mxu0 0.0
      %4205 = vmatprep.subr.mxu0 0.0
      %4206 = vmatpush1.msra.mxu0 0.0
      %4207 = vmatprep.subr.mxu0 0.0
      %4208 = vmatpush1.msra.mxu0 0.0
      %4209 = vmatprep.subr.mxu0 0.0
      %4210 = vmatpush1.msra.mxu0 0.0
      %v4211 = vand.u32 %v1283, 4294901760
      %4212 = vmatprep.subr.mxu0 %v4211
      %v4213 = vand.u32 %v1282, 4294901760
      %4214 = vmatpush1.msra.mxu0 %v4213
      %v4215 = vand.u32 %v1280, 4294901760
      %4216 = vmatprep.subr.mxu0 %v4215
      %v4217 = vand.u32 %v1279, 4294901760
      %4218 = vmatpush1.msra.mxu0 %v4217
      %v4219 = vand.u32 %v1277, 4294901760
      %4220 = vmatprep.subr.mxu0 %v4219
      %v4221 = vand.u32 %v1276, 4294901760
      %4222 = vmatpush1.msra.mxu0 %v4221
      %v4223 = vand.u32 %v1274, 4294901760
      %4224 = vmatprep.subr.mxu0 %v4223
      %v4225 = vand.u32 %v1273, 4294901760
      %4226 = vmatpush1.msra.mxu0 %v4225
      %4227 = vmatprep.subr.mxu0 0.0
      %4228 = vmatpush2.msra.mxu0 0.0
      %4229 = vmatprep.subr.mxu0 0.0
      %4230 = vmatpush2.msra.mxu0 0.0
      %4231 = vmatprep.subr.mxu0 0.0
      %4232 = vmatpush2.msra.mxu0 0.0
      %4233 = vmatprep.subr.mxu0 0.0
      %4234 = vmatpush2.msra.mxu0 0.0
      %4235 = vmatprep.subr.mxu0 0.0
      %4236 = vmatpush2.msra.mxu0 0.0
      %4237 = vmatprep.subr.mxu0 0.0
      %4238 = vmatpush2.msra.mxu0 0.0
      %4239 = vmatprep.subr.mxu0 0.0
      %4240 = vmatpush2.msra.mxu0 0.0
      %4241 = vmatprep.subr.mxu0 0.0
      %4242 = vmatpush2.msra.mxu0 0.0
      %4243 = vmatprep.subr.mxu0 0.0
      %4244 = vmatpush2.msra.mxu0 0.0
      %4245 = vmatprep.subr.mxu0 0.0
      %4246 = vmatpush2.msra.mxu0 0.0
      %4247 = vmatprep.subr.mxu0 0.0
      %4248 = vmatpush2.msra.mxu0 0.0
      %4249 = vmatprep.subr.mxu0 0.0
      %4250 = vmatpush2.msra.mxu0 0.0
      %4251 = vmatprep.subr.mxu0 0.0
      %4252 = vmatpush2.msra.mxu0 0.0
      %4253 = vmatprep.subr.mxu0 0.0
      %4254 = vmatpush2.msra.mxu0 0.0
      %4255 = vmatprep.subr.mxu0 0.0
      %4256 = vmatpush2.msra.mxu0 0.0
      %4257 = vmatprep.subr.mxu0 0.0
      %4258 = vmatpush2.msra.mxu0 0.0
      %4259 = vmatprep.mubr.f32.mxu0 0.0
      %v4260 = vand.u32 %v3722, 4294901760
      %4261 = vmatmul.mubr.f32.gmra.mxu0 %v4260
      %v4262 = vpop.f32.mrf.mxu0
      %v4263 = vadd.f32 %v4183, %v4262
      %v4264 = vpop.f32.mrf.mxu0
      %v4265 = vadd.f32 %v4185, %v4264
      %4266 = vdwg.mxu0
      %s4267 = scalar_lea.vmem %s2, 4
      %v4268 = vld [vmem:[%s4267] ss:$8 sm:$0x3]
      %v4270 = vlaneseq
      %v4271 = vshrl.u32 %v4270, 7
      %v4272 = vsub.s32 0, %v4271
      %v4273 = vrot.slane %v4268, %v4272
      %v4274 = vlaneseq
      %v4275 = vshrl.u32 %v4274, 7
      %v4276 = vsub.s32 1, %v4275
      %v4277 = vrot.slane %v4268, %v4276
      %v4280 = vmul.f32 %v4263, %v4273
      %v4281 = vmul.f32 %v4265, %v4277
      %v4282 = vadd.f32 %v3717, %v4280
      %v4283 = vadd.f32 %v3718, %v4281
      %v4284 = vld [vmem:[#allocation2 + $0x8] sm:$0xff]
      %v4285 = vld [vmem:[#allocation2 + $0x10] sm:$0xff]
      %v4286 = vld [vmem:[#allocation2 + $0x18] sm:$0xff]
      %v4287 = vld [vmem:[#allocation2 + $0x28] sm:$0xff]
      %v4288 = vld [vmem:[#allocation2 + $0x30] sm:$0xff]
      %v4289 = vld [vmem:[#allocation2 + $0x38] sm:$0xff]
      %v4290 = vld [vmem:[#allocation2 + $0x48] sm:$0xff]
      %v4291 = vld [vmem:[#allocation2 + $0x50] sm:$0xff]
      %v4292 = vld [vmem:[#allocation2 + $0x58] sm:$0xff]
      %v4293 = vld [vmem:[#allocation2 + $0x68] sm:$0xff]
      %v4294 = vld [vmem:[#allocation2 + $0x70] sm:$0xff]
      %v4295 = vld [vmem:[#allocation2 + $0x78] sm:$0xff]
      %s4296 = scalar_lea.vmem %s5, 20
      %v4297 = vld [vmem:[%s4296] sm:$0xf]
      %4310 = vrot.lane.b32.xlu0 %v4284, 127
      %v4311 = vpop.permute.xlu0 %4310
      %4312 = vrot.lane.b32.xlu0 %v4285, 127
      %v4313 = vpop.permute.xlu0 %4312
      %4314 = vrot.lane.b32.xlu0 %v4286, 127
      %v4315 = vpop.permute.xlu0 %4314
      %4316 = vrot.lane.b32.xlu0 %v4287, 127
      %v4317 = vpop.permute.xlu0 %4316
      %4318 = vrot.lane.b32.xlu0 %v4288, 127
      %v4319 = vpop.permute.xlu0 %4318
      %4320 = vrot.lane.b32.xlu0 %v4289, 127
      %v4321 = vpop.permute.xlu0 %4320
      %4322 = vrot.lane.b32.xlu0 %v4290, 127
      %v4323 = vpop.permute.xlu0 %4322
      %4324 = vrot.lane.b32.xlu0 %v4291, 127
      %v4325 = vpop.permute.xlu0 %4324
      %4326 = vrot.lane.b32.xlu0 %v4292, 127
      %v4327 = vpop.permute.xlu0 %4326
      %4328 = vrot.lane.b32.xlu0 %v4293, 127
      %v4329 = vpop.permute.xlu0 %4328
      %4330 = vrot.lane.b32.xlu0 %v4294, 127
      %v4331 = vpop.permute.xlu0 %4330
      %4332 = vrot.lane.b32.xlu0 %v4295, 127
      %v4333 = vpop.permute.xlu0 %4332
      %vm4334 = vcmask 1039360
      %v4335 = vsel %vm4334, %v4311, %v4313
      %v4336 = vsel %vm4334, %v4313, %v4315
      %v4337 = vsel %vm4334, %v4317, %v4319
      %v4338 = vsel %vm4334, %v4319, %v4321
      %v4339 = vsel %vm4334, %v4323, %v4325
      %v4340 = vsel %vm4334, %v4325, %v4327
      %v4341 = vsel %vm4334, %v4329, %v4331
      %v4342 = vsel %vm4334, %v4331, %v4333
      %v4352 = vsel %vm1338, %v4297, 0
      %4354 = vmatprep.subr.mxu0 0.0
      %4355 = vmatpush1.msra.mxu0 0.0
      %4356 = vmatprep.subr.mxu0 0.0
      %4357 = vmatpush1.msra.mxu0 0.0
      %4358 = vmatprep.subr.mxu0 0.0
      %4359 = vmatpush1.msra.mxu0 0.0
      %4360 = vmatprep.subr.mxu0 0.0
      %4361 = vmatpush1.msra.mxu0 0.0
      %4362 = vmatprep.subr.mxu0 0.0
      %4363 = vmatpush1.msra.mxu0 0.0
      %4364 = vmatprep.subr.mxu0 0.0
      %4365 = vmatpush1.msra.mxu0 0.0
      %4366 = vmatprep.subr.mxu0 0.0
      %4367 = vmatpush1.msra.mxu0 0.0
      %4368 = vmatprep.subr.mxu0 0.0
      %4369 = vmatpush1.msra.mxu0 0.0
      %4370 = vmatprep.subr.mxu0 0.0
      %4371 = vmatpush1.msra.mxu0 0.0
      %4372 = vmatprep.subr.mxu0 0.0
      %4373 = vmatpush1.msra.mxu0 0.0
      %4374 = vmatprep.subr.mxu0 0.0
      %4375 = vmatpush1.msra.mxu0 0.0
      %4376 = vmatprep.subr.mxu0 0.0
      %4377 = vmatpush1.msra.mxu0 0.0
      %v4378 = vand.u32 %v4342, 4294901760
      %4379 = vmatprep.subr.mxu0 %v4378
      %v4380 = vand.u32 %v4341, 4294901760
      %4381 = vmatpush1.msra.mxu0 %v4380
      %v4382 = vand.u32 %v4340, 4294901760
      %4383 = vmatprep.subr.mxu0 %v4382
      %v4384 = vand.u32 %v4339, 4294901760
      %4385 = vmatpush1.msra.mxu0 %v4384
      %v4386 = vand.u32 %v4338, 4294901760
      %4387 = vmatprep.subr.mxu0 %v4386
      %v4388 = vand.u32 %v4337, 4294901760
      %4389 = vmatpush1.msra.mxu0 %v4388
      %v4390 = vand.u32 %v4336, 4294901760
      %4391 = vmatprep.subr.mxu0 %v4390
      %v4392 = vand.u32 %v4335, 4294901760
      %4393 = vmatpush1.msra.mxu0 %v4392
      %4394 = vmatprep.subr.mxu0 0.0
      %4395 = vmatpush2.msra.mxu0 0.0
      %4396 = vmatprep.subr.mxu0 0.0
      %4397 = vmatpush2.msra.mxu0 0.0
      %4398 = vmatprep.subr.mxu0 0.0
      %4399 = vmatpush2.msra.mxu0 0.0
      %4400 = vmatprep.subr.mxu0 0.0
      %4401 = vmatpush2.msra.mxu0 0.0
      %4402 = vmatprep.subr.mxu0 0.0
      %4403 = vmatpush2.msra.mxu0 0.0
      %4404 = vmatprep.subr.mxu0 0.0
      %4405 = vmatpush2.msra.mxu0 0.0
      %4406 = vmatprep.subr.mxu0 0.0
      %4407 = vmatpush2.msra.mxu0 0.0
      %4408 = vmatprep.subr.mxu0 0.0
      %4409 = vmatpush2.msra.mxu0 0.0
      %4410 = vmatprep.subr.mxu0 0.0
      %4411 = vmatpush2.msra.mxu0 0.0
      %4412 = vmatprep.subr.mxu0 0.0
      %4413 = vmatpush2.msra.mxu0 0.0
      %4414 = vmatprep.subr.mxu0 0.0
      %4415 = vmatpush2.msra.mxu0 0.0
      %4416 = vmatprep.subr.mxu0 0.0
      %4417 = vmatpush2.msra.mxu0 0.0
      %4418 = vmatprep.subr.mxu0 0.0
      %4419 = vmatpush2.msra.mxu0 0.0
      %4420 = vmatprep.subr.mxu0 0.0
      %4421 = vmatpush2.msra.mxu0 0.0
      %4422 = vmatprep.subr.mxu0 0.0
      %4423 = vmatpush2.msra.mxu0 0.0
      %4424 = vmatprep.subr.mxu0 0.0
      %4425 = vmatpush2.msra.mxu0 0.0
      %4426 = vmatprep.mubr.f32.mxu0 0.0
      %v4427 = vand.u32 %v4352, 4294901760
      %v4428 = vsub.f32 %v4352, %v4427
      %v4429 = vand.u32 %v4428, 4294901760
      %v4430 = vsub.f32 %v4428, %v4429
      %v4431 = vand.u32 %v4430, 4294901760
      %4432 = vmatmul.mubr.f32.gmra.mxu0 %v4431
      %v4433 = vpop.f32.mrf.mxu0
      %v4434 = vadd.f32 0.0, %v4433
      %v4435 = vpop.f32.mrf.mxu0
      %v4436 = vadd.f32 0.0, %v4435
      %4437 = vdwg.mxu0
      %4438 = vmatprep.subr.mxu0 0.0
      %4439 = vmatpush1.msra.mxu0 0.0
      %4440 = vmatprep.subr.mxu0 0.0
      %4441 = vmatpush1.msra.mxu0 0.0
      %4442 = vmatprep.subr.mxu0 0.0
      %4443 = vmatpush1.msra.mxu0 0.0
      %4444 = vmatprep.subr.mxu0 0.0
      %4445 = vmatpush1.msra.mxu0 0.0
      %4446 = vmatprep.subr.mxu0 0.0
      %4447 = vmatpush1.msra.mxu0 0.0
      %4448 = vmatprep.subr.mxu0 0.0
      %4449 = vmatpush1.msra.mxu0 0.0
      %4450 = vmatprep.subr.mxu0 0.0
      %4451 = vmatpush1.msra.mxu0 0.0
      %4452 = vmatprep.subr.mxu0 0.0
      %4453 = vmatpush1.msra.mxu0 0.0
      %4454 = vmatprep.subr.mxu0 0.0
      %4455 = vmatpush1.msra.mxu0 0.0
      %4456 = vmatprep.subr.mxu0 0.0
      %4457 = vmatpush1.msra.mxu0 0.0
      %4458 = vmatprep.subr.mxu0 0.0
      %4459 = vmatpush1.msra.mxu0 0.0
      %4460 = vmatprep.subr.mxu0 0.0
      %4461 = vmatpush1.msra.mxu0 0.0
      %v4462 = vand.u32 %v4342, 4294901760
      %v4463 = vsub.f32 %v4342, %v4462
      %v4464 = vand.u32 %v4463, 4294901760
      %v4465 = vsub.f32 %v4463, %v4464
      %v4466 = vand.u32 %v4465, 4294901760
      %4467 = vmatprep.subr.mxu0 %v4466
      %v4468 = vand.u32 %v4341, 4294901760
      %v4469 = vsub.f32 %v4341, %v4468
      %v4470 = vand.u32 %v4469, 4294901760
      %v4471 = vsub.f32 %v4469, %v4470
      %v4472 = vand.u32 %v4471, 4294901760
      %4473 = vmatpush1.msra.mxu0 %v4472
      %v4474 = vand.u32 %v4340, 4294901760
      %v4475 = vsub.f32 %v4340, %v4474
      %v4476 = vand.u32 %v4475, 4294901760
      %v4477 = vsub.f32 %v4475, %v4476
      %v4478 = vand.u32 %v4477, 4294901760
      %4479 = vmatprep.subr.mxu0 %v4478
      %v4480 = vand.u32 %v4339, 4294901760
      %v4481 = vsub.f32 %v4339, %v4480
      %v4482 = vand.u32 %v4481, 4294901760
      %v4483 = vsub.f32 %v4481, %v4482
      %v4484 = vand.u32 %v4483, 4294901760
      %4485 = vmatpush1.msra.mxu0 %v4484
      %v4486 = vand.u32 %v4338, 4294901760
      %v4487 = vsub.f32 %v4338, %v4486
      %v4488 = vand.u32 %v4487, 4294901760
      %v4489 = vsub.f32 %v4487, %v4488
      %v4490 = vand.u32 %v4489, 4294901760
      %4491 = vmatprep.subr.mxu0 %v4490
      %v4492 = vand.u32 %v4337, 4294901760
      %v4493 = vsub.f32 %v4337, %v4492
      %v4494 = vand.u32 %v4493, 4294901760
      %v4495 = vsub.f32 %v4493, %v4494
      %v4496 = vand.u32 %v4495, 4294901760
      %4497 = vmatpush1.msra.mxu0 %v4496
      %v4498 = vand.u32 %v4336, 4294901760
      %v4499 = vsub.f32 %v4336, %v4498
      %v4500 = vand.u32 %v4499, 4294901760
      %v4501 = vsub.f32 %v4499, %v4500
      %v4502 = vand.u32 %v4501, 4294901760
      %4503 = vmatprep.subr.mxu0 %v4502
      %v4504 = vand.u32 %v4335, 4294901760
      %v4505 = vsub.f32 %v4335, %v4504
      %v4506 = vand.u32 %v4505, 4294901760
      %v4507 = vsub.f32 %v4505, %v4506
      %v4508 = vand.u32 %v4507, 4294901760
      %4509 = vmatpush1.msra.mxu0 %v4508
      %4510 = vmatprep.subr.mxu0 0.0
      %4511 = vmatpush2.msra.mxu0 0.0
      %4512 = vmatprep.subr.mxu0 0.0
      %4513 = vmatpush2.msra.mxu0 0.0
      %4514 = vmatprep.subr.mxu0 0.0
      %4515 = vmatpush2.msra.mxu0 0.0
      %4516 = vmatprep.subr.mxu0 0.0
      %4517 = vmatpush2.msra.mxu0 0.0
      %4518 = vmatprep.subr.mxu0 0.0
      %4519 = vmatpush2.msra.mxu0 0.0
      %4520 = vmatprep.subr.mxu0 0.0
      %4521 = vmatpush2.msra.mxu0 0.0
      %4522 = vmatprep.subr.mxu0 0.0
      %4523 = vmatpush2.msra.mxu0 0.0
      %4524 = vmatprep.subr.mxu0 0.0
      %4525 = vmatpush2.msra.mxu0 0.0
      %4526 = vmatprep.subr.mxu0 0.0
      %4527 = vmatpush2.msra.mxu0 0.0
      %4528 = vmatprep.subr.mxu0 0.0
      %4529 = vmatpush2.msra.mxu0 0.0
      %4530 = vmatprep.subr.mxu0 0.0
      %4531 = vmatpush2.msra.mxu0 0.0
      %4532 = vmatprep.subr.mxu0 0.0
      %4533 = vmatpush2.msra.mxu0 0.0
      %4534 = vmatprep.subr.mxu0 0.0
      %4535 = vmatpush2.msra.mxu0 0.0
      %4536 = vmatprep.subr.mxu0 0.0
      %4537 = vmatpush2.msra.mxu0 0.0
      %4538 = vmatprep.subr.mxu0 0.0
      %4539 = vmatpush2.msra.mxu0 0.0
      %4540 = vmatprep.subr.mxu0 0.0
      %4541 = vmatpush2.msra.mxu0 0.0
      %4542 = vmatprep.mubr.f32.mxu0 0.0
      %v4543 = vand.u32 %v4352, 4294901760
      %4544 = vmatmul.mubr.f32.gmra.mxu0 %v4543
      %v4545 = vpop.f32.mrf.mxu0
      %v4546 = vadd.f32 %v4434, %v4545
      %v4547 = vpop.f32.mrf.mxu0
      %v4548 = vadd.f32 %v4436, %v4547
      %4549 = vdwg.mxu0
      %4550 = vmatprep.subr.mxu0 0.0
      %4551 = vmatpush1.msra.mxu0 0.0
      %4552 = vmatprep.subr.mxu0 0.0
      %4553 = vmatpush1.msra.mxu0 0.0
      %4554 = vmatprep.subr.mxu0 0.0
      %4555 = vmatpush1.msra.mxu0 0.0
      %4556 = vmatprep.subr.mxu0 0.0
      %4557 = vmatpush1.msra.mxu0 0.0
      %4558 = vmatprep.subr.mxu0 0.0
      %4559 = vmatpush1.msra.mxu0 0.0
      %4560 = vmatprep.subr.mxu0 0.0
      %4561 = vmatpush1.msra.mxu0 0.0
      %4562 = vmatprep.subr.mxu0 0.0
      %4563 = vmatpush1.msra.mxu0 0.0
      %4564 = vmatprep.subr.mxu0 0.0
      %4565 = vmatpush1.msra.mxu0 0.0
      %4566 = vmatprep.subr.mxu0 0.0
      %4567 = vmatpush1.msra.mxu0 0.0
      %4568 = vmatprep.subr.mxu0 0.0
      %4569 = vmatpush1.msra.mxu0 0.0
      %4570 = vmatprep.subr.mxu0 0.0
      %4571 = vmatpush1.msra.mxu0 0.0
      %4572 = vmatprep.subr.mxu0 0.0
      %4573 = vmatpush1.msra.mxu0 0.0
      %v4574 = vand.u32 %v4342, 4294901760
      %v4575 = vsub.f32 %v4342, %v4574
      %4576 = vmatprep.subr.mxu0 %v4575
      %v4577 = vand.u32 %v4341, 4294901760
      %v4578 = vsub.f32 %v4341, %v4577
      %4579 = vmatpush1.msra.mxu0 %v4578
      %v4580 = vand.u32 %v4340, 4294901760
      %v4581 = vsub.f32 %v4340, %v4580
      %4582 = vmatprep.subr.mxu0 %v4581
      %v4583 = vand.u32 %v4339, 4294901760
      %v4584 = vsub.f32 %v4339, %v4583
      %4585 = vmatpush1.msra.mxu0 %v4584
      %v4586 = vand.u32 %v4338, 4294901760
      %v4587 = vsub.f32 %v4338, %v4586
      %4588 = vmatprep.subr.mxu0 %v4587
      %v4589 = vand.u32 %v4337, 4294901760
      %v4590 = vsub.f32 %v4337, %v4589
      %4591 = vmatpush1.msra.mxu0 %v4590
      %v4592 = vand.u32 %v4336, 4294901760
      %v4593 = vsub.f32 %v4336, %v4592
      %4594 = vmatprep.subr.mxu0 %v4593
      %v4595 = vand.u32 %v4335, 4294901760
      %v4596 = vsub.f32 %v4335, %v4595
      %4597 = vmatpush1.msra.mxu0 %v4596
      %4598 = vmatprep.subr.mxu0 0.0
      %4599 = vmatpush2.msra.mxu0 0.0
      %4600 = vmatprep.subr.mxu0 0.0
      %4601 = vmatpush2.msra.mxu0 0.0
      %4602 = vmatprep.subr.mxu0 0.0
      %4603 = vmatpush2.msra.mxu0 0.0
      %4604 = vmatprep.subr.mxu0 0.0
      %4605 = vmatpush2.msra.mxu0 0.0
      %4606 = vmatprep.subr.mxu0 0.0
      %4607 = vmatpush2.msra.mxu0 0.0
      %4608 = vmatprep.subr.mxu0 0.0
      %4609 = vmatpush2.msra.mxu0 0.0
      %4610 = vmatprep.subr.mxu0 0.0
      %4611 = vmatpush2.msra.mxu0 0.0
      %4612 = vmatprep.subr.mxu0 0.0
      %4613 = vmatpush2.msra.mxu0 0.0
      %4614 = vmatprep.subr.mxu0 0.0
      %4615 = vmatpush2.msra.mxu0 0.0
      %4616 = vmatprep.subr.mxu0 0.0
      %4617 = vmatpush2.msra.mxu0 0.0
      %4618 = vmatprep.subr.mxu0 0.0
      %4619 = vmatpush2.msra.mxu0 0.0
      %4620 = vmatprep.subr.mxu0 0.0
      %4621 = vmatpush2.msra.mxu0 0.0
      %4622 = vmatprep.subr.mxu0 0.0
      %4623 = vmatpush2.msra.mxu0 0.0
      %4624 = vmatprep.subr.mxu0 0.0
      %4625 = vmatpush2.msra.mxu0 0.0
      %4626 = vmatprep.subr.mxu0 0.0
      %4627 = vmatpush2.msra.mxu0 0.0
      %4628 = vmatprep.subr.mxu0 0.0
      %4629 = vmatpush2.msra.mxu0 0.0
      %4630 = vmatprep.mubr.f32.mxu0 0.0
      %v4631 = vand.u32 %v4352, 4294901760
      %v4632 = vsub.f32 %v4352, %v4631
      %4633 = vmatmul.mubr.f32.gmra.mxu0 %v4632
      %v4634 = vpop.f32.mrf.mxu0
      %v4635 = vadd.f32 %v4546, %v4634
      %v4636 = vpop.f32.mrf.mxu0
      %v4637 = vadd.f32 %v4548, %v4636
      %4638 = vdwg.mxu0
      %4639 = vmatprep.subr.mxu0 0.0
      %4640 = vmatpush1.msra.mxu0 0.0
      %4641 = vmatprep.subr.mxu0 0.0
      %4642 = vmatpush1.msra.mxu0 0.0
      %4643 = vmatprep.subr.mxu0 0.0
      %4644 = vmatpush1.msra.mxu0 0.0
      %4645 = vmatprep.subr.mxu0 0.0
      %4646 = vmatpush1.msra.mxu0 0.0
      %4647 = vmatprep.subr.mxu0 0.0
      %4648 = vmatpush1.msra.mxu0 0.0
      %4649 = vmatprep.subr.mxu0 0.0
      %4650 = vmatpush1.msra.mxu0 0.0
      %4651 = vmatprep.subr.mxu0 0.0
      %4652 = vmatpush1.msra.mxu0 0.0
      %4653 = vmatprep.subr.mxu0 0.0
      %4654 = vmatpush1.msra.mxu0 0.0
      %4655 = vmatprep.subr.mxu0 0.0
      %4656 = vmatpush1.msra.mxu0 0.0
      %4657 = vmatprep.subr.mxu0 0.0
      %4658 = vmatpush1.msra.mxu0 0.0
      %4659 = vmatprep.subr.mxu0 0.0
      %4660 = vmatpush1.msra.mxu0 0.0
      %4661 = vmatprep.subr.mxu0 0.0
      %4662 = vmatpush1.msra.mxu0 0.0
      %v4663 = vand.u32 %v4342, 4294901760
      %4664 = vmatprep.subr.mxu0 %v4663
      %v4665 = vand.u32 %v4341, 4294901760
      %4666 = vmatpush1.msra.mxu0 %v4665
      %v4667 = vand.u32 %v4340, 4294901760
      %4668 = vmatprep.subr.mxu0 %v4667
      %v4669 = vand.u32 %v4339, 4294901760
      %4670 = vmatpush1.msra.mxu0 %v4669
      %v4671 = vand.u32 %v4338, 4294901760
      %4672 = vmatprep.subr.mxu0 %v4671
      %v4673 = vand.u32 %v4337, 4294901760
      %4674 = vmatpush1.msra.mxu0 %v4673
      %v4675 = vand.u32 %v4336, 4294901760
      %4676 = vmatprep.subr.mxu0 %v4675
      %v4677 = vand.u32 %v4335, 4294901760
      %4678 = vmatpush1.msra.mxu0 %v4677
      %4679 = vmatprep.subr.mxu0 0.0
      %4680 = vmatpush2.msra.mxu0 0.0
      %4681 = vmatprep.subr.mxu0 0.0
      %4682 = vmatpush2.msra.mxu0 0.0
      %4683 = vmatprep.subr.mxu0 0.0
      %4684 = vmatpush2.msra.mxu0 0.0
      %4685 = vmatprep.subr.mxu0 0.0
      %4686 = vmatpush2.msra.mxu0 0.0
      %4687 = vmatprep.subr.mxu0 0.0
      %4688 = vmatpush2.msra.mxu0 0.0
      %4689 = vmatprep.subr.mxu0 0.0
      %4690 = vmatpush2.msra.mxu0 0.0
      %4691 = vmatprep.subr.mxu0 0.0
      %4692 = vmatpush2.msra.mxu0 0.0
      %4693 = vmatprep.subr.mxu0 0.0
      %4694 = vmatpush2.msra.mxu0 0.0
      %4695 = vmatprep.subr.mxu0 0.0
      %4696 = vmatpush2.msra.mxu0 0.0
      %4697 = vmatprep.subr.mxu0 0.0
      %4698 = vmatpush2.msra.mxu0 0.0
      %4699 = vmatprep.subr.mxu0 0.0
      %4700 = vmatpush2.msra.mxu0 0.0
      %4701 = vmatprep.subr.mxu0 0.0
      %4702 = vmatpush2.msra.mxu0 0.0
      %4703 = vmatprep.subr.mxu0 0.0
      %4704 = vmatpush2.msra.mxu0 0.0
      %4705 = vmatprep.subr.mxu0 0.0
      %4706 = vmatpush2.msra.mxu0 0.0
      %4707 = vmatprep.subr.mxu0 0.0
      %4708 = vmatpush2.msra.mxu0 0.0
      %4709 = vmatprep.subr.mxu0 0.0
      %4710 = vmatpush2.msra.mxu0 0.0
      %4711 = vmatprep.mubr.f32.mxu0 0.0
      %v4712 = vand.u32 %v4352, 4294901760
      %v4713 = vsub.f32 %v4352, %v4712
      %v4714 = vand.u32 %v4713, 4294901760
      %4715 = vmatmul.mubr.f32.gmra.mxu0 %v4714
      %v4716 = vpop.f32.mrf.mxu0
      %v4717 = vadd.f32 %v4635, %v4716
      %v4718 = vpop.f32.mrf.mxu0
      %v4719 = vadd.f32 %v4637, %v4718
      %4720 = vdwg.mxu0
      %4721 = vmatprep.subr.mxu0 0.0
      %4722 = vmatpush1.msra.mxu0 0.0
      %4723 = vmatprep.subr.mxu0 0.0
      %4724 = vmatpush1.msra.mxu0 0.0
      %4725 = vmatprep.subr.mxu0 0.0
      %4726 = vmatpush1.msra.mxu0 0.0
      %4727 = vmatprep.subr.mxu0 0.0
      %4728 = vmatpush1.msra.mxu0 0.0
      %4729 = vmatprep.subr.mxu0 0.0
      %4730 = vmatpush1.msra.mxu0 0.0
      %4731 = vmatprep.subr.mxu0 0.0
      %4732 = vmatpush1.msra.mxu0 0.0
      %4733 = vmatprep.subr.mxu0 0.0
      %4734 = vmatpush1.msra.mxu0 0.0
      %4735 = vmatprep.subr.mxu0 0.0
      %4736 = vmatpush1.msra.mxu0 0.0
      %4737 = vmatprep.subr.mxu0 0.0
      %4738 = vmatpush1.msra.mxu0 0.0
      %4739 = vmatprep.subr.mxu0 0.0
      %4740 = vmatpush1.msra.mxu0 0.0
      %4741 = vmatprep.subr.mxu0 0.0
      %4742 = vmatpush1.msra.mxu0 0.0
      %4743 = vmatprep.subr.mxu0 0.0
      %4744 = vmatpush1.msra.mxu0 0.0
      %v4745 = vand.u32 %v4342, 4294901760
      %v4746 = vsub.f32 %v4342, %v4745
      %v4747 = vand.u32 %v4746, 4294901760
      %4748 = vmatprep.subr.mxu0 %v4747
      %v4749 = vand.u32 %v4341, 4294901760
      %v4750 = vsub.f32 %v4341, %v4749
      %v4751 = vand.u32 %v4750, 4294901760
      %4752 = vmatpush1.msra.mxu0 %v4751
      %v4753 = vand.u32 %v4340, 4294901760
      %v4754 = vsub.f32 %v4340, %v4753
      %v4755 = vand.u32 %v4754, 4294901760
      %4756 = vmatprep.subr.mxu0 %v4755
      %v4757 = vand.u32 %v4339, 4294901760
      %v4758 = vsub.f32 %v4339, %v4757
      %v4759 = vand.u32 %v4758, 4294901760
      %4760 = vmatpush1.msra.mxu0 %v4759
      %v4761 = vand.u32 %v4338, 4294901760
      %v4762 = vsub.f32 %v4338, %v4761
      %v4763 = vand.u32 %v4762, 4294901760
      %4764 = vmatprep.subr.mxu0 %v4763
      %v4765 = vand.u32 %v4337, 4294901760
      %v4766 = vsub.f32 %v4337, %v4765
      %v4767 = vand.u32 %v4766, 4294901760
      %4768 = vmatpush1.msra.mxu0 %v4767
      %v4769 = vand.u32 %v4336, 4294901760
      %v4770 = vsub.f32 %v4336, %v4769
      %v4771 = vand.u32 %v4770, 4294901760
      %4772 = vmatprep.subr.mxu0 %v4771
      %v4773 = vand.u32 %v4335, 4294901760
      %v4774 = vsub.f32 %v4335, %v4773
      %v4775 = vand.u32 %v4774, 4294901760
      %4776 = vmatpush1.msra.mxu0 %v4775
      %4777 = vmatprep.subr.mxu0 0.0
      %4778 = vmatpush2.msra.mxu0 0.0
      %4779 = vmatprep.subr.mxu0 0.0
      %4780 = vmatpush2.msra.mxu0 0.0
      %4781 = vmatprep.subr.mxu0 0.0
      %4782 = vmatpush2.msra.mxu0 0.0
      %4783 = vmatprep.subr.mxu0 0.0
      %4784 = vmatpush2.msra.mxu0 0.0
      %4785 = vmatprep.subr.mxu0 0.0
      %4786 = vmatpush2.msra.mxu0 0.0
      %4787 = vmatprep.subr.mxu0 0.0
      %4788 = vmatpush2.msra.mxu0 0.0
      %4789 = vmatprep.subr.mxu0 0.0
      %4790 = vmatpush2.msra.mxu0 0.0
      %4791 = vmatprep.subr.mxu0 0.0
      %4792 = vmatpush2.msra.mxu0 0.0
      %4793 = vmatprep.subr.mxu0 0.0
      %4794 = vmatpush2.msra.mxu0 0.0
      %4795 = vmatprep.subr.mxu0 0.0
      %4796 = vmatpush2.msra.mxu0 0.0
      %4797 = vmatprep.subr.mxu0 0.0
      %4798 = vmatpush2.msra.mxu0 0.0
      %4799 = vmatprep.subr.mxu0 0.0
      %4800 = vmatpush2.msra.mxu0 0.0
      %4801 = vmatprep.subr.mxu0 0.0
      %4802 = vmatpush2.msra.mxu0 0.0
      %4803 = vmatprep.subr.mxu0 0.0
      %4804 = vmatpush2.msra.mxu0 0.0
      %4805 = vmatprep.subr.mxu0 0.0
      %4806 = vmatpush2.msra.mxu0 0.0
      %4807 = vmatprep.subr.mxu0 0.0
      %4808 = vmatpush2.msra.mxu0 0.0
      %4809 = vmatprep.mubr.f32.mxu0 0.0
      %v4810 = vand.u32 %v4352, 4294901760
      %4811 = vmatmul.mubr.f32.gmra.mxu0 %v4810
      %v4812 = vpop.f32.mrf.mxu0
      %v4813 = vadd.f32 %v4717, %v4812
      %v4814 = vpop.f32.mrf.mxu0
      %v4815 = vadd.f32 %v4719, %v4814
      %4816 = vdwg.mxu0
      %4817 = vmatprep.subr.mxu0 0.0
      %4818 = vmatpush1.msra.mxu0 0.0
      %4819 = vmatprep.subr.mxu0 0.0
      %4820 = vmatpush1.msra.mxu0 0.0
      %4821 = vmatprep.subr.mxu0 0.0
      %4822 = vmatpush1.msra.mxu0 0.0
      %4823 = vmatprep.subr.mxu0 0.0
      %4824 = vmatpush1.msra.mxu0 0.0
      %4825 = vmatprep.subr.mxu0 0.0
      %4826 = vmatpush1.msra.mxu0 0.0
      %4827 = vmatprep.subr.mxu0 0.0
      %4828 = vmatpush1.msra.mxu0 0.0
      %4829 = vmatprep.subr.mxu0 0.0
      %4830 = vmatpush1.msra.mxu0 0.0
      %4831 = vmatprep.subr.mxu0 0.0
      %4832 = vmatpush1.msra.mxu0 0.0
      %4833 = vmatprep.subr.mxu0 0.0
      %4834 = vmatpush1.msra.mxu0 0.0
      %4835 = vmatprep.subr.mxu0 0.0
      %4836 = vmatpush1.msra.mxu0 0.0
      %4837 = vmatprep.subr.mxu0 0.0
      %4838 = vmatpush1.msra.mxu0 0.0
      %4839 = vmatprep.subr.mxu0 0.0
      %4840 = vmatpush1.msra.mxu0 0.0
      %v4841 = vand.u32 %v4342, 4294901760
      %4842 = vmatprep.subr.mxu0 %v4841
      %v4843 = vand.u32 %v4341, 4294901760
      %4844 = vmatpush1.msra.mxu0 %v4843
      %v4845 = vand.u32 %v4340, 4294901760
      %4846 = vmatprep.subr.mxu0 %v4845
      %v4847 = vand.u32 %v4339, 4294901760
      %4848 = vmatpush1.msra.mxu0 %v4847
      %v4849 = vand.u32 %v4338, 4294901760
      %4850 = vmatprep.subr.mxu0 %v4849
      %v4851 = vand.u32 %v4337, 4294901760
      %4852 = vmatpush1.msra.mxu0 %v4851
      %v4853 = vand.u32 %v4336, 4294901760
      %4854 = vmatprep.subr.mxu0 %v4853
      %v4855 = vand.u32 %v4335, 4294901760
      %4856 = vmatpush1.msra.mxu0 %v4855
      %4857 = vmatprep.subr.mxu0 0.0
      %4858 = vmatpush2.msra.mxu0 0.0
      %4859 = vmatprep.subr.mxu0 0.0
      %4860 = vmatpush2.msra.mxu0 0.0
      %4861 = vmatprep.subr.mxu0 0.0
      %4862 = vmatpush2.msra.mxu0 0.0
      %4863 = vmatprep.subr.mxu0 0.0
      %4864 = vmatpush2.msra.mxu0 0.0
      %4865 = vmatprep.subr.mxu0 0.0
      %4866 = vmatpush2.msra.mxu0 0.0
      %4867 = vmatprep.subr.mxu0 0.0
      %4868 = vmatpush2.msra.mxu0 0.0
      %4869 = vmatprep.subr.mxu0 0.0
      %4870 = vmatpush2.msra.mxu0 0.0
      %4871 = vmatprep.subr.mxu0 0.0
      %4872 = vmatpush2.msra.mxu0 0.0
      %4873 = vmatprep.subr.mxu0 0.0
      %4874 = vmatpush2.msra.mxu0 0.0
      %4875 = vmatprep.subr.mxu0 0.0
      %4876 = vmatpush2.msra.mxu0 0.0
      %4877 = vmatprep.subr.mxu0 0.0
      %4878 = vmatpush2.msra.mxu0 0.0
      %4879 = vmatprep.subr.mxu0 0.0
      %4880 = vmatpush2.msra.mxu0 0.0
      %4881 = vmatprep.subr.mxu0 0.0
      %4882 = vmatpush2.msra.mxu0 0.0
      %4883 = vmatprep.subr.mxu0 0.0
      %4884 = vmatpush2.msra.mxu0 0.0
      %4885 = vmatprep.subr.mxu0 0.0
      %4886 = vmatpush2.msra.mxu0 0.0
      %4887 = vmatprep.subr.mxu0 0.0
      %4888 = vmatpush2.msra.mxu0 0.0
      %4889 = vmatprep.mubr.f32.mxu0 0.0
      %v4890 = vand.u32 %v4352, 4294901760
      %4891 = vmatmul.mubr.f32.gmra.mxu0 %v4890
      %v4892 = vpop.f32.mrf.mxu0
      %v4893 = vadd.f32 %v4813, %v4892
      %v4894 = vpop.f32.mrf.mxu0
      %v4895 = vadd.f32 %v4815, %v4894
      %4896 = vdwg.mxu0
      %s4897 = scalar_lea.vmem %s2, 5
      %v4898 = vld [vmem:[%s4897] ss:$8 sm:$0x3]
      %v4900 = vlaneseq
      %v4901 = vshrl.u32 %v4900, 7
      %v4902 = vsub.s32 0, %v4901
      %v4903 = vrot.slane %v4898, %v4902
      %v4904 = vlaneseq
      %v4905 = vshrl.u32 %v4904, 7
      %v4906 = vsub.s32 1, %v4905
      %v4907 = vrot.slane %v4898, %v4906
      %v4910 = vmul.f32 %v4893, %v4903
      %v4911 = vmul.f32 %v4895, %v4907
      %v4912 = vadd.f32 %v4282, %v4910
      %v4913 = vadd.f32 %v4283, %v4911
      %s4914 = scalar_lea.vmem %s5, 24
      %v4915 = vld [vmem:[%s4914] sm:$0xf]
      %4916 = vrot.lane.b32.xlu0 %v4284, 113
      %v4917 = vpop.permute.xlu0 %4916
      %4918 = vrot.lane.b32.xlu0 %v4285, 113
      %v4919 = vpop.permute.xlu0 %4918
      %4920 = vrot.lane.b32.xlu0 %v4286, 113
      %v4921 = vpop.permute.xlu0 %4920
      %4922 = vrot.lane.b32.xlu0 %v4287, 113
      %v4923 = vpop.permute.xlu0 %4922
      %4924 = vrot.lane.b32.xlu0 %v4288, 113
      %v4925 = vpop.permute.xlu0 %4924
      %4926 = vrot.lane.b32.xlu0 %v4289, 113
      %v4927 = vpop.permute.xlu0 %4926
      %4928 = vrot.lane.b32.xlu0 %v4290, 113
      %v4929 = vpop.permute.xlu0 %4928
      %4930 = vrot.lane.b32.xlu0 %v4291, 113
      %v4931 = vpop.permute.xlu0 %4930
      %4932 = vrot.lane.b32.xlu0 %v4292, 113
      %v4933 = vpop.permute.xlu0 %4932
      %4934 = vrot.lane.b32.xlu0 %v4293, 113
      %v4935 = vpop.permute.xlu0 %4934
      %4936 = vrot.lane.b32.xlu0 %v4294, 113
      %v4937 = vpop.permute.xlu0 %4936
      %4938 = vrot.lane.b32.xlu0 %v4295, 113
      %v4939 = vpop.permute.xlu0 %4938
      %vm4940 = vcmask 924672
      %v4941 = vsel %vm4940, %v4917, %v4919
      %v4942 = vsel %vm4940, %v4919, %v4921
      %v4943 = vsel %vm4940, %v4923, %v4925
      %v4944 = vsel %vm4940, %v4925, %v4927
      %v4945 = vsel %vm4940, %v4929, %v4931
      %v4946 = vsel %vm4940, %v4931, %v4933
      %v4947 = vsel %vm4940, %v4935, %v4937
      %v4948 = vsel %vm4940, %v4937, %v4939
      %v4958 = vsel %vm1338, %v4915, 0
      %4960 = vmatprep.subr.mxu0 0.0
      %4961 = vmatpush1.msra.mxu0 0.0
      %4962 = vmatprep.subr.mxu0 0.0
      %4963 = vmatpush1.msra.mxu0 0.0
      %4964 = vmatprep.subr.mxu0 0.0
      %4965 = vmatpush1.msra.mxu0 0.0
      %4966 = vmatprep.subr.mxu0 0.0
      %4967 = vmatpush1.msra.mxu0 0.0
      %4968 = vmatprep.subr.mxu0 0.0
      %4969 = vmatpush1.msra.mxu0 0.0
      %4970 = vmatprep.subr.mxu0 0.0
      %4971 = vmatpush1.msra.mxu0 0.0
      %4972 = vmatprep.subr.mxu0 0.0
      %4973 = vmatpush1.msra.mxu0 0.0
      %4974 = vmatprep.subr.mxu0 0.0
      %4975 = vmatpush1.msra.mxu0 0.0
      %4976 = vmatprep.subr.mxu0 0.0
      %4977 = vmatpush1.msra.mxu0 0.0
      %4978 = vmatprep.subr.mxu0 0.0
      %4979 = vmatpush1.msra.mxu0 0.0
      %4980 = vmatprep.subr.mxu0 0.0
      %4981 = vmatpush1.msra.mxu0 0.0
      %4982 = vmatprep.subr.mxu0 0.0
      %4983 = vmatpush1.msra.mxu0 0.0
      %v4984 = vand.u32 %v4948, 4294901760
      %4985 = vmatprep.subr.mxu0 %v4984
      %v4986 = vand.u32 %v4947, 4294901760
      %4987 = vmatpush1.msra.mxu0 %v4986
      %v4988 = vand.u32 %v4946, 4294901760
      %4989 = vmatprep.subr.mxu0 %v4988
      %v4990 = vand.u32 %v4945, 4294901760
      %4991 = vmatpush1.msra.mxu0 %v4990
      %v4992 = vand.u32 %v4944, 4294901760
      %4993 = vmatprep.subr.mxu0 %v4992
      %v4994 = vand.u32 %v4943, 4294901760
      %4995 = vmatpush1.msra.mxu0 %v4994
      %v4996 = vand.u32 %v4942, 4294901760
      %4997 = vmatprep.subr.mxu0 %v4996
      %v4998 = vand.u32 %v4941, 4294901760
      %4999 = vmatpush1.msra.mxu0 %v4998
      %5000 = vmatprep.subr.mxu0 0.0
      %5001 = vmatpush2.msra.mxu0 0.0
      %5002 = vmatprep.subr.mxu0 0.0
      %5003 = vmatpush2.msra.mxu0 0.0
      %5004 = vmatprep.subr.mxu0 0.0
      %5005 = vmatpush2.msra.mxu0 0.0
      %5006 = vmatprep.subr.mxu0 0.0
      %5007 = vmatpush2.msra.mxu0 0.0
      %5008 = vmatprep.subr.mxu0 0.0
      %5009 = vmatpush2.msra.mxu0 0.0
      %5010 = vmatprep.subr.mxu0 0.0
      %5011 = vmatpush2.msra.mxu0 0.0
      %5012 = vmatprep.subr.mxu0 0.0
      %5013 = vmatpush2.msra.mxu0 0.0
      %5014 = vmatprep.subr.mxu0 0.0
      %5015 = vmatpush2.msra.mxu0 0.0
      %5016 = vmatprep.subr.mxu0 0.0
      %5017 = vmatpush2.msra.mxu0 0.0
      %5018 = vmatprep.subr.mxu0 0.0
      %5019 = vmatpush2.msra.mxu0 0.0
      %5020 = vmatprep.subr.mxu0 0.0
      %5021 = vmatpush2.msra.mxu0 0.0
      %5022 = vmatprep.subr.mxu0 0.0
      %5023 = vmatpush2.msra.mxu0 0.0
      %5024 = vmatprep.subr.mxu0 0.0
      %5025 = vmatpush2.msra.mxu0 0.0
      %5026 = vmatprep.subr.mxu0 0.0
      %5027 = vmatpush2.msra.mxu0 0.0
      %5028 = vmatprep.subr.mxu0 0.0
      %5029 = vmatpush2.msra.mxu0 0.0
      %5030 = vmatprep.subr.mxu0 0.0
      %5031 = vmatpush2.msra.mxu0 0.0
      %5032 = vmatprep.mubr.f32.mxu0 0.0
      %v5033 = vand.u32 %v4958, 4294901760
      %v5034 = vsub.f32 %v4958, %v5033
      %v5035 = vand.u32 %v5034, 4294901760
      %v5036 = vsub.f32 %v5034, %v5035
      %v5037 = vand.u32 %v5036, 4294901760
      %5038 = vmatmul.mubr.f32.gmra.mxu0 %v5037
      %v5039 = vpop.f32.mrf.mxu0
      %v5040 = vadd.f32 0.0, %v5039
      %v5041 = vpop.f32.mrf.mxu0
      %v5042 = vadd.f32 0.0, %v5041
      %5043 = vdwg.mxu0
      %5044 = vmatprep.subr.mxu0 0.0
      %5045 = vmatpush1.msra.mxu0 0.0
      %5046 = vmatprep.subr.mxu0 0.0
      %5047 = vmatpush1.msra.mxu0 0.0
      %5048 = vmatprep.subr.mxu0 0.0
      %5049 = vmatpush1.msra.mxu0 0.0
      %5050 = vmatprep.subr.mxu0 0.0
      %5051 = vmatpush1.msra.mxu0 0.0
      %5052 = vmatprep.subr.mxu0 0.0
      %5053 = vmatpush1.msra.mxu0 0.0
      %5054 = vmatprep.subr.mxu0 0.0
      %5055 = vmatpush1.msra.mxu0 0.0
      %5056 = vmatprep.subr.mxu0 0.0
      %5057 = vmatpush1.msra.mxu0 0.0
      %5058 = vmatprep.subr.mxu0 0.0
      %5059 = vmatpush1.msra.mxu0 0.0
      %5060 = vmatprep.subr.mxu0 0.0
      %5061 = vmatpush1.msra.mxu0 0.0
      %5062 = vmatprep.subr.mxu0 0.0
      %5063 = vmatpush1.msra.mxu0 0.0
      %5064 = vmatprep.subr.mxu0 0.0
      %5065 = vmatpush1.msra.mxu0 0.0
      %5066 = vmatprep.subr.mxu0 0.0
      %5067 = vmatpush1.msra.mxu0 0.0
      %v5068 = vand.u32 %v4948, 4294901760
      %v5069 = vsub.f32 %v4948, %v5068
      %v5070 = vand.u32 %v5069, 4294901760
      %v5071 = vsub.f32 %v5069, %v5070
      %v5072 = vand.u32 %v5071, 4294901760
      %5073 = vmatprep.subr.mxu0 %v5072
      %v5074 = vand.u32 %v4947, 4294901760
      %v5075 = vsub.f32 %v4947, %v5074
      %v5076 = vand.u32 %v5075, 4294901760
      %v5077 = vsub.f32 %v5075, %v5076
      %v5078 = vand.u32 %v5077, 4294901760
      %5079 = vmatpush1.msra.mxu0 %v5078
      %v5080 = vand.u32 %v4946, 4294901760
      %v5081 = vsub.f32 %v4946, %v5080
      %v5082 = vand.u32 %v5081, 4294901760
      %v5083 = vsub.f32 %v5081, %v5082
      %v5084 = vand.u32 %v5083, 4294901760
      %5085 = vmatprep.subr.mxu0 %v5084
      %v5086 = vand.u32 %v4945, 4294901760
      %v5087 = vsub.f32 %v4945, %v5086
      %v5088 = vand.u32 %v5087, 4294901760
      %v5089 = vsub.f32 %v5087, %v5088
      %v5090 = vand.u32 %v5089, 4294901760
      %5091 = vmatpush1.msra.mxu0 %v5090
      %v5092 = vand.u32 %v4944, 4294901760
      %v5093 = vsub.f32 %v4944, %v5092
      %v5094 = vand.u32 %v5093, 4294901760
      %v5095 = vsub.f32 %v5093, %v5094
      %v5096 = vand.u32 %v5095, 4294901760
      %5097 = vmatprep.subr.mxu0 %v5096
      %v5098 = vand.u32 %v4943, 4294901760
      %v5099 = vsub.f32 %v4943, %v5098
      %v5100 = vand.u32 %v5099, 4294901760
      %v5101 = vsub.f32 %v5099, %v5100
      %v5102 = vand.u32 %v5101, 4294901760
      %5103 = vmatpush1.msra.mxu0 %v5102
      %v5104 = vand.u32 %v4942, 4294901760
      %v5105 = vsub.f32 %v4942, %v5104
      %v5106 = vand.u32 %v5105, 4294901760
      %v5107 = vsub.f32 %v5105, %v5106
      %v5108 = vand.u32 %v5107, 4294901760
      %5109 = vmatprep.subr.mxu0 %v5108
      %v5110 = vand.u32 %v4941, 4294901760
      %v5111 = vsub.f32 %v4941, %v5110
      %v5112 = vand.u32 %v5111, 4294901760
      %v5113 = vsub.f32 %v5111, %v5112
      %v5114 = vand.u32 %v5113, 4294901760
      %5115 = vmatpush1.msra.mxu0 %v5114
      %5116 = vmatprep.subr.mxu0 0.0
      %5117 = vmatpush2.msra.mxu0 0.0
      %5118 = vmatprep.subr.mxu0 0.0
      %5119 = vmatpush2.msra.mxu0 0.0
      %5120 = vmatprep.subr.mxu0 0.0
      %5121 = vmatpush2.msra.mxu0 0.0
      %5122 = vmatprep.subr.mxu0 0.0
      %5123 = vmatpush2.msra.mxu0 0.0
      %5124 = vmatprep.subr.mxu0 0.0
      %5125 = vmatpush2.msra.mxu0 0.0
      %5126 = vmatprep.subr.mxu0 0.0
      %5127 = vmatpush2.msra.mxu0 0.0
      %5128 = vmatprep.subr.mxu0 0.0
      %5129 = vmatpush2.msra.mxu0 0.0
      %5130 = vmatprep.subr.mxu0 0.0
      %5131 = vmatpush2.msra.mxu0 0.0
      %5132 = vmatprep.subr.mxu0 0.0
      %5133 = vmatpush2.msra.mxu0 0.0
      %5134 = vmatprep.subr.mxu0 0.0
      %5135 = vmatpush2.msra.mxu0 0.0
      %5136 = vmatprep.subr.mxu0 0.0
      %5137 = vmatpush2.msra.mxu0 0.0
      %5138 = vmatprep.subr.mxu0 0.0
      %5139 = vmatpush2.msra.mxu0 0.0
      %5140 = vmatprep.subr.mxu0 0.0
      %5141 = vmatpush2.msra.mxu0 0.0
      %5142 = vmatprep.subr.mxu0 0.0
      %5143 = vmatpush2.msra.mxu0 0.0
      %5144 = vmatprep.subr.mxu0 0.0
      %5145 = vmatpush2.msra.mxu0 0.0
      %5146 = vmatprep.subr.mxu0 0.0
      %5147 = vmatpush2.msra.mxu0 0.0
      %5148 = vmatprep.mubr.f32.mxu0 0.0
      %v5149 = vand.u32 %v4958, 4294901760
      %5150 = vmatmul.mubr.f32.gmra.mxu0 %v5149
      %v5151 = vpop.f32.mrf.mxu0
      %v5152 = vadd.f32 %v5040, %v5151
      %v5153 = vpop.f32.mrf.mxu0
      %v5154 = vadd.f32 %v5042, %v5153
      %5155 = vdwg.mxu0
      %5156 = vmatprep.subr.mxu0 0.0
      %5157 = vmatpush1.msra.mxu0 0.0
      %5158 = vmatprep.subr.mxu0 0.0
      %5159 = vmatpush1.msra.mxu0 0.0
      %5160 = vmatprep.subr.mxu0 0.0
      %5161 = vmatpush1.msra.mxu0 0.0
      %5162 = vmatprep.subr.mxu0 0.0
      %5163 = vmatpush1.msra.mxu0 0.0
      %5164 = vmatprep.subr.mxu0 0.0
      %5165 = vmatpush1.msra.mxu0 0.0
      %5166 = vmatprep.subr.mxu0 0.0
      %5167 = vmatpush1.msra.mxu0 0.0
      %5168 = vmatprep.subr.mxu0 0.0
      %5169 = vmatpush1.msra.mxu0 0.0
      %5170 = vmatprep.subr.mxu0 0.0
      %5171 = vmatpush1.msra.mxu0 0.0
      %5172 = vmatprep.subr.mxu0 0.0
      %5173 = vmatpush1.msra.mxu0 0.0
      %5174 = vmatprep.subr.mxu0 0.0
      %5175 = vmatpush1.msra.mxu0 0.0
      %5176 = vmatprep.subr.mxu0 0.0
      %5177 = vmatpush1.msra.mxu0 0.0
      %5178 = vmatprep.subr.mxu0 0.0
      %5179 = vmatpush1.msra.mxu0 0.0
      %v5180 = vand.u32 %v4948, 4294901760
      %v5181 = vsub.f32 %v4948, %v5180
      %5182 = vmatprep.subr.mxu0 %v5181
      %v5183 = vand.u32 %v4947, 4294901760
      %v5184 = vsub.f32 %v4947, %v5183
      %5185 = vmatpush1.msra.mxu0 %v5184
      %v5186 = vand.u32 %v4946, 4294901760
      %v5187 = vsub.f32 %v4946, %v5186
      %5188 = vmatprep.subr.mxu0 %v5187
      %v5189 = vand.u32 %v4945, 4294901760
      %v5190 = vsub.f32 %v4945, %v5189
      %5191 = vmatpush1.msra.mxu0 %v5190
      %v5192 = vand.u32 %v4944, 4294901760
      %v5193 = vsub.f32 %v4944, %v5192
      %5194 = vmatprep.subr.mxu0 %v5193
      %v5195 = vand.u32 %v4943, 4294901760
      %v5196 = vsub.f32 %v4943, %v5195
      %5197 = vmatpush1.msra.mxu0 %v5196
      %v5198 = vand.u32 %v4942, 4294901760
      %v5199 = vsub.f32 %v4942, %v5198
      %5200 = vmatprep.subr.mxu0 %v5199
      %v5201 = vand.u32 %v4941, 4294901760
      %v5202 = vsub.f32 %v4941, %v5201
      %5203 = vmatpush1.msra.mxu0 %v5202
      %5204 = vmatprep.subr.mxu0 0.0
      %5205 = vmatpush2.msra.mxu0 0.0
      %5206 = vmatprep.subr.mxu0 0.0
      %5207 = vmatpush2.msra.mxu0 0.0
      %5208 = vmatprep.subr.mxu0 0.0
      %5209 = vmatpush2.msra.mxu0 0.0
      %5210 = vmatprep.subr.mxu0 0.0
      %5211 = vmatpush2.msra.mxu0 0.0
      %5212 = vmatprep.subr.mxu0 0.0
      %5213 = vmatpush2.msra.mxu0 0.0
      %5214 = vmatprep.subr.mxu0 0.0
      %5215 = vmatpush2.msra.mxu0 0.0
      %5216 = vmatprep.subr.mxu0 0.0
      %5217 = vmatpush2.msra.mxu0 0.0
      %5218 = vmatprep.subr.mxu0 0.0
      %5219 = vmatpush2.msra.mxu0 0.0
      %5220 = vmatprep.subr.mxu0 0.0
      %5221 = vmatpush2.msra.mxu0 0.0
      %5222 = vmatprep.subr.mxu0 0.0
      %5223 = vmatpush2.msra.mxu0 0.0
      %5224 = vmatprep.subr.mxu0 0.0
      %5225 = vmatpush2.msra.mxu0 0.0
      %5226 = vmatprep.subr.mxu0 0.0
      %5227 = vmatpush2.msra.mxu0 0.0
      %5228 = vmatprep.subr.mxu0 0.0
      %5229 = vmatpush2.msra.mxu0 0.0
      %5230 = vmatprep.subr.mxu0 0.0
      %5231 = vmatpush2.msra.mxu0 0.0
      %5232 = vmatprep.subr.mxu0 0.0
      %5233 = vmatpush2.msra.mxu0 0.0
      %5234 = vmatprep.subr.mxu0 0.0
      %5235 = vmatpush2.msra.mxu0 0.0
      %5236 = vmatprep.mubr.f32.mxu0 0.0
      %v5237 = vand.u32 %v4958, 4294901760
      %v5238 = vsub.f32 %v4958, %v5237
      %5239 = vmatmul.mubr.f32.gmra.mxu0 %v5238
      %v5240 = vpop.f32.mrf.mxu0
      %v5241 = vadd.f32 %v5152, %v5240
      %v5242 = vpop.f32.mrf.mxu0
      %v5243 = vadd.f32 %v5154, %v5242
      %5244 = vdwg.mxu0
      %5245 = vmatprep.subr.mxu0 0.0
      %5246 = vmatpush1.msra.mxu0 0.0
      %5247 = vmatprep.subr.mxu0 0.0
      %5248 = vmatpush1.msra.mxu0 0.0
      %5249 = vmatprep.subr.mxu0 0.0
      %5250 = vmatpush1.msra.mxu0 0.0
      %5251 = vmatprep.subr.mxu0 0.0
      %5252 = vmatpush1.msra.mxu0 0.0
      %5253 = vmatprep.subr.mxu0 0.0
      %5254 = vmatpush1.msra.mxu0 0.0
      %5255 = vmatprep.subr.mxu0 0.0
      %5256 = vmatpush1.msra.mxu0 0.0
      %5257 = vmatprep.subr.mxu0 0.0
      %5258 = vmatpush1.msra.mxu0 0.0
      %5259 = vmatprep.subr.mxu0 0.0
      %5260 = vmatpush1.msra.mxu0 0.0
      %5261 = vmatprep.subr.mxu0 0.0
      %5262 = vmatpush1.msra.mxu0 0.0
      %5263 = vmatprep.subr.mxu0 0.0
      %5264 = vmatpush1.msra.mxu0 0.0
      %5265 = vmatprep.subr.mxu0 0.0
      %5266 = vmatpush1.msra.mxu0 0.0
      %5267 = vmatprep.subr.mxu0 0.0
      %5268 = vmatpush1.msra.mxu0 0.0
      %v5269 = vand.u32 %v4948, 4294901760
      %5270 = vmatprep.subr.mxu0 %v5269
      %v5271 = vand.u32 %v4947, 4294901760
      %5272 = vmatpush1.msra.mxu0 %v5271
      %v5273 = vand.u32 %v4946, 4294901760
      %5274 = vmatprep.subr.mxu0 %v5273
      %v5275 = vand.u32 %v4945, 4294901760
      %5276 = vmatpush1.msra.mxu0 %v5275
      %v5277 = vand.u32 %v4944, 4294901760
      %5278 = vmatprep.subr.mxu0 %v5277
      %v5279 = vand.u32 %v4943, 4294901760
      %5280 = vmatpush1.msra.mxu0 %v5279
      %v5281 = vand.u32 %v4942, 4294901760
      %5282 = vmatprep.subr.mxu0 %v5281
      %v5283 = vand.u32 %v4941, 4294901760
      %5284 = vmatpush1.msra.mxu0 %v5283
      %5285 = vmatprep.subr.mxu0 0.0
      %5286 = vmatpush2.msra.mxu0 0.0
      %5287 = vmatprep.subr.mxu0 0.0
      %5288 = vmatpush2.msra.mxu0 0.0
      %5289 = vmatprep.subr.mxu0 0.0
      %5290 = vmatpush2.msra.mxu0 0.0
      %5291 = vmatprep.subr.mxu0 0.0
      %5292 = vmatpush2.msra.mxu0 0.0
      %5293 = vmatprep.subr.mxu0 0.0
      %5294 = vmatpush2.msra.mxu0 0.0
      %5295 = vmatprep.subr.mxu0 0.0
      %5296 = vmatpush2.msra.mxu0 0.0
      %5297 = vmatprep.subr.mxu0 0.0
      %5298 = vmatpush2.msra.mxu0 0.0
      %5299 = vmatprep.subr.mxu0 0.0
      %5300 = vmatpush2.msra.mxu0 0.0
      %5301 = vmatprep.subr.mxu0 0.0
      %5302 = vmatpush2.msra.mxu0 0.0
      %5303 = vmatprep.subr.mxu0 0.0
      %5304 = vmatpush2.msra.mxu0 0.0
      %5305 = vmatprep.subr.mxu0 0.0
      %5306 = vmatpush2.msra.mxu0 0.0
      %5307 = vmatprep.subr.mxu0 0.0
      %5308 = vmatpush2.msra.mxu0 0.0
      %5309 = vmatprep.subr.mxu0 0.0
      %5310 = vmatpush2.msra.mxu0 0.0
      %5311 = vmatprep.subr.mxu0 0.0
      %5312 = vmatpush2.msra.mxu0 0.0
      %5313 = vmatprep.subr.mxu0 0.0
      %5314 = vmatpush2.msra.mxu0 0.0
      %5315 = vmatprep.subr.mxu0 0.0
      %5316 = vmatpush2.msra.mxu0 0.0
      %5317 = vmatprep.mubr.f32.mxu0 0.0
      %v5318 = vand.u32 %v4958, 4294901760
      %v5319 = vsub.f32 %v4958, %v5318
      %v5320 = vand.u32 %v5319, 4294901760
      %5321 = vmatmul.mubr.f32.gmra.mxu0 %v5320
      %v5322 = vpop.f32.mrf.mxu0
      %v5323 = vadd.f32 %v5241, %v5322
      %v5324 = vpop.f32.mrf.mxu0
      %v5325 = vadd.f32 %v5243, %v5324
      %5326 = vdwg.mxu0
      %5327 = vmatprep.subr.mxu0 0.0
      %5328 = vmatpush1.msra.mxu0 0.0
      %5329 = vmatprep.subr.mxu0 0.0
      %5330 = vmatpush1.msra.mxu0 0.0
      %5331 = vmatprep.subr.mxu0 0.0
      %5332 = vmatpush1.msra.mxu0 0.0
      %5333 = vmatprep.subr.mxu0 0.0
      %5334 = vmatpush1.msra.mxu0 0.0
      %5335 = vmatprep.subr.mxu0 0.0
      %5336 = vmatpush1.msra.mxu0 0.0
      %5337 = vmatprep.subr.mxu0 0.0
      %5338 = vmatpush1.msra.mxu0 0.0
      %5339 = vmatprep.subr.mxu0 0.0
      %5340 = vmatpush1.msra.mxu0 0.0
      %5341 = vmatprep.subr.mxu0 0.0
      %5342 = vmatpush1.msra.mxu0 0.0
      %5343 = vmatprep.subr.mxu0 0.0
      %5344 = vmatpush1.msra.mxu0 0.0
      %5345 = vmatprep.subr.mxu0 0.0
      %5346 = vmatpush1.msra.mxu0 0.0
      %5347 = vmatprep.subr.mxu0 0.0
      %5348 = vmatpush1.msra.mxu0 0.0
      %5349 = vmatprep.subr.mxu0 0.0
      %5350 = vmatpush1.msra.mxu0 0.0
      %v5351 = vand.u32 %v4948, 4294901760
      %v5352 = vsub.f32 %v4948, %v5351
      %v5353 = vand.u32 %v5352, 4294901760
      %5354 = vmatprep.subr.mxu0 %v5353
      %v5355 = vand.u32 %v4947, 4294901760
      %v5356 = vsub.f32 %v4947, %v5355
      %v5357 = vand.u32 %v5356, 4294901760
      %5358 = vmatpush1.msra.mxu0 %v5357
      %v5359 = vand.u32 %v4946, 4294901760
      %v5360 = vsub.f32 %v4946, %v5359
      %v5361 = vand.u32 %v5360, 4294901760
      %5362 = vmatprep.subr.mxu0 %v5361
      %v5363 = vand.u32 %v4945, 4294901760
      %v5364 = vsub.f32 %v4945, %v5363
      %v5365 = vand.u32 %v5364, 4294901760
      %5366 = vmatpush1.msra.mxu0 %v5365
      %v5367 = vand.u32 %v4944, 4294901760
      %v5368 = vsub.f32 %v4944, %v5367
      %v5369 = vand.u32 %v5368, 4294901760
      %5370 = vmatprep.subr.mxu0 %v5369
      %v5371 = vand.u32 %v4943, 4294901760
      %v5372 = vsub.f32 %v4943, %v5371
      %v5373 = vand.u32 %v5372, 4294901760
      %5374 = vmatpush1.msra.mxu0 %v5373
      %v5375 = vand.u32 %v4942, 4294901760
      %v5376 = vsub.f32 %v4942, %v5375
      %v5377 = vand.u32 %v5376, 4294901760
      %5378 = vmatprep.subr.mxu0 %v5377
      %v5379 = vand.u32 %v4941, 4294901760
      %v5380 = vsub.f32 %v4941, %v5379
      %v5381 = vand.u32 %v5380, 4294901760
      %5382 = vmatpush1.msra.mxu0 %v5381
      %5383 = vmatprep.subr.mxu0 0.0
      %5384 = vmatpush2.msra.mxu0 0.0
      %5385 = vmatprep.subr.mxu0 0.0
      %5386 = vmatpush2.msra.mxu0 0.0
      %5387 = vmatprep.subr.mxu0 0.0
      %5388 = vmatpush2.msra.mxu0 0.0
      %5389 = vmatprep.subr.mxu0 0.0
      %5390 = vmatpush2.msra.mxu0 0.0
      %5391 = vmatprep.subr.mxu0 0.0
      %5392 = vmatpush2.msra.mxu0 0.0
      %5393 = vmatprep.subr.mxu0 0.0
      %5394 = vmatpush2.msra.mxu0 0.0
      %5395 = vmatprep.subr.mxu0 0.0
      %5396 = vmatpush2.msra.mxu0 0.0
      %5397 = vmatprep.subr.mxu0 0.0
      %5398 = vmatpush2.msra.mxu0 0.0
      %5399 = vmatprep.subr.mxu0 0.0
      %5400 = vmatpush2.msra.mxu0 0.0
      %5401 = vmatprep.subr.mxu0 0.0
      %5402 = vmatpush2.msra.mxu0 0.0
      %5403 = vmatprep.subr.mxu0 0.0
      %5404 = vmatpush2.msra.mxu0 0.0
      %5405 = vmatprep.subr.mxu0 0.0
      %5406 = vmatpush2.msra.mxu0 0.0
      %5407 = vmatprep.subr.mxu0 0.0
      %5408 = vmatpush2.msra.mxu0 0.0
      %5409 = vmatprep.subr.mxu0 0.0
      %5410 = vmatpush2.msra.mxu0 0.0
      %5411 = vmatprep.subr.mxu0 0.0
      %5412 = vmatpush2.msra.mxu0 0.0
      %5413 = vmatprep.subr.mxu0 0.0
      %5414 = vmatpush2.msra.mxu0 0.0
      %5415 = vmatprep.mubr.f32.mxu0 0.0
      %v5416 = vand.u32 %v4958, 4294901760
      %5417 = vmatmul.mubr.f32.gmra.mxu0 %v5416
      %v5418 = vpop.f32.mrf.mxu0
      %v5419 = vadd.f32 %v5323, %v5418
      %v5420 = vpop.f32.mrf.mxu0
      %v5421 = vadd.f32 %v5325, %v5420
      %5422 = vdwg.mxu0
      %5423 = vmatprep.subr.mxu0 0.0
      %5424 = vmatpush1.msra.mxu0 0.0
      %5425 = vmatprep.subr.mxu0 0.0
      %5426 = vmatpush1.msra.mxu0 0.0
      %5427 = vmatprep.subr.mxu0 0.0
      %5428 = vmatpush1.msra.mxu0 0.0
      %5429 = vmatprep.subr.mxu0 0.0
      %5430 = vmatpush1.msra.mxu0 0.0
      %5431 = vmatprep.subr.mxu0 0.0
      %5432 = vmatpush1.msra.mxu0 0.0
      %5433 = vmatprep.subr.mxu0 0.0
      %5434 = vmatpush1.msra.mxu0 0.0
      %5435 = vmatprep.subr.mxu0 0.0
      %5436 = vmatpush1.msra.mxu0 0.0
      %5437 = vmatprep.subr.mxu0 0.0
      %5438 = vmatpush1.msra.mxu0 0.0
      %5439 = vmatprep.subr.mxu0 0.0
      %5440 = vmatpush1.msra.mxu0 0.0
      %5441 = vmatprep.subr.mxu0 0.0
      %5442 = vmatpush1.msra.mxu0 0.0
      %5443 = vmatprep.subr.mxu0 0.0
      %5444 = vmatpush1.msra.mxu0 0.0
      %5445 = vmatprep.subr.mxu0 0.0
      %5446 = vmatpush1.msra.mxu0 0.0
      %v5447 = vand.u32 %v4948, 4294901760
      %5448 = vmatprep.subr.mxu0 %v5447
      %v5449 = vand.u32 %v4947, 4294901760
      %5450 = vmatpush1.msra.mxu0 %v5449
      %v5451 = vand.u32 %v4946, 4294901760
      %5452 = vmatprep.subr.mxu0 %v5451
      %v5453 = vand.u32 %v4945, 4294901760
      %5454 = vmatpush1.msra.mxu0 %v5453
      %v5455 = vand.u32 %v4944, 4294901760
      %5456 = vmatprep.subr.mxu0 %v5455
      %v5457 = vand.u32 %v4943, 4294901760
      %5458 = vmatpush1.msra.mxu0 %v5457
      %v5459 = vand.u32 %v4942, 4294901760
      %5460 = vmatprep.subr.mxu0 %v5459
      %v5461 = vand.u32 %v4941, 4294901760
      %5462 = vmatpush1.msra.mxu0 %v5461
      %5463 = vmatprep.subr.mxu0 0.0
      %5464 = vmatpush2.msra.mxu0 0.0
      %5465 = vmatprep.subr.mxu0 0.0
      %5466 = vmatpush2.msra.mxu0 0.0
      %5467 = vmatprep.subr.mxu0 0.0
      %5468 = vmatpush2.msra.mxu0 0.0
      %5469 = vmatprep.subr.mxu0 0.0
      %5470 = vmatpush2.msra.mxu0 0.0
      %5471 = vmatprep.subr.mxu0 0.0
      %5472 = vmatpush2.msra.mxu0 0.0
      %5473 = vmatprep.subr.mxu0 0.0
      %5474 = vmatpush2.msra.mxu0 0.0
      %5475 = vmatprep.subr.mxu0 0.0
      %5476 = vmatpush2.msra.mxu0 0.0
      %5477 = vmatprep.subr.mxu0 0.0
      %5478 = vmatpush2.msra.mxu0 0.0
      %5479 = vmatprep.subr.mxu0 0.0
      %5480 = vmatpush2.msra.mxu0 0.0
      %5481 = vmatprep.subr.mxu0 0.0
      %5482 = vmatpush2.msra.mxu0 0.0
      %5483 = vmatprep.subr.mxu0 0.0
      %5484 = vmatpush2.msra.mxu0 0.0
      %5485 = vmatprep.subr.mxu0 0.0
      %5486 = vmatpush2.msra.mxu0 0.0
      %5487 = vmatprep.subr.mxu0 0.0
      %5488 = vmatpush2.msra.mxu0 0.0
      %5489 = vmatprep.subr.mxu0 0.0
      %5490 = vmatpush2.msra.mxu0 0.0
      %5491 = vmatprep.subr.mxu0 0.0
      %5492 = vmatpush2.msra.mxu0 0.0
      %5493 = vmatprep.subr.mxu0 0.0
      %5494 = vmatpush2.msra.mxu0 0.0
      %5495 = vmatprep.mubr.f32.mxu0 0.0
      %v5496 = vand.u32 %v4958, 4294901760
      %5497 = vmatmul.mubr.f32.gmra.mxu0 %v5496
      %v5498 = vpop.f32.mrf.mxu0
      %v5499 = vadd.f32 %v5419, %v5498
      %v5500 = vpop.f32.mrf.mxu0
      %v5501 = vadd.f32 %v5421, %v5500
      %5502 = vdwg.mxu0
      %s5503 = scalar_lea.vmem %s2, 6
      %v5504 = vld [vmem:[%s5503] ss:$8 sm:$0x3]
      %v5506 = vlaneseq
      %v5507 = vshrl.u32 %v5506, 7
      %v5508 = vsub.s32 0, %v5507
      %v5509 = vrot.slane %v5504, %v5508
      %v5510 = vlaneseq
      %v5511 = vshrl.u32 %v5510, 7
      %v5512 = vsub.s32 1, %v5511
      %v5513 = vrot.slane %v5504, %v5512
      %v5516 = vmul.f32 %v5499, %v5509
      %v5517 = vmul.f32 %v5501, %v5513
      %v5518 = vadd.f32 %v4912, %v5516
      %v5519 = vadd.f32 %v4913, %v5517
      %s5520 = scalar_lea.vmem %s5, 28
      %v5521 = vld [vmem:[%s5520] sm:$0xf]
      %5522 = vrot.lane.b32.xlu0 %v4284, 112
      %v5523 = vpop.permute.xlu0 %5522
      %5524 = vrot.lane.b32.xlu0 %v4285, 112
      %v5525 = vpop.permute.xlu0 %5524
      %5526 = vrot.lane.b32.xlu0 %v4286, 112
      %v5527 = vpop.permute.xlu0 %5526
      %5528 = vrot.lane.b32.xlu0 %v4287, 112
      %v5529 = vpop.permute.xlu0 %5528
      %5530 = vrot.lane.b32.xlu0 %v4288, 112
      %v5531 = vpop.permute.xlu0 %5530
      %5532 = vrot.lane.b32.xlu0 %v4289, 112
      %v5533 = vpop.permute.xlu0 %5532
      %5534 = vrot.lane.b32.xlu0 %v4290, 112
      %v5535 = vpop.permute.xlu0 %5534
      %5536 = vrot.lane.b32.xlu0 %v4291, 112
      %v5537 = vpop.permute.xlu0 %5536
      %5538 = vrot.lane.b32.xlu0 %v4292, 112
      %v5539 = vpop.permute.xlu0 %5538
      %5540 = vrot.lane.b32.xlu0 %v4293, 112
      %v5541 = vpop.permute.xlu0 %5540
      %5542 = vrot.lane.b32.xlu0 %v4294, 112
      %v5543 = vpop.permute.xlu0 %5542
      %5544 = vrot.lane.b32.xlu0 %v4295, 112
      %v5545 = vpop.permute.xlu0 %5544
      %vm5546 = vcmask 916480
      %v5547 = vsel %vm5546, %v5523, %v5525
      %v5548 = vsel %vm5546, %v5525, %v5527
      %v5549 = vsel %vm5546, %v5529, %v5531
      %v5550 = vsel %vm5546, %v5531, %v5533
      %v5551 = vsel %vm5546, %v5535, %v5537
      %v5552 = vsel %vm5546, %v5537, %v5539
      %v5553 = vsel %vm5546, %v5541, %v5543
      %v5554 = vsel %vm5546, %v5543, %v5545
      %v5564 = vsel %vm1338, %v5521, 0
      %5566 = vmatprep.subr.mxu0 0.0
      %5567 = vmatpush1.msra.mxu0 0.0
      %5568 = vmatprep.subr.mxu0 0.0
      %5569 = vmatpush1.msra.mxu0 0.0
      %5570 = vmatprep.subr.mxu0 0.0
      %5571 = vmatpush1.msra.mxu0 0.0
      %5572 = vmatprep.subr.mxu0 0.0
      %5573 = vmatpush1.msra.mxu0 0.0
      %5574 = vmatprep.subr.mxu0 0.0
      %5575 = vmatpush1.msra.mxu0 0.0
      %5576 = vmatprep.subr.mxu0 0.0
      %5577 = vmatpush1.msra.mxu0 0.0
      %5578 = vmatprep.subr.mxu0 0.0
      %5579 = vmatpush1.msra.mxu0 0.0
      %5580 = vmatprep.subr.mxu0 0.0
      %5581 = vmatpush1.msra.mxu0 0.0
      %5582 = vmatprep.subr.mxu0 0.0
      %5583 = vmatpush1.msra.mxu0 0.0
      %5584 = vmatprep.subr.mxu0 0.0
      %5585 = vmatpush1.msra.mxu0 0.0
      %5586 = vmatprep.subr.mxu0 0.0
      %5587 = vmatpush1.msra.mxu0 0.0
      %5588 = vmatprep.subr.mxu0 0.0
      %5589 = vmatpush1.msra.mxu0 0.0
      %v5590 = vand.u32 %v5554, 4294901760
      %5591 = vmatprep.subr.mxu0 %v5590
      %v5592 = vand.u32 %v5553, 4294901760
      %5593 = vmatpush1.msra.mxu0 %v5592
      %v5594 = vand.u32 %v5552, 4294901760
      %5595 = vmatprep.subr.mxu0 %v5594
      %v5596 = vand.u32 %v5551, 4294901760
      %5597 = vmatpush1.msra.mxu0 %v5596
      %v5598 = vand.u32 %v5550, 4294901760
      %5599 = vmatprep.subr.mxu0 %v5598
      %v5600 = vand.u32 %v5549, 4294901760
      %5601 = vmatpush1.msra.mxu0 %v5600
      %v5602 = vand.u32 %v5548, 4294901760
      %5603 = vmatprep.subr.mxu0 %v5602
      %v5604 = vand.u32 %v5547, 4294901760
      %5605 = vmatpush1.msra.mxu0 %v5604
      %5606 = vmatprep.subr.mxu0 0.0
      %5607 = vmatpush2.msra.mxu0 0.0
      %5608 = vmatprep.subr.mxu0 0.0
      %5609 = vmatpush2.msra.mxu0 0.0
      %5610 = vmatprep.subr.mxu0 0.0
      %5611 = vmatpush2.msra.mxu0 0.0
      %5612 = vmatprep.subr.mxu0 0.0
      %5613 = vmatpush2.msra.mxu0 0.0
      %5614 = vmatprep.subr.mxu0 0.0
      %5615 = vmatpush2.msra.mxu0 0.0
      %5616 = vmatprep.subr.mxu0 0.0
      %5617 = vmatpush2.msra.mxu0 0.0
      %5618 = vmatprep.subr.mxu0 0.0
      %5619 = vmatpush2.msra.mxu0 0.0
      %5620 = vmatprep.subr.mxu0 0.0
      %5621 = vmatpush2.msra.mxu0 0.0
      %5622 = vmatprep.subr.mxu0 0.0
      %5623 = vmatpush2.msra.mxu0 0.0
      %5624 = vmatprep.subr.mxu0 0.0
      %5625 = vmatpush2.msra.mxu0 0.0
      %5626 = vmatprep.subr.mxu0 0.0
      %5627 = vmatpush2.msra.mxu0 0.0
      %5628 = vmatprep.subr.mxu0 0.0
      %5629 = vmatpush2.msra.mxu0 0.0
      %5630 = vmatprep.subr.mxu0 0.0
      %5631 = vmatpush2.msra.mxu0 0.0
      %5632 = vmatprep.subr.mxu0 0.0
      %5633 = vmatpush2.msra.mxu0 0.0
      %5634 = vmatprep.subr.mxu0 0.0
      %5635 = vmatpush2.msra.mxu0 0.0
      %5636 = vmatprep.subr.mxu0 0.0
      %5637 = vmatpush2.msra.mxu0 0.0
      %5638 = vmatprep.mubr.f32.mxu0 0.0
      %v5639 = vand.u32 %v5564, 4294901760
      %v5640 = vsub.f32 %v5564, %v5639
      %v5641 = vand.u32 %v5640, 4294901760
      %v5642 = vsub.f32 %v5640, %v5641
      %v5643 = vand.u32 %v5642, 4294901760
      %5644 = vmatmul.mubr.f32.gmra.mxu0 %v5643
      %v5645 = vpop.f32.mrf.mxu0
      %v5646 = vadd.f32 0.0, %v5645
      %v5647 = vpop.f32.mrf.mxu0
      %v5648 = vadd.f32 0.0, %v5647
      %5649 = vdwg.mxu0
      %5650 = vmatprep.subr.mxu0 0.0
      %5651 = vmatpush1.msra.mxu0 0.0
      %5652 = vmatprep.subr.mxu0 0.0
      %5653 = vmatpush1.msra.mxu0 0.0
      %5654 = vmatprep.subr.mxu0 0.0
      %5655 = vmatpush1.msra.mxu0 0.0
      %5656 = vmatprep.subr.mxu0 0.0
      %5657 = vmatpush1.msra.mxu0 0.0
      %5658 = vmatprep.subr.mxu0 0.0
      %5659 = vmatpush1.msra.mxu0 0.0
      %5660 = vmatprep.subr.mxu0 0.0
      %5661 = vmatpush1.msra.mxu0 0.0
      %5662 = vmatprep.subr.mxu0 0.0
      %5663 = vmatpush1.msra.mxu0 0.0
      %5664 = vmatprep.subr.mxu0 0.0
      %5665 = vmatpush1.msra.mxu0 0.0
      %5666 = vmatprep.subr.mxu0 0.0
      %5667 = vmatpush1.msra.mxu0 0.0
      %5668 = vmatprep.subr.mxu0 0.0
      %5669 = vmatpush1.msra.mxu0 0.0
      %5670 = vmatprep.subr.mxu0 0.0
      %5671 = vmatpush1.msra.mxu0 0.0
      %5672 = vmatprep.subr.mxu0 0.0
      %5673 = vmatpush1.msra.mxu0 0.0
      %v5674 = vand.u32 %v5554, 4294901760
      %v5675 = vsub.f32 %v5554, %v5674
      %v5676 = vand.u32 %v5675, 4294901760
      %v5677 = vsub.f32 %v5675, %v5676
      %v5678 = vand.u32 %v5677, 4294901760
      %5679 = vmatprep.subr.mxu0 %v5678
      %v5680 = vand.u32 %v5553, 4294901760
      %v5681 = vsub.f32 %v5553, %v5680
      %v5682 = vand.u32 %v5681, 4294901760
      %v5683 = vsub.f32 %v5681, %v5682
      %v5684 = vand.u32 %v5683, 4294901760
      %5685 = vmatpush1.msra.mxu0 %v5684
      %v5686 = vand.u32 %v5552, 4294901760
      %v5687 = vsub.f32 %v5552, %v5686
      %v5688 = vand.u32 %v5687, 4294901760
      %v5689 = vsub.f32 %v5687, %v5688
      %v5690 = vand.u32 %v5689, 4294901760
      %5691 = vmatprep.subr.mxu0 %v5690
      %v5692 = vand.u32 %v5551, 4294901760
      %v5693 = vsub.f32 %v5551, %v5692
      %v5694 = vand.u32 %v5693, 4294901760
      %v5695 = vsub.f32 %v5693, %v5694
      %v5696 = vand.u32 %v5695, 4294901760
      %5697 = vmatpush1.msra.mxu0 %v5696
      %v5698 = vand.u32 %v5550, 4294901760
      %v5699 = vsub.f32 %v5550, %v5698
      %v5700 = vand.u32 %v5699, 4294901760
      %v5701 = vsub.f32 %v5699, %v5700
      %v5702 = vand.u32 %v5701, 4294901760
      %5703 = vmatprep.subr.mxu0 %v5702
      %v5704 = vand.u32 %v5549, 4294901760
      %v5705 = vsub.f32 %v5549, %v5704
      %v5706 = vand.u32 %v5705, 4294901760
      %v5707 = vsub.f32 %v5705, %v5706
      %v5708 = vand.u32 %v5707, 4294901760
      %5709 = vmatpush1.msra.mxu0 %v5708
      %v5710 = vand.u32 %v5548, 4294901760
      %v5711 = vsub.f32 %v5548, %v5710
      %v5712 = vand.u32 %v5711, 4294901760
      %v5713 = vsub.f32 %v5711, %v5712
      %v5714 = vand.u32 %v5713, 4294901760
      %5715 = vmatprep.subr.mxu0 %v5714
      %v5716 = vand.u32 %v5547, 4294901760
      %v5717 = vsub.f32 %v5547, %v5716
      %v5718 = vand.u32 %v5717, 4294901760
      %v5719 = vsub.f32 %v5717, %v5718
      %v5720 = vand.u32 %v5719, 4294901760
      %5721 = vmatpush1.msra.mxu0 %v5720
      %5722 = vmatprep.subr.mxu0 0.0
      %5723 = vmatpush2.msra.mxu0 0.0
      %5724 = vmatprep.subr.mxu0 0.0
      %5725 = vmatpush2.msra.mxu0 0.0
      %5726 = vmatprep.subr.mxu0 0.0
      %5727 = vmatpush2.msra.mxu0 0.0
      %5728 = vmatprep.subr.mxu0 0.0
      %5729 = vmatpush2.msra.mxu0 0.0
      %5730 = vmatprep.subr.mxu0 0.0
      %5731 = vmatpush2.msra.mxu0 0.0
      %5732 = vmatprep.subr.mxu0 0.0
      %5733 = vmatpush2.msra.mxu0 0.0
      %5734 = vmatprep.subr.mxu0 0.0
      %5735 = vmatpush2.msra.mxu0 0.0
      %5736 = vmatprep.subr.mxu0 0.0
      %5737 = vmatpush2.msra.mxu0 0.0
      %5738 = vmatprep.subr.mxu0 0.0
      %5739 = vmatpush2.msra.mxu0 0.0
      %5740 = vmatprep.subr.mxu0 0.0
      %5741 = vmatpush2.msra.mxu0 0.0
      %5742 = vmatprep.subr.mxu0 0.0
      %5743 = vmatpush2.msra.mxu0 0.0
      %5744 = vmatprep.subr.mxu0 0.0
      %5745 = vmatpush2.msra.mxu0 0.0
      %5746 = vmatprep.subr.mxu0 0.0
      %5747 = vmatpush2.msra.mxu0 0.0
      %5748 = vmatprep.subr.mxu0 0.0
      %5749 = vmatpush2.msra.mxu0 0.0
      %5750 = vmatprep.subr.mxu0 0.0
      %5751 = vmatpush2.msra.mxu0 0.0
      %5752 = vmatprep.subr.mxu0 0.0
      %5753 = vmatpush2.msra.mxu0 0.0
      %5754 = vmatprep.mubr.f32.mxu0 0.0
      %v5755 = vand.u32 %v5564, 4294901760
      %5756 = vmatmul.mubr.f32.gmra.mxu0 %v5755
      %v5757 = vpop.f32.mrf.mxu0
      %v5758 = vadd.f32 %v5646, %v5757
      %v5759 = vpop.f32.mrf.mxu0
      %v5760 = vadd.f32 %v5648, %v5759
      %5761 = vdwg.mxu0
      %5762 = vmatprep.subr.mxu0 0.0
      %5763 = vmatpush1.msra.mxu0 0.0
      %5764 = vmatprep.subr.mxu0 0.0
      %5765 = vmatpush1.msra.mxu0 0.0
      %5766 = vmatprep.subr.mxu0 0.0
      %5767 = vmatpush1.msra.mxu0 0.0
      %5768 = vmatprep.subr.mxu0 0.0
      %5769 = vmatpush1.msra.mxu0 0.0
      %5770 = vmatprep.subr.mxu0 0.0
      %5771 = vmatpush1.msra.mxu0 0.0
      %5772 = vmatprep.subr.mxu0 0.0
      %5773 = vmatpush1.msra.mxu0 0.0
      %5774 = vmatprep.subr.mxu0 0.0
      %5775 = vmatpush1.msra.mxu0 0.0
      %5776 = vmatprep.subr.mxu0 0.0
      %5777 = vmatpush1.msra.mxu0 0.0
      %5778 = vmatprep.subr.mxu0 0.0
      %5779 = vmatpush1.msra.mxu0 0.0
      %5780 = vmatprep.subr.mxu0 0.0
      %5781 = vmatpush1.msra.mxu0 0.0
      %5782 = vmatprep.subr.mxu0 0.0
      %5783 = vmatpush1.msra.mxu0 0.0
      %5784 = vmatprep.subr.mxu0 0.0
      %5785 = vmatpush1.msra.mxu0 0.0
      %v5786 = vand.u32 %v5554, 4294901760
      %v5787 = vsub.f32 %v5554, %v5786
      %5788 = vmatprep.subr.mxu0 %v5787
      %v5789 = vand.u32 %v5553, 4294901760
      %v5790 = vsub.f32 %v5553, %v5789
      %5791 = vmatpush1.msra.mxu0 %v5790
      %v5792 = vand.u32 %v5552, 4294901760
      %v5793 = vsub.f32 %v5552, %v5792
      %5794 = vmatprep.subr.mxu0 %v5793
      %v5795 = vand.u32 %v5551, 4294901760
      %v5796 = vsub.f32 %v5551, %v5795
      %5797 = vmatpush1.msra.mxu0 %v5796
      %v5798 = vand.u32 %v5550, 4294901760
      %v5799 = vsub.f32 %v5550, %v5798
      %5800 = vmatprep.subr.mxu0 %v5799
      %v5801 = vand.u32 %v5549, 4294901760
      %v5802 = vsub.f32 %v5549, %v5801
      %5803 = vmatpush1.msra.mxu0 %v5802
      %v5804 = vand.u32 %v5548, 4294901760
      %v5805 = vsub.f32 %v5548, %v5804
      %5806 = vmatprep.subr.mxu0 %v5805
      %v5807 = vand.u32 %v5547, 4294901760
      %v5808 = vsub.f32 %v5547, %v5807
      %5809 = vmatpush1.msra.mxu0 %v5808
      %5810 = vmatprep.subr.mxu0 0.0
      %5811 = vmatpush2.msra.mxu0 0.0
      %5812 = vmatprep.subr.mxu0 0.0
      %5813 = vmatpush2.msra.mxu0 0.0
      %5814 = vmatprep.subr.mxu0 0.0
      %5815 = vmatpush2.msra.mxu0 0.0
      %5816 = vmatprep.subr.mxu0 0.0
      %5817 = vmatpush2.msra.mxu0 0.0
      %5818 = vmatprep.subr.mxu0 0.0
      %5819 = vmatpush2.msra.mxu0 0.0
      %5820 = vmatprep.subr.mxu0 0.0
      %5821 = vmatpush2.msra.mxu0 0.0
      %5822 = vmatprep.subr.mxu0 0.0
      %5823 = vmatpush2.msra.mxu0 0.0
      %5824 = vmatprep.subr.mxu0 0.0
      %5825 = vmatpush2.msra.mxu0 0.0
      %5826 = vmatprep.subr.mxu0 0.0
      %5827 = vmatpush2.msra.mxu0 0.0
      %5828 = vmatprep.subr.mxu0 0.0
      %5829 = vmatpush2.msra.mxu0 0.0
      %5830 = vmatprep.subr.mxu0 0.0
      %5831 = vmatpush2.msra.mxu0 0.0
      %5832 = vmatprep.subr.mxu0 0.0
      %5833 = vmatpush2.msra.mxu0 0.0
      %5834 = vmatprep.subr.mxu0 0.0
      %5835 = vmatpush2.msra.mxu0 0.0
      %5836 = vmatprep.subr.mxu0 0.0
      %5837 = vmatpush2.msra.mxu0 0.0
      %5838 = vmatprep.subr.mxu0 0.0
      %5839 = vmatpush2.msra.mxu0 0.0
      %5840 = vmatprep.subr.mxu0 0.0
      %5841 = vmatpush2.msra.mxu0 0.0
      %5842 = vmatprep.mubr.f32.mxu0 0.0
      %v5843 = vand.u32 %v5564, 4294901760
      %v5844 = vsub.f32 %v5564, %v5843
      %5845 = vmatmul.mubr.f32.gmra.mxu0 %v5844
      %v5846 = vpop.f32.mrf.mxu0
      %v5847 = vadd.f32 %v5758, %v5846
      %v5848 = vpop.f32.mrf.mxu0
      %v5849 = vadd.f32 %v5760, %v5848
      %5850 = vdwg.mxu0
      %5851 = vmatprep.subr.mxu0 0.0
      %5852 = vmatpush1.msra.mxu0 0.0
      %5853 = vmatprep.subr.mxu0 0.0
      %5854 = vmatpush1.msra.mxu0 0.0
      %5855 = vmatprep.subr.mxu0 0.0
      %5856 = vmatpush1.msra.mxu0 0.0
      %5857 = vmatprep.subr.mxu0 0.0
      %5858 = vmatpush1.msra.mxu0 0.0
      %5859 = vmatprep.subr.mxu0 0.0
      %5860 = vmatpush1.msra.mxu0 0.0
      %5861 = vmatprep.subr.mxu0 0.0
      %5862 = vmatpush1.msra.mxu0 0.0
      %5863 = vmatprep.subr.mxu0 0.0
      %5864 = vmatpush1.msra.mxu0 0.0
      %5865 = vmatprep.subr.mxu0 0.0
      %5866 = vmatpush1.msra.mxu0 0.0
      %5867 = vmatprep.subr.mxu0 0.0
      %5868 = vmatpush1.msra.mxu0 0.0
      %5869 = vmatprep.subr.mxu0 0.0
      %5870 = vmatpush1.msra.mxu0 0.0
      %5871 = vmatprep.subr.mxu0 0.0
      %5872 = vmatpush1.msra.mxu0 0.0
      %5873 = vmatprep.subr.mxu0 0.0
      %5874 = vmatpush1.msra.mxu0 0.0
      %v5875 = vand.u32 %v5554, 4294901760
      %5876 = vmatprep.subr.mxu0 %v5875
      %v5877 = vand.u32 %v5553, 4294901760
      %5878 = vmatpush1.msra.mxu0 %v5877
      %v5879 = vand.u32 %v5552, 4294901760
      %5880 = vmatprep.subr.mxu0 %v5879
      %v5881 = vand.u32 %v5551, 4294901760
      %5882 = vmatpush1.msra.mxu0 %v5881
      %v5883 = vand.u32 %v5550, 4294901760
      %5884 = vmatprep.subr.mxu0 %v5883
      %v5885 = vand.u32 %v5549, 4294901760
      %5886 = vmatpush1.msra.mxu0 %v5885
      %v5887 = vand.u32 %v5548, 4294901760
      %5888 = vmatprep.subr.mxu0 %v5887
      %v5889 = vand.u32 %v5547, 4294901760
      %5890 = vmatpush1.msra.mxu0 %v5889
      %5891 = vmatprep.subr.mxu0 0.0
      %5892 = vmatpush2.msra.mxu0 0.0
      %5893 = vmatprep.subr.mxu0 0.0
      %5894 = vmatpush2.msra.mxu0 0.0
      %5895 = vmatprep.subr.mxu0 0.0
      %5896 = vmatpush2.msra.mxu0 0.0
      %5897 = vmatprep.subr.mxu0 0.0
      %5898 = vmatpush2.msra.mxu0 0.0
      %5899 = vmatprep.subr.mxu0 0.0
      %5900 = vmatpush2.msra.mxu0 0.0
      %5901 = vmatprep.subr.mxu0 0.0
      %5902 = vmatpush2.msra.mxu0 0.0
      %5903 = vmatprep.subr.mxu0 0.0
      %5904 = vmatpush2.msra.mxu0 0.0
      %5905 = vmatprep.subr.mxu0 0.0
      %5906 = vmatpush2.msra.mxu0 0.0
      %5907 = vmatprep.subr.mxu0 0.0
      %5908 = vmatpush2.msra.mxu0 0.0
      %5909 = vmatprep.subr.mxu0 0.0
      %5910 = vmatpush2.msra.mxu0 0.0
      %5911 = vmatprep.subr.mxu0 0.0
      %5912 = vmatpush2.msra.mxu0 0.0
      %5913 = vmatprep.subr.mxu0 0.0
      %5914 = vmatpush2.msra.mxu0 0.0
      %5915 = vmatprep.subr.mxu0 0.0
      %5916 = vmatpush2.msra.mxu0 0.0
      %5917 = vmatprep.subr.mxu0 0.0
      %5918 = vmatpush2.msra.mxu0 0.0
      %5919 = vmatprep.subr.mxu0 0.0
      %5920 = vmatpush2.msra.mxu0 0.0
      %5921 = vmatprep.subr.mxu0 0.0
      %5922 = vmatpush2.msra.mxu0 0.0
      %5923 = vmatprep.mubr.f32.mxu0 0.0
      %v5924 = vand.u32 %v5564, 4294901760
      %v5925 = vsub.f32 %v5564, %v5924
      %v5926 = vand.u32 %v5925, 4294901760
      %5927 = vmatmul.mubr.f32.gmra.mxu0 %v5926
      %v5928 = vpop.f32.mrf.mxu0
      %v5929 = vadd.f32 %v5847, %v5928
      %v5930 = vpop.f32.mrf.mxu0
      %v5931 = vadd.f32 %v5849, %v5930
      %5932 = vdwg.mxu0
      %5933 = vmatprep.subr.mxu0 0.0
      %5934 = vmatpush1.msra.mxu0 0.0
      %5935 = vmatprep.subr.mxu0 0.0
      %5936 = vmatpush1.msra.mxu0 0.0
      %5937 = vmatprep.subr.mxu0 0.0
      %5938 = vmatpush1.msra.mxu0 0.0
      %5939 = vmatprep.subr.mxu0 0.0
      %5940 = vmatpush1.msra.mxu0 0.0
      %5941 = vmatprep.subr.mxu0 0.0
      %5942 = vmatpush1.msra.mxu0 0.0
      %5943 = vmatprep.subr.mxu0 0.0
      %5944 = vmatpush1.msra.mxu0 0.0
      %5945 = vmatprep.subr.mxu0 0.0
      %5946 = vmatpush1.msra.mxu0 0.0
      %5947 = vmatprep.subr.mxu0 0.0
      %5948 = vmatpush1.msra.mxu0 0.0
      %5949 = vmatprep.subr.mxu0 0.0
      %5950 = vmatpush1.msra.mxu0 0.0
      %5951 = vmatprep.subr.mxu0 0.0
      %5952 = vmatpush1.msra.mxu0 0.0
      %5953 = vmatprep.subr.mxu0 0.0
      %5954 = vmatpush1.msra.mxu0 0.0
      %5955 = vmatprep.subr.mxu0 0.0
      %5956 = vmatpush1.msra.mxu0 0.0
      %v5957 = vand.u32 %v5554, 4294901760
      %v5958 = vsub.f32 %v5554, %v5957
      %v5959 = vand.u32 %v5958, 4294901760
      %5960 = vmatprep.subr.mxu0 %v5959
      %v5961 = vand.u32 %v5553, 4294901760
      %v5962 = vsub.f32 %v5553, %v5961
      %v5963 = vand.u32 %v5962, 4294901760
      %5964 = vmatpush1.msra.mxu0 %v5963
      %v5965 = vand.u32 %v5552, 4294901760
      %v5966 = vsub.f32 %v5552, %v5965
      %v5967 = vand.u32 %v5966, 4294901760
      %5968 = vmatprep.subr.mxu0 %v5967
      %v5969 = vand.u32 %v5551, 4294901760
      %v5970 = vsub.f32 %v5551, %v5969
      %v5971 = vand.u32 %v5970, 4294901760
      %5972 = vmatpush1.msra.mxu0 %v5971
      %v5973 = vand.u32 %v5550, 4294901760
      %v5974 = vsub.f32 %v5550, %v5973
      %v5975 = vand.u32 %v5974, 4294901760
      %5976 = vmatprep.subr.mxu0 %v5975
      %v5977 = vand.u32 %v5549, 4294901760
      %v5978 = vsub.f32 %v5549, %v5977
      %v5979 = vand.u32 %v5978, 4294901760
      %5980 = vmatpush1.msra.mxu0 %v5979
      %v5981 = vand.u32 %v5548, 4294901760
      %v5982 = vsub.f32 %v5548, %v5981
      %v5983 = vand.u32 %v5982, 4294901760
      %5984 = vmatprep.subr.mxu0 %v5983
      %v5985 = vand.u32 %v5547, 4294901760
      %v5986 = vsub.f32 %v5547, %v5985
      %v5987 = vand.u32 %v5986, 4294901760
      %5988 = vmatpush1.msra.mxu0 %v5987
      %5989 = vmatprep.subr.mxu0 0.0
      %5990 = vmatpush2.msra.mxu0 0.0
      %5991 = vmatprep.subr.mxu0 0.0
      %5992 = vmatpush2.msra.mxu0 0.0
      %5993 = vmatprep.subr.mxu0 0.0
      %5994 = vmatpush2.msra.mxu0 0.0
      %5995 = vmatprep.subr.mxu0 0.0
      %5996 = vmatpush2.msra.mxu0 0.0
      %5997 = vmatprep.subr.mxu0 0.0
      %5998 = vmatpush2.msra.mxu0 0.0
      %5999 = vmatprep.subr.mxu0 0.0
      %6000 = vmatpush2.msra.mxu0 0.0
      %6001 = vmatprep.subr.mxu0 0.0
      %6002 = vmatpush2.msra.mxu0 0.0
      %6003 = vmatprep.subr.mxu0 0.0
      %6004 = vmatpush2.msra.mxu0 0.0
      %6005 = vmatprep.subr.mxu0 0.0
      %6006 = vmatpush2.msra.mxu0 0.0
      %6007 = vmatprep.subr.mxu0 0.0
      %6008 = vmatpush2.msra.mxu0 0.0
      %6009 = vmatprep.subr.mxu0 0.0
      %6010 = vmatpush2.msra.mxu0 0.0
      %6011 = vmatprep.subr.mxu0 0.0
      %6012 = vmatpush2.msra.mxu0 0.0
      %6013 = vmatprep.subr.mxu0 0.0
      %6014 = vmatpush2.msra.mxu0 0.0
      %6015 = vmatprep.subr.mxu0 0.0
      %6016 = vmatpush2.msra.mxu0 0.0
      %6017 = vmatprep.subr.mxu0 0.0
      %6018 = vmatpush2.msra.mxu0 0.0
      %6019 = vmatprep.subr.mxu0 0.0
      %6020 = vmatpush2.msra.mxu0 0.0
      %6021 = vmatprep.mubr.f32.mxu0 0.0
      %v6022 = vand.u32 %v5564, 4294901760
      %6023 = vmatmul.mubr.f32.gmra.mxu0 %v6022
      %v6024 = vpop.f32.mrf.mxu0
      %v6025 = vadd.f32 %v5929, %v6024
      %v6026 = vpop.f32.mrf.mxu0
      %v6027 = vadd.f32 %v5931, %v6026
      %6028 = vdwg.mxu0
      %6029 = vmatprep.subr.mxu0 0.0
      %6030 = vmatpush1.msra.mxu0 0.0
      %6031 = vmatprep.subr.mxu0 0.0
      %6032 = vmatpush1.msra.mxu0 0.0
      %6033 = vmatprep.subr.mxu0 0.0
      %6034 = vmatpush1.msra.mxu0 0.0
      %6035 = vmatprep.subr.mxu0 0.0
      %6036 = vmatpush1.msra.mxu0 0.0
      %6037 = vmatprep.subr.mxu0 0.0
      %6038 = vmatpush1.msra.mxu0 0.0
      %6039 = vmatprep.subr.mxu0 0.0
      %6040 = vmatpush1.msra.mxu0 0.0
      %6041 = vmatprep.subr.mxu0 0.0
      %6042 = vmatpush1.msra.mxu0 0.0
      %6043 = vmatprep.subr.mxu0 0.0
      %6044 = vmatpush1.msra.mxu0 0.0
      %6045 = vmatprep.subr.mxu0 0.0
      %6046 = vmatpush1.msra.mxu0 0.0
      %6047 = vmatprep.subr.mxu0 0.0
      %6048 = vmatpush1.msra.mxu0 0.0
      %6049 = vmatprep.subr.mxu0 0.0
      %6050 = vmatpush1.msra.mxu0 0.0
      %6051 = vmatprep.subr.mxu0 0.0
      %6052 = vmatpush1.msra.mxu0 0.0
      %v6053 = vand.u32 %v5554, 4294901760
      %6054 = vmatprep.subr.mxu0 %v6053
      %v6055 = vand.u32 %v5553, 4294901760
      %6056 = vmatpush1.msra.mxu0 %v6055
      %v6057 = vand.u32 %v5552, 4294901760
      %6058 = vmatprep.subr.mxu0 %v6057
      %v6059 = vand.u32 %v5551, 4294901760
      %6060 = vmatpush1.msra.mxu0 %v6059
      %v6061 = vand.u32 %v5550, 4294901760
      %6062 = vmatprep.subr.mxu0 %v6061
      %v6063 = vand.u32 %v5549, 4294901760
      %6064 = vmatpush1.msra.mxu0 %v6063
      %v6065 = vand.u32 %v5548, 4294901760
      %6066 = vmatprep.subr.mxu0 %v6065
      %v6067 = vand.u32 %v5547, 4294901760
      %6068 = vmatpush1.msra.mxu0 %v6067
      %6069 = vmatprep.subr.mxu0 0.0
      %6070 = vmatpush2.msra.mxu0 0.0
      %6071 = vmatprep.subr.mxu0 0.0
      %6072 = vmatpush2.msra.mxu0 0.0
      %6073 = vmatprep.subr.mxu0 0.0
      %6074 = vmatpush2.msra.mxu0 0.0
      %6075 = vmatprep.subr.mxu0 0.0
      %6076 = vmatpush2.msra.mxu0 0.0
      %6077 = vmatprep.subr.mxu0 0.0
      %6078 = vmatpush2.msra.mxu0 0.0
      %6079 = vmatprep.subr.mxu0 0.0
      %6080 = vmatpush2.msra.mxu0 0.0
      %6081 = vmatprep.subr.mxu0 0.0
      %6082 = vmatpush2.msra.mxu0 0.0
      %6083 = vmatprep.subr.mxu0 0.0
      %6084 = vmatpush2.msra.mxu0 0.0
      %6085 = vmatprep.subr.mxu0 0.0
      %6086 = vmatpush2.msra.mxu0 0.0
      %6087 = vmatprep.subr.mxu0 0.0
      %6088 = vmatpush2.msra.mxu0 0.0
      %6089 = vmatprep.subr.mxu0 0.0
      %6090 = vmatpush2.msra.mxu0 0.0
      %6091 = vmatprep.subr.mxu0 0.0
      %6092 = vmatpush2.msra.mxu0 0.0
      %6093 = vmatprep.subr.mxu0 0.0
      %6094 = vmatpush2.msra.mxu0 0.0
      %6095 = vmatprep.subr.mxu0 0.0
      %6096 = vmatpush2.msra.mxu0 0.0
      %6097 = vmatprep.subr.mxu0 0.0
      %6098 = vmatpush2.msra.mxu0 0.0
      %6099 = vmatprep.subr.mxu0 0.0
      %6100 = vmatpush2.msra.mxu0 0.0
      %6101 = vmatprep.mubr.f32.mxu0 0.0
      %v6102 = vand.u32 %v5564, 4294901760
      %6103 = vmatmul.mubr.f32.gmra.mxu0 %v6102
      %v6104 = vpop.f32.mrf.mxu0
      %v6105 = vadd.f32 %v6025, %v6104
      %v6106 = vpop.f32.mrf.mxu0
      %v6107 = vadd.f32 %v6027, %v6106
      %6108 = vdwg.mxu0
      %s6109 = scalar_lea.vmem %s2, 7
      %v6110 = vld [vmem:[%s6109] ss:$8 sm:$0x3]
      %v6112 = vlaneseq
      %v6113 = vshrl.u32 %v6112, 7
      %v6114 = vsub.s32 0, %v6113
      %v6115 = vrot.slane %v6110, %v6114
      %v6116 = vlaneseq
      %v6117 = vshrl.u32 %v6116, 7
      %v6118 = vsub.s32 1, %v6117
      %v6119 = vrot.slane %v6110, %v6118
      %v6122 = vmul.f32 %v6105, %v6115
      %v6123 = vmul.f32 %v6107, %v6119
      %v6124 = vadd.f32 %v5518, %v6122
      %v6125 = vadd.f32 %v5519, %v6123
      %s6126 = scalar_lea.vmem %s5, 32
      %v6127 = vld [vmem:[%s6126] sm:$0xf]
      %6128 = vrot.lane.b32.xlu0 %v4284, 111
      %v6129 = vpop.permute.xlu0 %6128
      %6130 = vrot.lane.b32.xlu0 %v4285, 111
      %v6131 = vpop.permute.xlu0 %6130
      %6132 = vrot.lane.b32.xlu0 %v4286, 111
      %v6133 = vpop.permute.xlu0 %6132
      %6134 = vrot.lane.b32.xlu0 %v4287, 111
      %v6135 = vpop.permute.xlu0 %6134
      %6136 = vrot.lane.b32.xlu0 %v4288, 111
      %v6137 = vpop.permute.xlu0 %6136
      %6138 = vrot.lane.b32.xlu0 %v4289, 111
      %v6139 = vpop.permute.xlu0 %6138
      %6140 = vrot.lane.b32.xlu0 %v4290, 111
      %v6141 = vpop.permute.xlu0 %6140
      %6142 = vrot.lane.b32.xlu0 %v4291, 111
      %v6143 = vpop.permute.xlu0 %6142
      %6144 = vrot.lane.b32.xlu0 %v4292, 111
      %v6145 = vpop.permute.xlu0 %6144
      %6146 = vrot.lane.b32.xlu0 %v4293, 111
      %v6147 = vpop.permute.xlu0 %6146
      %6148 = vrot.lane.b32.xlu0 %v4294, 111
      %v6149 = vpop.permute.xlu0 %6148
      %6150 = vrot.lane.b32.xlu0 %v4295, 111
      %v6151 = vpop.permute.xlu0 %6150
      %vm6152 = vcmask 908288
      %v6153 = vsel %vm6152, %v6129, %v6131
      %v6154 = vsel %vm6152, %v6131, %v6133
      %v6155 = vsel %vm6152, %v6135, %v6137
      %v6156 = vsel %vm6152, %v6137, %v6139
      %v6157 = vsel %vm6152, %v6141, %v6143
      %v6158 = vsel %vm6152, %v6143, %v6145
      %v6159 = vsel %vm6152, %v6147, %v6149
      %v6160 = vsel %vm6152, %v6149, %v6151
      %v6170 = vsel %vm1338, %v6127, 0
      %6172 = vmatprep.subr.mxu0 0.0
      %6173 = vmatpush1.msra.mxu0 0.0
      %6174 = vmatprep.subr.mxu0 0.0
      %6175 = vmatpush1.msra.mxu0 0.0
      %6176 = vmatprep.subr.mxu0 0.0
      %6177 = vmatpush1.msra.mxu0 0.0
      %6178 = vmatprep.subr.mxu0 0.0
      %6179 = vmatpush1.msra.mxu0 0.0
      %6180 = vmatprep.subr.mxu0 0.0
      %6181 = vmatpush1.msra.mxu0 0.0
      %6182 = vmatprep.subr.mxu0 0.0
      %6183 = vmatpush1.msra.mxu0 0.0
      %6184 = vmatprep.subr.mxu0 0.0
      %6185 = vmatpush1.msra.mxu0 0.0
      %6186 = vmatprep.subr.mxu0 0.0
      %6187 = vmatpush1.msra.mxu0 0.0
      %6188 = vmatprep.subr.mxu0 0.0
      %6189 = vmatpush1.msra.mxu0 0.0
      %6190 = vmatprep.subr.mxu0 0.0
      %6191 = vmatpush1.msra.mxu0 0.0
      %6192 = vmatprep.subr.mxu0 0.0
      %6193 = vmatpush1.msra.mxu0 0.0
      %6194 = vmatprep.subr.mxu0 0.0
      %6195 = vmatpush1.msra.mxu0 0.0
      %v6196 = vand.u32 %v6160, 4294901760
      %6197 = vmatprep.subr.mxu0 %v6196
      %v6198 = vand.u32 %v6159, 4294901760
      %6199 = vmatpush1.msra.mxu0 %v6198
      %v6200 = vand.u32 %v6158, 4294901760
      %6201 = vmatprep.subr.mxu0 %v6200
      %v6202 = vand.u32 %v6157, 4294901760
      %6203 = vmatpush1.msra.mxu0 %v6202
      %v6204 = vand.u32 %v6156, 4294901760
      %6205 = vmatprep.subr.mxu0 %v6204
      %v6206 = vand.u32 %v6155, 4294901760
      %6207 = vmatpush1.msra.mxu0 %v6206
      %v6208 = vand.u32 %v6154, 4294901760
      %6209 = vmatprep.subr.mxu0 %v6208
      %v6210 = vand.u32 %v6153, 4294901760
      %6211 = vmatpush1.msra.mxu0 %v6210
      %6212 = vmatprep.subr.mxu0 0.0
      %6213 = vmatpush2.msra.mxu0 0.0
      %6214 = vmatprep.subr.mxu0 0.0
      %6215 = vmatpush2.msra.mxu0 0.0
      %6216 = vmatprep.subr.mxu0 0.0
      %6217 = vmatpush2.msra.mxu0 0.0
      %6218 = vmatprep.subr.mxu0 0.0
      %6219 = vmatpush2.msra.mxu0 0.0
      %6220 = vmatprep.subr.mxu0 0.0
      %6221 = vmatpush2.msra.mxu0 0.0
      %6222 = vmatprep.subr.mxu0 0.0
      %6223 = vmatpush2.msra.mxu0 0.0
      %6224 = vmatprep.subr.mxu0 0.0
      %6225 = vmatpush2.msra.mxu0 0.0
      %6226 = vmatprep.subr.mxu0 0.0
      %6227 = vmatpush2.msra.mxu0 0.0
      %6228 = vmatprep.subr.mxu0 0.0
      %6229 = vmatpush2.msra.mxu0 0.0
      %6230 = vmatprep.subr.mxu0 0.0
      %6231 = vmatpush2.msra.mxu0 0.0
      %6232 = vmatprep.subr.mxu0 0.0
      %6233 = vmatpush2.msra.mxu0 0.0
      %6234 = vmatprep.subr.mxu0 0.0
      %6235 = vmatpush2.msra.mxu0 0.0
      %6236 = vmatprep.subr.mxu0 0.0
      %6237 = vmatpush2.msra.mxu0 0.0
      %6238 = vmatprep.subr.mxu0 0.0
      %6239 = vmatpush2.msra.mxu0 0.0
      %6240 = vmatprep.subr.mxu0 0.0
      %6241 = vmatpush2.msra.mxu0 0.0
      %6242 = vmatprep.subr.mxu0 0.0
      %6243 = vmatpush2.msra.mxu0 0.0
      %6244 = vmatprep.mubr.f32.mxu0 0.0
      %v6245 = vand.u32 %v6170, 4294901760
      %v6246 = vsub.f32 %v6170, %v6245
      %v6247 = vand.u32 %v6246, 4294901760
      %v6248 = vsub.f32 %v6246, %v6247
      %v6249 = vand.u32 %v6248, 4294901760
      %6250 = vmatmul.mubr.f32.gmra.mxu0 %v6249
      %v6251 = vpop.f32.mrf.mxu0
      %v6252 = vadd.f32 0.0, %v6251
      %v6253 = vpop.f32.mrf.mxu0
      %v6254 = vadd.f32 0.0, %v6253
      %6255 = vdwg.mxu0
      %6256 = vmatprep.subr.mxu0 0.0
      %6257 = vmatpush1.msra.mxu0 0.0
      %6258 = vmatprep.subr.mxu0 0.0
      %6259 = vmatpush1.msra.mxu0 0.0
      %6260 = vmatprep.subr.mxu0 0.0
      %6261 = vmatpush1.msra.mxu0 0.0
      %6262 = vmatprep.subr.mxu0 0.0
      %6263 = vmatpush1.msra.mxu0 0.0
      %6264 = vmatprep.subr.mxu0 0.0
      %6265 = vmatpush1.msra.mxu0 0.0
      %6266 = vmatprep.subr.mxu0 0.0
      %6267 = vmatpush1.msra.mxu0 0.0
      %6268 = vmatprep.subr.mxu0 0.0
      %6269 = vmatpush1.msra.mxu0 0.0
      %6270 = vmatprep.subr.mxu0 0.0
      %6271 = vmatpush1.msra.mxu0 0.0
      %6272 = vmatprep.subr.mxu0 0.0
      %6273 = vmatpush1.msra.mxu0 0.0
      %6274 = vmatprep.subr.mxu0 0.0
      %6275 = vmatpush1.msra.mxu0 0.0
      %6276 = vmatprep.subr.mxu0 0.0
      %6277 = vmatpush1.msra.mxu0 0.0
      %6278 = vmatprep.subr.mxu0 0.0
      %6279 = vmatpush1.msra.mxu0 0.0
      %v6280 = vand.u32 %v6160, 4294901760
      %v6281 = vsub.f32 %v6160, %v6280
      %v6282 = vand.u32 %v6281, 4294901760
      %v6283 = vsub.f32 %v6281, %v6282
      %v6284 = vand.u32 %v6283, 4294901760
      %6285 = vmatprep.subr.mxu0 %v6284
      %v6286 = vand.u32 %v6159, 4294901760
      %v6287 = vsub.f32 %v6159, %v6286
      %v6288 = vand.u32 %v6287, 4294901760
      %v6289 = vsub.f32 %v6287, %v6288
      %v6290 = vand.u32 %v6289, 4294901760
      %6291 = vmatpush1.msra.mxu0 %v6290
      %v6292 = vand.u32 %v6158, 4294901760
      %v6293 = vsub.f32 %v6158, %v6292
      %v6294 = vand.u32 %v6293, 4294901760
      %v6295 = vsub.f32 %v6293, %v6294
      %v6296 = vand.u32 %v6295, 4294901760
      %6297 = vmatprep.subr.mxu0 %v6296
      %v6298 = vand.u32 %v6157, 4294901760
      %v6299 = vsub.f32 %v6157, %v6298
      %v6300 = vand.u32 %v6299, 4294901760
      %v6301 = vsub.f32 %v6299, %v6300
      %v6302 = vand.u32 %v6301, 4294901760
      %6303 = vmatpush1.msra.mxu0 %v6302
      %v6304 = vand.u32 %v6156, 4294901760
      %v6305 = vsub.f32 %v6156, %v6304
      %v6306 = vand.u32 %v6305, 4294901760
      %v6307 = vsub.f32 %v6305, %v6306
      %v6308 = vand.u32 %v6307, 4294901760
      %6309 = vmatprep.subr.mxu0 %v6308
      %v6310 = vand.u32 %v6155, 4294901760
      %v6311 = vsub.f32 %v6155, %v6310
      %v6312 = vand.u32 %v6311, 4294901760
      %v6313 = vsub.f32 %v6311, %v6312
      %v6314 = vand.u32 %v6313, 4294901760
      %6315 = vmatpush1.msra.mxu0 %v6314
      %v6316 = vand.u32 %v6154, 4294901760
      %v6317 = vsub.f32 %v6154, %v6316
      %v6318 = vand.u32 %v6317, 4294901760
      %v6319 = vsub.f32 %v6317, %v6318
      %v6320 = vand.u32 %v6319, 4294901760
      %6321 = vmatprep.subr.mxu0 %v6320
      %v6322 = vand.u32 %v6153, 4294901760
      %v6323 = vsub.f32 %v6153, %v6322
      %v6324 = vand.u32 %v6323, 4294901760
      %v6325 = vsub.f32 %v6323, %v6324
      %v6326 = vand.u32 %v6325, 4294901760
      %6327 = vmatpush1.msra.mxu0 %v6326
      %6328 = vmatprep.subr.mxu0 0.0
      %6329 = vmatpush2.msra.mxu0 0.0
      %6330 = vmatprep.subr.mxu0 0.0
      %6331 = vmatpush2.msra.mxu0 0.0
      %6332 = vmatprep.subr.mxu0 0.0
      %6333 = vmatpush2.msra.mxu0 0.0
      %6334 = vmatprep.subr.mxu0 0.0
      %6335 = vmatpush2.msra.mxu0 0.0
      %6336 = vmatprep.subr.mxu0 0.0
      %6337 = vmatpush2.msra.mxu0 0.0
      %6338 = vmatprep.subr.mxu0 0.0
      %6339 = vmatpush2.msra.mxu0 0.0
      %6340 = vmatprep.subr.mxu0 0.0
      %6341 = vmatpush2.msra.mxu0 0.0
      %6342 = vmatprep.subr.mxu0 0.0
      %6343 = vmatpush2.msra.mxu0 0.0
      %6344 = vmatprep.subr.mxu0 0.0
      %6345 = vmatpush2.msra.mxu0 0.0
      %6346 = vmatprep.subr.mxu0 0.0
      %6347 = vmatpush2.msra.mxu0 0.0
      %6348 = vmatprep.subr.mxu0 0.0
      %6349 = vmatpush2.msra.mxu0 0.0
      %6350 = vmatprep.subr.mxu0 0.0
      %6351 = vmatpush2.msra.mxu0 0.0
      %6352 = vmatprep.subr.mxu0 0.0
      %6353 = vmatpush2.msra.mxu0 0.0
      %6354 = vmatprep.subr.mxu0 0.0
      %6355 = vmatpush2.msra.mxu0 0.0
      %6356 = vmatprep.subr.mxu0 0.0
      %6357 = vmatpush2.msra.mxu0 0.0
      %6358 = vmatprep.subr.mxu0 0.0
      %6359 = vmatpush2.msra.mxu0 0.0
      %6360 = vmatprep.mubr.f32.mxu0 0.0
      %v6361 = vand.u32 %v6170, 4294901760
      %6362 = vmatmul.mubr.f32.gmra.mxu0 %v6361
      %v6363 = vpop.f32.mrf.mxu0
      %v6364 = vadd.f32 %v6252, %v6363
      %v6365 = vpop.f32.mrf.mxu0
      %v6366 = vadd.f32 %v6254, %v6365
      %6367 = vdwg.mxu0
      %6368 = vmatprep.subr.mxu0 0.0
      %6369 = vmatpush1.msra.mxu0 0.0
      %6370 = vmatprep.subr.mxu0 0.0
      %6371 = vmatpush1.msra.mxu0 0.0
      %6372 = vmatprep.subr.mxu0 0.0
      %6373 = vmatpush1.msra.mxu0 0.0
      %6374 = vmatprep.subr.mxu0 0.0
      %6375 = vmatpush1.msra.mxu0 0.0
      %6376 = vmatprep.subr.mxu0 0.0
      %6377 = vmatpush1.msra.mxu0 0.0
      %6378 = vmatprep.subr.mxu0 0.0
      %6379 = vmatpush1.msra.mxu0 0.0
      %6380 = vmatprep.subr.mxu0 0.0
      %6381 = vmatpush1.msra.mxu0 0.0
      %6382 = vmatprep.subr.mxu0 0.0
      %6383 = vmatpush1.msra.mxu0 0.0
      %6384 = vmatprep.subr.mxu0 0.0
      %6385 = vmatpush1.msra.mxu0 0.0
      %6386 = vmatprep.subr.mxu0 0.0
      %6387 = vmatpush1.msra.mxu0 0.0
      %6388 = vmatprep.subr.mxu0 0.0
      %6389 = vmatpush1.msra.mxu0 0.0
      %6390 = vmatprep.subr.mxu0 0.0
      %6391 = vmatpush1.msra.mxu0 0.0
      %v6392 = vand.u32 %v6160, 4294901760
      %v6393 = vsub.f32 %v6160, %v6392
      %6394 = vmatprep.subr.mxu0 %v6393
      %v6395 = vand.u32 %v6159, 4294901760
      %v6396 = vsub.f32 %v6159, %v6395
      %6397 = vmatpush1.msra.mxu0 %v6396
      %v6398 = vand.u32 %v6158, 4294901760
      %v6399 = vsub.f32 %v6158, %v6398
      %6400 = vmatprep.subr.mxu0 %v6399
      %v6401 = vand.u32 %v6157, 4294901760
      %v6402 = vsub.f32 %v6157, %v6401
      %6403 = vmatpush1.msra.mxu0 %v6402
      %v6404 = vand.u32 %v6156, 4294901760
      %v6405 = vsub.f32 %v6156, %v6404
      %6406 = vmatprep.subr.mxu0 %v6405
      %v6407 = vand.u32 %v6155, 4294901760
      %v6408 = vsub.f32 %v6155, %v6407
      %6409 = vmatpush1.msra.mxu0 %v6408
      %v6410 = vand.u32 %v6154, 4294901760
      %v6411 = vsub.f32 %v6154, %v6410
      %6412 = vmatprep.subr.mxu0 %v6411
      %v6413 = vand.u32 %v6153, 4294901760
      %v6414 = vsub.f32 %v6153, %v6413
      %6415 = vmatpush1.msra.mxu0 %v6414
      %6416 = vmatprep.subr.mxu0 0.0
      %6417 = vmatpush2.msra.mxu0 0.0
      %6418 = vmatprep.subr.mxu0 0.0
      %6419 = vmatpush2.msra.mxu0 0.0
      %6420 = vmatprep.subr.mxu0 0.0
      %6421 = vmatpush2.msra.mxu0 0.0
      %6422 = vmatprep.subr.mxu0 0.0
      %6423 = vmatpush2.msra.mxu0 0.0
      %6424 = vmatprep.subr.mxu0 0.0
      %6425 = vmatpush2.msra.mxu0 0.0
      %6426 = vmatprep.subr.mxu0 0.0
      %6427 = vmatpush2.msra.mxu0 0.0
      %6428 = vmatprep.subr.mxu0 0.0
      %6429 = vmatpush2.msra.mxu0 0.0
      %6430 = vmatprep.subr.mxu0 0.0
      %6431 = vmatpush2.msra.mxu0 0.0
      %6432 = vmatprep.subr.mxu0 0.0
      %6433 = vmatpush2.msra.mxu0 0.0
      %6434 = vmatprep.subr.mxu0 0.0
      %6435 = vmatpush2.msra.mxu0 0.0
      %6436 = vmatprep.subr.mxu0 0.0
      %6437 = vmatpush2.msra.mxu0 0.0
      %6438 = vmatprep.subr.mxu0 0.0
      %6439 = vmatpush2.msra.mxu0 0.0
      %6440 = vmatprep.subr.mxu0 0.0
      %6441 = vmatpush2.msra.mxu0 0.0
      %6442 = vmatprep.subr.mxu0 0.0
      %6443 = vmatpush2.msra.mxu0 0.0
      %6444 = vmatprep.subr.mxu0 0.0
      %6445 = vmatpush2.msra.mxu0 0.0
      %6446 = vmatprep.subr.mxu0 0.0
      %6447 = vmatpush2.msra.mxu0 0.0
      %6448 = vmatprep.mubr.f32.mxu0 0.0
      %v6449 = vand.u32 %v6170, 4294901760
      %v6450 = vsub.f32 %v6170, %v6449
      %6451 = vmatmul.mubr.f32.gmra.mxu0 %v6450
      %v6452 = vpop.f32.mrf.mxu0
      %v6453 = vadd.f32 %v6364, %v6452
      %v6454 = vpop.f32.mrf.mxu0
      %v6455 = vadd.f32 %v6366, %v6454
      %6456 = vdwg.mxu0
      %6457 = vmatprep.subr.mxu0 0.0
      %6458 = vmatpush1.msra.mxu0 0.0
      %6459 = vmatprep.subr.mxu0 0.0
      %6460 = vmatpush1.msra.mxu0 0.0
      %6461 = vmatprep.subr.mxu0 0.0
      %6462 = vmatpush1.msra.mxu0 0.0
      %6463 = vmatprep.subr.mxu0 0.0
      %6464 = vmatpush1.msra.mxu0 0.0
      %6465 = vmatprep.subr.mxu0 0.0
      %6466 = vmatpush1.msra.mxu0 0.0
      %6467 = vmatprep.subr.mxu0 0.0
      %6468 = vmatpush1.msra.mxu0 0.0
      %6469 = vmatprep.subr.mxu0 0.0
      %6470 = vmatpush1.msra.mxu0 0.0
      %6471 = vmatprep.subr.mxu0 0.0
      %6472 = vmatpush1.msra.mxu0 0.0
      %6473 = vmatprep.subr.mxu0 0.0
      %6474 = vmatpush1.msra.mxu0 0.0
      %6475 = vmatprep.subr.mxu0 0.0
      %6476 = vmatpush1.msra.mxu0 0.0
      %6477 = vmatprep.subr.mxu0 0.0
      %6478 = vmatpush1.msra.mxu0 0.0
      %6479 = vmatprep.subr.mxu0 0.0
      %6480 = vmatpush1.msra.mxu0 0.0
      %v6481 = vand.u32 %v6160, 4294901760
      %6482 = vmatprep.subr.mxu0 %v6481
      %v6483 = vand.u32 %v6159, 4294901760
      %6484 = vmatpush1.msra.mxu0 %v6483
      %v6485 = vand.u32 %v6158, 4294901760
      %6486 = vmatprep.subr.mxu0 %v6485
      %v6487 = vand.u32 %v6157, 4294901760
      %6488 = vmatpush1.msra.mxu0 %v6487
      %v6489 = vand.u32 %v6156, 4294901760
      %6490 = vmatprep.subr.mxu0 %v6489
      %v6491 = vand.u32 %v6155, 4294901760
      %6492 = vmatpush1.msra.mxu0 %v6491
      %v6493 = vand.u32 %v6154, 4294901760
      %6494 = vmatprep.subr.mxu0 %v6493
      %v6495 = vand.u32 %v6153, 4294901760
      %6496 = vmatpush1.msra.mxu0 %v6495
      %6497 = vmatprep.subr.mxu0 0.0
      %6498 = vmatpush2.msra.mxu0 0.0
      %6499 = vmatprep.subr.mxu0 0.0
      %6500 = vmatpush2.msra.mxu0 0.0
      %6501 = vmatprep.subr.mxu0 0.0
      %6502 = vmatpush2.msra.mxu0 0.0
      %6503 = vmatprep.subr.mxu0 0.0
      %6504 = vmatpush2.msra.mxu0 0.0
      %6505 = vmatprep.subr.mxu0 0.0
      %6506 = vmatpush2.msra.mxu0 0.0
      %6507 = vmatprep.subr.mxu0 0.0
      %6508 = vmatpush2.msra.mxu0 0.0
      %6509 = vmatprep.subr.mxu0 0.0
      %6510 = vmatpush2.msra.mxu0 0.0
      %6511 = vmatprep.subr.mxu0 0.0
      %6512 = vmatpush2.msra.mxu0 0.0
      %6513 = vmatprep.subr.mxu0 0.0
      %6514 = vmatpush2.msra.mxu0 0.0
      %6515 = vmatprep.subr.mxu0 0.0
      %6516 = vmatpush2.msra.mxu0 0.0
      %6517 = vmatprep.subr.mxu0 0.0
      %6518 = vmatpush2.msra.mxu0 0.0
      %6519 = vmatprep.subr.mxu0 0.0
      %6520 = vmatpush2.msra.mxu0 0.0
      %6521 = vmatprep.subr.mxu0 0.0
      %6522 = vmatpush2.msra.mxu0 0.0
      %6523 = vmatprep.subr.mxu0 0.0
      %6524 = vmatpush2.msra.mxu0 0.0
      %6525 = vmatprep.subr.mxu0 0.0
      %6526 = vmatpush2.msra.mxu0 0.0
      %6527 = vmatprep.subr.mxu0 0.0
      %6528 = vmatpush2.msra.mxu0 0.0
      %6529 = vmatprep.mubr.f32.mxu0 0.0
      %v6530 = vand.u32 %v6170, 4294901760
      %v6531 = vsub.f32 %v6170, %v6530
      %v6532 = vand.u32 %v6531, 4294901760
      %6533 = vmatmul.mubr.f32.gmra.mxu0 %v6532
      %v6534 = vpop.f32.mrf.mxu0
      %v6535 = vadd.f32 %v6453, %v6534
      %v6536 = vpop.f32.mrf.mxu0
      %v6537 = vadd.f32 %v6455, %v6536
      %6538 = vdwg.mxu0
      %6539 = vmatprep.subr.mxu0 0.0
      %6540 = vmatpush1.msra.mxu0 0.0
      %6541 = vmatprep.subr.mxu0 0.0
      %6542 = vmatpush1.msra.mxu0 0.0
      %6543 = vmatprep.subr.mxu0 0.0
      %6544 = vmatpush1.msra.mxu0 0.0
      %6545 = vmatprep.subr.mxu0 0.0
      %6546 = vmatpush1.msra.mxu0 0.0
      %6547 = vmatprep.subr.mxu0 0.0
      %6548 = vmatpush1.msra.mxu0 0.0
      %6549 = vmatprep.subr.mxu0 0.0
      %6550 = vmatpush1.msra.mxu0 0.0
      %6551 = vmatprep.subr.mxu0 0.0
      %6552 = vmatpush1.msra.mxu0 0.0
      %6553 = vmatprep.subr.mxu0 0.0
      %6554 = vmatpush1.msra.mxu0 0.0
      %6555 = vmatprep.subr.mxu0 0.0
      %6556 = vmatpush1.msra.mxu0 0.0
      %6557 = vmatprep.subr.mxu0 0.0
      %6558 = vmatpush1.msra.mxu0 0.0
      %6559 = vmatprep.subr.mxu0 0.0
      %6560 = vmatpush1.msra.mxu0 0.0
      %6561 = vmatprep.subr.mxu0 0.0
      %6562 = vmatpush1.msra.mxu0 0.0
      %v6563 = vand.u32 %v6160, 4294901760
      %v6564 = vsub.f32 %v6160, %v6563
      %v6565 = vand.u32 %v6564, 4294901760
      %6566 = vmatprep.subr.mxu0 %v6565
      %v6567 = vand.u32 %v6159, 4294901760
      %v6568 = vsub.f32 %v6159, %v6567
      %v6569 = vand.u32 %v6568, 4294901760
      %6570 = vmatpush1.msra.mxu0 %v6569
      %v6571 = vand.u32 %v6158, 4294901760
      %v6572 = vsub.f32 %v6158, %v6571
      %v6573 = vand.u32 %v6572, 4294901760
      %6574 = vmatprep.subr.mxu0 %v6573
      %v6575 = vand.u32 %v6157, 4294901760
      %v6576 = vsub.f32 %v6157, %v6575
      %v6577 = vand.u32 %v6576, 4294901760
      %6578 = vmatpush1.msra.mxu0 %v6577
      %v6579 = vand.u32 %v6156, 4294901760
      %v6580 = vsub.f32 %v6156, %v6579
      %v6581 = vand.u32 %v6580, 4294901760
      %6582 = vmatprep.subr.mxu0 %v6581
      %v6583 = vand.u32 %v6155, 4294901760
      %v6584 = vsub.f32 %v6155, %v6583
      %v6585 = vand.u32 %v6584, 4294901760
      %6586 = vmatpush1.msra.mxu0 %v6585
      %v6587 = vand.u32 %v6154, 4294901760
      %v6588 = vsub.f32 %v6154, %v6587
      %v6589 = vand.u32 %v6588, 4294901760
      %6590 = vmatprep.subr.mxu0 %v6589
      %v6591 = vand.u32 %v6153, 4294901760
      %v6592 = vsub.f32 %v6153, %v6591
      %v6593 = vand.u32 %v6592, 4294901760
      %6594 = vmatpush1.msra.mxu0 %v6593
      %6595 = vmatprep.subr.mxu0 0.0
      %6596 = vmatpush2.msra.mxu0 0.0
      %6597 = vmatprep.subr.mxu0 0.0
      %6598 = vmatpush2.msra.mxu0 0.0
      %6599 = vmatprep.subr.mxu0 0.0
      %6600 = vmatpush2.msra.mxu0 0.0
      %6601 = vmatprep.subr.mxu0 0.0
      %6602 = vmatpush2.msra.mxu0 0.0
      %6603 = vmatprep.subr.mxu0 0.0
      %6604 = vmatpush2.msra.mxu0 0.0
      %6605 = vmatprep.subr.mxu0 0.0
      %6606 = vmatpush2.msra.mxu0 0.0
      %6607 = vmatprep.subr.mxu0 0.0
      %6608 = vmatpush2.msra.mxu0 0.0
      %6609 = vmatprep.subr.mxu0 0.0
      %6610 = vmatpush2.msra.mxu0 0.0
      %6611 = vmatprep.subr.mxu0 0.0
      %6612 = vmatpush2.msra.mxu0 0.0
      %6613 = vmatprep.subr.mxu0 0.0
      %6614 = vmatpush2.msra.mxu0 0.0
      %6615 = vmatprep.subr.mxu0 0.0
      %6616 = vmatpush2.msra.mxu0 0.0
      %6617 = vmatprep.subr.mxu0 0.0
      %6618 = vmatpush2.msra.mxu0 0.0
      %6619 = vmatprep.subr.mxu0 0.0
      %6620 = vmatpush2.msra.mxu0 0.0
      %6621 = vmatprep.subr.mxu0 0.0
      %6622 = vmatpush2.msra.mxu0 0.0
      %6623 = vmatprep.subr.mxu0 0.0
      %6624 = vmatpush2.msra.mxu0 0.0
      %6625 = vmatprep.subr.mxu0 0.0
      %6626 = vmatpush2.msra.mxu0 0.0
      %6627 = vmatprep.mubr.f32.mxu0 0.0
      %v6628 = vand.u32 %v6170, 4294901760
      %6629 = vmatmul.mubr.f32.gmra.mxu0 %v6628
      %v6630 = vpop.f32.mrf.mxu0
      %v6631 = vadd.f32 %v6535, %v6630
      %v6632 = vpop.f32.mrf.mxu0
      %v6633 = vadd.f32 %v6537, %v6632
      %6634 = vdwg.mxu0
      %6635 = vmatprep.subr.mxu0 0.0
      %6636 = vmatpush1.msra.mxu0 0.0
      %6637 = vmatprep.subr.mxu0 0.0
      %6638 = vmatpush1.msra.mxu0 0.0
      %6639 = vmatprep.subr.mxu0 0.0
      %6640 = vmatpush1.msra.mxu0 0.0
      %6641 = vmatprep.subr.mxu0 0.0
      %6642 = vmatpush1.msra.mxu0 0.0
      %6643 = vmatprep.subr.mxu0 0.0
      %6644 = vmatpush1.msra.mxu0 0.0
      %6645 = vmatprep.subr.mxu0 0.0
      %6646 = vmatpush1.msra.mxu0 0.0
      %6647 = vmatprep.subr.mxu0 0.0
      %6648 = vmatpush1.msra.mxu0 0.0
      %6649 = vmatprep.subr.mxu0 0.0
      %6650 = vmatpush1.msra.mxu0 0.0
      %6651 = vmatprep.subr.mxu0 0.0
      %6652 = vmatpush1.msra.mxu0 0.0
      %6653 = vmatprep.subr.mxu0 0.0
      %6654 = vmatpush1.msra.mxu0 0.0
      %6655 = vmatprep.subr.mxu0 0.0
      %6656 = vmatpush1.msra.mxu0 0.0
      %6657 = vmatprep.subr.mxu0 0.0
      %6658 = vmatpush1.msra.mxu0 0.0
      %v6659 = vand.u32 %v6160, 4294901760
      %6660 = vmatprep.subr.mxu0 %v6659
      %v6661 = vand.u32 %v6159, 4294901760
      %6662 = vmatpush1.msra.mxu0 %v6661
      %v6663 = vand.u32 %v6158, 4294901760
      %6664 = vmatprep.subr.mxu0 %v6663
      %v6665 = vand.u32 %v6157, 4294901760
      %6666 = vmatpush1.msra.mxu0 %v6665
      %v6667 = vand.u32 %v6156, 4294901760
      %6668 = vmatprep.subr.mxu0 %v6667
      %v6669 = vand.u32 %v6155, 4294901760
      %6670 = vmatpush1.msra.mxu0 %v6669
      %v6671 = vand.u32 %v6154, 4294901760
      %6672 = vmatprep.subr.mxu0 %v6671
      %v6673 = vand.u32 %v6153, 4294901760
      %6674 = vmatpush1.msra.mxu0 %v6673
      %6675 = vmatprep.subr.mxu0 0.0
      %6676 = vmatpush2.msra.mxu0 0.0
      %6677 = vmatprep.subr.mxu0 0.0
      %6678 = vmatpush2.msra.mxu0 0.0
      %6679 = vmatprep.subr.mxu0 0.0
      %6680 = vmatpush2.msra.mxu0 0.0
      %6681 = vmatprep.subr.mxu0 0.0
      %6682 = vmatpush2.msra.mxu0 0.0
      %6683 = vmatprep.subr.mxu0 0.0
      %6684 = vmatpush2.msra.mxu0 0.0
      %6685 = vmatprep.subr.mxu0 0.0
      %6686 = vmatpush2.msra.mxu0 0.0
      %6687 = vmatprep.subr.mxu0 0.0
      %6688 = vmatpush2.msra.mxu0 0.0
      %6689 = vmatprep.subr.mxu0 0.0
      %6690 = vmatpush2.msra.mxu0 0.0
      %6691 = vmatprep.subr.mxu0 0.0
      %6692 = vmatpush2.msra.mxu0 0.0
      %6693 = vmatprep.subr.mxu0 0.0
      %6694 = vmatpush2.msra.mxu0 0.0
      %6695 = vmatprep.subr.mxu0 0.0
      %6696 = vmatpush2.msra.mxu0 0.0
      %6697 = vmatprep.subr.mxu0 0.0
      %6698 = vmatpush2.msra.mxu0 0.0
      %6699 = vmatprep.subr.mxu0 0.0
      %6700 = vmatpush2.msra.mxu0 0.0
      %6701 = vmatprep.subr.mxu0 0.0
      %6702 = vmatpush2.msra.mxu0 0.0
      %6703 = vmatprep.subr.mxu0 0.0
      %6704 = vmatpush2.msra.mxu0 0.0
      %6705 = vmatprep.subr.mxu0 0.0
      %6706 = vmatpush2.msra.mxu0 0.0
      %6707 = vmatprep.mubr.f32.mxu0 0.0
      %v6708 = vand.u32 %v6170, 4294901760
      %6709 = vmatmul.mubr.f32.gmra.mxu0 %v6708
      %v6710 = vpop.f32.mrf.mxu0
      %v6711 = vadd.f32 %v6631, %v6710
      %v6712 = vpop.f32.mrf.mxu0
      %v6713 = vadd.f32 %v6633, %v6712
      %6714 = vdwg.mxu0
      %s6715 = scalar_lea.vmem %s2, 16
      %v6716 = vld [vmem:[%s6715] ss:$8 sm:$0x3]
      %v6718 = vlaneseq
      %v6719 = vshrl.u32 %v6718, 7
      %v6720 = vsub.s32 0, %v6719
      %v6721 = vrot.slane %v6716, %v6720
      %v6722 = vlaneseq
      %v6723 = vshrl.u32 %v6722, 7
      %v6724 = vsub.s32 1, %v6723
      %v6725 = vrot.slane %v6716, %v6724
      %v6728 = vmul.f32 %v6711, %v6721
      %v6729 = vmul.f32 %v6713, %v6725
      %v6730 = vadd.f32 %v6124, %v6728
      %v6731 = vadd.f32 %v6125, %v6729
      %v6732 = vld [vmem:[%s6] sm:$0xf]
      %6734 = vset.pattern.permute.xlu0 0
      %6735 = vperm.xlu0 %6734, %v6732
      %v6736 = vpop.permute.xlu0 %6735
      %v6738 = vadd.f32 %v6730, %v6736
      %v6739 = vadd.f32 %v6731, %v6736
      %vm6740 = vcmask 1043456
      %v6741 = vsel %vm6740, %v6738, -inf
      %v6742 = vrot.slane %v6741, 4
      %v6743 = vmax.f32 %v6741, %v6742
      %v6744 = vrot.slane %v6743, 2
      %v6745 = vmax.f32 %v6743, %v6744
      %v6746 = vrot.slane %v6745, 1
      %v6747 = vmax.f32 %v6745, %v6746
      %v6748 = vsel %vm6740, %v6739, -inf
      %v6749 = vrot.slane %v6748, 4
      %v6750 = vmax.f32 %v6748, %v6749
      %v6751 = vrot.slane %v6750, 2
      %v6752 = vmax.f32 %v6750, %v6751
      %v6753 = vrot.slane %v6752, 1
      %v6754 = vmax.f32 %v6752, %v6753
      %v6755 = vsub.f32 %v6738, %v6747
      %v6756 = vsub.f32 %v6739, %v6754
      %v6757 = vmul.f32 %v6755, 1.442695
      %v6758 = vpow.pop %v6757
      %v6759 = vmul.f32 %v6756, 1.442695
      %v6760 = vpow.pop %v6759
      %v6761 = vsel %vm6740, %v6758, 0.0
      %v6762 = vrot.slane %v6761, 4
      %v6763 = vadd.f32 %v6761, %v6762
      %v6764 = vrot.slane %v6763, 2
      %v6765 = vadd.f32 %v6763, %v6764
      %v6766 = vrot.slane %v6765, 1
      %v6767 = vadd.f32 %v6765, %v6766
      %v6768 = vsel %vm6740, %v6760, 0.0
      %v6769 = vrot.slane %v6768, 4
      %v6770 = vadd.f32 %v6768, %v6769
      %v6771 = vrot.slane %v6770, 2
      %v6772 = vadd.f32 %v6770, %v6771
      %v6773 = vrot.slane %v6772, 1
      %v6774 = vadd.f32 %v6772, %v6773
      %v6775 = vrcp.pop %v6767
      %v6776 = vmul.f32 %v6758, %v6775
      %v6777 = vrcp.pop %v6774
      %v6778 = vmul.f32 %v6760, %v6777
      %v6779 = vld [vmem:[%s292] sm:$0xff]
      %v6782 = vcombine.low %v6776, %v6778
      %v6784 = vmul.f32 %v6779, %v6782
      %v6786 = vcombine.high %v6784, %v6784
      %v6788 = vsel %vm6740, %v6784, 0.0
      %v6789 = vrot.slane %v6788, 4
      %v6790 = vadd.f32 %v6788, %v6789
      %v6791 = vrot.slane %v6790, 2
      %v6792 = vadd.f32 %v6790, %v6791
      %v6793 = vrot.slane %v6792, 1
      %v6794 = vadd.f32 %v6792, %v6793
      %v6795 = vsel %vm6740, %v6786, 0.0
      %v6796 = vrot.slane %v6795, 4
      %v6797 = vadd.f32 %v6795, %v6796
      %v6798 = vrot.slane %v6797, 2
      %v6799 = vadd.f32 %v6797, %v6798
      %v6800 = vrot.slane %v6799, 1
      %v6801 = vadd.f32 %v6799, %v6800
      %v6804 = vcombine.low %v6794, %v6801
      %v6806 = vunpack.c.l.s4 1966171168
      %v6807 = vunpack.c.0.s8 %v6806
      %v6808 = vlaneseq
      %v6809 = vshrl.u32 %v6808, 7
      %v6810 = vsub.s32 %v6807, %v6809
      %v6811 = vrot.slane %v6804, %v6810
      %v6813 = vunpack.c.l.s4 1966171168
      %v6814 = vunpack.c.0.s8 %v6813
      %v6815 = vlaneseq
      %v6816 = vshrl.u32 %v6815, 7
      %v6817 = vsub.s32 %v6814, %v6816
      %v6818 = vrot.slane %v6811, %v6817
      %v6820 = vlaneseq
      %vm6821 = vcmp.ge.s32.totalorder %v6820, 0
      %vm6822 = vcmp.lt.s32.totalorder %v6820, 256
      %vm6823 = vmand %vm6821, %vm6822
      %6824 = vst.msk [vmem:[%s296] sm:$0x3] %vm6823, %v6818
      %p6825 = scmp.lt.s32.totalorder %s18, 1
      %s6826 = scalar_select %p6825, %s18, 1
      %s6827 = smul.addr %s6826, 2
      %s6828 = scalar_lea.vmem %s7, %s6827
      // Predicated region
      $region49: #{cofusion_forward.1} parent=47 // pred_check
        %p6829 = pneg %p193
      $region50: #{cofusion_forward.1} parent=47 // pred_check_branch
        %6831 = sbr.rel (%p6829) target = $region52
      $region51: #{cofusion_forward.1} parent=47 // pred_region
        _
      $region52: #{cofusion_forward.1} parent=47 // pred_fallthru
        _
    $region48: #{cofusion_forward.1} parent=5 // pred_fallthru
      _
    %p6832 = scmp.le.s32.totalorder 2, %s13
    // Predicated region
    $region53: #{cofusion_forward.1} parent=5 // pred_check
      %p6833 = pneg %p6832
    $region54: #{cofusion_forward.1} parent=5 // pred_check_branch
      %6835 = sbr.rel (%p6833) target = $region56
    $region55: #{cofusion_forward.1} parent=5 // pred_region
      %s6836 = ssub.s32 %s13, 2
      // Predicated region
      $region57: #{cofusion_forward.1} parent=55 // pred_check
        %p6837 = pneg %p199
      $region58: #{cofusion_forward.1} parent=55 // pred_check_branch
        %6839 = sbr.rel (%p6837) target = $region60
      $region59: #{cofusion_forward.1} parent=55 // pred_region
        %p6840 = scmp.lt.s32.totalorder %s19, 1
        %s6841 = scalar_select %p6840, %s19, 1
        %s6842 = smul.addr %s6841, 2
        %s6843 = scalar_lea.vmem %s7, %s6842
      $region60: #{cofusion_forward.1} parent=55 // pred_fallthru
        _
    $region56: #{cofusion_forward.1} parent=5 // pred_fallthru
      _
  $region6: #{cofusion_forward.1} parent=0 // loop_footer
    %s17 = sadd.s32 1, %s13
  $region7: #{cofusion_forward.1} parent=0 // loop_footer_branch
    %12 = sbr.rel target = $region3
  $region8: #{cofusion_forward.1} parent=0 // loop_exit
    _

</llo_original>
